<compile_context>
chip_gen: v6e
topology: v6e:2x2x1
jax: 0.10.0
libtpu: 0.0.40
codegen_flags: <defaults>
</compile_context>

<pallas_src>
import jax
import jax.numpy as jnp
from jax.experimental import pallas as pl
from jax.experimental.pallas import tpu as pltpu

IN_DIM = 27 * 512          # 13824
H1, H2, H3 = 256, 128, 64
OUT_DIM = 41
_MAX_TB = 128              # max batch rows per grid step


def _round_up(x, m):
    return (x + m - 1) // m * m


def _mlp_kernel(x_ref, w1_ref, b1_ref, w2_ref, b2_ref, w3_ref, b3_ref,
                w4_ref, b4_ref, o_ref):
    # Flatten already happened in the wrapper (pure reshape).  Cast the
    # activation tile to bf16 here (VPU) so HBM only streams it once as f32.
    x = x_ref[...].astype(jnp.bfloat16)
    # fc1 + ReLU  (bf16 operands, f32 MXU accumulation)
    h = jnp.dot(x, w1_ref[...], preferred_element_type=jnp.float32)
    h = jnp.maximum(h + b1_ref[...], 0.0)
    # fc2 + ReLU
    h = jnp.dot(h.astype(jnp.bfloat16), w2_ref[...],
                preferred_element_type=jnp.float32)
    h = jnp.maximum(h + b2_ref[...], 0.0)
    # fc3 + ReLU
    h = jnp.dot(h.astype(jnp.bfloat16), w3_ref[...],
                preferred_element_type=jnp.float32)
    h = jnp.maximum(h + b3_ref[...], 0.0)
    # fc4 (no activation)
    out = jnp.dot(h.astype(jnp.bfloat16), w4_ref[...],
                  preferred_element_type=jnp.float32)
    o_ref[...] = (out + b4_ref[...]).astype(o_ref.dtype)


def au_encoder(x, w1, b1, w2, b2, w3, b3, w4, b4):
    """x: (B, 27, 512) or (B, 13824) f32. Weights are (in, out). Returns (B, 41) f32."""
    B = x.shape[0]
    xf = x.reshape(B, IN_DIM)          # Flatten is just a (contiguous) reshape

    # Batch tiling: pad B to a multiple of the tile, iterate tiles in the grid.
    tb = min(_MAX_TB, _round_up(B, 8))
    bp = _round_up(B, tb)
    if bp != B:
        xf = jnp.pad(xf, ((0, bp - B), (0, 0)))
    grid = (bp // tb,)

    # In production, store weights pre-cast to bf16; the cast here is a no-op
    # perf-wise once cached / jitted around.
    w1b = w1.astype(jnp.bfloat16)
    w2b = w2.astype(jnp.bfloat16)
    w3b = w3.astype(jnp.bfloat16)
    w4b = w4.astype(jnp.bfloat16)
    b1r = b1.reshape(1, H1).astype(jnp.float32)
    b2r = b2.reshape(1, H2).astype(jnp.float32)
    b3r = b3.reshape(1, H3).astype(jnp.float32)
    b4r = b4.reshape(1, OUT_DIM).astype(jnp.float32)

    flops = 2 * bp * (IN_DIM * H1 + H1 * H2 + H2 * H3 + H3 * OUT_DIM)
    bytes_accessed = (
        xf.size * 4
        + (w1b.size + w2b.size + w3b.size + w4b.size) * 2
        + (b1r.size + b2r.size + b3r.size + b4r.size) * 4
        + bp * OUT_DIM * 4
    )

    # Weights / biases: block index is always (0, 0), so Pallas loads them from
    # HBM exactly once and they stay resident in VMEM across all batch tiles.
    resident = lambda i: (0, 0)

    out = pl.pallas_call(
        _mlp_kernel,
        out_shape=jax.ShapeDtypeStruct((bp, OUT_DIM), jnp.float32),
        grid_spec=pltpu.PrefetchScalarGridSpec(
            num_scalar_prefetch=0,
            grid=grid,
            in_specs=[
                pl.BlockSpec((tb, IN_DIM), lambda i: (i, 0)),
                pl.BlockSpec((IN_DIM, H1), resident),
                pl.BlockSpec((1, H1), resident),
                pl.BlockSpec((H1, H2), resident),
                pl.BlockSpec((1, H2), resident),
                pl.BlockSpec((H2, H3), resident),
                pl.BlockSpec((1, H3), resident),
                pl.BlockSpec((H3, OUT_DIM), resident),
                pl.BlockSpec((1, OUT_DIM), resident),
            ],
            out_specs=pl.BlockSpec((tb, OUT_DIM), lambda i: (i, 0)),
        ),
        compiler_params=pltpu.CompilerParams(
            dimension_semantics=("parallel",),
            vmem_limit_bytes=40 << 20,   # fits v7x's 64 MiB physical VMEM
        ),
        cost_estimate=pl.CostEstimate(
            flops=flops, transcendentals=0, bytes_accessed=bytes_accessed),
    )(xf, w1b, b1r, w2b, b2r, w3b, b3r, w4b, b4r)

    return out[:B]


def _init_linear(key, fan_in, fan_out):
    """PyTorch-style Linear init: U(-1/sqrt(fan_in), +1/sqrt(fan_in)).
    Weight returned pre-transposed to (fan_in, fan_out)."""
    kw, kb = jax.random.split(key)
    bound = 1.0 / jnp.sqrt(jnp.float32(fan_in))
    w = jax.random.uniform(kw, (fan_in, fan_out), jnp.float32, -bound, bound)
    b = jax.random.uniform(kb, (fan_out,), jnp.float32, -bound, bound)
    return w, b


def reference(x, w1, b1, w2, b2, w3, b3, w4, b4):
    """Pure-JAX reference using the same bf16-operand / f32-accumulate recipe."""
    h = x.reshape(x.shape[0], IN_DIM).astype(jnp.bfloat16)
    h = jnp.maximum(jnp.dot(h, w1.astype(jnp.bfloat16),
                            preferred_element_type=jnp.float32) + b1, 0.0)
    h = jnp.maximum(jnp.dot(h.astype(jnp.bfloat16), w2.astype(jnp.bfloat16),
                            preferred_element_type=jnp.float32) + b2, 0.0)
    h = jnp.maximum(jnp.dot(h.astype(jnp.bfloat16), w3.astype(jnp.bfloat16),
                            preferred_element_type=jnp.float32) + b3, 0.0)
    return jnp.dot(h.astype(jnp.bfloat16), w4.astype(jnp.bfloat16),
                   preferred_element_type=jnp.float32) + b4


if __name__ == "__main__":
    key = jax.random.PRNGKey(0)
    k_x, k1, k2, k3, k4 = jax.random.split(key, 5)

    B = 8  # small batch; feature dims fixed by the module (13824 -> 256 -> 128 -> 64 -> 41)
    x = jax.random.normal(k_x, (B, 27, 512), jnp.float32)

    w1, b1 = _init_linear(k1, IN_DIM, H1)
    w2, b2 = _init_linear(k2, H1, H2)
    w3, b3 = _init_linear(k3, H2, H3)
    w4, b4 = _init_linear(k4, H3, OUT_DIM)

    out = au_encoder(x, w1, b1, w2, b2, w3, b3, w4, b4)
    out = jax.block_until_ready(out)

    ref = reference(x, w1, b1, w2, b2, w3, b3, w4, b4)
    assert out.shape == (B, OUT_DIM)
    max_err = float(jnp.max(jnp.abs(out - ref)))
    assert jnp.allclose(out, ref, atol=2e-2, rtol=2e-2), max_err

    print("KERNEL_OK")
</pallas_src>

<mosaic_0001>
module attributes {stable_mosaic.version = 11 : i64} {
  func.func @_mlp_kernel(%arg0: i32, %arg1: memref<8x13824xf32, #tpu.memory_space<vmem>>, %arg2: memref<13824x256xbf16, #tpu.memory_space<vmem>>, %arg3: memref<1x256xf32, #tpu.memory_space<vmem>>, %arg4: memref<256x128xbf16, #tpu.memory_space<vmem>>, %arg5: memref<1x128xf32, #tpu.memory_space<vmem>>, %arg6: memref<128x64xbf16, #tpu.memory_space<vmem>>, %arg7: memref<1x64xf32, #tpu.memory_space<vmem>>, %arg8: memref<64x41xbf16, #tpu.memory_space<vmem>>, %arg9: memref<1x41xf32, #tpu.memory_space<vmem>>, %arg10: memref<8x41xf32, #tpu.memory_space<vmem>>) attributes {dimension_semantics = [#tpu.dimension_semantics<parallel>], iteration_bounds = array<i64: 1>, scalar_prefetch = 0 : i64, scratch_operands = 0 : i64, tpu.core_type = #tpu.core_type<tc>, window_params = [{transform_indices = @transform_0, window_bounds = array<i64: 8, 13824>}, {pipeline_mode = #tpu.pipeline_mode<synchronous>, transform_indices = @transform_1, window_bounds = array<i64: 13824, 256>}, {pipeline_mode = #tpu.pipeline_mode<synchronous>, transform_indices = @transform_2, window_bounds = array<i64: 1, 256>}, {pipeline_mode = #tpu.pipeline_mode<synchronous>, transform_indices = @transform_3, window_bounds = array<i64: 256, 128>}, {pipeline_mode = #tpu.pipeline_mode<synchronous>, transform_indices = @transform_4, window_bounds = array<i64: 1, 128>}, {pipeline_mode = #tpu.pipeline_mode<synchronous>, transform_indices = @transform_5, window_bounds = array<i64: 128, 64>}, {pipeline_mode = #tpu.pipeline_mode<synchronous>, transform_indices = @transform_6, window_bounds = array<i64: 1, 64>}, {pipeline_mode = #tpu.pipeline_mode<synchronous>, transform_indices = @transform_7, window_bounds = array<i64: 64, 41>}, {pipeline_mode = #tpu.pipeline_mode<synchronous>, transform_indices = @transform_8, window_bounds = array<i64: 1, 41>}, {transform_indices = @transform_9, window_bounds = array<i64: 8, 41>}]} {
    %c0 = arith.constant 0 : index
    %c0_0 = arith.constant 0 : index
    %0 = vector.load %arg1[%c0, %c0_0] : memref<8x13824xf32, #tpu.memory_space<vmem>>, vector<8x13824xf32>
    %1 = arith.truncf %0 : vector<8x13824xf32> to vector<8x13824xbf16>
    %c0_1 = arith.constant 0 : index
    %c0_2 = arith.constant 0 : index
    %2 = vector.load %arg2[%c0_1, %c0_2] : memref<13824x256xbf16, #tpu.memory_space<vmem>>, vector<13824x256xbf16>
    %cst = arith.constant dense<0.000000e+00> : vector<8x256xf32>
    %3 = tpu.matmul %1, %2, %cst {dimension_numbers = #tpu.dot_dimension_numbers<[1], [0], [0], [1], [0, 0, 1, 1], [], []>} : vector<8x13824xbf16>, vector<13824x256xbf16>, vector<8x256xf32> -> vector<8x256xf32>
    %c0_3 = arith.constant 0 : index
    %c0_4 = arith.constant 0 : index
    %4 = vector.load %arg3[%c0_3, %c0_4] : memref<1x256xf32, #tpu.memory_space<vmem>>, vector<1x256xf32>
    %5 = vector.broadcast %4 : vector<1x256xf32> to vector<8x256xf32>
    %6 = arith.addf %3, %5 : vector<8x256xf32>
    %cst_5 = arith.constant 0.000000e+00 : f32
    %7 = vector.broadcast %cst_5 : f32 to vector<8x256xf32>
    %8 = arith.maximumf %6, %7 : vector<8x256xf32>
    %9 = arith.truncf %8 : vector<8x256xf32> to vector<8x256xbf16>
    %c0_6 = arith.constant 0 : index
    %c0_7 = arith.constant 0 : index
    %10 = vector.load %arg4[%c0_6, %c0_7] : memref<256x128xbf16, #tpu.memory_space<vmem>>, vector<256x128xbf16>
    %cst_8 = arith.constant dense<0.000000e+00> : vector<8x128xf32>
    %11 = tpu.matmul %9, %10, %cst_8 {dimension_numbers = #tpu.dot_dimension_numbers<[1], [0], [0], [1], [0, 0, 1, 1], [], []>} : vector<8x256xbf16>, vector<256x128xbf16>, vector<8x128xf32> -> vector<8x128xf32>
    %c0_9 = arith.constant 0 : index
    %c0_10 = arith.constant 0 : index
    %12 = vector.load %arg5[%c0_9, %c0_10] : memref<1x128xf32, #tpu.memory_space<vmem>>, vector<1x128xf32>
    %13 = vector.broadcast %12 : vector<1x128xf32> to vector<8x128xf32>
    %14 = arith.addf %11, %13 : vector<8x128xf32>
    %cst_11 = arith.constant 0.000000e+00 : f32
    %15 = vector.broadcast %cst_11 : f32 to vector<8x128xf32>
    %16 = arith.maximumf %14, %15 : vector<8x128xf32>
    %17 = arith.truncf %16 : vector<8x128xf32> to vector<8x128xbf16>
    %c0_12 = arith.constant 0 : index
    %c0_13 = arith.constant 0 : index
    %18 = vector.load %arg6[%c0_12, %c0_13] : memref<128x64xbf16, #tpu.memory_space<vmem>>, vector<128x64xbf16>
    %cst_14 = arith.constant dense<0.000000e+00> : vector<8x64xf32>
    %19 = tpu.matmul %17, %18, %cst_14 {dimension_numbers = #tpu.dot_dimension_numbers<[1], [0], [0], [1], [0, 0, 1, 1], [], []>} : vector<8x128xbf16>, vector<128x64xbf16>, vector<8x64xf32> -> vector<8x64xf32>
    %c0_15 = arith.constant 0 : index
    %c0_16 = arith.constant 0 : index
    %20 = vector.load %arg7[%c0_15, %c0_16] : memref<1x64xf32, #tpu.memory_space<vmem>>, vector<1x64xf32>
    %21 = vector.broadcast %20 : vector<1x64xf32> to vector<8x64xf32>
    %22 = arith.addf %19, %21 : vector<8x64xf32>
    %cst_17 = arith.constant 0.000000e+00 : f32
    %23 = vector.broadcast %cst_17 : f32 to vector<8x64xf32>
    %24 = arith.maximumf %22, %23 : vector<8x64xf32>
    %25 = arith.truncf %24 : vector<8x64xf32> to vector<8x64xbf16>
    %c0_18 = arith.constant 0 : index
    %c0_19 = arith.constant 0 : index
    %26 = vector.load %arg8[%c0_18, %c0_19] : memref<64x41xbf16, #tpu.memory_space<vmem>>, vector<64x41xbf16>
    %cst_20 = arith.constant dense<0.000000e+00> : vector<8x41xf32>
    %27 = tpu.matmul %25, %26, %cst_20 {dimension_numbers = #tpu.dot_dimension_numbers<[1], [0], [0], [1], [0, 0, 1, 1], [], []>} : vector<8x64xbf16>, vector<64x41xbf16>, vector<8x41xf32> -> vector<8x41xf32>
    %c0_21 = arith.constant 0 : index
    %c0_22 = arith.constant 0 : index
    %28 = vector.load %arg9[%c0_21, %c0_22] : memref<1x41xf32, #tpu.memory_space<vmem>>, vector<1x41xf32>
    %29 = vector.broadcast %28 : vector<1x41xf32> to vector<8x41xf32>
    %30 = arith.addf %27, %29 : vector<8x41xf32>
    %c0_23 = arith.constant 0 : index
    %c0_24 = arith.constant 0 : index
    %31 = vector.load %arg10[%c0_23, %c0_24] : memref<8x41xf32, #tpu.memory_space<vmem>>, vector<8x41xf32>
    tpu.vector_store %arg10[%c0_23, %c0_24], %30 {strides = array<i32>} : memref<8x41xf32, #tpu.memory_space<vmem>>, vector<8x41xf32>,
    return
  }
  func.func @transform_0(%arg0: i32) -> (i32, i32) {
    %c0_i32 = arith.constant 0 : i32
    %c0_i32_0 = arith.constant 0 : i32
    return %arg0, %c0_i32 : i32, i32
  }
  func.func @transform_1(%arg0: i32) -> (i32, i32) {
    %c0_i32 = arith.constant 0 : i32
    %c0_i32_0 = arith.constant 0 : i32
    %c0_i32_1 = arith.constant 0 : i32
    return %c0_i32, %c0_i32_0 : i32, i32
  }
  func.func @transform_2(%arg0: i32) -> (i32, i32) {
    %c0_i32 = arith.constant 0 : i32
    %c0_i32_0 = arith.constant 0 : i32
    %c0_i32_1 = arith.constant 0 : i32
    return %c0_i32, %c0_i32_0 : i32, i32
  }
  func.func @transform_3(%arg0: i32) -> (i32, i32) {
    %c0_i32 = arith.constant 0 : i32
    %c0_i32_0 = arith.constant 0 : i32
    %c0_i32_1 = arith.constant 0 : i32
    return %c0_i32, %c0_i32_0 : i32, i32
  }
  func.func @transform_4(%arg0: i32) -> (i32, i32) {
    %c0_i32 = arith.constant 0 : i32
    %c0_i32_0 = arith.constant 0 : i32
    %c0_i32_1 = arith.constant 0 : i32
    return %c0_i32, %c0_i32_0 : i32, i32
  }
  func.func @transform_5(%arg0: i32) -> (i32, i32) {
    %c0_i32 = arith.constant 0 : i32
    %c0_i32_0 = arith.constant 0 : i32
    %c0_i32_1 = arith.constant 0 : i32
    return %c0_i32, %c0_i32_0 : i32, i32
  }
  func.func @transform_6(%arg0: i32) -> (i32, i32) {
    %c0_i32 = arith.constant 0 : i32
    %c0_i32_0 = arith.constant 0 : i32
    %c0_i32_1 = arith.constant 0 : i32
    return %c0_i32, %c0_i32_0 : i32, i32
  }
  func.func @transform_7(%arg0: i32) -> (i32, i32) {
    %c0_i32 = arith.constant 0 : i32
    %c0_i32_0 = arith.constant 0 : i32
    %c0_i32_1 = arith.constant 0 : i32
    return %c0_i32, %c0_i32_0 : i32, i32
  }
  func.func @transform_8(%arg0: i32) -> (i32, i32) {
    %c0_i32 = arith.constant 0 : i32
    %c0_i32_0 = arith.constant 0 : i32
    %c0_i32_1 = arith.constant 0 : i32
    return %c0_i32, %c0_i32_0 : i32, i32
  }
  func.func @transform_9(%arg0: i32) -> (i32, i32) {
    %c0_i32 = arith.constant 0 : i32
    %c0_i32_0 = arith.constant 0 : i32
    return %arg0, %c0_i32 : i32, i32
  }
}

</mosaic_0001>

<llo_original>
// kernel: tpu_custom_call.1
$region0: #{tpu_custom_call.1}
  #allocation0 [shape = 'u32[]', space=smem, size = 0x4, offset = 0x4, fixed_abs, tag = 'smem constant byte address 0x4 - core index']
  #allocation1 [shape = 'u32[144,128]{1,0:T(1,128)}', space=vmem, size = 0x12000, scoped, tag = 'internal scratch']
  %s0 = inlined_call_operand.hbm [shape: f32[8,13824], index: 0, kind: input, shape index: {}]
  %s1 = inlined_call_operand.hbm [shape: bf16[13824,256], index: 1, kind: input, shape index: {}]
  %s2 = inlined_call_operand.hbm [shape: f32[1,256], index: 2, kind: input, shape index: {}]
  %s3 = inlined_call_operand.hbm [shape: bf16[256,128], index: 3, kind: input, shape index: {}]
  %s4 = inlined_call_operand.hbm [shape: f32[1,128], index: 4, kind: input, shape index: {}]
  %s5 = inlined_call_operand.vmem [shape: bf16[128,64], index: 5, kind: input, shape index: {}]
  %s6 = inlined_call_operand.hbm [shape: f32[1,64], index: 6, kind: input, shape index: {}]
  %s7 = inlined_call_operand.vmem [shape: bf16[64,41], index: 7, kind: input, shape index: {}]
  %s8 = inlined_call_operand.hbm [shape: f32[1,41], index: 8, kind: input, shape index: {}]
  %s9 = inlined_call_operand.hbm [shape: f32[8,41], index: 9, kind: output, shape index: {}]
  %s10 = sld [smem:[#allocation0]]
  $region74: #{tpu_custom_call.1} parent=0
    _
  %s12 = ssub.s32 1, %s10
  %s13 = scalar_select 0, %s12, %s10
  $region1: #{tpu_custom_call.1} parent=0
    #allocation2 [shape = 'u8[442368]{0}', space=vmem, size = 0x6c000, scoped, tag = 'input window, operand 0, single buffered']
    #allocation3 [shape = 's32[1]{0}', space=sflag, size = 0x4, scoped, tag = 'scoped memory for tpu_custom_call.1']
    #allocation4 [shape = 's32[1]{0}', space=sflag, size = 0x4, scoped, tag = 'scoped memory for tpu_custom_call.1']
    #allocation5 [shape = 'u8[7077888]{0}', space=vmem, size = 0x6c0000, scoped, tag = 'input window, operand 1, single buffered']
    #allocation6 [shape = 's32[1]{0}', space=sflag, size = 0x4, scoped, tag = 'scoped memory for tpu_custom_call.1']
    #allocation7 [shape = 'u8[1024]{0}', space=vmem, size = 0x400, scoped, tag = 'input window, operand 2, single buffered']
    #allocation8 [shape = 'u8[65536]{0}', space=vmem, size = 0x10000, scoped, tag = 'input window, operand 3, single buffered']
    #allocation9 [shape = 's32[1]{0}', space=sflag, size = 0x4, scoped, tag = 'scoped memory for tpu_custom_call.1']
    #allocation10 [shape = 'u8[512]{0}', space=vmem, size = 0x400, scoped, tag = 'input window, operand 4, single buffered']
    #allocation11 [shape = 'u8[512]{0}', space=vmem, size = 0x400, scoped, tag = 'input window, operand 6, single buffered']
    #allocation12 [shape = 's32[1]{0}', space=sflag, size = 0x4, scoped, tag = 'scoped memory for tpu_custom_call.1']
    #allocation13 [shape = 'u8[512]{0}', space=vmem, size = 0x400, scoped, tag = 'input window, operand 8, single buffered']
    #allocation14 [shape = 'u8[4096]{0}', space=vmem, size = 0x1000, scoped, tag = 'output window, operand 0, single buffered']
    %14 = vsyncpa [#allocation3], 0
    %15 = vsyncpa [#allocation6], 0
    %16 = vsyncpa [#allocation9], 0
    %17 = vsyncpa [#allocation12], 0
    %18 = vsyncpa [#allocation4], 0
    // Predicated region
    $region2: #{tpu_custom_call.1} parent=1 // pred_check
      _
    $region3: #{tpu_custom_call.1} parent=1 // pred_check_branch
      %20 = sbr.rel (0) target = $region5
    $region4: #{tpu_custom_call.1} parent=1 // pred_region
      %s22 = ssub.s32 13824, 13824
      %23 = vsyncadd [#allocation3], %s22
      %s25 = sshll.u32 [#allocation2], 4
      %s26 = int_to_ptr.vmem [resolvable:$true] %s25
      %28 = dma.hbm_to_vmem [thread:$0]  %s0, 13824, %s26, [#allocation3]
    $region5: #{tpu_custom_call.1} parent=1 // pred_fallthru
      _
    // Predicated region
    $region6: #{tpu_custom_call.1} parent=1 // pred_check
      _
    $region7: #{tpu_custom_call.1} parent=1 // pred_check_branch
      %30 = sbr.rel (0) target = $region9
    $region8: #{tpu_custom_call.1} parent=1 // pred_region
      %s32 = ssub.s32 221184, 221184
      %33 = vsyncadd [#allocation6], %s32
      %s34 = sshll.u32 [#allocation5], 4
      %s35 = int_to_ptr.vmem [resolvable:$true] %s34
      %40 = dma.hbm_to_vmem [thread:$0]  %s1, 221184, %s35, [#allocation6], 128, 128, 8
    $region9: #{tpu_custom_call.1} parent=1 // pred_fallthru
      _
    // Predicated region
    $region10: #{tpu_custom_call.1} parent=1 // pred_check
      _
    $region11: #{tpu_custom_call.1} parent=1 // pred_check_branch
      %42 = sbr.rel (0) target = $region13
    $region12: #{tpu_custom_call.1} parent=1 // pred_region
      %s44 = ssub.s32 32, 32
      %45 = vsyncadd [#allocation6], %s44
      %s47 = sshll.u32 [#allocation7], 4
      %s48 = int_to_ptr.vmem [resolvable:$true] %s47
      %50 = dma.hbm_to_vmem [thread:$0]  %s2, 32, %s48, [#allocation6]
    $region13: #{tpu_custom_call.1} parent=1 // pred_fallthru
      _
    // Predicated region
    $region14: #{tpu_custom_call.1} parent=1 // pred_check
      _
    $region15: #{tpu_custom_call.1} parent=1 // pred_check_branch
      %52 = sbr.rel (0) target = $region17
    $region16: #{tpu_custom_call.1} parent=1 // pred_region
      %s54 = ssub.s32 2048, 2048
      %55 = vsyncadd [#allocation9], %s54
      %s56 = sshll.u32 [#allocation8], 4
      %s57 = int_to_ptr.vmem [resolvable:$true] %s56
      %62 = dma.hbm_to_vmem [thread:$0]  %s3, 2048, %s57, [#allocation9], 64, 64, 4
    $region17: #{tpu_custom_call.1} parent=1 // pred_fallthru
      _
    // Predicated region
    $region18: #{tpu_custom_call.1} parent=1 // pred_check
      _
    $region19: #{tpu_custom_call.1} parent=1 // pred_check_branch
      %64 = sbr.rel (0) target = $region21
    $region20: #{tpu_custom_call.1} parent=1 // pred_region
      %s66 = ssub.s32 16, 16
      %67 = vsyncadd [#allocation9], %s66
      %s69 = sshll.u32 [#allocation10], 4
      %s70 = int_to_ptr.vmem [resolvable:$true] %s69
      %72 = dma.hbm_to_vmem [thread:$0]  %s4, 16, %s70, [#allocation9]
    $region21: #{tpu_custom_call.1} parent=1 // pred_fallthru
      _
    // Predicated region
    $region22: #{tpu_custom_call.1} parent=1 // pred_check
      _
    $region23: #{tpu_custom_call.1} parent=1 // pred_check_branch
      %74 = sbr.rel (0) target = $region25
    $region24: #{tpu_custom_call.1} parent=1 // pred_region
      _
    $region25: #{tpu_custom_call.1} parent=1 // pred_fallthru
      _
    // Predicated region
    $region26: #{tpu_custom_call.1} parent=1 // pred_check
      _
    $region27: #{tpu_custom_call.1} parent=1 // pred_check_branch
      %76 = sbr.rel (0) target = $region29
    $region28: #{tpu_custom_call.1} parent=1 // pred_region
      %s78 = ssub.s32 16, 16
      %79 = vsyncadd [#allocation12], %s78
      %s81 = sshll.u32 [#allocation11], 4
      %s82 = int_to_ptr.vmem [resolvable:$true] %s81
      %84 = dma.hbm_to_vmem [thread:$0]  %s6, 16, %s82, [#allocation12]
    $region29: #{tpu_custom_call.1} parent=1 // pred_fallthru
      _
    // Predicated region
    $region30: #{tpu_custom_call.1} parent=1 // pred_check
      _
    $region31: #{tpu_custom_call.1} parent=1 // pred_check_branch
      %86 = sbr.rel (0) target = $region33
    $region32: #{tpu_custom_call.1} parent=1 // pred_region
      _
    $region33: #{tpu_custom_call.1} parent=1 // pred_fallthru
      _
    // Predicated region
    $region34: #{tpu_custom_call.1} parent=1 // pred_check
      _
    $region35: #{tpu_custom_call.1} parent=1 // pred_check_branch
      %88 = sbr.rel (0) target = $region37
    $region36: #{tpu_custom_call.1} parent=1 // pred_region
      %s90 = ssub.s32 16, 16
      %91 = vsyncadd [#allocation12], %s90
      %s93 = sshll.u32 [#allocation13], 4
      %s94 = int_to_ptr.vmem [resolvable:$true] %s93
      %96 = dma.hbm_to_vmem [thread:$0]  %s8, 16, %s94, [#allocation12]
    $region37: #{tpu_custom_call.1} parent=1 // pred_fallthru
      _
    // Predicated region
    $region38: #{tpu_custom_call.1} parent=1 // pred_check
      _
    $region39: #{tpu_custom_call.1} parent=1 // pred_check_branch
      %98 = sbr.rel (0) target = $region41
    $region40: #{tpu_custom_call.1} parent=1 // pred_region
      %99 = dma.done [#allocation3], 13824
    $region41: #{tpu_custom_call.1} parent=1 // pred_fallthru
      _
    // Predicated region
    $region42: #{tpu_custom_call.1} parent=1 // pred_check
      _
    $region43: #{tpu_custom_call.1} parent=1 // pred_check_branch
      %101 = sbr.rel (0) target = $region45
    $region44: #{tpu_custom_call.1} parent=1 // pred_region
      %102 = dma.done [#allocation6], 221184
    $region45: #{tpu_custom_call.1} parent=1 // pred_fallthru
      _
    // Predicated region
    $region46: #{tpu_custom_call.1} parent=1 // pred_check
      _
    $region47: #{tpu_custom_call.1} parent=1 // pred_check_branch
      %104 = sbr.rel (0) target = $region49
    $region48: #{tpu_custom_call.1} parent=1 // pred_region
      %105 = dma.done [#allocation6], 32
    $region49: #{tpu_custom_call.1} parent=1 // pred_fallthru
      _
    // Predicated region
    $region50: #{tpu_custom_call.1} parent=1 // pred_check
      _
    $region51: #{tpu_custom_call.1} parent=1 // pred_check_branch
      %107 = sbr.rel (0) target = $region53
    $region52: #{tpu_custom_call.1} parent=1 // pred_region
      %108 = dma.done [#allocation9], 2048
    $region53: #{tpu_custom_call.1} parent=1 // pred_fallthru
      _
    // Predicated region
    $region54: #{tpu_custom_call.1} parent=1 // pred_check
      _
    $region55: #{tpu_custom_call.1} parent=1 // pred_check_branch
      %110 = sbr.rel (0) target = $region57
    $region56: #{tpu_custom_call.1} parent=1 // pred_region
      %111 = dma.done [#allocation9], 16
    $region57: #{tpu_custom_call.1} parent=1 // pred_fallthru
      _
    // Predicated region
    $region58: #{tpu_custom_call.1} parent=1 // pred_check
      _
    $region59: #{tpu_custom_call.1} parent=1 // pred_check_branch
      %113 = sbr.rel (0) target = $region61
    $region60: #{tpu_custom_call.1} parent=1 // pred_region
      %114 = dma.done [#allocation12], 16
    $region61: #{tpu_custom_call.1} parent=1 // pred_fallthru
      _
    // Predicated region
    $region62: #{tpu_custom_call.1} parent=1 // pred_check
      _
    $region63: #{tpu_custom_call.1} parent=1 // pred_check_branch
      %116 = sbr.rel (0) target = $region65
    $region64: #{tpu_custom_call.1} parent=1 // pred_region
      %117 = dma.done [#allocation12], 16
    $region65: #{tpu_custom_call.1} parent=1 // pred_fallthru
      _
    %v119 = vld [vmem:[#allocation2] sm:$0xff]
    %v120 = vld [vmem:[#allocation2 + $0x8] sm:$0xff]
    %v121 = vld [vmem:[#allocation2 + $0x10] sm:$0xff]
    %v122 = vld [vmem:[#allocation2 + $0x18] sm:$0xff]
    %v123 = vld [vmem:[#allocation2 + $0x20] sm:$0xff]
    %v124 = vld [vmem:[#allocation2 + $0x28] sm:$0xff]
    %v125 = vld [vmem:[#allocation2 + $0x30] sm:$0xff]
    %v126 = vld [vmem:[#allocation2 + $0x38] sm:$0xff]
    %v127 = vld [vmem:[#allocation2 + $0x40] sm:$0xff]
    %v128 = vld [vmem:[#allocation2 + $0x48] sm:$0xff]
    %v129 = vld [vmem:[#allocation2 + $0x50] sm:$0xff]
    %v130 = vld [vmem:[#allocation2 + $0x58] sm:$0xff]
    %v131 = vld [vmem:[#allocation2 + $0x60] sm:$0xff]
    %v132 = vld [vmem:[#allocation2 + $0x68] sm:$0xff]
    %v133 = vld [vmem:[#allocation2 + $0x70] sm:$0xff]
    %v134 = vld [vmem:[#allocation2 + $0x78] sm:$0xff]
    %v135 = vld [vmem:[#allocation2 + $0x80] sm:$0xff]
    %v136 = vld [vmem:[#allocation2 + $0x88] sm:$0xff]
    %v137 = vld [vmem:[#allocation2 + $0x90] sm:$0xff]
    %v138 = vld [vmem:[#allocation2 + $0x98] sm:$0xff]
    %v139 = vld [vmem:[#allocation2 + $0xa0] sm:$0xff]
    %v140 = vld [vmem:[#allocation2 + $0xa8] sm:$0xff]
    %v141 = vld [vmem:[#allocation2 + $0xb0] sm:$0xff]
    %v142 = vld [vmem:[#allocation2 + $0xb8] sm:$0xff]
    %v143 = vld [vmem:[#allocation2 + $0xc0] sm:$0xff]
    %v144 = vld [vmem:[#allocation2 + $0xc8] sm:$0xff]
    %v145 = vld [vmem:[#allocation2 + $0xd0] sm:$0xff]
    %v146 = vld [vmem:[#allocation2 + $0xd8] sm:$0xff]
    %v147 = vld [vmem:[#allocation2 + $0xe0] sm:$0xff]
    %v148 = vld [vmem:[#allocation2 + $0xe8] sm:$0xff]
    %v149 = vld [vmem:[#allocation2 + $0xf0] sm:$0xff]
    %v150 = vld [vmem:[#allocation2 + $0xf8] sm:$0xff]
    %v151 = vld [vmem:[#allocation2 + $0x100] sm:$0xff]
    %v152 = vld [vmem:[#allocation2 + $0x108] sm:$0xff]
    %v153 = vld [vmem:[#allocation2 + $0x110] sm:$0xff]
    %v154 = vld [vmem:[#allocation2 + $0x118] sm:$0xff]
    %v155 = vld [vmem:[#allocation2 + $0x120] sm:$0xff]
    %v156 = vld [vmem:[#allocation2 + $0x128] sm:$0xff]
    %v157 = vld [vmem:[#allocation2 + $0x130] sm:$0xff]
    %v158 = vld [vmem:[#allocation2 + $0x138] sm:$0xff]
    %v159 = vld [vmem:[#allocation2 + $0x140] sm:$0xff]
    %v160 = vld [vmem:[#allocation2 + $0x148] sm:$0xff]
    %v161 = vld [vmem:[#allocation2 + $0x150] sm:$0xff]
    %v162 = vld [vmem:[#allocation2 + $0x158] sm:$0xff]
    %v163 = vld [vmem:[#allocation2 + $0x160] sm:$0xff]
    %v164 = vld [vmem:[#allocation2 + $0x168] sm:$0xff]
    %v165 = vld [vmem:[#allocation2 + $0x170] sm:$0xff]
    %v166 = vld [vmem:[#allocation2 + $0x178] sm:$0xff]
    %v167 = vld [vmem:[#allocation2 + $0x180] sm:$0xff]
    %v168 = vld [vmem:[#allocation2 + $0x188] sm:$0xff]
    %v169 = vld [vmem:[#allocation2 + $0x190] sm:$0xff]
    %v170 = vld [vmem:[#allocation2 + $0x198] sm:$0xff]
    %v171 = vld [vmem:[#allocation2 + $0x1a0] sm:$0xff]
    %v172 = vld [vmem:[#allocation2 + $0x1a8] sm:$0xff]
    %v173 = vld [vmem:[#allocation2 + $0x1b0] sm:$0xff]
    %v174 = vld [vmem:[#allocation2 + $0x1b8] sm:$0xff]
    %v175 = vld [vmem:[#allocation2 + $0x1c0] sm:$0xff]
    %v176 = vld [vmem:[#allocation2 + $0x1c8] sm:$0xff]
    %v177 = vld [vmem:[#allocation2 + $0x1d0] sm:$0xff]
    %v178 = vld [vmem:[#allocation2 + $0x1d8] sm:$0xff]
    %v179 = vld [vmem:[#allocation2 + $0x1e0] sm:$0xff]
    %v180 = vld [vmem:[#allocation2 + $0x1e8] sm:$0xff]
    %v181 = vld [vmem:[#allocation2 + $0x1f0] sm:$0xff]
    %v182 = vld [vmem:[#allocation2 + $0x1f8] sm:$0xff]
    %v183 = vld [vmem:[#allocation2 + $0x200] sm:$0xff]
    %v184 = vld [vmem:[#allocation2 + $0x208] sm:$0xff]
    %v185 = vld [vmem:[#allocation2 + $0x210] sm:$0xff]
    %v186 = vld [vmem:[#allocation2 + $0x218] sm:$0xff]
    %v187 = vld [vmem:[#allocation2 + $0x220] sm:$0xff]
    %v188 = vld [vmem:[#allocation2 + $0x228] sm:$0xff]
    %v189 = vld [vmem:[#allocation2 + $0x230] sm:$0xff]
    %v190 = vld [vmem:[#allocation2 + $0x238] sm:$0xff]
    %v191 = vld [vmem:[#allocation2 + $0x240] sm:$0xff]
    %v192 = vld [vmem:[#allocation2 + $0x248] sm:$0xff]
    %v193 = vld [vmem:[#allocation2 + $0x250] sm:$0xff]
    %v194 = vld [vmem:[#allocation2 + $0x258] sm:$0xff]
    %v195 = vld [vmem:[#allocation2 + $0x260] sm:$0xff]
    %v196 = vld [vmem:[#allocation2 + $0x268] sm:$0xff]
    %v197 = vld [vmem:[#allocation2 + $0x270] sm:$0xff]
    %v198 = vld [vmem:[#allocation2 + $0x278] sm:$0xff]
    %v199 = vld [vmem:[#allocation2 + $0x280] sm:$0xff]
    %v200 = vld [vmem:[#allocation2 + $0x288] sm:$0xff]
    %v201 = vld [vmem:[#allocation2 + $0x290] sm:$0xff]
    %v202 = vld [vmem:[#allocation2 + $0x298] sm:$0xff]
    %v203 = vld [vmem:[#allocation2 + $0x2a0] sm:$0xff]
    %v204 = vld [vmem:[#allocation2 + $0x2a8] sm:$0xff]
    %v205 = vld [vmem:[#allocation2 + $0x2b0] sm:$0xff]
    %v206 = vld [vmem:[#allocation2 + $0x2b8] sm:$0xff]
    %v207 = vld [vmem:[#allocation2 + $0x2c0] sm:$0xff]
    %v208 = vld [vmem:[#allocation2 + $0x2c8] sm:$0xff]
    %v209 = vld [vmem:[#allocation2 + $0x2d0] sm:$0xff]
    %v210 = vld [vmem:[#allocation2 + $0x2d8] sm:$0xff]
    %v211 = vld [vmem:[#allocation2 + $0x2e0] sm:$0xff]
    %v212 = vld [vmem:[#allocation2 + $0x2e8] sm:$0xff]
    %v213 = vld [vmem:[#allocation2 + $0x2f0] sm:$0xff]
    %v214 = vld [vmem:[#allocation2 + $0x2f8] sm:$0xff]
    %v215 = vld [vmem:[#allocation2 + $0x300] sm:$0xff]
    %v216 = vld [vmem:[#allocation2 + $0x308] sm:$0xff]
    %v217 = vld [vmem:[#allocation2 + $0x310] sm:$0xff]
    %v218 = vld [vmem:[#allocation2 + $0x318] sm:$0xff]
    %v219 = vld [vmem:[#allocation2 + $0x320] sm:$0xff]
    %v220 = vld [vmem:[#allocation2 + $0x328] sm:$0xff]
    %v221 = vld [vmem:[#allocation2 + $0x330] sm:$0xff]
    %v222 = vld [vmem:[#allocation2 + $0x338] sm:$0xff]
    %v223 = vld [vmem:[#allocation2 + $0x340] sm:$0xff]
    %v224 = vld [vmem:[#allocation2 + $0x348] sm:$0xff]
    %v225 = vld [vmem:[#allocation2 + $0x350] sm:$0xff]
    %v226 = vld [vmem:[#allocation2 + $0x358] sm:$0xff]
    %v227 = vpack.c.bf16 %v119, %v119
    %v228 = vpack.c.bf16 %v120, %v120
    %v229 = vpack.c.bf16 %v121, %v121
    %v230 = vpack.c.bf16 %v122, %v122
    %v231 = vpack.c.bf16 %v123, %v123
    %v232 = vpack.c.bf16 %v124, %v124
    %v233 = vpack.c.bf16 %v125, %v125
    %v234 = vpack.c.bf16 %v126, %v126
    %v235 = vpack.c.bf16 %v127, %v127
    %v236 = vpack.c.bf16 %v128, %v128
    %v237 = vpack.c.bf16 %v129, %v129
    %v238 = vpack.c.bf16 %v130, %v130
    %v239 = vpack.c.bf16 %v131, %v131
    %v240 = vpack.c.bf16 %v132, %v132
    %v241 = vpack.c.bf16 %v133, %v133
    %v242 = vpack.c.bf16 %v134, %v134
    %v243 = vpack.c.bf16 %v135, %v135
    %v244 = vpack.c.bf16 %v136, %v136
    %v245 = vpack.c.bf16 %v137, %v137
    %v246 = vpack.c.bf16 %v138, %v138
    %v247 = vpack.c.bf16 %v139, %v139
    %v248 = vpack.c.bf16 %v140, %v140
    %v249 = vpack.c.bf16 %v141, %v141
    %v250 = vpack.c.bf16 %v142, %v142
    %v251 = vpack.c.bf16 %v143, %v143
    %v252 = vpack.c.bf16 %v144, %v144
    %v253 = vpack.c.bf16 %v145, %v145
    %v254 = vpack.c.bf16 %v146, %v146
    %v255 = vpack.c.bf16 %v147, %v147
    %v256 = vpack.c.bf16 %v148, %v148
    %v257 = vpack.c.bf16 %v149, %v149
    %v258 = vpack.c.bf16 %v150, %v150
    %v259 = vpack.c.bf16 %v151, %v151
    %v260 = vpack.c.bf16 %v152, %v152
    %v261 = vpack.c.bf16 %v153, %v153
    %v262 = vpack.c.bf16 %v154, %v154
    %v263 = vpack.c.bf16 %v155, %v155
    %v264 = vpack.c.bf16 %v156, %v156
    %v265 = vpack.c.bf16 %v157, %v157
    %v266 = vpack.c.bf16 %v158, %v158
    %v267 = vpack.c.bf16 %v159, %v159
    %v268 = vpack.c.bf16 %v160, %v160
    %v269 = vpack.c.bf16 %v161, %v161
    %v270 = vpack.c.bf16 %v162, %v162
    %v271 = vpack.c.bf16 %v163, %v163
    %v272 = vpack.c.bf16 %v164, %v164
    %v273 = vpack.c.bf16 %v165, %v165
    %v274 = vpack.c.bf16 %v166, %v166
    %v275 = vpack.c.bf16 %v167, %v167
    %v276 = vpack.c.bf16 %v168, %v168
    %v277 = vpack.c.bf16 %v169, %v169
    %v278 = vpack.c.bf16 %v170, %v170
    %v279 = vpack.c.bf16 %v171, %v171
    %v280 = vpack.c.bf16 %v172, %v172
    %v281 = vpack.c.bf16 %v173, %v173
    %v282 = vpack.c.bf16 %v174, %v174
    %v283 = vpack.c.bf16 %v175, %v175
    %v284 = vpack.c.bf16 %v176, %v176
    %v285 = vpack.c.bf16 %v177, %v177
    %v286 = vpack.c.bf16 %v178, %v178
    %v287 = vpack.c.bf16 %v179, %v179
    %v288 = vpack.c.bf16 %v180, %v180
    %v289 = vpack.c.bf16 %v181, %v181
    %v290 = vpack.c.bf16 %v182, %v182
    %v291 = vpack.c.bf16 %v183, %v183
    %v292 = vpack.c.bf16 %v184, %v184
    %v293 = vpack.c.bf16 %v185, %v185
    %v294 = vpack.c.bf16 %v186, %v186
    %v295 = vpack.c.bf16 %v187, %v187
    %v296 = vpack.c.bf16 %v188, %v188
    %v297 = vpack.c.bf16 %v189, %v189
    %v298 = vpack.c.bf16 %v190, %v190
    %v299 = vpack.c.bf16 %v191, %v191
    %v300 = vpack.c.bf16 %v192, %v192
    %v301 = vpack.c.bf16 %v193, %v193
    %v302 = vpack.c.bf16 %v194, %v194
    %v303 = vpack.c.bf16 %v195, %v195
    %v304 = vpack.c.bf16 %v196, %v196
    %v305 = vpack.c.bf16 %v197, %v197
    %v306 = vpack.c.bf16 %v198, %v198
    %v307 = vpack.c.bf16 %v199, %v199
    %v308 = vpack.c.bf16 %v200, %v200
    %v309 = vpack.c.bf16 %v201, %v201
    %v310 = vpack.c.bf16 %v202, %v202
    %v311 = vpack.c.bf16 %v203, %v203
    %v312 = vpack.c.bf16 %v204, %v204
    %v313 = vpack.c.bf16 %v205, %v205
    %v314 = vpack.c.bf16 %v206, %v206
    %v315 = vpack.c.bf16 %v207, %v207
    %v316 = vpack.c.bf16 %v208, %v208
    %v317 = vpack.c.bf16 %v209, %v209
    %v318 = vpack.c.bf16 %v210, %v210
    %v319 = vpack.c.bf16 %v211, %v211
    %v320 = vpack.c.bf16 %v212, %v212
    %v321 = vpack.c.bf16 %v213, %v213
    %v322 = vpack.c.bf16 %v214, %v214
    %v323 = vpack.c.bf16 %v215, %v215
    %v324 = vpack.c.bf16 %v216, %v216
    %v325 = vpack.c.bf16 %v217, %v217
    %v326 = vpack.c.bf16 %v218, %v218
    %v327 = vpack.c.bf16 %v219, %v219
    %v328 = vpack.c.bf16 %v220, %v220
    %v329 = vpack.c.bf16 %v221, %v221
    %v330 = vpack.c.bf16 %v222, %v222
    %v331 = vpack.c.bf16 %v223, %v223
    %v332 = vpack.c.bf16 %v224, %v224
    %v333 = vpack.c.bf16 %v225, %v225
    %v334 = vpack.c.bf16 %v226, %v226
    %v335 = vld [vmem:[#allocation5] sm:$0xff]
    %v336 = vld [vmem:[#allocation5 + $0x8] sm:$0xff]
    %v337 = vld [vmem:[#allocation5 + $0x10] sm:$0xff]
    %v338 = vld [vmem:[#allocation5 + $0x18] sm:$0xff]
    %v339 = vld [vmem:[#allocation5 + $0x20] sm:$0xff]
    %v340 = vld [vmem:[#allocation5 + $0x28] sm:$0xff]
    %v341 = vld [vmem:[#allocation5 + $0x30] sm:$0xff]
    %v342 = vld [vmem:[#allocation5 + $0x38] sm:$0xff]
    %v343 = vld [vmem:[#allocation5 + $0x40] sm:$0xff]
    %v344 = vld [vmem:[#allocation5 + $0x48] sm:$0xff]
    %v345 = vld [vmem:[#allocation5 + $0x50] sm:$0xff]
    %v346 = vld [vmem:[#allocation5 + $0x58] sm:$0xff]
    %v347 = vld [vmem:[#allocation5 + $0x60] sm:$0xff]
    %v348 = vld [vmem:[#allocation5 + $0x68] sm:$0xff]
    %v349 = vld [vmem:[#allocation5 + $0x70] sm:$0xff]
    %v350 = vld [vmem:[#allocation5 + $0x78] sm:$0xff]
    %v351 = vld [vmem:[#allocation5 + $0x80] sm:$0xff]
    %v352 = vld [vmem:[#allocation5 + $0x88] sm:$0xff]
    %v353 = vld [vmem:[#allocation5 + $0x90] sm:$0xff]
    %v354 = vld [vmem:[#allocation5 + $0x98] sm:$0xff]
    %v355 = vld [vmem:[#allocation5 + $0xa0] sm:$0xff]
    %v356 = vld [vmem:[#allocation5 + $0xa8] sm:$0xff]
    %v357 = vld [vmem:[#allocation5 + $0xb0] sm:$0xff]
    %v358 = vld [vmem:[#allocation5 + $0xb8] sm:$0xff]
    %v359 = vld [vmem:[#allocation5 + $0xc0] sm:$0xff]
    %v360 = vld [vmem:[#allocation5 + $0xc8] sm:$0xff]
    %v361 = vld [vmem:[#allocation5 + $0xd0] sm:$0xff]
    %v362 = vld [vmem:[#allocation5 + $0xd8] sm:$0xff]
    %v363 = vld [vmem:[#allocation5 + $0xe0] sm:$0xff]
    %v364 = vld [vmem:[#allocation5 + $0xe8] sm:$0xff]
    %v365 = vld [vmem:[#allocation5 + $0xf0] sm:$0xff]
    %v366 = vld [vmem:[#allocation5 + $0xf8] sm:$0xff]
    %v367 = vld [vmem:[#allocation5 + $0x100] sm:$0xff]
    %v368 = vld [vmem:[#allocation5 + $0x108] sm:$0xff]
    %v369 = vld [vmem:[#allocation5 + $0x110] sm:$0xff]
    %v370 = vld [vmem:[#allocation5 + $0x118] sm:$0xff]
    %v371 = vld [vmem:[#allocation5 + $0x120] sm:$0xff]
    %v372 = vld [vmem:[#allocation5 + $0x128] sm:$0xff]
    %v373 = vld [vmem:[#allocation5 + $0x130] sm:$0xff]
    %v374 = vld [vmem:[#allocation5 + $0x138] sm:$0xff]
    %v375 = vld [vmem:[#allocation5 + $0x140] sm:$0xff]
    %v376 = vld [vmem:[#allocation5 + $0x148] sm:$0xff]
    %v377 = vld [vmem:[#allocation5 + $0x150] sm:$0xff]
    %v378 = vld [vmem:[#allocation5 + $0x158] sm:$0xff]
    %v379 = vld [vmem:[#allocation5 + $0x160] sm:$0xff]
    %v380 = vld [vmem:[#allocation5 + $0x168] sm:$0xff]
    %v381 = vld [vmem:[#allocation5 + $0x170] sm:$0xff]
    %v382 = vld [vmem:[#allocation5 + $0x178] sm:$0xff]
    %v383 = vld [vmem:[#allocation5 + $0x180] sm:$0xff]
    %v384 = vld [vmem:[#allocation5 + $0x188] sm:$0xff]
    %v385 = vld [vmem:[#allocation5 + $0x190] sm:$0xff]
    %v386 = vld [vmem:[#allocation5 + $0x198] sm:$0xff]
    %v387 = vld [vmem:[#allocation5 + $0x1a0] sm:$0xff]
    %v388 = vld [vmem:[#allocation5 + $0x1a8] sm:$0xff]
    %v389 = vld [vmem:[#allocation5 + $0x1b0] sm:$0xff]
    %v390 = vld [vmem:[#allocation5 + $0x1b8] sm:$0xff]
    %v391 = vld [vmem:[#allocation5 + $0x1c0] sm:$0xff]
    %v392 = vld [vmem:[#allocation5 + $0x1c8] sm:$0xff]
    %v393 = vld [vmem:[#allocation5 + $0x1d0] sm:$0xff]
    %v394 = vld [vmem:[#allocation5 + $0x1d8] sm:$0xff]
    %v395 = vld [vmem:[#allocation5 + $0x1e0] sm:$0xff]
    %v396 = vld [vmem:[#allocation5 + $0x1e8] sm:$0xff]
    %v397 = vld [vmem:[#allocation5 + $0x1f0] sm:$0xff]
    %v398 = vld [vmem:[#allocation5 + $0x1f8] sm:$0xff]
    %v399 = vld [vmem:[#allocation5 + $0x200] sm:$0xff]
    %v400 = vld [vmem:[#allocation5 + $0x208] sm:$0xff]
    %v401 = vld [vmem:[#allocation5 + $0x210] sm:$0xff]
    %v402 = vld [vmem:[#allocation5 + $0x218] sm:$0xff]
    %v403 = vld [vmem:[#allocation5 + $0x220] sm:$0xff]
    %v404 = vld [vmem:[#allocation5 + $0x228] sm:$0xff]
    %v405 = vld [vmem:[#allocation5 + $0x230] sm:$0xff]
    %v406 = vld [vmem:[#allocation5 + $0x238] sm:$0xff]
    %v407 = vld [vmem:[#allocation5 + $0x240] sm:$0xff]
    %v408 = vld [vmem:[#allocation5 + $0x248] sm:$0xff]
    %v409 = vld [vmem:[#allocation5 + $0x250] sm:$0xff]
    %v410 = vld [vmem:[#allocation5 + $0x258] sm:$0xff]
    %v411 = vld [vmem:[#allocation5 + $0x260] sm:$0xff]
    %v412 = vld [vmem:[#allocation5 + $0x268] sm:$0xff]
    %v413 = vld [vmem:[#allocation5 + $0x270] sm:$0xff]
    %v414 = vld [vmem:[#allocation5 + $0x278] sm:$0xff]
    %v415 = vld [vmem:[#allocation5 + $0x280] sm:$0xff]
    %v416 = vld [vmem:[#allocation5 + $0x288] sm:$0xff]
    %v417 = vld [vmem:[#allocation5 + $0x290] sm:$0xff]
    %v418 = vld [vmem:[#allocation5 + $0x298] sm:$0xff]
    %v419 = vld [vmem:[#allocation5 + $0x2a0] sm:$0xff]
    %v420 = vld [vmem:[#allocation5 + $0x2a8] sm:$0xff]
    %v421 = vld [vmem:[#allocation5 + $0x2b0] sm:$0xff]
    %v422 = vld [vmem:[#allocation5 + $0x2b8] sm:$0xff]
    %v423 = vld [vmem:[#allocation5 + $0x2c0] sm:$0xff]
    %v424 = vld [vmem:[#allocation5 + $0x2c8] sm:$0xff]
    %v425 = vld [vmem:[#allocation5 + $0x2d0] sm:$0xff]
    %v426 = vld [vmem:[#allocation5 + $0x2d8] sm:$0xff]
    %v427 = vld [vmem:[#allocation5 + $0x2e0] sm:$0xff]
    %v428 = vld [vmem:[#allocation5 + $0x2e8] sm:$0xff]
    %v429 = vld [vmem:[#allocation5 + $0x2f0] sm:$0xff]
    %v430 = vld [vmem:[#allocation5 + $0x2f8] sm:$0xff]
    %v431 = vld [vmem:[#allocation5 + $0x300] sm:$0xff]
    %v432 = vld [vmem:[#allocation5 + $0x308] sm:$0xff]
    %v433 = vld [vmem:[#allocation5 + $0x310] sm:$0xff]
    %v434 = vld [vmem:[#allocation5 + $0x318] sm:$0xff]
    %v435 = vld [vmem:[#allocation5 + $0x320] sm:$0xff]
    %v436 = vld [vmem:[#allocation5 + $0x328] sm:$0xff]
    %v437 = vld [vmem:[#allocation5 + $0x330] sm:$0xff]
    %v438 = vld [vmem:[#allocation5 + $0x338] sm:$0xff]
    %v439 = vld [vmem:[#allocation5 + $0x340] sm:$0xff]
    %v440 = vld [vmem:[#allocation5 + $0x348] sm:$0xff]
    %v441 = vld [vmem:[#allocation5 + $0x350] sm:$0xff]
    %v442 = vld [vmem:[#allocation5 + $0x358] sm:$0xff]
    %v443 = vld [vmem:[#allocation5 + $0x360] sm:$0xff]
    %v444 = vld [vmem:[#allocation5 + $0x368] sm:$0xff]
    %v445 = vld [vmem:[#allocation5 + $0x370] sm:$0xff]
    %v446 = vld [vmem:[#allocation5 + $0x378] sm:$0xff]
    %v447 = vld [vmem:[#allocation5 + $0x380] sm:$0xff]
    %v448 = vld [vmem:[#allocation5 + $0x388] sm:$0xff]
    %v449 = vld [vmem:[#allocation5 + $0x390] sm:$0xff]
    %v450 = vld [vmem:[#allocation5 + $0x398] sm:$0xff]
    %v451 = vld [vmem:[#allocation5 + $0x3a0] sm:$0xff]
    %v452 = vld [vmem:[#allocation5 + $0x3a8] sm:$0xff]
    %v453 = vld [vmem:[#allocation5 + $0x3b0] sm:$0xff]
    %v454 = vld [vmem:[#allocation5 + $0x3b8] sm:$0xff]
    %v455 = vld [vmem:[#allocation5 + $0x3c0] sm:$0xff]
    %v456 = vld [vmem:[#allocation5 + $0x3c8] sm:$0xff]
    %v457 = vld [vmem:[#allocation5 + $0x3d0] sm:$0xff]
    %v458 = vld [vmem:[#allocation5 + $0x3d8] sm:$0xff]
    %v459 = vld [vmem:[#allocation5 + $0x3e0] sm:$0xff]
    %v460 = vld [vmem:[#allocation5 + $0x3e8] sm:$0xff]
    %v461 = vld [vmem:[#allocation5 + $0x3f0] sm:$0xff]
    %v462 = vld [vmem:[#allocation5 + $0x3f8] sm:$0xff]
    %v463 = vld [vmem:[#allocation5 + $0x400] sm:$0xff]
    %v464 = vld [vmem:[#allocation5 + $0x408] sm:$0xff]
    %v465 = vld [vmem:[#allocation5 + $0x410] sm:$0xff]
    %v466 = vld [vmem:[#allocation5 + $0x418] sm:$0xff]
    %v467 = vld [vmem:[#allocation5 + $0x420] sm:$0xff]
    %v468 = vld [vmem:[#allocation5 + $0x428] sm:$0xff]
    %v469 = vld [vmem:[#allocation5 + $0x430] sm:$0xff]
    %v470 = vld [vmem:[#allocation5 + $0x438] sm:$0xff]
    %v471 = vld [vmem:[#allocation5 + $0x440] sm:$0xff]
    %v472 = vld [vmem:[#allocation5 + $0x448] sm:$0xff]
    %v473 = vld [vmem:[#allocation5 + $0x450] sm:$0xff]
    %v474 = vld [vmem:[#allocation5 + $0x458] sm:$0xff]
    %v475 = vld [vmem:[#allocation5 + $0x460] sm:$0xff]
    %v476 = vld [vmem:[#allocation5 + $0x468] sm:$0xff]
    %v477 = vld [vmem:[#allocation5 + $0x470] sm:$0xff]
    %v478 = vld [vmem:[#allocation5 + $0x478] sm:$0xff]
    %v479 = vld [vmem:[#allocation5 + $0x480] sm:$0xff]
    %v480 = vld [vmem:[#allocation5 + $0x488] sm:$0xff]
    %v481 = vld [vmem:[#allocation5 + $0x490] sm:$0xff]
    %v482 = vld [vmem:[#allocation5 + $0x498] sm:$0xff]
    %v483 = vld [vmem:[#allocation5 + $0x4a0] sm:$0xff]
    %v484 = vld [vmem:[#allocation5 + $0x4a8] sm:$0xff]
    %v485 = vld [vmem:[#allocation5 + $0x4b0] sm:$0xff]
    %v486 = vld [vmem:[#allocation5 + $0x4b8] sm:$0xff]
    %v487 = vld [vmem:[#allocation5 + $0x4c0] sm:$0xff]
    %v488 = vld [vmem:[#allocation5 + $0x4c8] sm:$0xff]
    %v489 = vld [vmem:[#allocation5 + $0x4d0] sm:$0xff]
    %v490 = vld [vmem:[#allocation5 + $0x4d8] sm:$0xff]
    %v491 = vld [vmem:[#allocation5 + $0x4e0] sm:$0xff]
    %v492 = vld [vmem:[#allocation5 + $0x4e8] sm:$0xff]
    %v493 = vld [vmem:[#allocation5 + $0x4f0] sm:$0xff]
    %v494 = vld [vmem:[#allocation5 + $0x4f8] sm:$0xff]
    %v495 = vld [vmem:[#allocation5 + $0x500] sm:$0xff]
    %v496 = vld [vmem:[#allocation5 + $0x508] sm:$0xff]
    %v497 = vld [vmem:[#allocation5 + $0x510] sm:$0xff]
    %v498 = vld [vmem:[#allocation5 + $0x518] sm:$0xff]
    %v499 = vld [vmem:[#allocation5 + $0x520] sm:$0xff]
    %v500 = vld [vmem:[#allocation5 + $0x528] sm:$0xff]
    %v501 = vld [vmem:[#allocation5 + $0x530] sm:$0xff]
    %v502 = vld [vmem:[#allocation5 + $0x538] sm:$0xff]
    %v503 = vld [vmem:[#allocation5 + $0x540] sm:$0xff]
    %v504 = vld [vmem:[#allocation5 + $0x548] sm:$0xff]
    %v505 = vld [vmem:[#allocation5 + $0x550] sm:$0xff]
    %v506 = vld [vmem:[#allocation5 + $0x558] sm:$0xff]
    %v507 = vld [vmem:[#allocation5 + $0x560] sm:$0xff]
    %v508 = vld [vmem:[#allocation5 + $0x568] sm:$0xff]
    %v509 = vld [vmem:[#allocation5 + $0x570] sm:$0xff]
    %v510 = vld [vmem:[#allocation5 + $0x578] sm:$0xff]
    %v511 = vld [vmem:[#allocation5 + $0x580] sm:$0xff]
    %v512 = vld [vmem:[#allocation5 + $0x588] sm:$0xff]
    %v513 = vld [vmem:[#allocation5 + $0x590] sm:$0xff]
    %v514 = vld [vmem:[#allocation5 + $0x598] sm:$0xff]
    %v515 = vld [vmem:[#allocation5 + $0x5a0] sm:$0xff]
    %v516 = vld [vmem:[#allocation5 + $0x5a8] sm:$0xff]
    %v517 = vld [vmem:[#allocation5 + $0x5b0] sm:$0xff]
    %v518 = vld [vmem:[#allocation5 + $0x5b8] sm:$0xff]
    %v519 = vld [vmem:[#allocation5 + $0x5c0] sm:$0xff]
    %v520 = vld [vmem:[#allocation5 + $0x5c8] sm:$0xff]
    %v521 = vld [vmem:[#allocation5 + $0x5d0] sm:$0xff]
    %v522 = vld [vmem:[#allocation5 + $0x5d8] sm:$0xff]
    %v523 = vld [vmem:[#allocation5 + $0x5e0] sm:$0xff]
    %v524 = vld [vmem:[#allocation5 + $0x5e8] sm:$0xff]
    %v525 = vld [vmem:[#allocation5 + $0x5f0] sm:$0xff]
    %v526 = vld [vmem:[#allocation5 + $0x5f8] sm:$0xff]
    %v527 = vld [vmem:[#allocation5 + $0x600] sm:$0xff]
    %v528 = vld [vmem:[#allocation5 + $0x608] sm:$0xff]
    %v529 = vld [vmem:[#allocation5 + $0x610] sm:$0xff]
    %v530 = vld [vmem:[#allocation5 + $0x618] sm:$0xff]
    %v531 = vld [vmem:[#allocation5 + $0x620] sm:$0xff]
    %v532 = vld [vmem:[#allocation5 + $0x628] sm:$0xff]
    %v533 = vld [vmem:[#allocation5 + $0x630] sm:$0xff]
    %v534 = vld [vmem:[#allocation5 + $0x638] sm:$0xff]
    %v535 = vld [vmem:[#allocation5 + $0x640] sm:$0xff]
    %v536 = vld [vmem:[#allocation5 + $0x648] sm:$0xff]
    %v537 = vld [vmem:[#allocation5 + $0x650] sm:$0xff]
    %v538 = vld [vmem:[#allocation5 + $0x658] sm:$0xff]
    %v539 = vld [vmem:[#allocation5 + $0x660] sm:$0xff]
    %v540 = vld [vmem:[#allocation5 + $0x668] sm:$0xff]
    %v541 = vld [vmem:[#allocation5 + $0x670] sm:$0xff]
    %v542 = vld [vmem:[#allocation5 + $0x678] sm:$0xff]
    %v543 = vld [vmem:[#allocation5 + $0x680] sm:$0xff]
    %v544 = vld [vmem:[#allocation5 + $0x688] sm:$0xff]
    %v545 = vld [vmem:[#allocation5 + $0x690] sm:$0xff]
    %v546 = vld [vmem:[#allocation5 + $0x698] sm:$0xff]
    %v547 = vld [vmem:[#allocation5 + $0x6a0] sm:$0xff]
    %v548 = vld [vmem:[#allocation5 + $0x6a8] sm:$0xff]
    %v549 = vld [vmem:[#allocation5 + $0x6b0] sm:$0xff]
    %v550 = vld [vmem:[#allocation5 + $0x6b8] sm:$0xff]
    %v551 = vld [vmem:[#allocation5 + $0x6c0] sm:$0xff]
    %v552 = vld [vmem:[#allocation5 + $0x6c8] sm:$0xff]
    %v553 = vld [vmem:[#allocation5 + $0x6d0] sm:$0xff]
    %v554 = vld [vmem:[#allocation5 + $0x6d8] sm:$0xff]
    %v555 = vld [vmem:[#allocation5 + $0x6e0] sm:$0xff]
    %v556 = vld [vmem:[#allocation5 + $0x6e8] sm:$0xff]
    %v557 = vld [vmem:[#allocation5 + $0x6f0] sm:$0xff]
    %v558 = vld [vmem:[#allocation5 + $0x6f8] sm:$0xff]
    %v559 = vld [vmem:[#allocation5 + $0x700] sm:$0xff]
    %v560 = vld [vmem:[#allocation5 + $0x708] sm:$0xff]
    %v561 = vld [vmem:[#allocation5 + $0x710] sm:$0xff]
    %v562 = vld [vmem:[#allocation5 + $0x718] sm:$0xff]
    %v563 = vld [vmem:[#allocation5 + $0x720] sm:$0xff]
    %v564 = vld [vmem:[#allocation5 + $0x728] sm:$0xff]
    %v565 = vld [vmem:[#allocation5 + $0x730] sm:$0xff]
    %v566 = vld [vmem:[#allocation5 + $0x738] sm:$0xff]
    %v567 = vld [vmem:[#allocation5 + $0x740] sm:$0xff]
    %v568 = vld [vmem:[#allocation5 + $0x748] sm:$0xff]
    %v569 = vld [vmem:[#allocation5 + $0x750] sm:$0xff]
    %v570 = vld [vmem:[#allocation5 + $0x758] sm:$0xff]
    %v571 = vld [vmem:[#allocation5 + $0x760] sm:$0xff]
    %v572 = vld [vmem:[#allocation5 + $0x768] sm:$0xff]
    %v573 = vld [vmem:[#allocation5 + $0x770] sm:$0xff]
    %v574 = vld [vmem:[#allocation5 + $0x778] sm:$0xff]
    %v575 = vld [vmem:[#allocation5 + $0x780] sm:$0xff]
    %v576 = vld [vmem:[#allocation5 + $0x788] sm:$0xff]
    %v577 = vld [vmem:[#allocation5 + $0x790] sm:$0xff]
    %v578 = vld [vmem:[#allocation5 + $0x798] sm:$0xff]
    %v579 = vld [vmem:[#allocation5 + $0x7a0] sm:$0xff]
    %v580 = vld [vmem:[#allocation5 + $0x7a8] sm:$0xff]
    %v581 = vld [vmem:[#allocation5 + $0x7b0] sm:$0xff]
    %v582 = vld [vmem:[#allocation5 + $0x7b8] sm:$0xff]
    %v583 = vld [vmem:[#allocation5 + $0x7c0] sm:$0xff]
    %v584 = vld [vmem:[#allocation5 + $0x7c8] sm:$0xff]
    %v585 = vld [vmem:[#allocation5 + $0x7d0] sm:$0xff]
    %v586 = vld [vmem:[#allocation5 + $0x7d8] sm:$0xff]
    %v587 = vld [vmem:[#allocation5 + $0x7e0] sm:$0xff]
    %v588 = vld [vmem:[#allocation5 + $0x7e8] sm:$0xff]
    %v589 = vld [vmem:[#allocation5 + $0x7f0] sm:$0xff]
    %v590 = vld [vmem:[#allocation5 + $0x7f8] sm:$0xff]
    %v591 = vld [vmem:[#allocation5 + $0x800] sm:$0xff]
    %v592 = vld [vmem:[#allocation5 + $0x808] sm:$0xff]
    %v593 = vld [vmem:[#allocation5 + $0x810] sm:$0xff]
    %v594 = vld [vmem:[#allocation5 + $0x818] sm:$0xff]
    %v595 = vld [vmem:[#allocation5 + $0x820] sm:$0xff]
    %v596 = vld [vmem:[#allocation5 + $0x828] sm:$0xff]
    %v597 = vld [vmem:[#allocation5 + $0x830] sm:$0xff]
    %v598 = vld [vmem:[#allocation5 + $0x838] sm:$0xff]
    %v599 = vld [vmem:[#allocation5 + $0x840] sm:$0xff]
    %v600 = vld [vmem:[#allocation5 + $0x848] sm:$0xff]
    %v601 = vld [vmem:[#allocation5 + $0x850] sm:$0xff]
    %v602 = vld [vmem:[#allocation5 + $0x858] sm:$0xff]
    %v603 = vld [vmem:[#allocation5 + $0x860] sm:$0xff]
    %v604 = vld [vmem:[#allocation5 + $0x868] sm:$0xff]
    %v605 = vld [vmem:[#allocation5 + $0x870] sm:$0xff]
    %v606 = vld [vmem:[#allocation5 + $0x878] sm:$0xff]
    %v607 = vld [vmem:[#allocation5 + $0x880] sm:$0xff]
    %v608 = vld [vmem:[#allocation5 + $0x888] sm:$0xff]
    %v609 = vld [vmem:[#allocation5 + $0x890] sm:$0xff]
    %v610 = vld [vmem:[#allocation5 + $0x898] sm:$0xff]
    %v611 = vld [vmem:[#allocation5 + $0x8a0] sm:$0xff]
    %v612 = vld [vmem:[#allocation5 + $0x8a8] sm:$0xff]
    %v613 = vld [vmem:[#allocation5 + $0x8b0] sm:$0xff]
    %v614 = vld [vmem:[#allocation5 + $0x8b8] sm:$0xff]
    %v615 = vld [vmem:[#allocation5 + $0x8c0] sm:$0xff]
    %v616 = vld [vmem:[#allocation5 + $0x8c8] sm:$0xff]
    %v617 = vld [vmem:[#allocation5 + $0x8d0] sm:$0xff]
    %v618 = vld [vmem:[#allocation5 + $0x8d8] sm:$0xff]
    %v619 = vld [vmem:[#allocation5 + $0x8e0] sm:$0xff]
    %v620 = vld [vmem:[#allocation5 + $0x8e8] sm:$0xff]
    %v621 = vld [vmem:[#allocation5 + $0x8f0] sm:$0xff]
    %v622 = vld [vmem:[#allocation5 + $0x8f8] sm:$0xff]
    %v623 = vld [vmem:[#allocation5 + $0x900] sm:$0xff]
    %v624 = vld [vmem:[#allocation5 + $0x908] sm:$0xff]
    %v625 = vld [vmem:[#allocation5 + $0x910] sm:$0xff]
    %v626 = vld [vmem:[#allocation5 + $0x918] sm:$0xff]
    %v627 = vld [vmem:[#allocation5 + $0x920] sm:$0xff]
    %v628 = vld [vmem:[#allocation5 + $0x928] sm:$0xff]
    %v629 = vld [vmem:[#allocation5 + $0x930] sm:$0xff]
    %v630 = vld [vmem:[#allocation5 + $0x938] sm:$0xff]
    %v631 = vld [vmem:[#allocation5 + $0x940] sm:$0xff]
    %v632 = vld [vmem:[#allocation5 + $0x948] sm:$0xff]
    %v633 = vld [vmem:[#allocation5 + $0x950] sm:$0xff]
    %v634 = vld [vmem:[#allocation5 + $0x958] sm:$0xff]
    %v635 = vld [vmem:[#allocation5 + $0x960] sm:$0xff]
    %v636 = vld [vmem:[#allocation5 + $0x968] sm:$0xff]
    %v637 = vld [vmem:[#allocation5 + $0x970] sm:$0xff]
    %v638 = vld [vmem:[#allocation5 + $0x978] sm:$0xff]
    %v639 = vld [vmem:[#allocation5 + $0x980] sm:$0xff]
    %v640 = vld [vmem:[#allocation5 + $0x988] sm:$0xff]
    %v641 = vld [vmem:[#allocation5 + $0x990] sm:$0xff]
    %v642 = vld [vmem:[#allocation5 + $0x998] sm:$0xff]
    %v643 = vld [vmem:[#allocation5 + $0x9a0] sm:$0xff]
    %v644 = vld [vmem:[#allocation5 + $0x9a8] sm:$0xff]
    %v645 = vld [vmem:[#allocation5 + $0x9b0] sm:$0xff]
    %v646 = vld [vmem:[#allocation5 + $0x9b8] sm:$0xff]
    %v647 = vld [vmem:[#allocation5 + $0x9c0] sm:$0xff]
    %v648 = vld [vmem:[#allocation5 + $0x9c8] sm:$0xff]
    %v649 = vld [vmem:[#allocation5 + $0x9d0] sm:$0xff]
    %v650 = vld [vmem:[#allocation5 + $0x9d8] sm:$0xff]
    %v651 = vld [vmem:[#allocation5 + $0x9e0] sm:$0xff]
    %v652 = vld [vmem:[#allocation5 + $0x9e8] sm:$0xff]
    %v653 = vld [vmem:[#allocation5 + $0x9f0] sm:$0xff]
    %v654 = vld [vmem:[#allocation5 + $0x9f8] sm:$0xff]
    %v655 = vld [vmem:[#allocation5 + $0xa00] sm:$0xff]
    %v656 = vld [vmem:[#allocation5 + $0xa08] sm:$0xff]
    %v657 = vld [vmem:[#allocation5 + $0xa10] sm:$0xff]
    %v658 = vld [vmem:[#allocation5 + $0xa18] sm:$0xff]
    %v659 = vld [vmem:[#allocation5 + $0xa20] sm:$0xff]
    %v660 = vld [vmem:[#allocation5 + $0xa28] sm:$0xff]
    %v661 = vld [vmem:[#allocation5 + $0xa30] sm:$0xff]
    %v662 = vld [vmem:[#allocation5 + $0xa38] sm:$0xff]
    %v663 = vld [vmem:[#allocation5 + $0xa40] sm:$0xff]
    %v664 = vld [vmem:[#allocation5 + $0xa48] sm:$0xff]
    %v665 = vld [vmem:[#allocation5 + $0xa50] sm:$0xff]
    %v666 = vld [vmem:[#allocation5 + $0xa58] sm:$0xff]
    %v667 = vld [vmem:[#allocation5 + $0xa60] sm:$0xff]
    %v668 = vld [vmem:[#allocation5 + $0xa68] sm:$0xff]
    %v669 = vld [vmem:[#allocation5 + $0xa70] sm:$0xff]
    %v670 = vld [vmem:[#allocation5 + $0xa78] sm:$0xff]
    %v671 = vld [vmem:[#allocation5 + $0xa80] sm:$0xff]
    %v672 = vld [vmem:[#allocation5 + $0xa88] sm:$0xff]
    %v673 = vld [vmem:[#allocation5 + $0xa90] sm:$0xff]
    %v674 = vld [vmem:[#allocation5 + $0xa98] sm:$0xff]
    %v675 = vld [vmem:[#allocation5 + $0xaa0] sm:$0xff]
    %v676 = vld [vmem:[#allocation5 + $0xaa8] sm:$0xff]
    %v677 = vld [vmem:[#allocation5 + $0xab0] sm:$0xff]
    %v678 = vld [vmem:[#allocation5 + $0xab8] sm:$0xff]
    %v679 = vld [vmem:[#allocation5 + $0xac0] sm:$0xff]
    %v680 = vld [vmem:[#allocation5 + $0xac8] sm:$0xff]
    %v681 = vld [vmem:[#allocation5 + $0xad0] sm:$0xff]
    %v682 = vld [vmem:[#allocation5 + $0xad8] sm:$0xff]
    %v683 = vld [vmem:[#allocation5 + $0xae0] sm:$0xff]
    %v684 = vld [vmem:[#allocation5 + $0xae8] sm:$0xff]
    %v685 = vld [vmem:[#allocation5 + $0xaf0] sm:$0xff]
    %v686 = vld [vmem:[#allocation5 + $0xaf8] sm:$0xff]
    %v687 = vld [vmem:[#allocation5 + $0xb00] sm:$0xff]
    %v688 = vld [vmem:[#allocation5 + $0xb08] sm:$0xff]
    %v689 = vld [vmem:[#allocation5 + $0xb10] sm:$0xff]
    %v690 = vld [vmem:[#allocation5 + $0xb18] sm:$0xff]
    %v691 = vld [vmem:[#allocation5 + $0xb20] sm:$0xff]
    %v692 = vld [vmem:[#allocation5 + $0xb28] sm:$0xff]
    %v693 = vld [vmem:[#allocation5 + $0xb30] sm:$0xff]
    %v694 = vld [vmem:[#allocation5 + $0xb38] sm:$0xff]
    %v695 = vld [vmem:[#allocation5 + $0xb40] sm:$0xff]
    %v696 = vld [vmem:[#allocation5 + $0xb48] sm:$0xff]
    %v697 = vld [vmem:[#allocation5 + $0xb50] sm:$0xff]
    %v698 = vld [vmem:[#allocation5 + $0xb58] sm:$0xff]
    %v699 = vld [vmem:[#allocation5 + $0xb60] sm:$0xff]
    %v700 = vld [vmem:[#allocation5 + $0xb68] sm:$0xff]
    %v701 = vld [vmem:[#allocation5 + $0xb70] sm:$0xff]
    %v702 = vld [vmem:[#allocation5 + $0xb78] sm:$0xff]
    %v703 = vld [vmem:[#allocation5 + $0xb80] sm:$0xff]
    %v704 = vld [vmem:[#allocation5 + $0xb88] sm:$0xff]
    %v705 = vld [vmem:[#allocation5 + $0xb90] sm:$0xff]
    %v706 = vld [vmem:[#allocation5 + $0xb98] sm:$0xff]
    %v707 = vld [vmem:[#allocation5 + $0xba0] sm:$0xff]
    %v708 = vld [vmem:[#allocation5 + $0xba8] sm:$0xff]
    %v709 = vld [vmem:[#allocation5 + $0xbb0] sm:$0xff]
    %v710 = vld [vmem:[#allocation5 + $0xbb8] sm:$0xff]
    %v711 = vld [vmem:[#allocation5 + $0xbc0] sm:$0xff]
    %v712 = vld [vmem:[#allocation5 + $0xbc8] sm:$0xff]
    %v713 = vld [vmem:[#allocation5 + $0xbd0] sm:$0xff]
    %v714 = vld [vmem:[#allocation5 + $0xbd8] sm:$0xff]
    %v715 = vld [vmem:[#allocation5 + $0xbe0] sm:$0xff]
    %v716 = vld [vmem:[#allocation5 + $0xbe8] sm:$0xff]
    %v717 = vld [vmem:[#allocation5 + $0xbf0] sm:$0xff]
    %v718 = vld [vmem:[#allocation5 + $0xbf8] sm:$0xff]
    %v719 = vld [vmem:[#allocation5 + $0xc00] sm:$0xff]
    %v720 = vld [vmem:[#allocation5 + $0xc08] sm:$0xff]
    %v721 = vld [vmem:[#allocation5 + $0xc10] sm:$0xff]
    %v722 = vld [vmem:[#allocation5 + $0xc18] sm:$0xff]
    %v723 = vld [vmem:[#allocation5 + $0xc20] sm:$0xff]
    %v724 = vld [vmem:[#allocation5 + $0xc28] sm:$0xff]
    %v725 = vld [vmem:[#allocation5 + $0xc30] sm:$0xff]
    %v726 = vld [vmem:[#allocation5 + $0xc38] sm:$0xff]
    %v727 = vld [vmem:[#allocation5 + $0xc40] sm:$0xff]
    %v728 = vld [vmem:[#allocation5 + $0xc48] sm:$0xff]
    %v729 = vld [vmem:[#allocation5 + $0xc50] sm:$0xff]
    %v730 = vld [vmem:[#allocation5 + $0xc58] sm:$0xff]
    %v731 = vld [vmem:[#allocation5 + $0xc60] sm:$0xff]
    %v732 = vld [vmem:[#allocation5 + $0xc68] sm:$0xff]
    %v733 = vld [vmem:[#allocation5 + $0xc70] sm:$0xff]
    %v734 = vld [vmem:[#allocation5 + $0xc78] sm:$0xff]
    %v735 = vld [vmem:[#allocation5 + $0xc80] sm:$0xff]
    %v736 = vld [vmem:[#allocation5 + $0xc88] sm:$0xff]
    %v737 = vld [vmem:[#allocation5 + $0xc90] sm:$0xff]
    %v738 = vld [vmem:[#allocation5 + $0xc98] sm:$0xff]
    %v739 = vld [vmem:[#allocation5 + $0xca0] sm:$0xff]
    %v740 = vld [vmem:[#allocation5 + $0xca8] sm:$0xff]
    %v741 = vld [vmem:[#allocation5 + $0xcb0] sm:$0xff]
    %v742 = vld [vmem:[#allocation5 + $0xcb8] sm:$0xff]
    %v743 = vld [vmem:[#allocation5 + $0xcc0] sm:$0xff]
    %v744 = vld [vmem:[#allocation5 + $0xcc8] sm:$0xff]
    %v745 = vld [vmem:[#allocation5 + $0xcd0] sm:$0xff]
    %v746 = vld [vmem:[#allocation5 + $0xcd8] sm:$0xff]
    %v747 = vld [vmem:[#allocation5 + $0xce0] sm:$0xff]
    %v748 = vld [vmem:[#allocation5 + $0xce8] sm:$0xff]
    %v749 = vld [vmem:[#allocation5 + $0xcf0] sm:$0xff]
    %v750 = vld [vmem:[#allocation5 + $0xcf8] sm:$0xff]
    %v751 = vld [vmem:[#allocation5 + $0xd00] sm:$0xff]
    %v752 = vld [vmem:[#allocation5 + $0xd08] sm:$0xff]
    %v753 = vld [vmem:[#allocation5 + $0xd10] sm:$0xff]
    %v754 = vld [vmem:[#allocation5 + $0xd18] sm:$0xff]
    %v755 = vld [vmem:[#allocation5 + $0xd20] sm:$0xff]
    %v756 = vld [vmem:[#allocation5 + $0xd28] sm:$0xff]
    %v757 = vld [vmem:[#allocation5 + $0xd30] sm:$0xff]
    %v758 = vld [vmem:[#allocation5 + $0xd38] sm:$0xff]
    %v759 = vld [vmem:[#allocation5 + $0xd40] sm:$0xff]
    %v760 = vld [vmem:[#allocation5 + $0xd48] sm:$0xff]
    %v761 = vld [vmem:[#allocation5 + $0xd50] sm:$0xff]
    %v762 = vld [vmem:[#allocation5 + $0xd58] sm:$0xff]
    %v763 = vld [vmem:[#allocation5 + $0xd60] sm:$0xff]
    %v764 = vld [vmem:[#allocation5 + $0xd68] sm:$0xff]
    %v765 = vld [vmem:[#allocation5 + $0xd70] sm:$0xff]
    %v766 = vld [vmem:[#allocation5 + $0xd78] sm:$0xff]
    %v767 = vld [vmem:[#allocation5 + $0xd80] sm:$0xff]
    %v768 = vld [vmem:[#allocation5 + $0xd88] sm:$0xff]
    %v769 = vld [vmem:[#allocation5 + $0xd90] sm:$0xff]
    %v770 = vld [vmem:[#allocation5 + $0xd98] sm:$0xff]
    %v771 = vld [vmem:[#allocation5 + $0xda0] sm:$0xff]
    %v772 = vld [vmem:[#allocation5 + $0xda8] sm:$0xff]
    %v773 = vld [vmem:[#allocation5 + $0xdb0] sm:$0xff]
    %v774 = vld [vmem:[#allocation5 + $0xdb8] sm:$0xff]
    %v775 = vld [vmem:[#allocation5 + $0xdc0] sm:$0xff]
    %v776 = vld [vmem:[#allocation5 + $0xdc8] sm:$0xff]
    %v777 = vld [vmem:[#allocation5 + $0xdd0] sm:$0xff]
    %v778 = vld [vmem:[#allocation5 + $0xdd8] sm:$0xff]
    %v779 = vld [vmem:[#allocation5 + $0xde0] sm:$0xff]
    %v780 = vld [vmem:[#allocation5 + $0xde8] sm:$0xff]
    %v781 = vld [vmem:[#allocation5 + $0xdf0] sm:$0xff]
    %v782 = vld [vmem:[#allocation5 + $0xdf8] sm:$0xff]
    %v783 = vld [vmem:[#allocation5 + $0xe00] sm:$0xff]
    %v784 = vld [vmem:[#allocation5 + $0xe08] sm:$0xff]
    %v785 = vld [vmem:[#allocation5 + $0xe10] sm:$0xff]
    %v786 = vld [vmem:[#allocation5 + $0xe18] sm:$0xff]
    %v787 = vld [vmem:[#allocation5 + $0xe20] sm:$0xff]
    %v788 = vld [vmem:[#allocation5 + $0xe28] sm:$0xff]
    %v789 = vld [vmem:[#allocation5 + $0xe30] sm:$0xff]
    %v790 = vld [vmem:[#allocation5 + $0xe38] sm:$0xff]
    %v791 = vld [vmem:[#allocation5 + $0xe40] sm:$0xff]
    %v792 = vld [vmem:[#allocation5 + $0xe48] sm:$0xff]
    %v793 = vld [vmem:[#allocation5 + $0xe50] sm:$0xff]
    %v794 = vld [vmem:[#allocation5 + $0xe58] sm:$0xff]
    %v795 = vld [vmem:[#allocation5 + $0xe60] sm:$0xff]
    %v796 = vld [vmem:[#allocation5 + $0xe68] sm:$0xff]
    %v797 = vld [vmem:[#allocation5 + $0xe70] sm:$0xff]
    %v798 = vld [vmem:[#allocation5 + $0xe78] sm:$0xff]
    %v799 = vld [vmem:[#allocation5 + $0xe80] sm:$0xff]
    %v800 = vld [vmem:[#allocation5 + $0xe88] sm:$0xff]
    %v801 = vld [vmem:[#allocation5 + $0xe90] sm:$0xff]
    %v802 = vld [vmem:[#allocation5 + $0xe98] sm:$0xff]
    %v803 = vld [vmem:[#allocation5 + $0xea0] sm:$0xff]
    %v804 = vld [vmem:[#allocation5 + $0xea8] sm:$0xff]
    %v805 = vld [vmem:[#allocation5 + $0xeb0] sm:$0xff]
    %v806 = vld [vmem:[#allocation5 + $0xeb8] sm:$0xff]
    %v807 = vld [vmem:[#allocation5 + $0xec0] sm:$0xff]
    %v808 = vld [vmem:[#allocation5 + $0xec8] sm:$0xff]
    %v809 = vld [vmem:[#allocation5 + $0xed0] sm:$0xff]
    %v810 = vld [vmem:[#allocation5 + $0xed8] sm:$0xff]
    %v811 = vld [vmem:[#allocation5 + $0xee0] sm:$0xff]
    %v812 = vld [vmem:[#allocation5 + $0xee8] sm:$0xff]
    %v813 = vld [vmem:[#allocation5 + $0xef0] sm:$0xff]
    %v814 = vld [vmem:[#allocation5 + $0xef8] sm:$0xff]
    %v815 = vld [vmem:[#allocation5 + $0xf00] sm:$0xff]
    %v816 = vld [vmem:[#allocation5 + $0xf08] sm:$0xff]
    %v817 = vld [vmem:[#allocation5 + $0xf10] sm:$0xff]
    %v818 = vld [vmem:[#allocation5 + $0xf18] sm:$0xff]
    %v819 = vld [vmem:[#allocation5 + $0xf20] sm:$0xff]
    %v820 = vld [vmem:[#allocation5 + $0xf28] sm:$0xff]
    %v821 = vld [vmem:[#allocation5 + $0xf30] sm:$0xff]
    %v822 = vld [vmem:[#allocation5 + $0xf38] sm:$0xff]
    %v823 = vld [vmem:[#allocation5 + $0xf40] sm:$0xff]
    %v824 = vld [vmem:[#allocation5 + $0xf48] sm:$0xff]
    %v825 = vld [vmem:[#allocation5 + $0xf50] sm:$0xff]
    %v826 = vld [vmem:[#allocation5 + $0xf58] sm:$0xff]
    %v827 = vld [vmem:[#allocation5 + $0xf60] sm:$0xff]
    %v828 = vld [vmem:[#allocation5 + $0xf68] sm:$0xff]
    %v829 = vld [vmem:[#allocation5 + $0xf70] sm:$0xff]
    %v830 = vld [vmem:[#allocation5 + $0xf78] sm:$0xff]
    %v831 = vld [vmem:[#allocation5 + $0xf80] sm:$0xff]
    %v832 = vld [vmem:[#allocation5 + $0xf88] sm:$0xff]
    %v833 = vld [vmem:[#allocation5 + $0xf90] sm:$0xff]
    %v834 = vld [vmem:[#allocation5 + $0xf98] sm:$0xff]
    %v835 = vld [vmem:[#allocation5 + $0xfa0] sm:$0xff]
    %v836 = vld [vmem:[#allocation5 + $0xfa8] sm:$0xff]
    %v837 = vld [vmem:[#allocation5 + $0xfb0] sm:$0xff]
    %v838 = vld [vmem:[#allocation5 + $0xfb8] sm:$0xff]
    %v839 = vld [vmem:[#allocation5 + $0xfc0] sm:$0xff]
    %v840 = vld [vmem:[#allocation5 + $0xfc8] sm:$0xff]
    %v841 = vld [vmem:[#allocation5 + $0xfd0] sm:$0xff]
    %v842 = vld [vmem:[#allocation5 + $0xfd8] sm:$0xff]
    %v843 = vld [vmem:[#allocation5 + $0xfe0] sm:$0xff]
    %v844 = vld [vmem:[#allocation5 + $0xfe8] sm:$0xff]
    %v845 = vld [vmem:[#allocation5 + $0xff0] sm:$0xff]
    %v846 = vld [vmem:[#allocation5 + $0xff8] sm:$0xff]
    %v847 = vld [vmem:[#allocation5 + $0x1000] sm:$0xff]
    %v848 = vld [vmem:[#allocation5 + $0x1008] sm:$0xff]
    %v849 = vld [vmem:[#allocation5 + $0x1010] sm:$0xff]
    %v850 = vld [vmem:[#allocation5 + $0x1018] sm:$0xff]
    %v851 = vld [vmem:[#allocation5 + $0x1020] sm:$0xff]
    %v852 = vld [vmem:[#allocation5 + $0x1028] sm:$0xff]
    %v853 = vld [vmem:[#allocation5 + $0x1030] sm:$0xff]
    %v854 = vld [vmem:[#allocation5 + $0x1038] sm:$0xff]
    %v855 = vld [vmem:[#allocation5 + $0x1040] sm:$0xff]
    %v856 = vld [vmem:[#allocation5 + $0x1048] sm:$0xff]
    %v857 = vld [vmem:[#allocation5 + $0x1050] sm:$0xff]
    %v858 = vld [vmem:[#allocation5 + $0x1058] sm:$0xff]
    %v859 = vld [vmem:[#allocation5 + $0x1060] sm:$0xff]
    %v860 = vld [vmem:[#allocation5 + $0x1068] sm:$0xff]
    %v861 = vld [vmem:[#allocation5 + $0x1070] sm:$0xff]
    %v862 = vld [vmem:[#allocation5 + $0x1078] sm:$0xff]
    %v863 = vld [vmem:[#allocation5 + $0x1080] sm:$0xff]
    %v864 = vld [vmem:[#allocation5 + $0x1088] sm:$0xff]
    %v865 = vld [vmem:[#allocation5 + $0x1090] sm:$0xff]
    %v866 = vld [vmem:[#allocation5 + $0x1098] sm:$0xff]
    %v867 = vld [vmem:[#allocation5 + $0x10a0] sm:$0xff]
    %v868 = vld [vmem:[#allocation5 + $0x10a8] sm:$0xff]
    %v869 = vld [vmem:[#allocation5 + $0x10b0] sm:$0xff]
    %v870 = vld [vmem:[#allocation5 + $0x10b8] sm:$0xff]
    %v871 = vld [vmem:[#allocation5 + $0x10c0] sm:$0xff]
    %v872 = vld [vmem:[#allocation5 + $0x10c8] sm:$0xff]
    %v873 = vld [vmem:[#allocation5 + $0x10d0] sm:$0xff]
    %v874 = vld [vmem:[#allocation5 + $0x10d8] sm:$0xff]
    %v875 = vld [vmem:[#allocation5 + $0x10e0] sm:$0xff]
    %v876 = vld [vmem:[#allocation5 + $0x10e8] sm:$0xff]
    %v877 = vld [vmem:[#allocation5 + $0x10f0] sm:$0xff]
    %v878 = vld [vmem:[#allocation5 + $0x10f8] sm:$0xff]
    %v879 = vld [vmem:[#allocation5 + $0x1100] sm:$0xff]
    %v880 = vld [vmem:[#allocation5 + $0x1108] sm:$0xff]
    %v881 = vld [vmem:[#allocation5 + $0x1110] sm:$0xff]
    %v882 = vld [vmem:[#allocation5 + $0x1118] sm:$0xff]
    %v883 = vld [vmem:[#allocation5 + $0x1120] sm:$0xff]
    %v884 = vld [vmem:[#allocation5 + $0x1128] sm:$0xff]
    %v885 = vld [vmem:[#allocation5 + $0x1130] sm:$0xff]
    %v886 = vld [vmem:[#allocation5 + $0x1138] sm:$0xff]
    %v887 = vld [vmem:[#allocation5 + $0x1140] sm:$0xff]
    %v888 = vld [vmem:[#allocation5 + $0x1148] sm:$0xff]
    %v889 = vld [vmem:[#allocation5 + $0x1150] sm:$0xff]
    %v890 = vld [vmem:[#allocation5 + $0x1158] sm:$0xff]
    %v891 = vld [vmem:[#allocation5 + $0x1160] sm:$0xff]
    %v892 = vld [vmem:[#allocation5 + $0x1168] sm:$0xff]
    %v893 = vld [vmem:[#allocation5 + $0x1170] sm:$0xff]
    %v894 = vld [vmem:[#allocation5 + $0x1178] sm:$0xff]
    %v895 = vld [vmem:[#allocation5 + $0x1180] sm:$0xff]
    %v896 = vld [vmem:[#allocation5 + $0x1188] sm:$0xff]
    %v897 = vld [vmem:[#allocation5 + $0x1190] sm:$0xff]
    %v898 = vld [vmem:[#allocation5 + $0x1198] sm:$0xff]
    %v899 = vld [vmem:[#allocation5 + $0x11a0] sm:$0xff]
    %v900 = vld [vmem:[#allocation5 + $0x11a8] sm:$0xff]
    %v901 = vld [vmem:[#allocation5 + $0x11b0] sm:$0xff]
    %v902 = vld [vmem:[#allocation5 + $0x11b8] sm:$0xff]
    %v903 = vld [vmem:[#allocation5 + $0x11c0] sm:$0xff]
    %v904 = vld [vmem:[#allocation5 + $0x11c8] sm:$0xff]
    %v905 = vld [vmem:[#allocation5 + $0x11d0] sm:$0xff]
    %v906 = vld [vmem:[#allocation5 + $0x11d8] sm:$0xff]
    %v907 = vld [vmem:[#allocation5 + $0x11e0] sm:$0xff]
    %v908 = vld [vmem:[#allocation5 + $0x11e8] sm:$0xff]
    %v909 = vld [vmem:[#allocation5 + $0x11f0] sm:$0xff]
    %v910 = vld [vmem:[#allocation5 + $0x11f8] sm:$0xff]
    %v911 = vld [vmem:[#allocation5 + $0x1200] sm:$0xff]
    %v912 = vld [vmem:[#allocation5 + $0x1208] sm:$0xff]
    %v913 = vld [vmem:[#allocation5 + $0x1210] sm:$0xff]
    %v914 = vld [vmem:[#allocation5 + $0x1218] sm:$0xff]
    %v915 = vld [vmem:[#allocation5 + $0x1220] sm:$0xff]
    %v916 = vld [vmem:[#allocation5 + $0x1228] sm:$0xff]
    %v917 = vld [vmem:[#allocation5 + $0x1230] sm:$0xff]
    %v918 = vld [vmem:[#allocation5 + $0x1238] sm:$0xff]
    %v919 = vld [vmem:[#allocation5 + $0x1240] sm:$0xff]
    %v920 = vld [vmem:[#allocation5 + $0x1248] sm:$0xff]
    %v921 = vld [vmem:[#allocation5 + $0x1250] sm:$0xff]
    %v922 = vld [vmem:[#allocation5 + $0x1258] sm:$0xff]
    %v923 = vld [vmem:[#allocation5 + $0x1260] sm:$0xff]
    %v924 = vld [vmem:[#allocation5 + $0x1268] sm:$0xff]
    %v925 = vld [vmem:[#allocation5 + $0x1270] sm:$0xff]
    %v926 = vld [vmem:[#allocation5 + $0x1278] sm:$0xff]
    %v927 = vld [vmem:[#allocation5 + $0x1280] sm:$0xff]
    %v928 = vld [vmem:[#allocation5 + $0x1288] sm:$0xff]
    %v929 = vld [vmem:[#allocation5 + $0x1290] sm:$0xff]
    %v930 = vld [vmem:[#allocation5 + $0x1298] sm:$0xff]
    %v931 = vld [vmem:[#allocation5 + $0x12a0] sm:$0xff]
    %v932 = vld [vmem:[#allocation5 + $0x12a8] sm:$0xff]
    %v933 = vld [vmem:[#allocation5 + $0x12b0] sm:$0xff]
    %v934 = vld [vmem:[#allocation5 + $0x12b8] sm:$0xff]
    %v935 = vld [vmem:[#allocation5 + $0x12c0] sm:$0xff]
    %v936 = vld [vmem:[#allocation5 + $0x12c8] sm:$0xff]
    %v937 = vld [vmem:[#allocation5 + $0x12d0] sm:$0xff]
    %v938 = vld [vmem:[#allocation5 + $0x12d8] sm:$0xff]
    %v939 = vld [vmem:[#allocation5 + $0x12e0] sm:$0xff]
    %v940 = vld [vmem:[#allocation5 + $0x12e8] sm:$0xff]
    %v941 = vld [vmem:[#allocation5 + $0x12f0] sm:$0xff]
    %v942 = vld [vmem:[#allocation5 + $0x12f8] sm:$0xff]
    %v943 = vld [vmem:[#allocation5 + $0x1300] sm:$0xff]
    %v944 = vld [vmem:[#allocation5 + $0x1308] sm:$0xff]
    %v945 = vld [vmem:[#allocation5 + $0x1310] sm:$0xff]
    %v946 = vld [vmem:[#allocation5 + $0x1318] sm:$0xff]
    %v947 = vld [vmem:[#allocation5 + $0x1320] sm:$0xff]
    %v948 = vld [vmem:[#allocation5 + $0x1328] sm:$0xff]
    %v949 = vld [vmem:[#allocation5 + $0x1330] sm:$0xff]
    %v950 = vld [vmem:[#allocation5 + $0x1338] sm:$0xff]
    %v951 = vld [vmem:[#allocation5 + $0x1340] sm:$0xff]
    %v952 = vld [vmem:[#allocation5 + $0x1348] sm:$0xff]
    %v953 = vld [vmem:[#allocation5 + $0x1350] sm:$0xff]
    %v954 = vld [vmem:[#allocation5 + $0x1358] sm:$0xff]
    %v955 = vld [vmem:[#allocation5 + $0x1360] sm:$0xff]
    %v956 = vld [vmem:[#allocation5 + $0x1368] sm:$0xff]
    %v957 = vld [vmem:[#allocation5 + $0x1370] sm:$0xff]
    %v958 = vld [vmem:[#allocation5 + $0x1378] sm:$0xff]
    %v959 = vld [vmem:[#allocation5 + $0x1380] sm:$0xff]
    %v960 = vld [vmem:[#allocation5 + $0x1388] sm:$0xff]
    %v961 = vld [vmem:[#allocation5 + $0x1390] sm:$0xff]
    %v962 = vld [vmem:[#allocation5 + $0x1398] sm:$0xff]
    %v963 = vld [vmem:[#allocation5 + $0x13a0] sm:$0xff]
    %v964 = vld [vmem:[#allocation5 + $0x13a8] sm:$0xff]
    %v965 = vld [vmem:[#allocation5 + $0x13b0] sm:$0xff]
    %v966 = vld [vmem:[#allocation5 + $0x13b8] sm:$0xff]
    %v967 = vld [vmem:[#allocation5 + $0x13c0] sm:$0xff]
    %v968 = vld [vmem:[#allocation5 + $0x13c8] sm:$0xff]
    %v969 = vld [vmem:[#allocation5 + $0x13d0] sm:$0xff]
    %v970 = vld [vmem:[#allocation5 + $0x13d8] sm:$0xff]
    %v971 = vld [vmem:[#allocation5 + $0x13e0] sm:$0xff]
    %v972 = vld [vmem:[#allocation5 + $0x13e8] sm:$0xff]
    %v973 = vld [vmem:[#allocation5 + $0x13f0] sm:$0xff]
    %v974 = vld [vmem:[#allocation5 + $0x13f8] sm:$0xff]
    %v975 = vld [vmem:[#allocation5 + $0x1400] sm:$0xff]
    %v976 = vld [vmem:[#allocation5 + $0x1408] sm:$0xff]
    %v977 = vld [vmem:[#allocation5 + $0x1410] sm:$0xff]
    %v978 = vld [vmem:[#allocation5 + $0x1418] sm:$0xff]
    %v979 = vld [vmem:[#allocation5 + $0x1420] sm:$0xff]
    %v980 = vld [vmem:[#allocation5 + $0x1428] sm:$0xff]
    %v981 = vld [vmem:[#allocation5 + $0x1430] sm:$0xff]
    %v982 = vld [vmem:[#allocation5 + $0x1438] sm:$0xff]
    %v983 = vld [vmem:[#allocation5 + $0x1440] sm:$0xff]
    %v984 = vld [vmem:[#allocation5 + $0x1448] sm:$0xff]
    %v985 = vld [vmem:[#allocation5 + $0x1450] sm:$0xff]
    %v986 = vld [vmem:[#allocation5 + $0x1458] sm:$0xff]
    %v987 = vld [vmem:[#allocation5 + $0x1460] sm:$0xff]
    %v988 = vld [vmem:[#allocation5 + $0x1468] sm:$0xff]
    %v989 = vld [vmem:[#allocation5 + $0x1470] sm:$0xff]
    %v990 = vld [vmem:[#allocation5 + $0x1478] sm:$0xff]
    %v991 = vld [vmem:[#allocation5 + $0x1480] sm:$0xff]
    %v992 = vld [vmem:[#allocation5 + $0x1488] sm:$0xff]
    %v993 = vld [vmem:[#allocation5 + $0x1490] sm:$0xff]
    %v994 = vld [vmem:[#allocation5 + $0x1498] sm:$0xff]
    %v995 = vld [vmem:[#allocation5 + $0x14a0] sm:$0xff]
    %v996 = vld [vmem:[#allocation5 + $0x14a8] sm:$0xff]
    %v997 = vld [vmem:[#allocation5 + $0x14b0] sm:$0xff]
    %v998 = vld [vmem:[#allocation5 + $0x14b8] sm:$0xff]
    %v999 = vld [vmem:[#allocation5 + $0x14c0] sm:$0xff]
    %v1000 = vld [vmem:[#allocation5 + $0x14c8] sm:$0xff]
    %v1001 = vld [vmem:[#allocation5 + $0x14d0] sm:$0xff]
    %v1002 = vld [vmem:[#allocation5 + $0x14d8] sm:$0xff]
    %v1003 = vld [vmem:[#allocation5 + $0x14e0] sm:$0xff]
    %v1004 = vld [vmem:[#allocation5 + $0x14e8] sm:$0xff]
    %v1005 = vld [vmem:[#allocation5 + $0x14f0] sm:$0xff]
    %v1006 = vld [vmem:[#allocation5 + $0x14f8] sm:$0xff]
    %v1007 = vld [vmem:[#allocation5 + $0x1500] sm:$0xff]
    %v1008 = vld [vmem:[#allocation5 + $0x1508] sm:$0xff]
    %v1009 = vld [vmem:[#allocation5 + $0x1510] sm:$0xff]
    %v1010 = vld [vmem:[#allocation5 + $0x1518] sm:$0xff]
    %v1011 = vld [vmem:[#allocation5 + $0x1520] sm:$0xff]
    %v1012 = vld [vmem:[#allocation5 + $0x1528] sm:$0xff]
    %v1013 = vld [vmem:[#allocation5 + $0x1530] sm:$0xff]
    %v1014 = vld [vmem:[#allocation5 + $0x1538] sm:$0xff]
    %v1015 = vld [vmem:[#allocation5 + $0x1540] sm:$0xff]
    %v1016 = vld [vmem:[#allocation5 + $0x1548] sm:$0xff]
    %v1017 = vld [vmem:[#allocation5 + $0x1550] sm:$0xff]
    %v1018 = vld [vmem:[#allocation5 + $0x1558] sm:$0xff]
    %v1019 = vld [vmem:[#allocation5 + $0x1560] sm:$0xff]
    %v1020 = vld [vmem:[#allocation5 + $0x1568] sm:$0xff]
    %v1021 = vld [vmem:[#allocation5 + $0x1570] sm:$0xff]
    %v1022 = vld [vmem:[#allocation5 + $0x1578] sm:$0xff]
    %v1023 = vld [vmem:[#allocation5 + $0x1580] sm:$0xff]
    %v1024 = vld [vmem:[#allocation5 + $0x1588] sm:$0xff]
    %v1025 = vld [vmem:[#allocation5 + $0x1590] sm:$0xff]
    %v1026 = vld [vmem:[#allocation5 + $0x1598] sm:$0xff]
    %v1027 = vld [vmem:[#allocation5 + $0x15a0] sm:$0xff]
    %v1028 = vld [vmem:[#allocation5 + $0x15a8] sm:$0xff]
    %v1029 = vld [vmem:[#allocation5 + $0x15b0] sm:$0xff]
    %v1030 = vld [vmem:[#allocation5 + $0x15b8] sm:$0xff]
    %v1031 = vld [vmem:[#allocation5 + $0x15c0] sm:$0xff]
    %v1032 = vld [vmem:[#allocation5 + $0x15c8] sm:$0xff]
    %v1033 = vld [vmem:[#allocation5 + $0x15d0] sm:$0xff]
    %v1034 = vld [vmem:[#allocation5 + $0x15d8] sm:$0xff]
    %v1035 = vld [vmem:[#allocation5 + $0x15e0] sm:$0xff]
    %v1036 = vld [vmem:[#allocation5 + $0x15e8] sm:$0xff]
    %v1037 = vld [vmem:[#allocation5 + $0x15f0] sm:$0xff]
    %v1038 = vld [vmem:[#allocation5 + $0x15f8] sm:$0xff]
    %v1039 = vld [vmem:[#allocation5 + $0x1600] sm:$0xff]
    %v1040 = vld [vmem:[#allocation5 + $0x1608] sm:$0xff]
    %v1041 = vld [vmem:[#allocation5 + $0x1610] sm:$0xff]
    %v1042 = vld [vmem:[#allocation5 + $0x1618] sm:$0xff]
    %v1043 = vld [vmem:[#allocation5 + $0x1620] sm:$0xff]
    %v1044 = vld [vmem:[#allocation5 + $0x1628] sm:$0xff]
    %v1045 = vld [vmem:[#allocation5 + $0x1630] sm:$0xff]
    %v1046 = vld [vmem:[#allocation5 + $0x1638] sm:$0xff]
    %v1047 = vld [vmem:[#allocation5 + $0x1640] sm:$0xff]
    %v1048 = vld [vmem:[#allocation5 + $0x1648] sm:$0xff]
    %v1049 = vld [vmem:[#allocation5 + $0x1650] sm:$0xff]
    %v1050 = vld [vmem:[#allocation5 + $0x1658] sm:$0xff]
    %v1051 = vld [vmem:[#allocation5 + $0x1660] sm:$0xff]
    %v1052 = vld [vmem:[#allocation5 + $0x1668] sm:$0xff]
    %v1053 = vld [vmem:[#allocation5 + $0x1670] sm:$0xff]
    %v1054 = vld [vmem:[#allocation5 + $0x1678] sm:$0xff]
    %v1055 = vld [vmem:[#allocation5 + $0x1680] sm:$0xff]
    %v1056 = vld [vmem:[#allocation5 + $0x1688] sm:$0xff]
    %v1057 = vld [vmem:[#allocation5 + $0x1690] sm:$0xff]
    %v1058 = vld [vmem:[#allocation5 + $0x1698] sm:$0xff]
    %v1059 = vld [vmem:[#allocation5 + $0x16a0] sm:$0xff]
    %v1060 = vld [vmem:[#allocation5 + $0x16a8] sm:$0xff]
    %v1061 = vld [vmem:[#allocation5 + $0x16b0] sm:$0xff]
    %v1062 = vld [vmem:[#allocation5 + $0x16b8] sm:$0xff]
    %v1063 = vld [vmem:[#allocation5 + $0x16c0] sm:$0xff]
    %v1064 = vld [vmem:[#allocation5 + $0x16c8] sm:$0xff]
    %v1065 = vld [vmem:[#allocation5 + $0x16d0] sm:$0xff]
    %v1066 = vld [vmem:[#allocation5 + $0x16d8] sm:$0xff]
    %v1067 = vld [vmem:[#allocation5 + $0x16e0] sm:$0xff]
    %v1068 = vld [vmem:[#allocation5 + $0x16e8] sm:$0xff]
    %v1069 = vld [vmem:[#allocation5 + $0x16f0] sm:$0xff]
    %v1070 = vld [vmem:[#allocation5 + $0x16f8] sm:$0xff]
    %v1071 = vld [vmem:[#allocation5 + $0x1700] sm:$0xff]
    %v1072 = vld [vmem:[#allocation5 + $0x1708] sm:$0xff]
    %v1073 = vld [vmem:[#allocation5 + $0x1710] sm:$0xff]
    %v1074 = vld [vmem:[#allocation5 + $0x1718] sm:$0xff]
    %v1075 = vld [vmem:[#allocation5 + $0x1720] sm:$0xff]
    %v1076 = vld [vmem:[#allocation5 + $0x1728] sm:$0xff]
    %v1077 = vld [vmem:[#allocation5 + $0x1730] sm:$0xff]
    %v1078 = vld [vmem:[#allocation5 + $0x1738] sm:$0xff]
    %v1079 = vld [vmem:[#allocation5 + $0x1740] sm:$0xff]
    %v1080 = vld [vmem:[#allocation5 + $0x1748] sm:$0xff]
    %v1081 = vld [vmem:[#allocation5 + $0x1750] sm:$0xff]
    %v1082 = vld [vmem:[#allocation5 + $0x1758] sm:$0xff]
    %v1083 = vld [vmem:[#allocation5 + $0x1760] sm:$0xff]
    %v1084 = vld [vmem:[#allocation5 + $0x1768] sm:$0xff]
    %v1085 = vld [vmem:[#allocation5 + $0x1770] sm:$0xff]
    %v1086 = vld [vmem:[#allocation5 + $0x1778] sm:$0xff]
    %v1087 = vld [vmem:[#allocation5 + $0x1780] sm:$0xff]
    %v1088 = vld [vmem:[#allocation5 + $0x1788] sm:$0xff]
    %v1089 = vld [vmem:[#allocation5 + $0x1790] sm:$0xff]
    %v1090 = vld [vmem:[#allocation5 + $0x1798] sm:$0xff]
    %v1091 = vld [vmem:[#allocation5 + $0x17a0] sm:$0xff]
    %v1092 = vld [vmem:[#allocation5 + $0x17a8] sm:$0xff]
    %v1093 = vld [vmem:[#allocation5 + $0x17b0] sm:$0xff]
    %v1094 = vld [vmem:[#allocation5 + $0x17b8] sm:$0xff]
    %v1095 = vld [vmem:[#allocation5 + $0x17c0] sm:$0xff]
    %v1096 = vld [vmem:[#allocation5 + $0x17c8] sm:$0xff]
    %v1097 = vld [vmem:[#allocation5 + $0x17d0] sm:$0xff]
    %v1098 = vld [vmem:[#allocation5 + $0x17d8] sm:$0xff]
    %v1099 = vld [vmem:[#allocation5 + $0x17e0] sm:$0xff]
    %v1100 = vld [vmem:[#allocation5 + $0x17e8] sm:$0xff]
    %v1101 = vld [vmem:[#allocation5 + $0x17f0] sm:$0xff]
    %v1102 = vld [vmem:[#allocation5 + $0x17f8] sm:$0xff]
    %v1103 = vld [vmem:[#allocation5 + $0x1800] sm:$0xff]
    %v1104 = vld [vmem:[#allocation5 + $0x1808] sm:$0xff]
    %v1105 = vld [vmem:[#allocation5 + $0x1810] sm:$0xff]
    %v1106 = vld [vmem:[#allocation5 + $0x1818] sm:$0xff]
    %v1107 = vld [vmem:[#allocation5 + $0x1820] sm:$0xff]
    %v1108 = vld [vmem:[#allocation5 + $0x1828] sm:$0xff]
    %v1109 = vld [vmem:[#allocation5 + $0x1830] sm:$0xff]
    %v1110 = vld [vmem:[#allocation5 + $0x1838] sm:$0xff]
    %v1111 = vld [vmem:[#allocation5 + $0x1840] sm:$0xff]
    %v1112 = vld [vmem:[#allocation5 + $0x1848] sm:$0xff]
    %v1113 = vld [vmem:[#allocation5 + $0x1850] sm:$0xff]
    %v1114 = vld [vmem:[#allocation5 + $0x1858] sm:$0xff]
    %v1115 = vld [vmem:[#allocation5 + $0x1860] sm:$0xff]
    %v1116 = vld [vmem:[#allocation5 + $0x1868] sm:$0xff]
    %v1117 = vld [vmem:[#allocation5 + $0x1870] sm:$0xff]
    %v1118 = vld [vmem:[#allocation5 + $0x1878] sm:$0xff]
    %v1119 = vld [vmem:[#allocation5 + $0x1880] sm:$0xff]
    %v1120 = vld [vmem:[#allocation5 + $0x1888] sm:$0xff]
    %v1121 = vld [vmem:[#allocation5 + $0x1890] sm:$0xff]
    %v1122 = vld [vmem:[#allocation5 + $0x1898] sm:$0xff]
    %v1123 = vld [vmem:[#allocation5 + $0x18a0] sm:$0xff]
    %v1124 = vld [vmem:[#allocation5 + $0x18a8] sm:$0xff]
    %v1125 = vld [vmem:[#allocation5 + $0x18b0] sm:$0xff]
    %v1126 = vld [vmem:[#allocation5 + $0x18b8] sm:$0xff]
    %v1127 = vld [vmem:[#allocation5 + $0x18c0] sm:$0xff]
    %v1128 = vld [vmem:[#allocation5 + $0x18c8] sm:$0xff]
    %v1129 = vld [vmem:[#allocation5 + $0x18d0] sm:$0xff]
    %v1130 = vld [vmem:[#allocation5 + $0x18d8] sm:$0xff]
    %v1131 = vld [vmem:[#allocation5 + $0x18e0] sm:$0xff]
    %v1132 = vld [vmem:[#allocation5 + $0x18e8] sm:$0xff]
    %v1133 = vld [vmem:[#allocation5 + $0x18f0] sm:$0xff]
    %v1134 = vld [vmem:[#allocation5 + $0x18f8] sm:$0xff]
    %v1135 = vld [vmem:[#allocation5 + $0x1900] sm:$0xff]
    %v1136 = vld [vmem:[#allocation5 + $0x1908] sm:$0xff]
    %v1137 = vld [vmem:[#allocation5 + $0x1910] sm:$0xff]
    %v1138 = vld [vmem:[#allocation5 + $0x1918] sm:$0xff]
    %v1139 = vld [vmem:[#allocation5 + $0x1920] sm:$0xff]
    %v1140 = vld [vmem:[#allocation5 + $0x1928] sm:$0xff]
    %v1141 = vld [vmem:[#allocation5 + $0x1930] sm:$0xff]
    %v1142 = vld [vmem:[#allocation5 + $0x1938] sm:$0xff]
    %v1143 = vld [vmem:[#allocation5 + $0x1940] sm:$0xff]
    %v1144 = vld [vmem:[#allocation5 + $0x1948] sm:$0xff]
    %v1145 = vld [vmem:[#allocation5 + $0x1950] sm:$0xff]
    %v1146 = vld [vmem:[#allocation5 + $0x1958] sm:$0xff]
    %v1147 = vld [vmem:[#allocation5 + $0x1960] sm:$0xff]
    %v1148 = vld [vmem:[#allocation5 + $0x1968] sm:$0xff]
    %v1149 = vld [vmem:[#allocation5 + $0x1970] sm:$0xff]
    %v1150 = vld [vmem:[#allocation5 + $0x1978] sm:$0xff]
    %v1151 = vld [vmem:[#allocation5 + $0x1980] sm:$0xff]
    %v1152 = vld [vmem:[#allocation5 + $0x1988] sm:$0xff]
    %v1153 = vld [vmem:[#allocation5 + $0x1990] sm:$0xff]
    %v1154 = vld [vmem:[#allocation5 + $0x1998] sm:$0xff]
    %v1155 = vld [vmem:[#allocation5 + $0x19a0] sm:$0xff]
    %v1156 = vld [vmem:[#allocation5 + $0x19a8] sm:$0xff]
    %v1157 = vld [vmem:[#allocation5 + $0x19b0] sm:$0xff]
    %v1158 = vld [vmem:[#allocation5 + $0x19b8] sm:$0xff]
    %v1159 = vld [vmem:[#allocation5 + $0x19c0] sm:$0xff]
    %v1160 = vld [vmem:[#allocation5 + $0x19c8] sm:$0xff]
    %v1161 = vld [vmem:[#allocation5 + $0x19d0] sm:$0xff]
    %v1162 = vld [vmem:[#allocation5 + $0x19d8] sm:$0xff]
    %v1163 = vld [vmem:[#allocation5 + $0x19e0] sm:$0xff]
    %v1164 = vld [vmem:[#allocation5 + $0x19e8] sm:$0xff]
    %v1165 = vld [vmem:[#allocation5 + $0x19f0] sm:$0xff]
    %v1166 = vld [vmem:[#allocation5 + $0x19f8] sm:$0xff]
    %v1167 = vld [vmem:[#allocation5 + $0x1a00] sm:$0xff]
    %v1168 = vld [vmem:[#allocation5 + $0x1a08] sm:$0xff]
    %v1169 = vld [vmem:[#allocation5 + $0x1a10] sm:$0xff]
    %v1170 = vld [vmem:[#allocation5 + $0x1a18] sm:$0xff]
    %v1171 = vld [vmem:[#allocation5 + $0x1a20] sm:$0xff]
    %v1172 = vld [vmem:[#allocation5 + $0x1a28] sm:$0xff]
    %v1173 = vld [vmem:[#allocation5 + $0x1a30] sm:$0xff]
    %v1174 = vld [vmem:[#allocation5 + $0x1a38] sm:$0xff]
    %v1175 = vld [vmem:[#allocation5 + $0x1a40] sm:$0xff]
    %v1176 = vld [vmem:[#allocation5 + $0x1a48] sm:$0xff]
    %v1177 = vld [vmem:[#allocation5 + $0x1a50] sm:$0xff]
    %v1178 = vld [vmem:[#allocation5 + $0x1a58] sm:$0xff]
    %v1179 = vld [vmem:[#allocation5 + $0x1a60] sm:$0xff]
    %v1180 = vld [vmem:[#allocation5 + $0x1a68] sm:$0xff]
    %v1181 = vld [vmem:[#allocation5 + $0x1a70] sm:$0xff]
    %v1182 = vld [vmem:[#allocation5 + $0x1a78] sm:$0xff]
    %v1183 = vld [vmem:[#allocation5 + $0x1a80] sm:$0xff]
    %v1184 = vld [vmem:[#allocation5 + $0x1a88] sm:$0xff]
    %v1185 = vld [vmem:[#allocation5 + $0x1a90] sm:$0xff]
    %v1186 = vld [vmem:[#allocation5 + $0x1a98] sm:$0xff]
    %v1187 = vld [vmem:[#allocation5 + $0x1aa0] sm:$0xff]
    %v1188 = vld [vmem:[#allocation5 + $0x1aa8] sm:$0xff]
    %v1189 = vld [vmem:[#allocation5 + $0x1ab0] sm:$0xff]
    %v1190 = vld [vmem:[#allocation5 + $0x1ab8] sm:$0xff]
    %v1191 = vld [vmem:[#allocation5 + $0x1ac0] sm:$0xff]
    %v1192 = vld [vmem:[#allocation5 + $0x1ac8] sm:$0xff]
    %v1193 = vld [vmem:[#allocation5 + $0x1ad0] sm:$0xff]
    %v1194 = vld [vmem:[#allocation5 + $0x1ad8] sm:$0xff]
    %v1195 = vld [vmem:[#allocation5 + $0x1ae0] sm:$0xff]
    %v1196 = vld [vmem:[#allocation5 + $0x1ae8] sm:$0xff]
    %v1197 = vld [vmem:[#allocation5 + $0x1af0] sm:$0xff]
    %v1198 = vld [vmem:[#allocation5 + $0x1af8] sm:$0xff]
    %v1199 = vld [vmem:[#allocation5 + $0x1b00] sm:$0xff]
    %v1200 = vld [vmem:[#allocation5 + $0x1b08] sm:$0xff]
    %v1201 = vld [vmem:[#allocation5 + $0x1b10] sm:$0xff]
    %v1202 = vld [vmem:[#allocation5 + $0x1b18] sm:$0xff]
    %v1203 = vld [vmem:[#allocation5 + $0x1b20] sm:$0xff]
    %v1204 = vld [vmem:[#allocation5 + $0x1b28] sm:$0xff]
    %v1205 = vld [vmem:[#allocation5 + $0x1b30] sm:$0xff]
    %v1206 = vld [vmem:[#allocation5 + $0x1b38] sm:$0xff]
    %v1207 = vld [vmem:[#allocation5 + $0x1b40] sm:$0xff]
    %v1208 = vld [vmem:[#allocation5 + $0x1b48] sm:$0xff]
    %v1209 = vld [vmem:[#allocation5 + $0x1b50] sm:$0xff]
    %v1210 = vld [vmem:[#allocation5 + $0x1b58] sm:$0xff]
    %v1211 = vld [vmem:[#allocation5 + $0x1b60] sm:$0xff]
    %v1212 = vld [vmem:[#allocation5 + $0x1b68] sm:$0xff]
    %v1213 = vld [vmem:[#allocation5 + $0x1b70] sm:$0xff]
    %v1214 = vld [vmem:[#allocation5 + $0x1b78] sm:$0xff]
    %v1215 = vld [vmem:[#allocation5 + $0x1b80] sm:$0xff]
    %v1216 = vld [vmem:[#allocation5 + $0x1b88] sm:$0xff]
    %v1217 = vld [vmem:[#allocation5 + $0x1b90] sm:$0xff]
    %v1218 = vld [vmem:[#allocation5 + $0x1b98] sm:$0xff]
    %v1219 = vld [vmem:[#allocation5 + $0x1ba0] sm:$0xff]
    %v1220 = vld [vmem:[#allocation5 + $0x1ba8] sm:$0xff]
    %v1221 = vld [vmem:[#allocation5 + $0x1bb0] sm:$0xff]
    %v1222 = vld [vmem:[#allocation5 + $0x1bb8] sm:$0xff]
    %v1223 = vld [vmem:[#allocation5 + $0x1bc0] sm:$0xff]
    %v1224 = vld [vmem:[#allocation5 + $0x1bc8] sm:$0xff]
    %v1225 = vld [vmem:[#allocation5 + $0x1bd0] sm:$0xff]
    %v1226 = vld [vmem:[#allocation5 + $0x1bd8] sm:$0xff]
    %v1227 = vld [vmem:[#allocation5 + $0x1be0] sm:$0xff]
    %v1228 = vld [vmem:[#allocation5 + $0x1be8] sm:$0xff]
    %v1229 = vld [vmem:[#allocation5 + $0x1bf0] sm:$0xff]
    %v1230 = vld [vmem:[#allocation5 + $0x1bf8] sm:$0xff]
    %v1231 = vld [vmem:[#allocation5 + $0x1c00] sm:$0xff]
    %v1232 = vld [vmem:[#allocation5 + $0x1c08] sm:$0xff]
    %v1233 = vld [vmem:[#allocation5 + $0x1c10] sm:$0xff]
    %v1234 = vld [vmem:[#allocation5 + $0x1c18] sm:$0xff]
    %v1235 = vld [vmem:[#allocation5 + $0x1c20] sm:$0xff]
    %v1236 = vld [vmem:[#allocation5 + $0x1c28] sm:$0xff]
    %v1237 = vld [vmem:[#allocation5 + $0x1c30] sm:$0xff]
    %v1238 = vld [vmem:[#allocation5 + $0x1c38] sm:$0xff]
    %v1239 = vld [vmem:[#allocation5 + $0x1c40] sm:$0xff]
    %v1240 = vld [vmem:[#allocation5 + $0x1c48] sm:$0xff]
    %v1241 = vld [vmem:[#allocation5 + $0x1c50] sm:$0xff]
    %v1242 = vld [vmem:[#allocation5 + $0x1c58] sm:$0xff]
    %v1243 = vld [vmem:[#allocation5 + $0x1c60] sm:$0xff]
    %v1244 = vld [vmem:[#allocation5 + $0x1c68] sm:$0xff]
    %v1245 = vld [vmem:[#allocation5 + $0x1c70] sm:$0xff]
    %v1246 = vld [vmem:[#allocation5 + $0x1c78] sm:$0xff]
    %v1247 = vld [vmem:[#allocation5 + $0x1c80] sm:$0xff]
    %v1248 = vld [vmem:[#allocation5 + $0x1c88] sm:$0xff]
    %v1249 = vld [vmem:[#allocation5 + $0x1c90] sm:$0xff]
    %v1250 = vld [vmem:[#allocation5 + $0x1c98] sm:$0xff]
    %v1251 = vld [vmem:[#allocation5 + $0x1ca0] sm:$0xff]
    %v1252 = vld [vmem:[#allocation5 + $0x1ca8] sm:$0xff]
    %v1253 = vld [vmem:[#allocation5 + $0x1cb0] sm:$0xff]
    %v1254 = vld [vmem:[#allocation5 + $0x1cb8] sm:$0xff]
    %v1255 = vld [vmem:[#allocation5 + $0x1cc0] sm:$0xff]
    %v1256 = vld [vmem:[#allocation5 + $0x1cc8] sm:$0xff]
    %v1257 = vld [vmem:[#allocation5 + $0x1cd0] sm:$0xff]
    %v1258 = vld [vmem:[#allocation5 + $0x1cd8] sm:$0xff]
    %v1259 = vld [vmem:[#allocation5 + $0x1ce0] sm:$0xff]
    %v1260 = vld [vmem:[#allocation5 + $0x1ce8] sm:$0xff]
    %v1261 = vld [vmem:[#allocation5 + $0x1cf0] sm:$0xff]
    %v1262 = vld [vmem:[#allocation5 + $0x1cf8] sm:$0xff]
    %v1263 = vld [vmem:[#allocation5 + $0x1d00] sm:$0xff]
    %v1264 = vld [vmem:[#allocation5 + $0x1d08] sm:$0xff]
    %v1265 = vld [vmem:[#allocation5 + $0x1d10] sm:$0xff]
    %v1266 = vld [vmem:[#allocation5 + $0x1d18] sm:$0xff]
    %v1267 = vld [vmem:[#allocation5 + $0x1d20] sm:$0xff]
    %v1268 = vld [vmem:[#allocation5 + $0x1d28] sm:$0xff]
    %v1269 = vld [vmem:[#allocation5 + $0x1d30] sm:$0xff]
    %v1270 = vld [vmem:[#allocation5 + $0x1d38] sm:$0xff]
    %v1271 = vld [vmem:[#allocation5 + $0x1d40] sm:$0xff]
    %v1272 = vld [vmem:[#allocation5 + $0x1d48] sm:$0xff]
    %v1273 = vld [vmem:[#allocation5 + $0x1d50] sm:$0xff]
    %v1274 = vld [vmem:[#allocation5 + $0x1d58] sm:$0xff]
    %v1275 = vld [vmem:[#allocation5 + $0x1d60] sm:$0xff]
    %v1276 = vld [vmem:[#allocation5 + $0x1d68] sm:$0xff]
    %v1277 = vld [vmem:[#allocation5 + $0x1d70] sm:$0xff]
    %v1278 = vld [vmem:[#allocation5 + $0x1d78] sm:$0xff]
    %v1279 = vld [vmem:[#allocation5 + $0x1d80] sm:$0xff]
    %v1280 = vld [vmem:[#allocation5 + $0x1d88] sm:$0xff]
    %v1281 = vld [vmem:[#allocation5 + $0x1d90] sm:$0xff]
    %v1282 = vld [vmem:[#allocation5 + $0x1d98] sm:$0xff]
    %v1283 = vld [vmem:[#allocation5 + $0x1da0] sm:$0xff]
    %v1284 = vld [vmem:[#allocation5 + $0x1da8] sm:$0xff]
    %v1285 = vld [vmem:[#allocation5 + $0x1db0] sm:$0xff]
    %v1286 = vld [vmem:[#allocation5 + $0x1db8] sm:$0xff]
    %v1287 = vld [vmem:[#allocation5 + $0x1dc0] sm:$0xff]
    %v1288 = vld [vmem:[#allocation5 + $0x1dc8] sm:$0xff]
    %v1289 = vld [vmem:[#allocation5 + $0x1dd0] sm:$0xff]
    %v1290 = vld [vmem:[#allocation5 + $0x1dd8] sm:$0xff]
    %v1291 = vld [vmem:[#allocation5 + $0x1de0] sm:$0xff]
    %v1292 = vld [vmem:[#allocation5 + $0x1de8] sm:$0xff]
    %v1293 = vld [vmem:[#allocation5 + $0x1df0] sm:$0xff]
    %v1294 = vld [vmem:[#allocation5 + $0x1df8] sm:$0xff]
    %v1295 = vld [vmem:[#allocation5 + $0x1e00] sm:$0xff]
    %v1296 = vld [vmem:[#allocation5 + $0x1e08] sm:$0xff]
    %v1297 = vld [vmem:[#allocation5 + $0x1e10] sm:$0xff]
    %v1298 = vld [vmem:[#allocation5 + $0x1e18] sm:$0xff]
    %v1299 = vld [vmem:[#allocation5 + $0x1e20] sm:$0xff]
    %v1300 = vld [vmem:[#allocation5 + $0x1e28] sm:$0xff]
    %v1301 = vld [vmem:[#allocation5 + $0x1e30] sm:$0xff]
    %v1302 = vld [vmem:[#allocation5 + $0x1e38] sm:$0xff]
    %v1303 = vld [vmem:[#allocation5 + $0x1e40] sm:$0xff]
    %v1304 = vld [vmem:[#allocation5 + $0x1e48] sm:$0xff]
    %v1305 = vld [vmem:[#allocation5 + $0x1e50] sm:$0xff]
    %v1306 = vld [vmem:[#allocation5 + $0x1e58] sm:$0xff]
    %v1307 = vld [vmem:[#allocation5 + $0x1e60] sm:$0xff]
    %v1308 = vld [vmem:[#allocation5 + $0x1e68] sm:$0xff]
    %v1309 = vld [vmem:[#allocation5 + $0x1e70] sm:$0xff]
    %v1310 = vld [vmem:[#allocation5 + $0x1e78] sm:$0xff]
    %v1311 = vld [vmem:[#allocation5 + $0x1e80] sm:$0xff]
    %v1312 = vld [vmem:[#allocation5 + $0x1e88] sm:$0xff]
    %v1313 = vld [vmem:[#allocation5 + $0x1e90] sm:$0xff]
    %v1314 = vld [vmem:[#allocation5 + $0x1e98] sm:$0xff]
    %v1315 = vld [vmem:[#allocation5 + $0x1ea0] sm:$0xff]
    %v1316 = vld [vmem:[#allocation5 + $0x1ea8] sm:$0xff]
    %v1317 = vld [vmem:[#allocation5 + $0x1eb0] sm:$0xff]
    %v1318 = vld [vmem:[#allocation5 + $0x1eb8] sm:$0xff]
    %v1319 = vld [vmem:[#allocation5 + $0x1ec0] sm:$0xff]
    %v1320 = vld [vmem:[#allocation5 + $0x1ec8] sm:$0xff]
    %v1321 = vld [vmem:[#allocation5 + $0x1ed0] sm:$0xff]
    %v1322 = vld [vmem:[#allocation5 + $0x1ed8] sm:$0xff]
    %v1323 = vld [vmem:[#allocation5 + $0x1ee0] sm:$0xff]
    %v1324 = vld [vmem:[#allocation5 + $0x1ee8] sm:$0xff]
    %v1325 = vld [vmem:[#allocation5 + $0x1ef0] sm:$0xff]
    %v1326 = vld [vmem:[#allocation5 + $0x1ef8] sm:$0xff]
    %v1327 = vld [vmem:[#allocation5 + $0x1f00] sm:$0xff]
    %v1328 = vld [vmem:[#allocation5 + $0x1f08] sm:$0xff]
    %v1329 = vld [vmem:[#allocation5 + $0x1f10] sm:$0xff]
    %v1330 = vld [vmem:[#allocation5 + $0x1f18] sm:$0xff]
    %v1331 = vld [vmem:[#allocation5 + $0x1f20] sm:$0xff]
    %v1332 = vld [vmem:[#allocation5 + $0x1f28] sm:$0xff]
    %v1333 = vld [vmem:[#allocation5 + $0x1f30] sm:$0xff]
    %v1334 = vld [vmem:[#allocation5 + $0x1f38] sm:$0xff]
    %v1335 = vld [vmem:[#allocation5 + $0x1f40] sm:$0xff]
    %v1336 = vld [vmem:[#allocation5 + $0x1f48] sm:$0xff]
    %v1337 = vld [vmem:[#allocation5 + $0x1f50] sm:$0xff]
    %v1338 = vld [vmem:[#allocation5 + $0x1f58] sm:$0xff]
    %v1339 = vld [vmem:[#allocation5 + $0x1f60] sm:$0xff]
    %v1340 = vld [vmem:[#allocation5 + $0x1f68] sm:$0xff]
    %v1341 = vld [vmem:[#allocation5 + $0x1f70] sm:$0xff]
    %v1342 = vld [vmem:[#allocation5 + $0x1f78] sm:$0xff]
    %v1343 = vld [vmem:[#allocation5 + $0x1f80] sm:$0xff]
    %v1344 = vld [vmem:[#allocation5 + $0x1f88] sm:$0xff]
    %v1345 = vld [vmem:[#allocation5 + $0x1f90] sm:$0xff]
    %v1346 = vld [vmem:[#allocation5 + $0x1f98] sm:$0xff]
    %v1347 = vld [vmem:[#allocation5 + $0x1fa0] sm:$0xff]
    %v1348 = vld [vmem:[#allocation5 + $0x1fa8] sm:$0xff]
    %v1349 = vld [vmem:[#allocation5 + $0x1fb0] sm:$0xff]
    %v1350 = vld [vmem:[#allocation5 + $0x1fb8] sm:$0xff]
    %v1351 = vld [vmem:[#allocation5 + $0x1fc0] sm:$0xff]
    %v1352 = vld [vmem:[#allocation5 + $0x1fc8] sm:$0xff]
    %v1353 = vld [vmem:[#allocation5 + $0x1fd0] sm:$0xff]
    %v1354 = vld [vmem:[#allocation5 + $0x1fd8] sm:$0xff]
    %v1355 = vld [vmem:[#allocation5 + $0x1fe0] sm:$0xff]
    %v1356 = vld [vmem:[#allocation5 + $0x1fe8] sm:$0xff]
    %v1357 = vld [vmem:[#allocation5 + $0x1ff0] sm:$0xff]
    %v1358 = vld [vmem:[#allocation5 + $0x1ff8] sm:$0xff]
    %v1359 = vld [vmem:[#allocation5 + $0x2000] sm:$0xff]
    %v1360 = vld [vmem:[#allocation5 + $0x2008] sm:$0xff]
    %v1361 = vld [vmem:[#allocation5 + $0x2010] sm:$0xff]
    %v1362 = vld [vmem:[#allocation5 + $0x2018] sm:$0xff]
    %v1363 = vld [vmem:[#allocation5 + $0x2020] sm:$0xff]
    %v1364 = vld [vmem:[#allocation5 + $0x2028] sm:$0xff]
    %v1365 = vld [vmem:[#allocation5 + $0x2030] sm:$0xff]
    %v1366 = vld [vmem:[#allocation5 + $0x2038] sm:$0xff]
    %v1367 = vld [vmem:[#allocation5 + $0x2040] sm:$0xff]
    %v1368 = vld [vmem:[#allocation5 + $0x2048] sm:$0xff]
    %v1369 = vld [vmem:[#allocation5 + $0x2050] sm:$0xff]
    %v1370 = vld [vmem:[#allocation5 + $0x2058] sm:$0xff]
    %v1371 = vld [vmem:[#allocation5 + $0x2060] sm:$0xff]
    %v1372 = vld [vmem:[#allocation5 + $0x2068] sm:$0xff]
    %v1373 = vld [vmem:[#allocation5 + $0x2070] sm:$0xff]
    %v1374 = vld [vmem:[#allocation5 + $0x2078] sm:$0xff]
    %v1375 = vld [vmem:[#allocation5 + $0x2080] sm:$0xff]
    %v1376 = vld [vmem:[#allocation5 + $0x2088] sm:$0xff]
    %v1377 = vld [vmem:[#allocation5 + $0x2090] sm:$0xff]
    %v1378 = vld [vmem:[#allocation5 + $0x2098] sm:$0xff]
    %v1379 = vld [vmem:[#allocation5 + $0x20a0] sm:$0xff]
    %v1380 = vld [vmem:[#allocation5 + $0x20a8] sm:$0xff]
    %v1381 = vld [vmem:[#allocation5 + $0x20b0] sm:$0xff]
    %v1382 = vld [vmem:[#allocation5 + $0x20b8] sm:$0xff]
    %v1383 = vld [vmem:[#allocation5 + $0x20c0] sm:$0xff]
    %v1384 = vld [vmem:[#allocation5 + $0x20c8] sm:$0xff]
    %v1385 = vld [vmem:[#allocation5 + $0x20d0] sm:$0xff]
    %v1386 = vld [vmem:[#allocation5 + $0x20d8] sm:$0xff]
    %v1387 = vld [vmem:[#allocation5 + $0x20e0] sm:$0xff]
    %v1388 = vld [vmem:[#allocation5 + $0x20e8] sm:$0xff]
    %v1389 = vld [vmem:[#allocation5 + $0x20f0] sm:$0xff]
    %v1390 = vld [vmem:[#allocation5 + $0x20f8] sm:$0xff]
    %v1391 = vld [vmem:[#allocation5 + $0x2100] sm:$0xff]
    %v1392 = vld [vmem:[#allocation5 + $0x2108] sm:$0xff]
    %v1393 = vld [vmem:[#allocation5 + $0x2110] sm:$0xff]
    %v1394 = vld [vmem:[#allocation5 + $0x2118] sm:$0xff]
    %v1395 = vld [vmem:[#allocation5 + $0x2120] sm:$0xff]
    %v1396 = vld [vmem:[#allocation5 + $0x2128] sm:$0xff]
    %v1397 = vld [vmem:[#allocation5 + $0x2130] sm:$0xff]
    %v1398 = vld [vmem:[#allocation5 + $0x2138] sm:$0xff]
    %v1399 = vld [vmem:[#allocation5 + $0x2140] sm:$0xff]
    %v1400 = vld [vmem:[#allocation5 + $0x2148] sm:$0xff]
    %v1401 = vld [vmem:[#allocation5 + $0x2150] sm:$0xff]
    %v1402 = vld [vmem:[#allocation5 + $0x2158] sm:$0xff]
    %v1403 = vld [vmem:[#allocation5 + $0x2160] sm:$0xff]
    %v1404 = vld [vmem:[#allocation5 + $0x2168] sm:$0xff]
    %v1405 = vld [vmem:[#allocation5 + $0x2170] sm:$0xff]
    %v1406 = vld [vmem:[#allocation5 + $0x2178] sm:$0xff]
    %v1407 = vld [vmem:[#allocation5 + $0x2180] sm:$0xff]
    %v1408 = vld [vmem:[#allocation5 + $0x2188] sm:$0xff]
    %v1409 = vld [vmem:[#allocation5 + $0x2190] sm:$0xff]
    %v1410 = vld [vmem:[#allocation5 + $0x2198] sm:$0xff]
    %v1411 = vld [vmem:[#allocation5 + $0x21a0] sm:$0xff]
    %v1412 = vld [vmem:[#allocation5 + $0x21a8] sm:$0xff]
    %v1413 = vld [vmem:[#allocation5 + $0x21b0] sm:$0xff]
    %v1414 = vld [vmem:[#allocation5 + $0x21b8] sm:$0xff]
    %v1415 = vld [vmem:[#allocation5 + $0x21c0] sm:$0xff]
    %v1416 = vld [vmem:[#allocation5 + $0x21c8] sm:$0xff]
    %v1417 = vld [vmem:[#allocation5 + $0x21d0] sm:$0xff]
    %v1418 = vld [vmem:[#allocation5 + $0x21d8] sm:$0xff]
    %v1419 = vld [vmem:[#allocation5 + $0x21e0] sm:$0xff]
    %v1420 = vld [vmem:[#allocation5 + $0x21e8] sm:$0xff]
    %v1421 = vld [vmem:[#allocation5 + $0x21f0] sm:$0xff]
    %v1422 = vld [vmem:[#allocation5 + $0x21f8] sm:$0xff]
    %v1423 = vld [vmem:[#allocation5 + $0x2200] sm:$0xff]
    %v1424 = vld [vmem:[#allocation5 + $0x2208] sm:$0xff]
    %v1425 = vld [vmem:[#allocation5 + $0x2210] sm:$0xff]
    %v1426 = vld [vmem:[#allocation5 + $0x2218] sm:$0xff]
    %v1427 = vld [vmem:[#allocation5 + $0x2220] sm:$0xff]
    %v1428 = vld [vmem:[#allocation5 + $0x2228] sm:$0xff]
    %v1429 = vld [vmem:[#allocation5 + $0x2230] sm:$0xff]
    %v1430 = vld [vmem:[#allocation5 + $0x2238] sm:$0xff]
    %v1431 = vld [vmem:[#allocation5 + $0x2240] sm:$0xff]
    %v1432 = vld [vmem:[#allocation5 + $0x2248] sm:$0xff]
    %v1433 = vld [vmem:[#allocation5 + $0x2250] sm:$0xff]
    %v1434 = vld [vmem:[#allocation5 + $0x2258] sm:$0xff]
    %v1435 = vld [vmem:[#allocation5 + $0x2260] sm:$0xff]
    %v1436 = vld [vmem:[#allocation5 + $0x2268] sm:$0xff]
    %v1437 = vld [vmem:[#allocation5 + $0x2270] sm:$0xff]
    %v1438 = vld [vmem:[#allocation5 + $0x2278] sm:$0xff]
    %v1439 = vld [vmem:[#allocation5 + $0x2280] sm:$0xff]
    %v1440 = vld [vmem:[#allocation5 + $0x2288] sm:$0xff]
    %v1441 = vld [vmem:[#allocation5 + $0x2290] sm:$0xff]
    %v1442 = vld [vmem:[#allocation5 + $0x2298] sm:$0xff]
    %v1443 = vld [vmem:[#allocation5 + $0x22a0] sm:$0xff]
    %v1444 = vld [vmem:[#allocation5 + $0x22a8] sm:$0xff]
    %v1445 = vld [vmem:[#allocation5 + $0x22b0] sm:$0xff]
    %v1446 = vld [vmem:[#allocation5 + $0x22b8] sm:$0xff]
    %v1447 = vld [vmem:[#allocation5 + $0x22c0] sm:$0xff]
    %v1448 = vld [vmem:[#allocation5 + $0x22c8] sm:$0xff]
    %v1449 = vld [vmem:[#allocation5 + $0x22d0] sm:$0xff]
    %v1450 = vld [vmem:[#allocation5 + $0x22d8] sm:$0xff]
    %v1451 = vld [vmem:[#allocation5 + $0x22e0] sm:$0xff]
    %v1452 = vld [vmem:[#allocation5 + $0x22e8] sm:$0xff]
    %v1453 = vld [vmem:[#allocation5 + $0x22f0] sm:$0xff]
    %v1454 = vld [vmem:[#allocation5 + $0x22f8] sm:$0xff]
    %v1455 = vld [vmem:[#allocation5 + $0x2300] sm:$0xff]
    %v1456 = vld [vmem:[#allocation5 + $0x2308] sm:$0xff]
    %v1457 = vld [vmem:[#allocation5 + $0x2310] sm:$0xff]
    %v1458 = vld [vmem:[#allocation5 + $0x2318] sm:$0xff]
    %v1459 = vld [vmem:[#allocation5 + $0x2320] sm:$0xff]
    %v1460 = vld [vmem:[#allocation5 + $0x2328] sm:$0xff]
    %v1461 = vld [vmem:[#allocation5 + $0x2330] sm:$0xff]
    %v1462 = vld [vmem:[#allocation5 + $0x2338] sm:$0xff]
    %v1463 = vld [vmem:[#allocation5 + $0x2340] sm:$0xff]
    %v1464 = vld [vmem:[#allocation5 + $0x2348] sm:$0xff]
    %v1465 = vld [vmem:[#allocation5 + $0x2350] sm:$0xff]
    %v1466 = vld [vmem:[#allocation5 + $0x2358] sm:$0xff]
    %v1467 = vld [vmem:[#allocation5 + $0x2360] sm:$0xff]
    %v1468 = vld [vmem:[#allocation5 + $0x2368] sm:$0xff]
    %v1469 = vld [vmem:[#allocation5 + $0x2370] sm:$0xff]
    %v1470 = vld [vmem:[#allocation5 + $0x2378] sm:$0xff]
    %v1471 = vld [vmem:[#allocation5 + $0x2380] sm:$0xff]
    %v1472 = vld [vmem:[#allocation5 + $0x2388] sm:$0xff]
    %v1473 = vld [vmem:[#allocation5 + $0x2390] sm:$0xff]
    %v1474 = vld [vmem:[#allocation5 + $0x2398] sm:$0xff]
    %v1475 = vld [vmem:[#allocation5 + $0x23a0] sm:$0xff]
    %v1476 = vld [vmem:[#allocation5 + $0x23a8] sm:$0xff]
    %v1477 = vld [vmem:[#allocation5 + $0x23b0] sm:$0xff]
    %v1478 = vld [vmem:[#allocation5 + $0x23b8] sm:$0xff]
    %v1479 = vld [vmem:[#allocation5 + $0x23c0] sm:$0xff]
    %v1480 = vld [vmem:[#allocation5 + $0x23c8] sm:$0xff]
    %v1481 = vld [vmem:[#allocation5 + $0x23d0] sm:$0xff]
    %v1482 = vld [vmem:[#allocation5 + $0x23d8] sm:$0xff]
    %v1483 = vld [vmem:[#allocation5 + $0x23e0] sm:$0xff]
    %v1484 = vld [vmem:[#allocation5 + $0x23e8] sm:$0xff]
    %v1485 = vld [vmem:[#allocation5 + $0x23f0] sm:$0xff]
    %v1486 = vld [vmem:[#allocation5 + $0x23f8] sm:$0xff]
    %v1487 = vld [vmem:[#allocation5 + $0x2400] sm:$0xff]
    %v1488 = vld [vmem:[#allocation5 + $0x2408] sm:$0xff]
    %v1489 = vld [vmem:[#allocation5 + $0x2410] sm:$0xff]
    %v1490 = vld [vmem:[#allocation5 + $0x2418] sm:$0xff]
    %v1491 = vld [vmem:[#allocation5 + $0x2420] sm:$0xff]
    %v1492 = vld [vmem:[#allocation5 + $0x2428] sm:$0xff]
    %v1493 = vld [vmem:[#allocation5 + $0x2430] sm:$0xff]
    %v1494 = vld [vmem:[#allocation5 + $0x2438] sm:$0xff]
    %v1495 = vld [vmem:[#allocation5 + $0x2440] sm:$0xff]
    %v1496 = vld [vmem:[#allocation5 + $0x2448] sm:$0xff]
    %v1497 = vld [vmem:[#allocation5 + $0x2450] sm:$0xff]
    %v1498 = vld [vmem:[#allocation5 + $0x2458] sm:$0xff]
    %v1499 = vld [vmem:[#allocation5 + $0x2460] sm:$0xff]
    %v1500 = vld [vmem:[#allocation5 + $0x2468] sm:$0xff]
    %v1501 = vld [vmem:[#allocation5 + $0x2470] sm:$0xff]
    %v1502 = vld [vmem:[#allocation5 + $0x2478] sm:$0xff]
    %v1503 = vld [vmem:[#allocation5 + $0x2480] sm:$0xff]
    %v1504 = vld [vmem:[#allocation5 + $0x2488] sm:$0xff]
    %v1505 = vld [vmem:[#allocation5 + $0x2490] sm:$0xff]
    %v1506 = vld [vmem:[#allocation5 + $0x2498] sm:$0xff]
    %v1507 = vld [vmem:[#allocation5 + $0x24a0] sm:$0xff]
    %v1508 = vld [vmem:[#allocation5 + $0x24a8] sm:$0xff]
    %v1509 = vld [vmem:[#allocation5 + $0x24b0] sm:$0xff]
    %v1510 = vld [vmem:[#allocation5 + $0x24b8] sm:$0xff]
    %v1511 = vld [vmem:[#allocation5 + $0x24c0] sm:$0xff]
    %v1512 = vld [vmem:[#allocation5 + $0x24c8] sm:$0xff]
    %v1513 = vld [vmem:[#allocation5 + $0x24d0] sm:$0xff]
    %v1514 = vld [vmem:[#allocation5 + $0x24d8] sm:$0xff]
    %v1515 = vld [vmem:[#allocation5 + $0x24e0] sm:$0xff]
    %v1516 = vld [vmem:[#allocation5 + $0x24e8] sm:$0xff]
    %v1517 = vld [vmem:[#allocation5 + $0x24f0] sm:$0xff]
    %v1518 = vld [vmem:[#allocation5 + $0x24f8] sm:$0xff]
    %v1519 = vld [vmem:[#allocation5 + $0x2500] sm:$0xff]
    %v1520 = vld [vmem:[#allocation5 + $0x2508] sm:$0xff]
    %v1521 = vld [vmem:[#allocation5 + $0x2510] sm:$0xff]
    %v1522 = vld [vmem:[#allocation5 + $0x2518] sm:$0xff]
    %v1523 = vld [vmem:[#allocation5 + $0x2520] sm:$0xff]
    %v1524 = vld [vmem:[#allocation5 + $0x2528] sm:$0xff]
    %v1525 = vld [vmem:[#allocation5 + $0x2530] sm:$0xff]
    %v1526 = vld [vmem:[#allocation5 + $0x2538] sm:$0xff]
    %v1527 = vld [vmem:[#allocation5 + $0x2540] sm:$0xff]
    %v1528 = vld [vmem:[#allocation5 + $0x2548] sm:$0xff]
    %v1529 = vld [vmem:[#allocation5 + $0x2550] sm:$0xff]
    %v1530 = vld [vmem:[#allocation5 + $0x2558] sm:$0xff]
    %v1531 = vld [vmem:[#allocation5 + $0x2560] sm:$0xff]
    %v1532 = vld [vmem:[#allocation5 + $0x2568] sm:$0xff]
    %v1533 = vld [vmem:[#allocation5 + $0x2570] sm:$0xff]
    %v1534 = vld [vmem:[#allocation5 + $0x2578] sm:$0xff]
    %v1535 = vld [vmem:[#allocation5 + $0x2580] sm:$0xff]
    %v1536 = vld [vmem:[#allocation5 + $0x2588] sm:$0xff]
    %v1537 = vld [vmem:[#allocation5 + $0x2590] sm:$0xff]
    %v1538 = vld [vmem:[#allocation5 + $0x2598] sm:$0xff]
    %v1539 = vld [vmem:[#allocation5 + $0x25a0] sm:$0xff]
    %v1540 = vld [vmem:[#allocation5 + $0x25a8] sm:$0xff]
    %v1541 = vld [vmem:[#allocation5 + $0x25b0] sm:$0xff]
    %v1542 = vld [vmem:[#allocation5 + $0x25b8] sm:$0xff]
    %v1543 = vld [vmem:[#allocation5 + $0x25c0] sm:$0xff]
    %v1544 = vld [vmem:[#allocation5 + $0x25c8] sm:$0xff]
    %v1545 = vld [vmem:[#allocation5 + $0x25d0] sm:$0xff]
    %v1546 = vld [vmem:[#allocation5 + $0x25d8] sm:$0xff]
    %v1547 = vld [vmem:[#allocation5 + $0x25e0] sm:$0xff]
    %v1548 = vld [vmem:[#allocation5 + $0x25e8] sm:$0xff]
    %v1549 = vld [vmem:[#allocation5 + $0x25f0] sm:$0xff]
    %v1550 = vld [vmem:[#allocation5 + $0x25f8] sm:$0xff]
    %v1551 = vld [vmem:[#allocation5 + $0x2600] sm:$0xff]
    %v1552 = vld [vmem:[#allocation5 + $0x2608] sm:$0xff]
    %v1553 = vld [vmem:[#allocation5 + $0x2610] sm:$0xff]
    %v1554 = vld [vmem:[#allocation5 + $0x2618] sm:$0xff]
    %v1555 = vld [vmem:[#allocation5 + $0x2620] sm:$0xff]
    %v1556 = vld [vmem:[#allocation5 + $0x2628] sm:$0xff]
    %v1557 = vld [vmem:[#allocation5 + $0x2630] sm:$0xff]
    %v1558 = vld [vmem:[#allocation5 + $0x2638] sm:$0xff]
    %v1559 = vld [vmem:[#allocation5 + $0x2640] sm:$0xff]
    %v1560 = vld [vmem:[#allocation5 + $0x2648] sm:$0xff]
    %v1561 = vld [vmem:[#allocation5 + $0x2650] sm:$0xff]
    %v1562 = vld [vmem:[#allocation5 + $0x2658] sm:$0xff]
    %v1563 = vld [vmem:[#allocation5 + $0x2660] sm:$0xff]
    %v1564 = vld [vmem:[#allocation5 + $0x2668] sm:$0xff]
    %v1565 = vld [vmem:[#allocation5 + $0x2670] sm:$0xff]
    %v1566 = vld [vmem:[#allocation5 + $0x2678] sm:$0xff]
    %v1567 = vld [vmem:[#allocation5 + $0x2680] sm:$0xff]
    %v1568 = vld [vmem:[#allocation5 + $0x2688] sm:$0xff]
    %v1569 = vld [vmem:[#allocation5 + $0x2690] sm:$0xff]
    %v1570 = vld [vmem:[#allocation5 + $0x2698] sm:$0xff]
    %v1571 = vld [vmem:[#allocation5 + $0x26a0] sm:$0xff]
    %v1572 = vld [vmem:[#allocation5 + $0x26a8] sm:$0xff]
    %v1573 = vld [vmem:[#allocation5 + $0x26b0] sm:$0xff]
    %v1574 = vld [vmem:[#allocation5 + $0x26b8] sm:$0xff]
    %v1575 = vld [vmem:[#allocation5 + $0x26c0] sm:$0xff]
    %v1576 = vld [vmem:[#allocation5 + $0x26c8] sm:$0xff]
    %v1577 = vld [vmem:[#allocation5 + $0x26d0] sm:$0xff]
    %v1578 = vld [vmem:[#allocation5 + $0x26d8] sm:$0xff]
    %v1579 = vld [vmem:[#allocation5 + $0x26e0] sm:$0xff]
    %v1580 = vld [vmem:[#allocation5 + $0x26e8] sm:$0xff]
    %v1581 = vld [vmem:[#allocation5 + $0x26f0] sm:$0xff]
    %v1582 = vld [vmem:[#allocation5 + $0x26f8] sm:$0xff]
    %v1583 = vld [vmem:[#allocation5 + $0x2700] sm:$0xff]
    %v1584 = vld [vmem:[#allocation5 + $0x2708] sm:$0xff]
    %v1585 = vld [vmem:[#allocation5 + $0x2710] sm:$0xff]
    %v1586 = vld [vmem:[#allocation5 + $0x2718] sm:$0xff]
    %v1587 = vld [vmem:[#allocation5 + $0x2720] sm:$0xff]
    %v1588 = vld [vmem:[#allocation5 + $0x2728] sm:$0xff]
    %v1589 = vld [vmem:[#allocation5 + $0x2730] sm:$0xff]
    %v1590 = vld [vmem:[#allocation5 + $0x2738] sm:$0xff]
    %v1591 = vld [vmem:[#allocation5 + $0x2740] sm:$0xff]
    %v1592 = vld [vmem:[#allocation5 + $0x2748] sm:$0xff]
    %v1593 = vld [vmem:[#allocation5 + $0x2750] sm:$0xff]
    %v1594 = vld [vmem:[#allocation5 + $0x2758] sm:$0xff]
    %v1595 = vld [vmem:[#allocation5 + $0x2760] sm:$0xff]
    %v1596 = vld [vmem:[#allocation5 + $0x2768] sm:$0xff]
    %v1597 = vld [vmem:[#allocation5 + $0x2770] sm:$0xff]
    %v1598 = vld [vmem:[#allocation5 + $0x2778] sm:$0xff]
    %v1599 = vld [vmem:[#allocation5 + $0x2780] sm:$0xff]
    %v1600 = vld [vmem:[#allocation5 + $0x2788] sm:$0xff]
    %v1601 = vld [vmem:[#allocation5 + $0x2790] sm:$0xff]
    %v1602 = vld [vmem:[#allocation5 + $0x2798] sm:$0xff]
    %v1603 = vld [vmem:[#allocation5 + $0x27a0] sm:$0xff]
    %v1604 = vld [vmem:[#allocation5 + $0x27a8] sm:$0xff]
    %v1605 = vld [vmem:[#allocation5 + $0x27b0] sm:$0xff]
    %v1606 = vld [vmem:[#allocation5 + $0x27b8] sm:$0xff]
    %v1607 = vld [vmem:[#allocation5 + $0x27c0] sm:$0xff]
    %v1608 = vld [vmem:[#allocation5 + $0x27c8] sm:$0xff]
    %v1609 = vld [vmem:[#allocation5 + $0x27d0] sm:$0xff]
    %v1610 = vld [vmem:[#allocation5 + $0x27d8] sm:$0xff]
    %v1611 = vld [vmem:[#allocation5 + $0x27e0] sm:$0xff]
    %v1612 = vld [vmem:[#allocation5 + $0x27e8] sm:$0xff]
    %v1613 = vld [vmem:[#allocation5 + $0x27f0] sm:$0xff]
    %v1614 = vld [vmem:[#allocation5 + $0x27f8] sm:$0xff]
    %v1615 = vld [vmem:[#allocation5 + $0x2800] sm:$0xff]
    %v1616 = vld [vmem:[#allocation5 + $0x2808] sm:$0xff]
    %v1617 = vld [vmem:[#allocation5 + $0x2810] sm:$0xff]
    %v1618 = vld [vmem:[#allocation5 + $0x2818] sm:$0xff]
    %v1619 = vld [vmem:[#allocation5 + $0x2820] sm:$0xff]
    %v1620 = vld [vmem:[#allocation5 + $0x2828] sm:$0xff]
    %v1621 = vld [vmem:[#allocation5 + $0x2830] sm:$0xff]
    %v1622 = vld [vmem:[#allocation5 + $0x2838] sm:$0xff]
    %v1623 = vld [vmem:[#allocation5 + $0x2840] sm:$0xff]
    %v1624 = vld [vmem:[#allocation5 + $0x2848] sm:$0xff]
    %v1625 = vld [vmem:[#allocation5 + $0x2850] sm:$0xff]
    %v1626 = vld [vmem:[#allocation5 + $0x2858] sm:$0xff]
    %v1627 = vld [vmem:[#allocation5 + $0x2860] sm:$0xff]
    %v1628 = vld [vmem:[#allocation5 + $0x2868] sm:$0xff]
    %v1629 = vld [vmem:[#allocation5 + $0x2870] sm:$0xff]
    %v1630 = vld [vmem:[#allocation5 + $0x2878] sm:$0xff]
    %v1631 = vld [vmem:[#allocation5 + $0x2880] sm:$0xff]
    %v1632 = vld [vmem:[#allocation5 + $0x2888] sm:$0xff]
    %v1633 = vld [vmem:[#allocation5 + $0x2890] sm:$0xff]
    %v1634 = vld [vmem:[#allocation5 + $0x2898] sm:$0xff]
    %v1635 = vld [vmem:[#allocation5 + $0x28a0] sm:$0xff]
    %v1636 = vld [vmem:[#allocation5 + $0x28a8] sm:$0xff]
    %v1637 = vld [vmem:[#allocation5 + $0x28b0] sm:$0xff]
    %v1638 = vld [vmem:[#allocation5 + $0x28b8] sm:$0xff]
    %v1639 = vld [vmem:[#allocation5 + $0x28c0] sm:$0xff]
    %v1640 = vld [vmem:[#allocation5 + $0x28c8] sm:$0xff]
    %v1641 = vld [vmem:[#allocation5 + $0x28d0] sm:$0xff]
    %v1642 = vld [vmem:[#allocation5 + $0x28d8] sm:$0xff]
    %v1643 = vld [vmem:[#allocation5 + $0x28e0] sm:$0xff]
    %v1644 = vld [vmem:[#allocation5 + $0x28e8] sm:$0xff]
    %v1645 = vld [vmem:[#allocation5 + $0x28f0] sm:$0xff]
    %v1646 = vld [vmem:[#allocation5 + $0x28f8] sm:$0xff]
    %v1647 = vld [vmem:[#allocation5 + $0x2900] sm:$0xff]
    %v1648 = vld [vmem:[#allocation5 + $0x2908] sm:$0xff]
    %v1649 = vld [vmem:[#allocation5 + $0x2910] sm:$0xff]
    %v1650 = vld [vmem:[#allocation5 + $0x2918] sm:$0xff]
    %v1651 = vld [vmem:[#allocation5 + $0x2920] sm:$0xff]
    %v1652 = vld [vmem:[#allocation5 + $0x2928] sm:$0xff]
    %v1653 = vld [vmem:[#allocation5 + $0x2930] sm:$0xff]
    %v1654 = vld [vmem:[#allocation5 + $0x2938] sm:$0xff]
    %v1655 = vld [vmem:[#allocation5 + $0x2940] sm:$0xff]
    %v1656 = vld [vmem:[#allocation5 + $0x2948] sm:$0xff]
    %v1657 = vld [vmem:[#allocation5 + $0x2950] sm:$0xff]
    %v1658 = vld [vmem:[#allocation5 + $0x2958] sm:$0xff]
    %v1659 = vld [vmem:[#allocation5 + $0x2960] sm:$0xff]
    %v1660 = vld [vmem:[#allocation5 + $0x2968] sm:$0xff]
    %v1661 = vld [vmem:[#allocation5 + $0x2970] sm:$0xff]
    %v1662 = vld [vmem:[#allocation5 + $0x2978] sm:$0xff]
    %v1663 = vld [vmem:[#allocation5 + $0x2980] sm:$0xff]
    %v1664 = vld [vmem:[#allocation5 + $0x2988] sm:$0xff]
    %v1665 = vld [vmem:[#allocation5 + $0x2990] sm:$0xff]
    %v1666 = vld [vmem:[#allocation5 + $0x2998] sm:$0xff]
    %v1667 = vld [vmem:[#allocation5 + $0x29a0] sm:$0xff]
    %v1668 = vld [vmem:[#allocation5 + $0x29a8] sm:$0xff]
    %v1669 = vld [vmem:[#allocation5 + $0x29b0] sm:$0xff]
    %v1670 = vld [vmem:[#allocation5 + $0x29b8] sm:$0xff]
    %v1671 = vld [vmem:[#allocation5 + $0x29c0] sm:$0xff]
    %v1672 = vld [vmem:[#allocation5 + $0x29c8] sm:$0xff]
    %v1673 = vld [vmem:[#allocation5 + $0x29d0] sm:$0xff]
    %v1674 = vld [vmem:[#allocation5 + $0x29d8] sm:$0xff]
    %v1675 = vld [vmem:[#allocation5 + $0x29e0] sm:$0xff]
    %v1676 = vld [vmem:[#allocation5 + $0x29e8] sm:$0xff]
    %v1677 = vld [vmem:[#allocation5 + $0x29f0] sm:$0xff]
    %v1678 = vld [vmem:[#allocation5 + $0x29f8] sm:$0xff]
    %v1679 = vld [vmem:[#allocation5 + $0x2a00] sm:$0xff]
    %v1680 = vld [vmem:[#allocation5 + $0x2a08] sm:$0xff]
    %v1681 = vld [vmem:[#allocation5 + $0x2a10] sm:$0xff]
    %v1682 = vld [vmem:[#allocation5 + $0x2a18] sm:$0xff]
    %v1683 = vld [vmem:[#allocation5 + $0x2a20] sm:$0xff]
    %v1684 = vld [vmem:[#allocation5 + $0x2a28] sm:$0xff]
    %v1685 = vld [vmem:[#allocation5 + $0x2a30] sm:$0xff]
    %v1686 = vld [vmem:[#allocation5 + $0x2a38] sm:$0xff]
    %v1687 = vld [vmem:[#allocation5 + $0x2a40] sm:$0xff]
    %v1688 = vld [vmem:[#allocation5 + $0x2a48] sm:$0xff]
    %v1689 = vld [vmem:[#allocation5 + $0x2a50] sm:$0xff]
    %v1690 = vld [vmem:[#allocation5 + $0x2a58] sm:$0xff]
    %v1691 = vld [vmem:[#allocation5 + $0x2a60] sm:$0xff]
    %v1692 = vld [vmem:[#allocation5 + $0x2a68] sm:$0xff]
    %v1693 = vld [vmem:[#allocation5 + $0x2a70] sm:$0xff]
    %v1694 = vld [vmem:[#allocation5 + $0x2a78] sm:$0xff]
    %v1695 = vld [vmem:[#allocation5 + $0x2a80] sm:$0xff]
    %v1696 = vld [vmem:[#allocation5 + $0x2a88] sm:$0xff]
    %v1697 = vld [vmem:[#allocation5 + $0x2a90] sm:$0xff]
    %v1698 = vld [vmem:[#allocation5 + $0x2a98] sm:$0xff]
    %v1699 = vld [vmem:[#allocation5 + $0x2aa0] sm:$0xff]
    %v1700 = vld [vmem:[#allocation5 + $0x2aa8] sm:$0xff]
    %v1701 = vld [vmem:[#allocation5 + $0x2ab0] sm:$0xff]
    %v1702 = vld [vmem:[#allocation5 + $0x2ab8] sm:$0xff]
    %v1703 = vld [vmem:[#allocation5 + $0x2ac0] sm:$0xff]
    %v1704 = vld [vmem:[#allocation5 + $0x2ac8] sm:$0xff]
    %v1705 = vld [vmem:[#allocation5 + $0x2ad0] sm:$0xff]
    %v1706 = vld [vmem:[#allocation5 + $0x2ad8] sm:$0xff]
    %v1707 = vld [vmem:[#allocation5 + $0x2ae0] sm:$0xff]
    %v1708 = vld [vmem:[#allocation5 + $0x2ae8] sm:$0xff]
    %v1709 = vld [vmem:[#allocation5 + $0x2af0] sm:$0xff]
    %v1710 = vld [vmem:[#allocation5 + $0x2af8] sm:$0xff]
    %v1711 = vld [vmem:[#allocation5 + $0x2b00] sm:$0xff]
    %v1712 = vld [vmem:[#allocation5 + $0x2b08] sm:$0xff]
    %v1713 = vld [vmem:[#allocation5 + $0x2b10] sm:$0xff]
    %v1714 = vld [vmem:[#allocation5 + $0x2b18] sm:$0xff]
    %v1715 = vld [vmem:[#allocation5 + $0x2b20] sm:$0xff]
    %v1716 = vld [vmem:[#allocation5 + $0x2b28] sm:$0xff]
    %v1717 = vld [vmem:[#allocation5 + $0x2b30] sm:$0xff]
    %v1718 = vld [vmem:[#allocation5 + $0x2b38] sm:$0xff]
    %v1719 = vld [vmem:[#allocation5 + $0x2b40] sm:$0xff]
    %v1720 = vld [vmem:[#allocation5 + $0x2b48] sm:$0xff]
    %v1721 = vld [vmem:[#allocation5 + $0x2b50] sm:$0xff]
    %v1722 = vld [vmem:[#allocation5 + $0x2b58] sm:$0xff]
    %v1723 = vld [vmem:[#allocation5 + $0x2b60] sm:$0xff]
    %v1724 = vld [vmem:[#allocation5 + $0x2b68] sm:$0xff]
    %v1725 = vld [vmem:[#allocation5 + $0x2b70] sm:$0xff]
    %v1726 = vld [vmem:[#allocation5 + $0x2b78] sm:$0xff]
    %v1727 = vld [vmem:[#allocation5 + $0x2b80] sm:$0xff]
    %v1728 = vld [vmem:[#allocation5 + $0x2b88] sm:$0xff]
    %v1729 = vld [vmem:[#allocation5 + $0x2b90] sm:$0xff]
    %v1730 = vld [vmem:[#allocation5 + $0x2b98] sm:$0xff]
    %v1731 = vld [vmem:[#allocation5 + $0x2ba0] sm:$0xff]
    %v1732 = vld [vmem:[#allocation5 + $0x2ba8] sm:$0xff]
    %v1733 = vld [vmem:[#allocation5 + $0x2bb0] sm:$0xff]
    %v1734 = vld [vmem:[#allocation5 + $0x2bb8] sm:$0xff]
    %v1735 = vld [vmem:[#allocation5 + $0x2bc0] sm:$0xff]
    %v1736 = vld [vmem:[#allocation5 + $0x2bc8] sm:$0xff]
    %v1737 = vld [vmem:[#allocation5 + $0x2bd0] sm:$0xff]
    %v1738 = vld [vmem:[#allocation5 + $0x2bd8] sm:$0xff]
    %v1739 = vld [vmem:[#allocation5 + $0x2be0] sm:$0xff]
    %v1740 = vld [vmem:[#allocation5 + $0x2be8] sm:$0xff]
    %v1741 = vld [vmem:[#allocation5 + $0x2bf0] sm:$0xff]
    %v1742 = vld [vmem:[#allocation5 + $0x2bf8] sm:$0xff]
    %v1743 = vld [vmem:[#allocation5 + $0x2c00] sm:$0xff]
    %v1744 = vld [vmem:[#allocation5 + $0x2c08] sm:$0xff]
    %v1745 = vld [vmem:[#allocation5 + $0x2c10] sm:$0xff]
    %v1746 = vld [vmem:[#allocation5 + $0x2c18] sm:$0xff]
    %v1747 = vld [vmem:[#allocation5 + $0x2c20] sm:$0xff]
    %v1748 = vld [vmem:[#allocation5 + $0x2c28] sm:$0xff]
    %v1749 = vld [vmem:[#allocation5 + $0x2c30] sm:$0xff]
    %v1750 = vld [vmem:[#allocation5 + $0x2c38] sm:$0xff]
    %v1751 = vld [vmem:[#allocation5 + $0x2c40] sm:$0xff]
    %v1752 = vld [vmem:[#allocation5 + $0x2c48] sm:$0xff]
    %v1753 = vld [vmem:[#allocation5 + $0x2c50] sm:$0xff]
    %v1754 = vld [vmem:[#allocation5 + $0x2c58] sm:$0xff]
    %v1755 = vld [vmem:[#allocation5 + $0x2c60] sm:$0xff]
    %v1756 = vld [vmem:[#allocation5 + $0x2c68] sm:$0xff]
    %v1757 = vld [vmem:[#allocation5 + $0x2c70] sm:$0xff]
    %v1758 = vld [vmem:[#allocation5 + $0x2c78] sm:$0xff]
    %v1759 = vld [vmem:[#allocation5 + $0x2c80] sm:$0xff]
    %v1760 = vld [vmem:[#allocation5 + $0x2c88] sm:$0xff]
    %v1761 = vld [vmem:[#allocation5 + $0x2c90] sm:$0xff]
    %v1762 = vld [vmem:[#allocation5 + $0x2c98] sm:$0xff]
    %v1763 = vld [vmem:[#allocation5 + $0x2ca0] sm:$0xff]
    %v1764 = vld [vmem:[#allocation5 + $0x2ca8] sm:$0xff]
    %v1765 = vld [vmem:[#allocation5 + $0x2cb0] sm:$0xff]
    %v1766 = vld [vmem:[#allocation5 + $0x2cb8] sm:$0xff]
    %v1767 = vld [vmem:[#allocation5 + $0x2cc0] sm:$0xff]
    %v1768 = vld [vmem:[#allocation5 + $0x2cc8] sm:$0xff]
    %v1769 = vld [vmem:[#allocation5 + $0x2cd0] sm:$0xff]
    %v1770 = vld [vmem:[#allocation5 + $0x2cd8] sm:$0xff]
    %v1771 = vld [vmem:[#allocation5 + $0x2ce0] sm:$0xff]
    %v1772 = vld [vmem:[#allocation5 + $0x2ce8] sm:$0xff]
    %v1773 = vld [vmem:[#allocation5 + $0x2cf0] sm:$0xff]
    %v1774 = vld [vmem:[#allocation5 + $0x2cf8] sm:$0xff]
    %v1775 = vld [vmem:[#allocation5 + $0x2d00] sm:$0xff]
    %v1776 = vld [vmem:[#allocation5 + $0x2d08] sm:$0xff]
    %v1777 = vld [vmem:[#allocation5 + $0x2d10] sm:$0xff]
    %v1778 = vld [vmem:[#allocation5 + $0x2d18] sm:$0xff]
    %v1779 = vld [vmem:[#allocation5 + $0x2d20] sm:$0xff]
    %v1780 = vld [vmem:[#allocation5 + $0x2d28] sm:$0xff]
    %v1781 = vld [vmem:[#allocation5 + $0x2d30] sm:$0xff]
    %v1782 = vld [vmem:[#allocation5 + $0x2d38] sm:$0xff]
    %v1783 = vld [vmem:[#allocation5 + $0x2d40] sm:$0xff]
    %v1784 = vld [vmem:[#allocation5 + $0x2d48] sm:$0xff]
    %v1785 = vld [vmem:[#allocation5 + $0x2d50] sm:$0xff]
    %v1786 = vld [vmem:[#allocation5 + $0x2d58] sm:$0xff]
    %v1787 = vld [vmem:[#allocation5 + $0x2d60] sm:$0xff]
    %v1788 = vld [vmem:[#allocation5 + $0x2d68] sm:$0xff]
    %v1789 = vld [vmem:[#allocation5 + $0x2d70] sm:$0xff]
    %v1790 = vld [vmem:[#allocation5 + $0x2d78] sm:$0xff]
    %v1791 = vld [vmem:[#allocation5 + $0x2d80] sm:$0xff]
    %v1792 = vld [vmem:[#allocation5 + $0x2d88] sm:$0xff]
    %v1793 = vld [vmem:[#allocation5 + $0x2d90] sm:$0xff]
    %v1794 = vld [vmem:[#allocation5 + $0x2d98] sm:$0xff]
    %v1795 = vld [vmem:[#allocation5 + $0x2da0] sm:$0xff]
    %v1796 = vld [vmem:[#allocation5 + $0x2da8] sm:$0xff]
    %v1797 = vld [vmem:[#allocation5 + $0x2db0] sm:$0xff]
    %v1798 = vld [vmem:[#allocation5 + $0x2db8] sm:$0xff]
    %v1799 = vld [vmem:[#allocation5 + $0x2dc0] sm:$0xff]
    %v1800 = vld [vmem:[#allocation5 + $0x2dc8] sm:$0xff]
    %v1801 = vld [vmem:[#allocation5 + $0x2dd0] sm:$0xff]
    %v1802 = vld [vmem:[#allocation5 + $0x2dd8] sm:$0xff]
    %v1803 = vld [vmem:[#allocation5 + $0x2de0] sm:$0xff]
    %v1804 = vld [vmem:[#allocation5 + $0x2de8] sm:$0xff]
    %v1805 = vld [vmem:[#allocation5 + $0x2df0] sm:$0xff]
    %v1806 = vld [vmem:[#allocation5 + $0x2df8] sm:$0xff]
    %v1807 = vld [vmem:[#allocation5 + $0x2e00] sm:$0xff]
    %v1808 = vld [vmem:[#allocation5 + $0x2e08] sm:$0xff]
    %v1809 = vld [vmem:[#allocation5 + $0x2e10] sm:$0xff]
    %v1810 = vld [vmem:[#allocation5 + $0x2e18] sm:$0xff]
    %v1811 = vld [vmem:[#allocation5 + $0x2e20] sm:$0xff]
    %v1812 = vld [vmem:[#allocation5 + $0x2e28] sm:$0xff]
    %v1813 = vld [vmem:[#allocation5 + $0x2e30] sm:$0xff]
    %v1814 = vld [vmem:[#allocation5 + $0x2e38] sm:$0xff]
    %v1815 = vld [vmem:[#allocation5 + $0x2e40] sm:$0xff]
    %v1816 = vld [vmem:[#allocation5 + $0x2e48] sm:$0xff]
    %v1817 = vld [vmem:[#allocation5 + $0x2e50] sm:$0xff]
    %v1818 = vld [vmem:[#allocation5 + $0x2e58] sm:$0xff]
    %v1819 = vld [vmem:[#allocation5 + $0x2e60] sm:$0xff]
    %v1820 = vld [vmem:[#allocation5 + $0x2e68] sm:$0xff]
    %v1821 = vld [vmem:[#allocation5 + $0x2e70] sm:$0xff]
    %v1822 = vld [vmem:[#allocation5 + $0x2e78] sm:$0xff]
    %v1823 = vld [vmem:[#allocation5 + $0x2e80] sm:$0xff]
    %v1824 = vld [vmem:[#allocation5 + $0x2e88] sm:$0xff]
    %v1825 = vld [vmem:[#allocation5 + $0x2e90] sm:$0xff]
    %v1826 = vld [vmem:[#allocation5 + $0x2e98] sm:$0xff]
    %v1827 = vld [vmem:[#allocation5 + $0x2ea0] sm:$0xff]
    %v1828 = vld [vmem:[#allocation5 + $0x2ea8] sm:$0xff]
    %v1829 = vld [vmem:[#allocation5 + $0x2eb0] sm:$0xff]
    %v1830 = vld [vmem:[#allocation5 + $0x2eb8] sm:$0xff]
    %v1831 = vld [vmem:[#allocation5 + $0x2ec0] sm:$0xff]
    %v1832 = vld [vmem:[#allocation5 + $0x2ec8] sm:$0xff]
    %v1833 = vld [vmem:[#allocation5 + $0x2ed0] sm:$0xff]
    %v1834 = vld [vmem:[#allocation5 + $0x2ed8] sm:$0xff]
    %v1835 = vld [vmem:[#allocation5 + $0x2ee0] sm:$0xff]
    %v1836 = vld [vmem:[#allocation5 + $0x2ee8] sm:$0xff]
    %v1837 = vld [vmem:[#allocation5 + $0x2ef0] sm:$0xff]
    %v1838 = vld [vmem:[#allocation5 + $0x2ef8] sm:$0xff]
    %v1839 = vld [vmem:[#allocation5 + $0x2f00] sm:$0xff]
    %v1840 = vld [vmem:[#allocation5 + $0x2f08] sm:$0xff]
    %v1841 = vld [vmem:[#allocation5 + $0x2f10] sm:$0xff]
    %v1842 = vld [vmem:[#allocation5 + $0x2f18] sm:$0xff]
    %v1843 = vld [vmem:[#allocation5 + $0x2f20] sm:$0xff]
    %v1844 = vld [vmem:[#allocation5 + $0x2f28] sm:$0xff]
    %v1845 = vld [vmem:[#allocation5 + $0x2f30] sm:$0xff]
    %v1846 = vld [vmem:[#allocation5 + $0x2f38] sm:$0xff]
    %v1847 = vld [vmem:[#allocation5 + $0x2f40] sm:$0xff]
    %v1848 = vld [vmem:[#allocation5 + $0x2f48] sm:$0xff]
    %v1849 = vld [vmem:[#allocation5 + $0x2f50] sm:$0xff]
    %v1850 = vld [vmem:[#allocation5 + $0x2f58] sm:$0xff]
    %v1851 = vld [vmem:[#allocation5 + $0x2f60] sm:$0xff]
    %v1852 = vld [vmem:[#allocation5 + $0x2f68] sm:$0xff]
    %v1853 = vld [vmem:[#allocation5 + $0x2f70] sm:$0xff]
    %v1854 = vld [vmem:[#allocation5 + $0x2f78] sm:$0xff]
    %v1855 = vld [vmem:[#allocation5 + $0x2f80] sm:$0xff]
    %v1856 = vld [vmem:[#allocation5 + $0x2f88] sm:$0xff]
    %v1857 = vld [vmem:[#allocation5 + $0x2f90] sm:$0xff]
    %v1858 = vld [vmem:[#allocation5 + $0x2f98] sm:$0xff]
    %v1859 = vld [vmem:[#allocation5 + $0x2fa0] sm:$0xff]
    %v1860 = vld [vmem:[#allocation5 + $0x2fa8] sm:$0xff]
    %v1861 = vld [vmem:[#allocation5 + $0x2fb0] sm:$0xff]
    %v1862 = vld [vmem:[#allocation5 + $0x2fb8] sm:$0xff]
    %v1863 = vld [vmem:[#allocation5 + $0x2fc0] sm:$0xff]
    %v1864 = vld [vmem:[#allocation5 + $0x2fc8] sm:$0xff]
    %v1865 = vld [vmem:[#allocation5 + $0x2fd0] sm:$0xff]
    %v1866 = vld [vmem:[#allocation5 + $0x2fd8] sm:$0xff]
    %v1867 = vld [vmem:[#allocation5 + $0x2fe0] sm:$0xff]
    %v1868 = vld [vmem:[#allocation5 + $0x2fe8] sm:$0xff]
    %v1869 = vld [vmem:[#allocation5 + $0x2ff0] sm:$0xff]
    %v1870 = vld [vmem:[#allocation5 + $0x2ff8] sm:$0xff]
    %v1871 = vld [vmem:[#allocation5 + $0x3000] sm:$0xff]
    %v1872 = vld [vmem:[#allocation5 + $0x3008] sm:$0xff]
    %v1873 = vld [vmem:[#allocation5 + $0x3010] sm:$0xff]
    %v1874 = vld [vmem:[#allocation5 + $0x3018] sm:$0xff]
    %v1875 = vld [vmem:[#allocation5 + $0x3020] sm:$0xff]
    %v1876 = vld [vmem:[#allocation5 + $0x3028] sm:$0xff]
    %v1877 = vld [vmem:[#allocation5 + $0x3030] sm:$0xff]
    %v1878 = vld [vmem:[#allocation5 + $0x3038] sm:$0xff]
    %v1879 = vld [vmem:[#allocation5 + $0x3040] sm:$0xff]
    %v1880 = vld [vmem:[#allocation5 + $0x3048] sm:$0xff]
    %v1881 = vld [vmem:[#allocation5 + $0x3050] sm:$0xff]
    %v1882 = vld [vmem:[#allocation5 + $0x3058] sm:$0xff]
    %v1883 = vld [vmem:[#allocation5 + $0x3060] sm:$0xff]
    %v1884 = vld [vmem:[#allocation5 + $0x3068] sm:$0xff]
    %v1885 = vld [vmem:[#allocation5 + $0x3070] sm:$0xff]
    %v1886 = vld [vmem:[#allocation5 + $0x3078] sm:$0xff]
    %v1887 = vld [vmem:[#allocation5 + $0x3080] sm:$0xff]
    %v1888 = vld [vmem:[#allocation5 + $0x3088] sm:$0xff]
    %v1889 = vld [vmem:[#allocation5 + $0x3090] sm:$0xff]
    %v1890 = vld [vmem:[#allocation5 + $0x3098] sm:$0xff]
    %v1891 = vld [vmem:[#allocation5 + $0x30a0] sm:$0xff]
    %v1892 = vld [vmem:[#allocation5 + $0x30a8] sm:$0xff]
    %v1893 = vld [vmem:[#allocation5 + $0x30b0] sm:$0xff]
    %v1894 = vld [vmem:[#allocation5 + $0x30b8] sm:$0xff]
    %v1895 = vld [vmem:[#allocation5 + $0x30c0] sm:$0xff]
    %v1896 = vld [vmem:[#allocation5 + $0x30c8] sm:$0xff]
    %v1897 = vld [vmem:[#allocation5 + $0x30d0] sm:$0xff]
    %v1898 = vld [vmem:[#allocation5 + $0x30d8] sm:$0xff]
    %v1899 = vld [vmem:[#allocation5 + $0x30e0] sm:$0xff]
    %v1900 = vld [vmem:[#allocation5 + $0x30e8] sm:$0xff]
    %v1901 = vld [vmem:[#allocation5 + $0x30f0] sm:$0xff]
    %v1902 = vld [vmem:[#allocation5 + $0x30f8] sm:$0xff]
    %v1903 = vld [vmem:[#allocation5 + $0x3100] sm:$0xff]
    %v1904 = vld [vmem:[#allocation5 + $0x3108] sm:$0xff]
    %v1905 = vld [vmem:[#allocation5 + $0x3110] sm:$0xff]
    %v1906 = vld [vmem:[#allocation5 + $0x3118] sm:$0xff]
    %v1907 = vld [vmem:[#allocation5 + $0x3120] sm:$0xff]
    %v1908 = vld [vmem:[#allocation5 + $0x3128] sm:$0xff]
    %v1909 = vld [vmem:[#allocation5 + $0x3130] sm:$0xff]
    %v1910 = vld [vmem:[#allocation5 + $0x3138] sm:$0xff]
    %v1911 = vld [vmem:[#allocation5 + $0x3140] sm:$0xff]
    %v1912 = vld [vmem:[#allocation5 + $0x3148] sm:$0xff]
    %v1913 = vld [vmem:[#allocation5 + $0x3150] sm:$0xff]
    %v1914 = vld [vmem:[#allocation5 + $0x3158] sm:$0xff]
    %v1915 = vld [vmem:[#allocation5 + $0x3160] sm:$0xff]
    %v1916 = vld [vmem:[#allocation5 + $0x3168] sm:$0xff]
    %v1917 = vld [vmem:[#allocation5 + $0x3170] sm:$0xff]
    %v1918 = vld [vmem:[#allocation5 + $0x3178] sm:$0xff]
    %v1919 = vld [vmem:[#allocation5 + $0x3180] sm:$0xff]
    %v1920 = vld [vmem:[#allocation5 + $0x3188] sm:$0xff]
    %v1921 = vld [vmem:[#allocation5 + $0x3190] sm:$0xff]
    %v1922 = vld [vmem:[#allocation5 + $0x3198] sm:$0xff]
    %v1923 = vld [vmem:[#allocation5 + $0x31a0] sm:$0xff]
    %v1924 = vld [vmem:[#allocation5 + $0x31a8] sm:$0xff]
    %v1925 = vld [vmem:[#allocation5 + $0x31b0] sm:$0xff]
    %v1926 = vld [vmem:[#allocation5 + $0x31b8] sm:$0xff]
    %v1927 = vld [vmem:[#allocation5 + $0x31c0] sm:$0xff]
    %v1928 = vld [vmem:[#allocation5 + $0x31c8] sm:$0xff]
    %v1929 = vld [vmem:[#allocation5 + $0x31d0] sm:$0xff]
    %v1930 = vld [vmem:[#allocation5 + $0x31d8] sm:$0xff]
    %v1931 = vld [vmem:[#allocation5 + $0x31e0] sm:$0xff]
    %v1932 = vld [vmem:[#allocation5 + $0x31e8] sm:$0xff]
    %v1933 = vld [vmem:[#allocation5 + $0x31f0] sm:$0xff]
    %v1934 = vld [vmem:[#allocation5 + $0x31f8] sm:$0xff]
    %v1935 = vld [vmem:[#allocation5 + $0x3200] sm:$0xff]
    %v1936 = vld [vmem:[#allocation5 + $0x3208] sm:$0xff]
    %v1937 = vld [vmem:[#allocation5 + $0x3210] sm:$0xff]
    %v1938 = vld [vmem:[#allocation5 + $0x3218] sm:$0xff]
    %v1939 = vld [vmem:[#allocation5 + $0x3220] sm:$0xff]
    %v1940 = vld [vmem:[#allocation5 + $0x3228] sm:$0xff]
    %v1941 = vld [vmem:[#allocation5 + $0x3230] sm:$0xff]
    %v1942 = vld [vmem:[#allocation5 + $0x3238] sm:$0xff]
    %v1943 = vld [vmem:[#allocation5 + $0x3240] sm:$0xff]
    %v1944 = vld [vmem:[#allocation5 + $0x3248] sm:$0xff]
    %v1945 = vld [vmem:[#allocation5 + $0x3250] sm:$0xff]
    %v1946 = vld [vmem:[#allocation5 + $0x3258] sm:$0xff]
    %v1947 = vld [vmem:[#allocation5 + $0x3260] sm:$0xff]
    %v1948 = vld [vmem:[#allocation5 + $0x3268] sm:$0xff]
    %v1949 = vld [vmem:[#allocation5 + $0x3270] sm:$0xff]
    %v1950 = vld [vmem:[#allocation5 + $0x3278] sm:$0xff]
    %v1951 = vld [vmem:[#allocation5 + $0x3280] sm:$0xff]
    %v1952 = vld [vmem:[#allocation5 + $0x3288] sm:$0xff]
    %v1953 = vld [vmem:[#allocation5 + $0x3290] sm:$0xff]
    %v1954 = vld [vmem:[#allocation5 + $0x3298] sm:$0xff]
    %v1955 = vld [vmem:[#allocation5 + $0x32a0] sm:$0xff]
    %v1956 = vld [vmem:[#allocation5 + $0x32a8] sm:$0xff]
    %v1957 = vld [vmem:[#allocation5 + $0x32b0] sm:$0xff]
    %v1958 = vld [vmem:[#allocation5 + $0x32b8] sm:$0xff]
    %v1959 = vld [vmem:[#allocation5 + $0x32c0] sm:$0xff]
    %v1960 = vld [vmem:[#allocation5 + $0x32c8] sm:$0xff]
    %v1961 = vld [vmem:[#allocation5 + $0x32d0] sm:$0xff]
    %v1962 = vld [vmem:[#allocation5 + $0x32d8] sm:$0xff]
    %v1963 = vld [vmem:[#allocation5 + $0x32e0] sm:$0xff]
    %v1964 = vld [vmem:[#allocation5 + $0x32e8] sm:$0xff]
    %v1965 = vld [vmem:[#allocation5 + $0x32f0] sm:$0xff]
    %v1966 = vld [vmem:[#allocation5 + $0x32f8] sm:$0xff]
    %v1967 = vld [vmem:[#allocation5 + $0x3300] sm:$0xff]
    %v1968 = vld [vmem:[#allocation5 + $0x3308] sm:$0xff]
    %v1969 = vld [vmem:[#allocation5 + $0x3310] sm:$0xff]
    %v1970 = vld [vmem:[#allocation5 + $0x3318] sm:$0xff]
    %v1971 = vld [vmem:[#allocation5 + $0x3320] sm:$0xff]
    %v1972 = vld [vmem:[#allocation5 + $0x3328] sm:$0xff]
    %v1973 = vld [vmem:[#allocation5 + $0x3330] sm:$0xff]
    %v1974 = vld [vmem:[#allocation5 + $0x3338] sm:$0xff]
    %v1975 = vld [vmem:[#allocation5 + $0x3340] sm:$0xff]
    %v1976 = vld [vmem:[#allocation5 + $0x3348] sm:$0xff]
    %v1977 = vld [vmem:[#allocation5 + $0x3350] sm:$0xff]
    %v1978 = vld [vmem:[#allocation5 + $0x3358] sm:$0xff]
    %v1979 = vld [vmem:[#allocation5 + $0x3360] sm:$0xff]
    %v1980 = vld [vmem:[#allocation5 + $0x3368] sm:$0xff]
    %v1981 = vld [vmem:[#allocation5 + $0x3370] sm:$0xff]
    %v1982 = vld [vmem:[#allocation5 + $0x3378] sm:$0xff]
    %v1983 = vld [vmem:[#allocation5 + $0x3380] sm:$0xff]
    %v1984 = vld [vmem:[#allocation5 + $0x3388] sm:$0xff]
    %v1985 = vld [vmem:[#allocation5 + $0x3390] sm:$0xff]
    %v1986 = vld [vmem:[#allocation5 + $0x3398] sm:$0xff]
    %v1987 = vld [vmem:[#allocation5 + $0x33a0] sm:$0xff]
    %v1988 = vld [vmem:[#allocation5 + $0x33a8] sm:$0xff]
    %v1989 = vld [vmem:[#allocation5 + $0x33b0] sm:$0xff]
    %v1990 = vld [vmem:[#allocation5 + $0x33b8] sm:$0xff]
    %v1991 = vld [vmem:[#allocation5 + $0x33c0] sm:$0xff]
    %v1992 = vld [vmem:[#allocation5 + $0x33c8] sm:$0xff]
    %v1993 = vld [vmem:[#allocation5 + $0x33d0] sm:$0xff]
    %v1994 = vld [vmem:[#allocation5 + $0x33d8] sm:$0xff]
    %v1995 = vld [vmem:[#allocation5 + $0x33e0] sm:$0xff]
    %v1996 = vld [vmem:[#allocation5 + $0x33e8] sm:$0xff]
    %v1997 = vld [vmem:[#allocation5 + $0x33f0] sm:$0xff]
    %v1998 = vld [vmem:[#allocation5 + $0x33f8] sm:$0xff]
    %v1999 = vld [vmem:[#allocation5 + $0x3400] sm:$0xff]
    %v2000 = vld [vmem:[#allocation5 + $0x3408] sm:$0xff]
    %v2001 = vld [vmem:[#allocation5 + $0x3410] sm:$0xff]
    %v2002 = vld [vmem:[#allocation5 + $0x3418] sm:$0xff]
    %v2003 = vld [vmem:[#allocation5 + $0x3420] sm:$0xff]
    %v2004 = vld [vmem:[#allocation5 + $0x3428] sm:$0xff]
    %v2005 = vld [vmem:[#allocation5 + $0x3430] sm:$0xff]
    %v2006 = vld [vmem:[#allocation5 + $0x3438] sm:$0xff]
    %v2007 = vld [vmem:[#allocation5 + $0x3440] sm:$0xff]
    %v2008 = vld [vmem:[#allocation5 + $0x3448] sm:$0xff]
    %v2009 = vld [vmem:[#allocation5 + $0x3450] sm:$0xff]
    %v2010 = vld [vmem:[#allocation5 + $0x3458] sm:$0xff]
    %v2011 = vld [vmem:[#allocation5 + $0x3460] sm:$0xff]
    %v2012 = vld [vmem:[#allocation5 + $0x3468] sm:$0xff]
    %v2013 = vld [vmem:[#allocation5 + $0x3470] sm:$0xff]
    %v2014 = vld [vmem:[#allocation5 + $0x3478] sm:$0xff]
    %v2015 = vld [vmem:[#allocation5 + $0x3480] sm:$0xff]
    %v2016 = vld [vmem:[#allocation5 + $0x3488] sm:$0xff]
    %v2017 = vld [vmem:[#allocation5 + $0x3490] sm:$0xff]
    %v2018 = vld [vmem:[#allocation5 + $0x3498] sm:$0xff]
    %v2019 = vld [vmem:[#allocation5 + $0x34a0] sm:$0xff]
    %v2020 = vld [vmem:[#allocation5 + $0x34a8] sm:$0xff]
    %v2021 = vld [vmem:[#allocation5 + $0x34b0] sm:$0xff]
    %v2022 = vld [vmem:[#allocation5 + $0x34b8] sm:$0xff]
    %v2023 = vld [vmem:[#allocation5 + $0x34c0] sm:$0xff]
    %v2024 = vld [vmem:[#allocation5 + $0x34c8] sm:$0xff]
    %v2025 = vld [vmem:[#allocation5 + $0x34d0] sm:$0xff]
    %v2026 = vld [vmem:[#allocation5 + $0x34d8] sm:$0xff]
    %v2027 = vld [vmem:[#allocation5 + $0x34e0] sm:$0xff]
    %v2028 = vld [vmem:[#allocation5 + $0x34e8] sm:$0xff]
    %v2029 = vld [vmem:[#allocation5 + $0x34f0] sm:$0xff]
    %v2030 = vld [vmem:[#allocation5 + $0x34f8] sm:$0xff]
    %v2031 = vld [vmem:[#allocation5 + $0x3500] sm:$0xff]
    %v2032 = vld [vmem:[#allocation5 + $0x3508] sm:$0xff]
    %v2033 = vld [vmem:[#allocation5 + $0x3510] sm:$0xff]
    %v2034 = vld [vmem:[#allocation5 + $0x3518] sm:$0xff]
    %v2035 = vld [vmem:[#allocation5 + $0x3520] sm:$0xff]
    %v2036 = vld [vmem:[#allocation5 + $0x3528] sm:$0xff]
    %v2037 = vld [vmem:[#allocation5 + $0x3530] sm:$0xff]
    %v2038 = vld [vmem:[#allocation5 + $0x3538] sm:$0xff]
    %v2039 = vld [vmem:[#allocation5 + $0x3540] sm:$0xff]
    %v2040 = vld [vmem:[#allocation5 + $0x3548] sm:$0xff]
    %v2041 = vld [vmem:[#allocation5 + $0x3550] sm:$0xff]
    %v2042 = vld [vmem:[#allocation5 + $0x3558] sm:$0xff]
    %v2043 = vld [vmem:[#allocation5 + $0x3560] sm:$0xff]
    %v2044 = vld [vmem:[#allocation5 + $0x3568] sm:$0xff]
    %v2045 = vld [vmem:[#allocation5 + $0x3570] sm:$0xff]
    %v2046 = vld [vmem:[#allocation5 + $0x3578] sm:$0xff]
    %v2047 = vld [vmem:[#allocation5 + $0x3580] sm:$0xff]
    %v2048 = vld [vmem:[#allocation5 + $0x3588] sm:$0xff]
    %v2049 = vld [vmem:[#allocation5 + $0x3590] sm:$0xff]
    %v2050 = vld [vmem:[#allocation5 + $0x3598] sm:$0xff]
    %v2051 = vld [vmem:[#allocation5 + $0x35a0] sm:$0xff]
    %v2052 = vld [vmem:[#allocation5 + $0x35a8] sm:$0xff]
    %v2053 = vld [vmem:[#allocation5 + $0x35b0] sm:$0xff]
    %v2054 = vld [vmem:[#allocation5 + $0x35b8] sm:$0xff]
    %v2055 = vld [vmem:[#allocation5 + $0x35c0] sm:$0xff]
    %v2056 = vld [vmem:[#allocation5 + $0x35c8] sm:$0xff]
    %v2057 = vld [vmem:[#allocation5 + $0x35d0] sm:$0xff]
    %v2058 = vld [vmem:[#allocation5 + $0x35d8] sm:$0xff]
    %v2059 = vld [vmem:[#allocation5 + $0x35e0] sm:$0xff]
    %v2060 = vld [vmem:[#allocation5 + $0x35e8] sm:$0xff]
    %v2061 = vld [vmem:[#allocation5 + $0x35f0] sm:$0xff]
    %v2062 = vld [vmem:[#allocation5 + $0x35f8] sm:$0xff]
    %v2063 = vld [vmem:[#allocation7] sm:$0x3]
    %v2065 = vlaneseq
    %v2066 = vshrl.u32 %v2065, 7
    %v2067 = vsub.s32 0, %v2066
    %v2068 = vrot.slane %v2063, %v2067
    %v2069 = vlaneseq
    %v2070 = vshrl.u32 %v2069, 7
    %v2071 = vsub.s32 1, %v2070
    %v2072 = vrot.slane %v2063, %v2071
    %v3803 = vunpack.c.l.b16 %v335
    %v3804 = vunpack.c.h.b16 %v335
    %v3805 = vunpack.c.l.b16 %v336
    %v3806 = vunpack.c.h.b16 %v336
    %v3807 = vunpack.c.l.b16 %v337
    %v3808 = vunpack.c.h.b16 %v337
    %v3809 = vunpack.c.l.b16 %v338
    %v3810 = vunpack.c.h.b16 %v338
    %v3811 = vunpack.c.l.b16 %v339
    %v3812 = vunpack.c.h.b16 %v339
    %v3813 = vunpack.c.l.b16 %v340
    %v3814 = vunpack.c.h.b16 %v340
    %v3815 = vunpack.c.l.b16 %v341
    %v3816 = vunpack.c.h.b16 %v341
    %v3817 = vunpack.c.l.b16 %v342
    %v3818 = vunpack.c.h.b16 %v342
    %v3819 = vunpack.c.l.b16 %v343
    %v3820 = vunpack.c.h.b16 %v343
    %v3821 = vunpack.c.l.b16 %v344
    %v3822 = vunpack.c.h.b16 %v344
    %v3823 = vunpack.c.l.b16 %v345
    %v3824 = vunpack.c.h.b16 %v345
    %v3825 = vunpack.c.l.b16 %v346
    %v3826 = vunpack.c.h.b16 %v346
    %v3827 = vunpack.c.l.b16 %v347
    %v3828 = vunpack.c.h.b16 %v347
    %v3829 = vunpack.c.l.b16 %v348
    %v3830 = vunpack.c.h.b16 %v348
    %v3831 = vunpack.c.l.b16 %v349
    %v3832 = vunpack.c.h.b16 %v349
    %v3833 = vunpack.c.l.b16 %v350
    %v3834 = vunpack.c.h.b16 %v350
    %v3835 = vunpack.c.l.b16 %v351
    %v3836 = vunpack.c.h.b16 %v351
    %v3837 = vunpack.c.l.b16 %v352
    %v3838 = vunpack.c.h.b16 %v352
    %v3839 = vunpack.c.l.b16 %v353
    %v3840 = vunpack.c.h.b16 %v353
    %v3841 = vunpack.c.l.b16 %v354
    %v3842 = vunpack.c.h.b16 %v354
    %v3843 = vunpack.c.l.b16 %v355
    %v3844 = vunpack.c.h.b16 %v355
    %v3845 = vunpack.c.l.b16 %v356
    %v3846 = vunpack.c.h.b16 %v356
    %v3847 = vunpack.c.l.b16 %v357
    %v3848 = vunpack.c.h.b16 %v357
    %v3849 = vunpack.c.l.b16 %v358
    %v3850 = vunpack.c.h.b16 %v358
    %v3851 = vunpack.c.l.b16 %v359
    %v3852 = vunpack.c.h.b16 %v359
    %v3853 = vunpack.c.l.b16 %v360
    %v3854 = vunpack.c.h.b16 %v360
    %v3855 = vunpack.c.l.b16 %v361
    %v3856 = vunpack.c.h.b16 %v361
    %v3857 = vunpack.c.l.b16 %v362
    %v3858 = vunpack.c.h.b16 %v362
    %v3859 = vunpack.c.l.b16 %v363
    %v3860 = vunpack.c.h.b16 %v363
    %v3861 = vunpack.c.l.b16 %v364
    %v3862 = vunpack.c.h.b16 %v364
    %v3863 = vunpack.c.l.b16 %v365
    %v3864 = vunpack.c.h.b16 %v365
    %v3865 = vunpack.c.l.b16 %v366
    %v3866 = vunpack.c.h.b16 %v366
    %v3867 = vunpack.c.l.b16 %v367
    %v3868 = vunpack.c.h.b16 %v367
    %v3869 = vunpack.c.l.b16 %v368
    %v3870 = vunpack.c.h.b16 %v368
    %v3871 = vunpack.c.l.b16 %v369
    %v3872 = vunpack.c.h.b16 %v369
    %v3873 = vunpack.c.l.b16 %v370
    %v3874 = vunpack.c.h.b16 %v370
    %v3875 = vunpack.c.l.b16 %v371
    %v3876 = vunpack.c.h.b16 %v371
    %v3877 = vunpack.c.l.b16 %v372
    %v3878 = vunpack.c.h.b16 %v372
    %v3879 = vunpack.c.l.b16 %v373
    %v3880 = vunpack.c.h.b16 %v373
    %v3881 = vunpack.c.l.b16 %v374
    %v3882 = vunpack.c.h.b16 %v374
    %v3883 = vunpack.c.l.b16 %v375
    %v3884 = vunpack.c.h.b16 %v375
    %v3885 = vunpack.c.l.b16 %v376
    %v3886 = vunpack.c.h.b16 %v376
    %v3887 = vunpack.c.l.b16 %v377
    %v3888 = vunpack.c.h.b16 %v377
    %v3889 = vunpack.c.l.b16 %v378
    %v3890 = vunpack.c.h.b16 %v378
    %v3891 = vunpack.c.l.b16 %v379
    %v3892 = vunpack.c.h.b16 %v379
    %v3893 = vunpack.c.l.b16 %v380
    %v3894 = vunpack.c.h.b16 %v380
    %v3895 = vunpack.c.l.b16 %v381
    %v3896 = vunpack.c.h.b16 %v381
    %v3897 = vunpack.c.l.b16 %v382
    %v3898 = vunpack.c.h.b16 %v382
    %v3899 = vunpack.c.l.b16 %v383
    %v3900 = vunpack.c.h.b16 %v383
    %v3901 = vunpack.c.l.b16 %v384
    %v3902 = vunpack.c.h.b16 %v384
    %v3903 = vunpack.c.l.b16 %v385
    %v3904 = vunpack.c.h.b16 %v385
    %v3905 = vunpack.c.l.b16 %v386
    %v3906 = vunpack.c.h.b16 %v386
    %v3907 = vunpack.c.l.b16 %v387
    %v3908 = vunpack.c.h.b16 %v387
    %v3909 = vunpack.c.l.b16 %v388
    %v3910 = vunpack.c.h.b16 %v388
    %v3911 = vunpack.c.l.b16 %v389
    %v3912 = vunpack.c.h.b16 %v389
    %v3913 = vunpack.c.l.b16 %v390
    %v3914 = vunpack.c.h.b16 %v390
    %v3915 = vunpack.c.l.b16 %v391
    %v3916 = vunpack.c.h.b16 %v391
    %v3917 = vunpack.c.l.b16 %v392
    %v3918 = vunpack.c.h.b16 %v392
    %v3919 = vunpack.c.l.b16 %v393
    %v3920 = vunpack.c.h.b16 %v393
    %v3921 = vunpack.c.l.b16 %v394
    %v3922 = vunpack.c.h.b16 %v394
    %v3923 = vunpack.c.l.b16 %v395
    %v3924 = vunpack.c.h.b16 %v395
    %v3925 = vunpack.c.l.b16 %v396
    %v3926 = vunpack.c.h.b16 %v396
    %v3927 = vunpack.c.l.b16 %v397
    %v3928 = vunpack.c.h.b16 %v397
    %v3929 = vunpack.c.l.b16 %v398
    %v3930 = vunpack.c.h.b16 %v398
    %v3931 = vunpack.c.l.b16 %v399
    %v3932 = vunpack.c.h.b16 %v399
    %v3933 = vunpack.c.l.b16 %v400
    %v3934 = vunpack.c.h.b16 %v400
    %v3935 = vunpack.c.l.b16 %v401
    %v3936 = vunpack.c.h.b16 %v401
    %v3937 = vunpack.c.l.b16 %v402
    %v3938 = vunpack.c.h.b16 %v402
    %v3939 = vunpack.c.l.b16 %v403
    %v3940 = vunpack.c.h.b16 %v403
    %v3941 = vunpack.c.l.b16 %v404
    %v3942 = vunpack.c.h.b16 %v404
    %v3943 = vunpack.c.l.b16 %v405
    %v3944 = vunpack.c.h.b16 %v405
    %v3945 = vunpack.c.l.b16 %v406
    %v3946 = vunpack.c.h.b16 %v406
    %v3947 = vunpack.c.l.b16 %v407
    %v3948 = vunpack.c.h.b16 %v407
    %v3949 = vunpack.c.l.b16 %v408
    %v3950 = vunpack.c.h.b16 %v408
    %v3951 = vunpack.c.l.b16 %v409
    %v3952 = vunpack.c.h.b16 %v409
    %v3953 = vunpack.c.l.b16 %v410
    %v3954 = vunpack.c.h.b16 %v410
    %v3955 = vunpack.c.l.b16 %v411
    %v3956 = vunpack.c.h.b16 %v411
    %v3957 = vunpack.c.l.b16 %v412
    %v3958 = vunpack.c.h.b16 %v412
    %v3959 = vunpack.c.l.b16 %v413
    %v3960 = vunpack.c.h.b16 %v413
    %v3961 = vunpack.c.l.b16 %v414
    %v3962 = vunpack.c.h.b16 %v414
    %v3963 = vunpack.c.l.b16 %v415
    %v3964 = vunpack.c.h.b16 %v415
    %v3965 = vunpack.c.l.b16 %v416
    %v3966 = vunpack.c.h.b16 %v416
    %v3967 = vunpack.c.l.b16 %v417
    %v3968 = vunpack.c.h.b16 %v417
    %v3969 = vunpack.c.l.b16 %v418
    %v3970 = vunpack.c.h.b16 %v418
    %v3971 = vunpack.c.l.b16 %v419
    %v3972 = vunpack.c.h.b16 %v419
    %v3973 = vunpack.c.l.b16 %v420
    %v3974 = vunpack.c.h.b16 %v420
    %v3975 = vunpack.c.l.b16 %v421
    %v3976 = vunpack.c.h.b16 %v421
    %v3977 = vunpack.c.l.b16 %v422
    %v3978 = vunpack.c.h.b16 %v422
    %v3979 = vunpack.c.l.b16 %v423
    %v3980 = vunpack.c.h.b16 %v423
    %v3981 = vunpack.c.l.b16 %v424
    %v3982 = vunpack.c.h.b16 %v424
    %v3983 = vunpack.c.l.b16 %v425
    %v3984 = vunpack.c.h.b16 %v425
    %v3985 = vunpack.c.l.b16 %v426
    %v3986 = vunpack.c.h.b16 %v426
    %v3987 = vunpack.c.l.b16 %v427
    %v3988 = vunpack.c.h.b16 %v427
    %v3989 = vunpack.c.l.b16 %v428
    %v3990 = vunpack.c.h.b16 %v428
    %v3991 = vunpack.c.l.b16 %v429
    %v3992 = vunpack.c.h.b16 %v429
    %v3993 = vunpack.c.l.b16 %v430
    %v3994 = vunpack.c.h.b16 %v430
    %v3995 = vunpack.c.l.b16 %v431
    %v3996 = vunpack.c.h.b16 %v431
    %v3997 = vunpack.c.l.b16 %v432
    %v3998 = vunpack.c.h.b16 %v432
    %v3999 = vunpack.c.l.b16 %v433
    %v4000 = vunpack.c.h.b16 %v433
    %v4001 = vunpack.c.l.b16 %v434
    %v4002 = vunpack.c.h.b16 %v434
    %v4003 = vunpack.c.l.b16 %v435
    %v4004 = vunpack.c.h.b16 %v435
    %v4005 = vunpack.c.l.b16 %v436
    %v4006 = vunpack.c.h.b16 %v436
    %v4007 = vunpack.c.l.b16 %v437
    %v4008 = vunpack.c.h.b16 %v437
    %v4009 = vunpack.c.l.b16 %v438
    %v4010 = vunpack.c.h.b16 %v438
    %v4011 = vunpack.c.l.b16 %v439
    %v4012 = vunpack.c.h.b16 %v439
    %v4013 = vunpack.c.l.b16 %v440
    %v4014 = vunpack.c.h.b16 %v440
    %v4015 = vunpack.c.l.b16 %v441
    %v4016 = vunpack.c.h.b16 %v441
    %v4017 = vunpack.c.l.b16 %v442
    %v4018 = vunpack.c.h.b16 %v442
    %v4019 = vunpack.c.l.b16 %v443
    %v4020 = vunpack.c.h.b16 %v443
    %v4021 = vunpack.c.l.b16 %v444
    %v4022 = vunpack.c.h.b16 %v444
    %v4023 = vunpack.c.l.b16 %v445
    %v4024 = vunpack.c.h.b16 %v445
    %v4025 = vunpack.c.l.b16 %v446
    %v4026 = vunpack.c.h.b16 %v446
    %v4027 = vunpack.c.l.b16 %v447
    %v4028 = vunpack.c.h.b16 %v447
    %v4029 = vunpack.c.l.b16 %v448
    %v4030 = vunpack.c.h.b16 %v448
    %v4031 = vunpack.c.l.b16 %v449
    %v4032 = vunpack.c.h.b16 %v449
    %v4033 = vunpack.c.l.b16 %v450
    %v4034 = vunpack.c.h.b16 %v450
    %v4035 = vunpack.c.l.b16 %v451
    %v4036 = vunpack.c.h.b16 %v451
    %v4037 = vunpack.c.l.b16 %v452
    %v4038 = vunpack.c.h.b16 %v452
    %v4039 = vunpack.c.l.b16 %v453
    %v4040 = vunpack.c.h.b16 %v453
    %v4041 = vunpack.c.l.b16 %v454
    %v4042 = vunpack.c.h.b16 %v454
    %v4043 = vunpack.c.l.b16 %v455
    %v4044 = vunpack.c.h.b16 %v455
    %v4045 = vunpack.c.l.b16 %v456
    %v4046 = vunpack.c.h.b16 %v456
    %v4047 = vunpack.c.l.b16 %v457
    %v4048 = vunpack.c.h.b16 %v457
    %v4049 = vunpack.c.l.b16 %v458
    %v4050 = vunpack.c.h.b16 %v458
    %v4051 = vunpack.c.l.b16 %v459
    %v4052 = vunpack.c.h.b16 %v459
    %v4053 = vunpack.c.l.b16 %v460
    %v4054 = vunpack.c.h.b16 %v460
    %v4055 = vunpack.c.l.b16 %v461
    %v4056 = vunpack.c.h.b16 %v461
    %v4057 = vunpack.c.l.b16 %v462
    %v4058 = vunpack.c.h.b16 %v462
    %v4059 = vunpack.c.l.b16 %v463
    %v4060 = vunpack.c.h.b16 %v463
    %v4061 = vunpack.c.l.b16 %v464
    %v4062 = vunpack.c.h.b16 %v464
    %v4063 = vunpack.c.l.b16 %v465
    %v4064 = vunpack.c.h.b16 %v465
    %v4065 = vunpack.c.l.b16 %v466
    %v4066 = vunpack.c.h.b16 %v466
    %v4067 = vunpack.c.l.b16 %v467
    %v4068 = vunpack.c.h.b16 %v467
    %v4069 = vunpack.c.l.b16 %v468
    %v4070 = vunpack.c.h.b16 %v468
    %v4071 = vunpack.c.l.b16 %v469
    %v4072 = vunpack.c.h.b16 %v469
    %v4073 = vunpack.c.l.b16 %v470
    %v4074 = vunpack.c.h.b16 %v470
    %v4075 = vunpack.c.l.b16 %v471
    %v4076 = vunpack.c.h.b16 %v471
    %v4077 = vunpack.c.l.b16 %v472
    %v4078 = vunpack.c.h.b16 %v472
    %v4079 = vunpack.c.l.b16 %v473
    %v4080 = vunpack.c.h.b16 %v473
    %v4081 = vunpack.c.l.b16 %v474
    %v4082 = vunpack.c.h.b16 %v474
    %v4083 = vunpack.c.l.b16 %v475
    %v4084 = vunpack.c.h.b16 %v475
    %v4085 = vunpack.c.l.b16 %v476
    %v4086 = vunpack.c.h.b16 %v476
    %v4087 = vunpack.c.l.b16 %v477
    %v4088 = vunpack.c.h.b16 %v477
    %v4089 = vunpack.c.l.b16 %v478
    %v4090 = vunpack.c.h.b16 %v478
    %v4091 = vunpack.c.l.b16 %v479
    %v4092 = vunpack.c.h.b16 %v479
    %v4093 = vunpack.c.l.b16 %v480
    %v4094 = vunpack.c.h.b16 %v480
    %v4095 = vunpack.c.l.b16 %v481
    %v4096 = vunpack.c.h.b16 %v481
    %v4097 = vunpack.c.l.b16 %v482
    %v4098 = vunpack.c.h.b16 %v482
    %v4099 = vunpack.c.l.b16 %v483
    %v4100 = vunpack.c.h.b16 %v483
    %v4101 = vunpack.c.l.b16 %v484
    %v4102 = vunpack.c.h.b16 %v484
    %v4103 = vunpack.c.l.b16 %v485
    %v4104 = vunpack.c.h.b16 %v485
    %v4105 = vunpack.c.l.b16 %v486
    %v4106 = vunpack.c.h.b16 %v486
    %v4107 = vunpack.c.l.b16 %v487
    %v4108 = vunpack.c.h.b16 %v487
    %v4109 = vunpack.c.l.b16 %v488
    %v4110 = vunpack.c.h.b16 %v488
    %v4111 = vunpack.c.l.b16 %v489
    %v4112 = vunpack.c.h.b16 %v489
    %v4113 = vunpack.c.l.b16 %v490
    %v4114 = vunpack.c.h.b16 %v490
    %v4115 = vunpack.c.l.b16 %v491
    %v4116 = vunpack.c.h.b16 %v491
    %v4117 = vunpack.c.l.b16 %v492
    %v4118 = vunpack.c.h.b16 %v492
    %v4119 = vunpack.c.l.b16 %v493
    %v4120 = vunpack.c.h.b16 %v493
    %v4121 = vunpack.c.l.b16 %v494
    %v4122 = vunpack.c.h.b16 %v494
    %v4123 = vunpack.c.l.b16 %v495
    %v4124 = vunpack.c.h.b16 %v495
    %v4125 = vunpack.c.l.b16 %v496
    %v4126 = vunpack.c.h.b16 %v496
    %v4127 = vunpack.c.l.b16 %v497
    %v4128 = vunpack.c.h.b16 %v497
    %v4129 = vunpack.c.l.b16 %v498
    %v4130 = vunpack.c.h.b16 %v498
    %v4131 = vunpack.c.l.b16 %v499
    %v4132 = vunpack.c.h.b16 %v499
    %v4133 = vunpack.c.l.b16 %v500
    %v4134 = vunpack.c.h.b16 %v500
    %v4135 = vunpack.c.l.b16 %v501
    %v4136 = vunpack.c.h.b16 %v501
    %v4137 = vunpack.c.l.b16 %v502
    %v4138 = vunpack.c.h.b16 %v502
    %v4139 = vunpack.c.l.b16 %v503
    %v4140 = vunpack.c.h.b16 %v503
    %v4141 = vunpack.c.l.b16 %v504
    %v4142 = vunpack.c.h.b16 %v504
    %v4143 = vunpack.c.l.b16 %v505
    %v4144 = vunpack.c.h.b16 %v505
    %v4145 = vunpack.c.l.b16 %v506
    %v4146 = vunpack.c.h.b16 %v506
    %v4147 = vunpack.c.l.b16 %v507
    %v4148 = vunpack.c.h.b16 %v507
    %v4149 = vunpack.c.l.b16 %v508
    %v4150 = vunpack.c.h.b16 %v508
    %v4151 = vunpack.c.l.b16 %v509
    %v4152 = vunpack.c.h.b16 %v509
    %v4153 = vunpack.c.l.b16 %v510
    %v4154 = vunpack.c.h.b16 %v510
    %v4155 = vunpack.c.l.b16 %v511
    %v4156 = vunpack.c.h.b16 %v511
    %v4157 = vunpack.c.l.b16 %v512
    %v4158 = vunpack.c.h.b16 %v512
    %v4159 = vunpack.c.l.b16 %v513
    %v4160 = vunpack.c.h.b16 %v513
    %v4161 = vunpack.c.l.b16 %v514
    %v4162 = vunpack.c.h.b16 %v514
    %v4163 = vunpack.c.l.b16 %v515
    %v4164 = vunpack.c.h.b16 %v515
    %v4165 = vunpack.c.l.b16 %v516
    %v4166 = vunpack.c.h.b16 %v516
    %v4167 = vunpack.c.l.b16 %v517
    %v4168 = vunpack.c.h.b16 %v517
    %v4169 = vunpack.c.l.b16 %v518
    %v4170 = vunpack.c.h.b16 %v518
    %v4171 = vunpack.c.l.b16 %v519
    %v4172 = vunpack.c.h.b16 %v519
    %v4173 = vunpack.c.l.b16 %v520
    %v4174 = vunpack.c.h.b16 %v520
    %v4175 = vunpack.c.l.b16 %v521
    %v4176 = vunpack.c.h.b16 %v521
    %v4177 = vunpack.c.l.b16 %v522
    %v4178 = vunpack.c.h.b16 %v522
    %v4179 = vunpack.c.l.b16 %v523
    %v4180 = vunpack.c.h.b16 %v523
    %v4181 = vunpack.c.l.b16 %v524
    %v4182 = vunpack.c.h.b16 %v524
    %v4183 = vunpack.c.l.b16 %v525
    %v4184 = vunpack.c.h.b16 %v525
    %v4185 = vunpack.c.l.b16 %v526
    %v4186 = vunpack.c.h.b16 %v526
    %v4187 = vunpack.c.l.b16 %v527
    %v4188 = vunpack.c.h.b16 %v527
    %v4189 = vunpack.c.l.b16 %v528
    %v4190 = vunpack.c.h.b16 %v528
    %v4191 = vunpack.c.l.b16 %v529
    %v4192 = vunpack.c.h.b16 %v529
    %v4193 = vunpack.c.l.b16 %v530
    %v4194 = vunpack.c.h.b16 %v530
    %v4195 = vunpack.c.l.b16 %v531
    %v4196 = vunpack.c.h.b16 %v531
    %v4197 = vunpack.c.l.b16 %v532
    %v4198 = vunpack.c.h.b16 %v532
    %v4199 = vunpack.c.l.b16 %v533
    %v4200 = vunpack.c.h.b16 %v533
    %v4201 = vunpack.c.l.b16 %v534
    %v4202 = vunpack.c.h.b16 %v534
    %v4203 = vunpack.c.l.b16 %v535
    %v4204 = vunpack.c.h.b16 %v535
    %v4205 = vunpack.c.l.b16 %v536
    %v4206 = vunpack.c.h.b16 %v536
    %v4207 = vunpack.c.l.b16 %v537
    %v4208 = vunpack.c.h.b16 %v537
    %v4209 = vunpack.c.l.b16 %v538
    %v4210 = vunpack.c.h.b16 %v538
    %v4211 = vunpack.c.l.b16 %v539
    %v4212 = vunpack.c.h.b16 %v539
    %v4213 = vunpack.c.l.b16 %v540
    %v4214 = vunpack.c.h.b16 %v540
    %v4215 = vunpack.c.l.b16 %v541
    %v4216 = vunpack.c.h.b16 %v541
    %v4217 = vunpack.c.l.b16 %v542
    %v4218 = vunpack.c.h.b16 %v542
    %v4219 = vunpack.c.l.b16 %v543
    %v4220 = vunpack.c.h.b16 %v543
    %v4221 = vunpack.c.l.b16 %v544
    %v4222 = vunpack.c.h.b16 %v544
    %v4223 = vunpack.c.l.b16 %v545
    %v4224 = vunpack.c.h.b16 %v545
    %v4225 = vunpack.c.l.b16 %v546
    %v4226 = vunpack.c.h.b16 %v546
    %v4227 = vunpack.c.l.b16 %v547
    %v4228 = vunpack.c.h.b16 %v547
    %v4229 = vunpack.c.l.b16 %v548
    %v4230 = vunpack.c.h.b16 %v548
    %v4231 = vunpack.c.l.b16 %v549
    %v4232 = vunpack.c.h.b16 %v549
    %v4233 = vunpack.c.l.b16 %v550
    %v4234 = vunpack.c.h.b16 %v550
    %v4235 = vunpack.c.l.b16 %v551
    %v4236 = vunpack.c.h.b16 %v551
    %v4237 = vunpack.c.l.b16 %v552
    %v4238 = vunpack.c.h.b16 %v552
    %v4239 = vunpack.c.l.b16 %v553
    %v4240 = vunpack.c.h.b16 %v553
    %v4241 = vunpack.c.l.b16 %v554
    %v4242 = vunpack.c.h.b16 %v554
    %v4243 = vunpack.c.l.b16 %v555
    %v4244 = vunpack.c.h.b16 %v555
    %v4245 = vunpack.c.l.b16 %v556
    %v4246 = vunpack.c.h.b16 %v556
    %v4247 = vunpack.c.l.b16 %v557
    %v4248 = vunpack.c.h.b16 %v557
    %v4249 = vunpack.c.l.b16 %v558
    %v4250 = vunpack.c.h.b16 %v558
    %v4251 = vunpack.c.l.b16 %v559
    %v4252 = vunpack.c.h.b16 %v559
    %v4253 = vunpack.c.l.b16 %v560
    %v4254 = vunpack.c.h.b16 %v560
    %v4255 = vunpack.c.l.b16 %v561
    %v4256 = vunpack.c.h.b16 %v561
    %v4257 = vunpack.c.l.b16 %v562
    %v4258 = vunpack.c.h.b16 %v562
    %v4259 = vunpack.c.l.b16 %v563
    %v4260 = vunpack.c.h.b16 %v563
    %v4261 = vunpack.c.l.b16 %v564
    %v4262 = vunpack.c.h.b16 %v564
    %v4263 = vunpack.c.l.b16 %v565
    %v4264 = vunpack.c.h.b16 %v565
    %v4265 = vunpack.c.l.b16 %v566
    %v4266 = vunpack.c.h.b16 %v566
    %v4267 = vunpack.c.l.b16 %v567
    %v4268 = vunpack.c.h.b16 %v567
    %v4269 = vunpack.c.l.b16 %v568
    %v4270 = vunpack.c.h.b16 %v568
    %v4271 = vunpack.c.l.b16 %v569
    %v4272 = vunpack.c.h.b16 %v569
    %v4273 = vunpack.c.l.b16 %v570
    %v4274 = vunpack.c.h.b16 %v570
    %v4275 = vunpack.c.l.b16 %v571
    %v4276 = vunpack.c.h.b16 %v571
    %v4277 = vunpack.c.l.b16 %v572
    %v4278 = vunpack.c.h.b16 %v572
    %v4279 = vunpack.c.l.b16 %v573
    %v4280 = vunpack.c.h.b16 %v573
    %v4281 = vunpack.c.l.b16 %v574
    %v4282 = vunpack.c.h.b16 %v574
    %v4283 = vunpack.c.l.b16 %v575
    %v4284 = vunpack.c.h.b16 %v575
    %v4285 = vunpack.c.l.b16 %v576
    %v4286 = vunpack.c.h.b16 %v576
    %v4287 = vunpack.c.l.b16 %v577
    %v4288 = vunpack.c.h.b16 %v577
    %v4289 = vunpack.c.l.b16 %v578
    %v4290 = vunpack.c.h.b16 %v578
    %v4291 = vunpack.c.l.b16 %v579
    %v4292 = vunpack.c.h.b16 %v579
    %v4293 = vunpack.c.l.b16 %v580
    %v4294 = vunpack.c.h.b16 %v580
    %v4295 = vunpack.c.l.b16 %v581
    %v4296 = vunpack.c.h.b16 %v581
    %v4297 = vunpack.c.l.b16 %v582
    %v4298 = vunpack.c.h.b16 %v582
    %v4299 = vunpack.c.l.b16 %v583
    %v4300 = vunpack.c.h.b16 %v583
    %v4301 = vunpack.c.l.b16 %v584
    %v4302 = vunpack.c.h.b16 %v584
    %v4303 = vunpack.c.l.b16 %v585
    %v4304 = vunpack.c.h.b16 %v585
    %v4305 = vunpack.c.l.b16 %v586
    %v4306 = vunpack.c.h.b16 %v586
    %v4307 = vunpack.c.l.b16 %v587
    %v4308 = vunpack.c.h.b16 %v587
    %v4309 = vunpack.c.l.b16 %v588
    %v4310 = vunpack.c.h.b16 %v588
    %v4311 = vunpack.c.l.b16 %v589
    %v4312 = vunpack.c.h.b16 %v589
    %v4313 = vunpack.c.l.b16 %v590
    %v4314 = vunpack.c.h.b16 %v590
    %v4315 = vunpack.c.l.b16 %v591
    %v4316 = vunpack.c.h.b16 %v591
    %v4317 = vunpack.c.l.b16 %v592
    %v4318 = vunpack.c.h.b16 %v592
    %v4319 = vunpack.c.l.b16 %v593
    %v4320 = vunpack.c.h.b16 %v593
    %v4321 = vunpack.c.l.b16 %v594
    %v4322 = vunpack.c.h.b16 %v594
    %v4323 = vunpack.c.l.b16 %v595
    %v4324 = vunpack.c.h.b16 %v595
    %v4325 = vunpack.c.l.b16 %v596
    %v4326 = vunpack.c.h.b16 %v596
    %v4327 = vunpack.c.l.b16 %v597
    %v4328 = vunpack.c.h.b16 %v597
    %v4329 = vunpack.c.l.b16 %v598
    %v4330 = vunpack.c.h.b16 %v598
    %v4331 = vunpack.c.l.b16 %v599
    %v4332 = vunpack.c.h.b16 %v599
    %v4333 = vunpack.c.l.b16 %v600
    %v4334 = vunpack.c.h.b16 %v600
    %v4335 = vunpack.c.l.b16 %v601
    %v4336 = vunpack.c.h.b16 %v601
    %v4337 = vunpack.c.l.b16 %v602
    %v4338 = vunpack.c.h.b16 %v602
    %v4339 = vunpack.c.l.b16 %v603
    %v4340 = vunpack.c.h.b16 %v603
    %v4341 = vunpack.c.l.b16 %v604
    %v4342 = vunpack.c.h.b16 %v604
    %v4343 = vunpack.c.l.b16 %v605
    %v4344 = vunpack.c.h.b16 %v605
    %v4345 = vunpack.c.l.b16 %v606
    %v4346 = vunpack.c.h.b16 %v606
    %v4347 = vunpack.c.l.b16 %v607
    %v4348 = vunpack.c.h.b16 %v607
    %v4349 = vunpack.c.l.b16 %v608
    %v4350 = vunpack.c.h.b16 %v608
    %v4351 = vunpack.c.l.b16 %v609
    %v4352 = vunpack.c.h.b16 %v609
    %v4353 = vunpack.c.l.b16 %v610
    %v4354 = vunpack.c.h.b16 %v610
    %v4355 = vunpack.c.l.b16 %v611
    %v4356 = vunpack.c.h.b16 %v611
    %v4357 = vunpack.c.l.b16 %v612
    %v4358 = vunpack.c.h.b16 %v612
    %v4359 = vunpack.c.l.b16 %v613
    %v4360 = vunpack.c.h.b16 %v613
    %v4361 = vunpack.c.l.b16 %v614
    %v4362 = vunpack.c.h.b16 %v614
    %v4363 = vunpack.c.l.b16 %v615
    %v4364 = vunpack.c.h.b16 %v615
    %v4365 = vunpack.c.l.b16 %v616
    %v4366 = vunpack.c.h.b16 %v616
    %v4367 = vunpack.c.l.b16 %v617
    %v4368 = vunpack.c.h.b16 %v617
    %v4369 = vunpack.c.l.b16 %v618
    %v4370 = vunpack.c.h.b16 %v618
    %v4371 = vunpack.c.l.b16 %v619
    %v4372 = vunpack.c.h.b16 %v619
    %v4373 = vunpack.c.l.b16 %v620
    %v4374 = vunpack.c.h.b16 %v620
    %v4375 = vunpack.c.l.b16 %v621
    %v4376 = vunpack.c.h.b16 %v621
    %v4377 = vunpack.c.l.b16 %v622
    %v4378 = vunpack.c.h.b16 %v622
    %v4379 = vunpack.c.l.b16 %v623
    %v4380 = vunpack.c.h.b16 %v623
    %v4381 = vunpack.c.l.b16 %v624
    %v4382 = vunpack.c.h.b16 %v624
    %v4383 = vunpack.c.l.b16 %v625
    %v4384 = vunpack.c.h.b16 %v625
    %v4385 = vunpack.c.l.b16 %v626
    %v4386 = vunpack.c.h.b16 %v626
    %v4387 = vunpack.c.l.b16 %v627
    %v4388 = vunpack.c.h.b16 %v627
    %v4389 = vunpack.c.l.b16 %v628
    %v4390 = vunpack.c.h.b16 %v628
    %v4391 = vunpack.c.l.b16 %v629
    %v4392 = vunpack.c.h.b16 %v629
    %v4393 = vunpack.c.l.b16 %v630
    %v4394 = vunpack.c.h.b16 %v630
    %v4395 = vunpack.c.l.b16 %v631
    %v4396 = vunpack.c.h.b16 %v631
    %v4397 = vunpack.c.l.b16 %v632
    %v4398 = vunpack.c.h.b16 %v632
    %v4399 = vunpack.c.l.b16 %v633
    %v4400 = vunpack.c.h.b16 %v633
    %v4401 = vunpack.c.l.b16 %v634
    %v4402 = vunpack.c.h.b16 %v634
    %v4403 = vunpack.c.l.b16 %v635
    %v4404 = vunpack.c.h.b16 %v635
    %v4405 = vunpack.c.l.b16 %v636
    %v4406 = vunpack.c.h.b16 %v636
    %v4407 = vunpack.c.l.b16 %v637
    %v4408 = vunpack.c.h.b16 %v637
    %v4409 = vunpack.c.l.b16 %v638
    %v4410 = vunpack.c.h.b16 %v638
    %v4411 = vunpack.c.l.b16 %v639
    %v4412 = vunpack.c.h.b16 %v639
    %v4413 = vunpack.c.l.b16 %v640
    %v4414 = vunpack.c.h.b16 %v640
    %v4415 = vunpack.c.l.b16 %v641
    %v4416 = vunpack.c.h.b16 %v641
    %v4417 = vunpack.c.l.b16 %v642
    %v4418 = vunpack.c.h.b16 %v642
    %v4419 = vunpack.c.l.b16 %v643
    %v4420 = vunpack.c.h.b16 %v643
    %v4421 = vunpack.c.l.b16 %v644
    %v4422 = vunpack.c.h.b16 %v644
    %v4423 = vunpack.c.l.b16 %v645
    %v4424 = vunpack.c.h.b16 %v645
    %v4425 = vunpack.c.l.b16 %v646
    %v4426 = vunpack.c.h.b16 %v646
    %v4427 = vunpack.c.l.b16 %v647
    %v4428 = vunpack.c.h.b16 %v647
    %v4429 = vunpack.c.l.b16 %v648
    %v4430 = vunpack.c.h.b16 %v648
    %v4431 = vunpack.c.l.b16 %v649
    %v4432 = vunpack.c.h.b16 %v649
    %v4433 = vunpack.c.l.b16 %v650
    %v4434 = vunpack.c.h.b16 %v650
    %v4435 = vunpack.c.l.b16 %v651
    %v4436 = vunpack.c.h.b16 %v651
    %v4437 = vunpack.c.l.b16 %v652
    %v4438 = vunpack.c.h.b16 %v652
    %v4439 = vunpack.c.l.b16 %v653
    %v4440 = vunpack.c.h.b16 %v653
    %v4441 = vunpack.c.l.b16 %v654
    %v4442 = vunpack.c.h.b16 %v654
    %v4443 = vunpack.c.l.b16 %v655
    %v4444 = vunpack.c.h.b16 %v655
    %v4445 = vunpack.c.l.b16 %v656
    %v4446 = vunpack.c.h.b16 %v656
    %v4447 = vunpack.c.l.b16 %v657
    %v4448 = vunpack.c.h.b16 %v657
    %v4449 = vunpack.c.l.b16 %v658
    %v4450 = vunpack.c.h.b16 %v658
    %v4451 = vunpack.c.l.b16 %v659
    %v4452 = vunpack.c.h.b16 %v659
    %v4453 = vunpack.c.l.b16 %v660
    %v4454 = vunpack.c.h.b16 %v660
    %v4455 = vunpack.c.l.b16 %v661
    %v4456 = vunpack.c.h.b16 %v661
    %v4457 = vunpack.c.l.b16 %v662
    %v4458 = vunpack.c.h.b16 %v662
    %v4459 = vunpack.c.l.b16 %v663
    %v4460 = vunpack.c.h.b16 %v663
    %v4461 = vunpack.c.l.b16 %v664
    %v4462 = vunpack.c.h.b16 %v664
    %v4463 = vunpack.c.l.b16 %v665
    %v4464 = vunpack.c.h.b16 %v665
    %v4465 = vunpack.c.l.b16 %v666
    %v4466 = vunpack.c.h.b16 %v666
    %v4467 = vunpack.c.l.b16 %v667
    %v4468 = vunpack.c.h.b16 %v667
    %v4469 = vunpack.c.l.b16 %v668
    %v4470 = vunpack.c.h.b16 %v668
    %v4471 = vunpack.c.l.b16 %v669
    %v4472 = vunpack.c.h.b16 %v669
    %v4473 = vunpack.c.l.b16 %v670
    %v4474 = vunpack.c.h.b16 %v670
    %v4475 = vunpack.c.l.b16 %v671
    %v4476 = vunpack.c.h.b16 %v671
    %v4477 = vunpack.c.l.b16 %v672
    %v4478 = vunpack.c.h.b16 %v672
    %v4479 = vunpack.c.l.b16 %v673
    %v4480 = vunpack.c.h.b16 %v673
    %v4481 = vunpack.c.l.b16 %v674
    %v4482 = vunpack.c.h.b16 %v674
    %v4483 = vunpack.c.l.b16 %v675
    %v4484 = vunpack.c.h.b16 %v675
    %v4485 = vunpack.c.l.b16 %v676
    %v4486 = vunpack.c.h.b16 %v676
    %v4487 = vunpack.c.l.b16 %v677
    %v4488 = vunpack.c.h.b16 %v677
    %v4489 = vunpack.c.l.b16 %v678
    %v4490 = vunpack.c.h.b16 %v678
    %v4491 = vunpack.c.l.b16 %v679
    %v4492 = vunpack.c.h.b16 %v679
    %v4493 = vunpack.c.l.b16 %v680
    %v4494 = vunpack.c.h.b16 %v680
    %v4495 = vunpack.c.l.b16 %v681
    %v4496 = vunpack.c.h.b16 %v681
    %v4497 = vunpack.c.l.b16 %v682
    %v4498 = vunpack.c.h.b16 %v682
    %v4499 = vunpack.c.l.b16 %v683
    %v4500 = vunpack.c.h.b16 %v683
    %v4501 = vunpack.c.l.b16 %v684
    %v4502 = vunpack.c.h.b16 %v684
    %v4503 = vunpack.c.l.b16 %v685
    %v4504 = vunpack.c.h.b16 %v685
    %v4505 = vunpack.c.l.b16 %v686
    %v4506 = vunpack.c.h.b16 %v686
    %v4507 = vunpack.c.l.b16 %v687
    %v4508 = vunpack.c.h.b16 %v687
    %v4509 = vunpack.c.l.b16 %v688
    %v4510 = vunpack.c.h.b16 %v688
    %v4511 = vunpack.c.l.b16 %v689
    %v4512 = vunpack.c.h.b16 %v689
    %v4513 = vunpack.c.l.b16 %v690
    %v4514 = vunpack.c.h.b16 %v690
    %v4515 = vunpack.c.l.b16 %v691
    %v4516 = vunpack.c.h.b16 %v691
    %v4517 = vunpack.c.l.b16 %v692
    %v4518 = vunpack.c.h.b16 %v692
    %v4519 = vunpack.c.l.b16 %v693
    %v4520 = vunpack.c.h.b16 %v693
    %v4521 = vunpack.c.l.b16 %v694
    %v4522 = vunpack.c.h.b16 %v694
    %v4523 = vunpack.c.l.b16 %v695
    %v4524 = vunpack.c.h.b16 %v695
    %v4525 = vunpack.c.l.b16 %v696
    %v4526 = vunpack.c.h.b16 %v696
    %v4527 = vunpack.c.l.b16 %v697
    %v4528 = vunpack.c.h.b16 %v697
    %v4529 = vunpack.c.l.b16 %v698
    %v4530 = vunpack.c.h.b16 %v698
    %v4531 = vunpack.c.l.b16 %v699
    %v4532 = vunpack.c.h.b16 %v699
    %v4533 = vunpack.c.l.b16 %v700
    %v4534 = vunpack.c.h.b16 %v700
    %v4535 = vunpack.c.l.b16 %v701
    %v4536 = vunpack.c.h.b16 %v701
    %v4537 = vunpack.c.l.b16 %v702
    %v4538 = vunpack.c.h.b16 %v702
    %v4539 = vunpack.c.l.b16 %v703
    %v4540 = vunpack.c.h.b16 %v703
    %v4541 = vunpack.c.l.b16 %v704
    %v4542 = vunpack.c.h.b16 %v704
    %v4543 = vunpack.c.l.b16 %v705
    %v4544 = vunpack.c.h.b16 %v705
    %v4545 = vunpack.c.l.b16 %v706
    %v4546 = vunpack.c.h.b16 %v706
    %v4547 = vunpack.c.l.b16 %v707
    %v4548 = vunpack.c.h.b16 %v707
    %v4549 = vunpack.c.l.b16 %v708
    %v4550 = vunpack.c.h.b16 %v708
    %v4551 = vunpack.c.l.b16 %v709
    %v4552 = vunpack.c.h.b16 %v709
    %v4553 = vunpack.c.l.b16 %v710
    %v4554 = vunpack.c.h.b16 %v710
    %v4555 = vunpack.c.l.b16 %v711
    %v4556 = vunpack.c.h.b16 %v711
    %v4557 = vunpack.c.l.b16 %v712
    %v4558 = vunpack.c.h.b16 %v712
    %v4559 = vunpack.c.l.b16 %v713
    %v4560 = vunpack.c.h.b16 %v713
    %v4561 = vunpack.c.l.b16 %v714
    %v4562 = vunpack.c.h.b16 %v714
    %v4563 = vunpack.c.l.b16 %v715
    %v4564 = vunpack.c.h.b16 %v715
    %v4565 = vunpack.c.l.b16 %v716
    %v4566 = vunpack.c.h.b16 %v716
    %v4567 = vunpack.c.l.b16 %v717
    %v4568 = vunpack.c.h.b16 %v717
    %v4569 = vunpack.c.l.b16 %v718
    %v4570 = vunpack.c.h.b16 %v718
    %v4571 = vunpack.c.l.b16 %v719
    %v4572 = vunpack.c.h.b16 %v719
    %v4573 = vunpack.c.l.b16 %v720
    %v4574 = vunpack.c.h.b16 %v720
    %v4575 = vunpack.c.l.b16 %v721
    %v4576 = vunpack.c.h.b16 %v721
    %v4577 = vunpack.c.l.b16 %v722
    %v4578 = vunpack.c.h.b16 %v722
    %v4579 = vunpack.c.l.b16 %v723
    %v4580 = vunpack.c.h.b16 %v723
    %v4581 = vunpack.c.l.b16 %v724
    %v4582 = vunpack.c.h.b16 %v724
    %v4583 = vunpack.c.l.b16 %v725
    %v4584 = vunpack.c.h.b16 %v725
    %v4585 = vunpack.c.l.b16 %v726
    %v4586 = vunpack.c.h.b16 %v726
    %v4587 = vunpack.c.l.b16 %v727
    %v4588 = vunpack.c.h.b16 %v727
    %v4589 = vunpack.c.l.b16 %v728
    %v4590 = vunpack.c.h.b16 %v728
    %v4591 = vunpack.c.l.b16 %v729
    %v4592 = vunpack.c.h.b16 %v729
    %v4593 = vunpack.c.l.b16 %v730
    %v4594 = vunpack.c.h.b16 %v730
    %v4595 = vunpack.c.l.b16 %v731
    %v4596 = vunpack.c.h.b16 %v731
    %v4597 = vunpack.c.l.b16 %v732
    %v4598 = vunpack.c.h.b16 %v732
    %v4599 = vunpack.c.l.b16 %v733
    %v4600 = vunpack.c.h.b16 %v733
    %v4601 = vunpack.c.l.b16 %v734
    %v4602 = vunpack.c.h.b16 %v734
    %v4603 = vunpack.c.l.b16 %v735
    %v4604 = vunpack.c.h.b16 %v735
    %v4605 = vunpack.c.l.b16 %v736
    %v4606 = vunpack.c.h.b16 %v736
    %v4607 = vunpack.c.l.b16 %v737
    %v4608 = vunpack.c.h.b16 %v737
    %v4609 = vunpack.c.l.b16 %v738
    %v4610 = vunpack.c.h.b16 %v738
    %v4611 = vunpack.c.l.b16 %v739
    %v4612 = vunpack.c.h.b16 %v739
    %v4613 = vunpack.c.l.b16 %v740
    %v4614 = vunpack.c.h.b16 %v740
    %v4615 = vunpack.c.l.b16 %v741
    %v4616 = vunpack.c.h.b16 %v741
    %v4617 = vunpack.c.l.b16 %v742
    %v4618 = vunpack.c.h.b16 %v742
    %v4619 = vunpack.c.l.b16 %v743
    %v4620 = vunpack.c.h.b16 %v743
    %v4621 = vunpack.c.l.b16 %v744
    %v4622 = vunpack.c.h.b16 %v744
    %v4623 = vunpack.c.l.b16 %v745
    %v4624 = vunpack.c.h.b16 %v745
    %v4625 = vunpack.c.l.b16 %v746
    %v4626 = vunpack.c.h.b16 %v746
    %v4627 = vunpack.c.l.b16 %v747
    %v4628 = vunpack.c.h.b16 %v747
    %v4629 = vunpack.c.l.b16 %v748
    %v4630 = vunpack.c.h.b16 %v748
    %v4631 = vunpack.c.l.b16 %v749
    %v4632 = vunpack.c.h.b16 %v749
    %v4633 = vunpack.c.l.b16 %v750
    %v4634 = vunpack.c.h.b16 %v750
    %v4635 = vunpack.c.l.b16 %v751
    %v4636 = vunpack.c.h.b16 %v751
    %v4637 = vunpack.c.l.b16 %v752
    %v4638 = vunpack.c.h.b16 %v752
    %v4639 = vunpack.c.l.b16 %v753
    %v4640 = vunpack.c.h.b16 %v753
    %v4641 = vunpack.c.l.b16 %v754
    %v4642 = vunpack.c.h.b16 %v754
    %v4643 = vunpack.c.l.b16 %v755
    %v4644 = vunpack.c.h.b16 %v755
    %v4645 = vunpack.c.l.b16 %v756
    %v4646 = vunpack.c.h.b16 %v756
    %v4647 = vunpack.c.l.b16 %v757
    %v4648 = vunpack.c.h.b16 %v757
    %v4649 = vunpack.c.l.b16 %v758
    %v4650 = vunpack.c.h.b16 %v758
    %v4651 = vunpack.c.l.b16 %v759
    %v4652 = vunpack.c.h.b16 %v759
    %v4653 = vunpack.c.l.b16 %v760
    %v4654 = vunpack.c.h.b16 %v760
    %v4655 = vunpack.c.l.b16 %v761
    %v4656 = vunpack.c.h.b16 %v761
    %v4657 = vunpack.c.l.b16 %v762
    %v4658 = vunpack.c.h.b16 %v762
    %v4659 = vunpack.c.l.b16 %v763
    %v4660 = vunpack.c.h.b16 %v763
    %v4661 = vunpack.c.l.b16 %v764
    %v4662 = vunpack.c.h.b16 %v764
    %v4663 = vunpack.c.l.b16 %v765
    %v4664 = vunpack.c.h.b16 %v765
    %v4665 = vunpack.c.l.b16 %v766
    %v4666 = vunpack.c.h.b16 %v766
    %v4667 = vunpack.c.l.b16 %v767
    %v4668 = vunpack.c.h.b16 %v767
    %v4669 = vunpack.c.l.b16 %v768
    %v4670 = vunpack.c.h.b16 %v768
    %v4671 = vunpack.c.l.b16 %v769
    %v4672 = vunpack.c.h.b16 %v769
    %v4673 = vunpack.c.l.b16 %v770
    %v4674 = vunpack.c.h.b16 %v770
    %v4675 = vunpack.c.l.b16 %v771
    %v4676 = vunpack.c.h.b16 %v771
    %v4677 = vunpack.c.l.b16 %v772
    %v4678 = vunpack.c.h.b16 %v772
    %v4679 = vunpack.c.l.b16 %v773
    %v4680 = vunpack.c.h.b16 %v773
    %v4681 = vunpack.c.l.b16 %v774
    %v4682 = vunpack.c.h.b16 %v774
    %v4683 = vunpack.c.l.b16 %v775
    %v4684 = vunpack.c.h.b16 %v775
    %v4685 = vunpack.c.l.b16 %v776
    %v4686 = vunpack.c.h.b16 %v776
    %v4687 = vunpack.c.l.b16 %v777
    %v4688 = vunpack.c.h.b16 %v777
    %v4689 = vunpack.c.l.b16 %v778
    %v4690 = vunpack.c.h.b16 %v778
    %v4691 = vunpack.c.l.b16 %v779
    %v4692 = vunpack.c.h.b16 %v779
    %v4693 = vunpack.c.l.b16 %v780
    %v4694 = vunpack.c.h.b16 %v780
    %v4695 = vunpack.c.l.b16 %v781
    %v4696 = vunpack.c.h.b16 %v781
    %v4697 = vunpack.c.l.b16 %v782
    %v4698 = vunpack.c.h.b16 %v782
    %v4699 = vunpack.c.l.b16 %v783
    %v4700 = vunpack.c.h.b16 %v783
    %v4701 = vunpack.c.l.b16 %v784
    %v4702 = vunpack.c.h.b16 %v784
    %v4703 = vunpack.c.l.b16 %v785
    %v4704 = vunpack.c.h.b16 %v785
    %v4705 = vunpack.c.l.b16 %v786
    %v4706 = vunpack.c.h.b16 %v786
    %v4707 = vunpack.c.l.b16 %v787
    %v4708 = vunpack.c.h.b16 %v787
    %v4709 = vunpack.c.l.b16 %v788
    %v4710 = vunpack.c.h.b16 %v788
    %v4711 = vunpack.c.l.b16 %v789
    %v4712 = vunpack.c.h.b16 %v789
    %v4713 = vunpack.c.l.b16 %v790
    %v4714 = vunpack.c.h.b16 %v790
    %v4715 = vunpack.c.l.b16 %v791
    %v4716 = vunpack.c.h.b16 %v791
    %v4717 = vunpack.c.l.b16 %v792
    %v4718 = vunpack.c.h.b16 %v792
    %v4719 = vunpack.c.l.b16 %v793
    %v4720 = vunpack.c.h.b16 %v793
    %v4721 = vunpack.c.l.b16 %v794
    %v4722 = vunpack.c.h.b16 %v794
    %v4723 = vunpack.c.l.b16 %v795
    %v4724 = vunpack.c.h.b16 %v795
    %v4725 = vunpack.c.l.b16 %v796
    %v4726 = vunpack.c.h.b16 %v796
    %v4727 = vunpack.c.l.b16 %v797
    %v4728 = vunpack.c.h.b16 %v797
    %v4729 = vunpack.c.l.b16 %v798
    %v4730 = vunpack.c.h.b16 %v798
    %v4731 = vunpack.c.l.b16 %v799
    %v4732 = vunpack.c.h.b16 %v799
    %v4733 = vunpack.c.l.b16 %v800
    %v4734 = vunpack.c.h.b16 %v800
    %v4735 = vunpack.c.l.b16 %v801
    %v4736 = vunpack.c.h.b16 %v801
    %v4737 = vunpack.c.l.b16 %v802
    %v4738 = vunpack.c.h.b16 %v802
    %v4739 = vunpack.c.l.b16 %v803
    %v4740 = vunpack.c.h.b16 %v803
    %v4741 = vunpack.c.l.b16 %v804
    %v4742 = vunpack.c.h.b16 %v804
    %v4743 = vunpack.c.l.b16 %v805
    %v4744 = vunpack.c.h.b16 %v805
    %v4745 = vunpack.c.l.b16 %v806
    %v4746 = vunpack.c.h.b16 %v806
    %v4747 = vunpack.c.l.b16 %v807
    %v4748 = vunpack.c.h.b16 %v807
    %v4749 = vunpack.c.l.b16 %v808
    %v4750 = vunpack.c.h.b16 %v808
    %v4751 = vunpack.c.l.b16 %v809
    %v4752 = vunpack.c.h.b16 %v809
    %v4753 = vunpack.c.l.b16 %v810
    %v4754 = vunpack.c.h.b16 %v810
    %v4755 = vunpack.c.l.b16 %v811
    %v4756 = vunpack.c.h.b16 %v811
    %v4757 = vunpack.c.l.b16 %v812
    %v4758 = vunpack.c.h.b16 %v812
    %v4759 = vunpack.c.l.b16 %v813
    %v4760 = vunpack.c.h.b16 %v813
    %v4761 = vunpack.c.l.b16 %v814
    %v4762 = vunpack.c.h.b16 %v814
    %v4763 = vunpack.c.l.b16 %v815
    %v4764 = vunpack.c.h.b16 %v815
    %v4765 = vunpack.c.l.b16 %v816
    %v4766 = vunpack.c.h.b16 %v816
    %v4767 = vunpack.c.l.b16 %v817
    %v4768 = vunpack.c.h.b16 %v817
    %v4769 = vunpack.c.l.b16 %v818
    %v4770 = vunpack.c.h.b16 %v818
    %v4771 = vunpack.c.l.b16 %v819
    %v4772 = vunpack.c.h.b16 %v819
    %v4773 = vunpack.c.l.b16 %v820
    %v4774 = vunpack.c.h.b16 %v820
    %v4775 = vunpack.c.l.b16 %v821
    %v4776 = vunpack.c.h.b16 %v821
    %v4777 = vunpack.c.l.b16 %v822
    %v4778 = vunpack.c.h.b16 %v822
    %v4779 = vunpack.c.l.b16 %v823
    %v4780 = vunpack.c.h.b16 %v823
    %v4781 = vunpack.c.l.b16 %v824
    %v4782 = vunpack.c.h.b16 %v824
    %v4783 = vunpack.c.l.b16 %v825
    %v4784 = vunpack.c.h.b16 %v825
    %v4785 = vunpack.c.l.b16 %v826
    %v4786 = vunpack.c.h.b16 %v826
    %v4787 = vunpack.c.l.b16 %v827
    %v4788 = vunpack.c.h.b16 %v827
    %v4789 = vunpack.c.l.b16 %v828
    %v4790 = vunpack.c.h.b16 %v828
    %v4791 = vunpack.c.l.b16 %v829
    %v4792 = vunpack.c.h.b16 %v829
    %v4793 = vunpack.c.l.b16 %v830
    %v4794 = vunpack.c.h.b16 %v830
    %v4795 = vunpack.c.l.b16 %v831
    %v4796 = vunpack.c.h.b16 %v831
    %v4797 = vunpack.c.l.b16 %v832
    %v4798 = vunpack.c.h.b16 %v832
    %v4799 = vunpack.c.l.b16 %v833
    %v4800 = vunpack.c.h.b16 %v833
    %v4801 = vunpack.c.l.b16 %v834
    %v4802 = vunpack.c.h.b16 %v834
    %v4803 = vunpack.c.l.b16 %v835
    %v4804 = vunpack.c.h.b16 %v835
    %v4805 = vunpack.c.l.b16 %v836
    %v4806 = vunpack.c.h.b16 %v836
    %v4807 = vunpack.c.l.b16 %v837
    %v4808 = vunpack.c.h.b16 %v837
    %v4809 = vunpack.c.l.b16 %v838
    %v4810 = vunpack.c.h.b16 %v838
    %v4811 = vunpack.c.l.b16 %v839
    %v4812 = vunpack.c.h.b16 %v839
    %v4813 = vunpack.c.l.b16 %v840
    %v4814 = vunpack.c.h.b16 %v840
    %v4815 = vunpack.c.l.b16 %v841
    %v4816 = vunpack.c.h.b16 %v841
    %v4817 = vunpack.c.l.b16 %v842
    %v4818 = vunpack.c.h.b16 %v842
    %v4819 = vunpack.c.l.b16 %v843
    %v4820 = vunpack.c.h.b16 %v843
    %v4821 = vunpack.c.l.b16 %v844
    %v4822 = vunpack.c.h.b16 %v844
    %v4823 = vunpack.c.l.b16 %v845
    %v4824 = vunpack.c.h.b16 %v845
    %v4825 = vunpack.c.l.b16 %v846
    %v4826 = vunpack.c.h.b16 %v846
    %v4827 = vunpack.c.l.b16 %v847
    %v4828 = vunpack.c.h.b16 %v847
    %v4829 = vunpack.c.l.b16 %v848
    %v4830 = vunpack.c.h.b16 %v848
    %v4831 = vunpack.c.l.b16 %v849
    %v4832 = vunpack.c.h.b16 %v849
    %v4833 = vunpack.c.l.b16 %v850
    %v4834 = vunpack.c.h.b16 %v850
    %v4835 = vunpack.c.l.b16 %v851
    %v4836 = vunpack.c.h.b16 %v851
    %v4837 = vunpack.c.l.b16 %v852
    %v4838 = vunpack.c.h.b16 %v852
    %v4839 = vunpack.c.l.b16 %v853
    %v4840 = vunpack.c.h.b16 %v853
    %v4841 = vunpack.c.l.b16 %v854
    %v4842 = vunpack.c.h.b16 %v854
    %v4843 = vunpack.c.l.b16 %v855
    %v4844 = vunpack.c.h.b16 %v855
    %v4845 = vunpack.c.l.b16 %v856
    %v4846 = vunpack.c.h.b16 %v856
    %v4847 = vunpack.c.l.b16 %v857
    %v4848 = vunpack.c.h.b16 %v857
    %v4849 = vunpack.c.l.b16 %v858
    %v4850 = vunpack.c.h.b16 %v858
    %v4851 = vunpack.c.l.b16 %v859
    %v4852 = vunpack.c.h.b16 %v859
    %v4853 = vunpack.c.l.b16 %v860
    %v4854 = vunpack.c.h.b16 %v860
    %v4855 = vunpack.c.l.b16 %v861
    %v4856 = vunpack.c.h.b16 %v861
    %v4857 = vunpack.c.l.b16 %v862
    %v4858 = vunpack.c.h.b16 %v862
    %v4859 = vunpack.c.l.b16 %v863
    %v4860 = vunpack.c.h.b16 %v863
    %v4861 = vunpack.c.l.b16 %v864
    %v4862 = vunpack.c.h.b16 %v864
    %v4863 = vunpack.c.l.b16 %v865
    %v4864 = vunpack.c.h.b16 %v865
    %v4865 = vunpack.c.l.b16 %v866
    %v4866 = vunpack.c.h.b16 %v866
    %v4867 = vunpack.c.l.b16 %v867
    %v4868 = vunpack.c.h.b16 %v867
    %v4869 = vunpack.c.l.b16 %v868
    %v4870 = vunpack.c.h.b16 %v868
    %v4871 = vunpack.c.l.b16 %v869
    %v4872 = vunpack.c.h.b16 %v869
    %v4873 = vunpack.c.l.b16 %v870
    %v4874 = vunpack.c.h.b16 %v870
    %v4875 = vunpack.c.l.b16 %v871
    %v4876 = vunpack.c.h.b16 %v871
    %v4877 = vunpack.c.l.b16 %v872
    %v4878 = vunpack.c.h.b16 %v872
    %v4879 = vunpack.c.l.b16 %v873
    %v4880 = vunpack.c.h.b16 %v873
    %v4881 = vunpack.c.l.b16 %v874
    %v4882 = vunpack.c.h.b16 %v874
    %v4883 = vunpack.c.l.b16 %v875
    %v4884 = vunpack.c.h.b16 %v875
    %v4885 = vunpack.c.l.b16 %v876
    %v4886 = vunpack.c.h.b16 %v876
    %v4887 = vunpack.c.l.b16 %v877
    %v4888 = vunpack.c.h.b16 %v877
    %v4889 = vunpack.c.l.b16 %v878
    %v4890 = vunpack.c.h.b16 %v878
    %v4891 = vunpack.c.l.b16 %v879
    %v4892 = vunpack.c.h.b16 %v879
    %v4893 = vunpack.c.l.b16 %v880
    %v4894 = vunpack.c.h.b16 %v880
    %v4895 = vunpack.c.l.b16 %v881
    %v4896 = vunpack.c.h.b16 %v881
    %v4897 = vunpack.c.l.b16 %v882
    %v4898 = vunpack.c.h.b16 %v882
    %v4899 = vunpack.c.l.b16 %v883
    %v4900 = vunpack.c.h.b16 %v883
    %v4901 = vunpack.c.l.b16 %v884
    %v4902 = vunpack.c.h.b16 %v884
    %v4903 = vunpack.c.l.b16 %v885
    %v4904 = vunpack.c.h.b16 %v885
    %v4905 = vunpack.c.l.b16 %v886
    %v4906 = vunpack.c.h.b16 %v886
    %v4907 = vunpack.c.l.b16 %v887
    %v4908 = vunpack.c.h.b16 %v887
    %v4909 = vunpack.c.l.b16 %v888
    %v4910 = vunpack.c.h.b16 %v888
    %v4911 = vunpack.c.l.b16 %v889
    %v4912 = vunpack.c.h.b16 %v889
    %v4913 = vunpack.c.l.b16 %v890
    %v4914 = vunpack.c.h.b16 %v890
    %v4915 = vunpack.c.l.b16 %v891
    %v4916 = vunpack.c.h.b16 %v891
    %v4917 = vunpack.c.l.b16 %v892
    %v4918 = vunpack.c.h.b16 %v892
    %v4919 = vunpack.c.l.b16 %v893
    %v4920 = vunpack.c.h.b16 %v893
    %v4921 = vunpack.c.l.b16 %v894
    %v4922 = vunpack.c.h.b16 %v894
    %v4923 = vunpack.c.l.b16 %v895
    %v4924 = vunpack.c.h.b16 %v895
    %v4925 = vunpack.c.l.b16 %v896
    %v4926 = vunpack.c.h.b16 %v896
    %v4927 = vunpack.c.l.b16 %v897
    %v4928 = vunpack.c.h.b16 %v897
    %v4929 = vunpack.c.l.b16 %v898
    %v4930 = vunpack.c.h.b16 %v898
    %v4931 = vunpack.c.l.b16 %v899
    %v4932 = vunpack.c.h.b16 %v899
    %v4933 = vunpack.c.l.b16 %v900
    %v4934 = vunpack.c.h.b16 %v900
    %v4935 = vunpack.c.l.b16 %v901
    %v4936 = vunpack.c.h.b16 %v901
    %v4937 = vunpack.c.l.b16 %v902
    %v4938 = vunpack.c.h.b16 %v902
    %v4939 = vunpack.c.l.b16 %v903
    %v4940 = vunpack.c.h.b16 %v903
    %v4941 = vunpack.c.l.b16 %v904
    %v4942 = vunpack.c.h.b16 %v904
    %v4943 = vunpack.c.l.b16 %v905
    %v4944 = vunpack.c.h.b16 %v905
    %v4945 = vunpack.c.l.b16 %v906
    %v4946 = vunpack.c.h.b16 %v906
    %v4947 = vunpack.c.l.b16 %v907
    %v4948 = vunpack.c.h.b16 %v907
    %v4949 = vunpack.c.l.b16 %v908
    %v4950 = vunpack.c.h.b16 %v908
    %v4951 = vunpack.c.l.b16 %v909
    %v4952 = vunpack.c.h.b16 %v909
    %v4953 = vunpack.c.l.b16 %v910
    %v4954 = vunpack.c.h.b16 %v910
    %v4955 = vunpack.c.l.b16 %v911
    %v4956 = vunpack.c.h.b16 %v911
    %v4957 = vunpack.c.l.b16 %v912
    %v4958 = vunpack.c.h.b16 %v912
    %v4959 = vunpack.c.l.b16 %v913
    %v4960 = vunpack.c.h.b16 %v913
    %v4961 = vunpack.c.l.b16 %v914
    %v4962 = vunpack.c.h.b16 %v914
    %v4963 = vunpack.c.l.b16 %v915
    %v4964 = vunpack.c.h.b16 %v915
    %v4965 = vunpack.c.l.b16 %v916
    %v4966 = vunpack.c.h.b16 %v916
    %v4967 = vunpack.c.l.b16 %v917
    %v4968 = vunpack.c.h.b16 %v917
    %v4969 = vunpack.c.l.b16 %v918
    %v4970 = vunpack.c.h.b16 %v918
    %v4971 = vunpack.c.l.b16 %v919
    %v4972 = vunpack.c.h.b16 %v919
    %v4973 = vunpack.c.l.b16 %v920
    %v4974 = vunpack.c.h.b16 %v920
    %v4975 = vunpack.c.l.b16 %v921
    %v4976 = vunpack.c.h.b16 %v921
    %v4977 = vunpack.c.l.b16 %v922
    %v4978 = vunpack.c.h.b16 %v922
    %v4979 = vunpack.c.l.b16 %v923
    %v4980 = vunpack.c.h.b16 %v923
    %v4981 = vunpack.c.l.b16 %v924
    %v4982 = vunpack.c.h.b16 %v924
    %v4983 = vunpack.c.l.b16 %v925
    %v4984 = vunpack.c.h.b16 %v925
    %v4985 = vunpack.c.l.b16 %v926
    %v4986 = vunpack.c.h.b16 %v926
    %v4987 = vunpack.c.l.b16 %v927
    %v4988 = vunpack.c.h.b16 %v927
    %v4989 = vunpack.c.l.b16 %v928
    %v4990 = vunpack.c.h.b16 %v928
    %v4991 = vunpack.c.l.b16 %v929
    %v4992 = vunpack.c.h.b16 %v929
    %v4993 = vunpack.c.l.b16 %v930
    %v4994 = vunpack.c.h.b16 %v930
    %v4995 = vunpack.c.l.b16 %v931
    %v4996 = vunpack.c.h.b16 %v931
    %v4997 = vunpack.c.l.b16 %v932
    %v4998 = vunpack.c.h.b16 %v932
    %v4999 = vunpack.c.l.b16 %v933
    %v5000 = vunpack.c.h.b16 %v933
    %v5001 = vunpack.c.l.b16 %v934
    %v5002 = vunpack.c.h.b16 %v934
    %v5003 = vunpack.c.l.b16 %v935
    %v5004 = vunpack.c.h.b16 %v935
    %v5005 = vunpack.c.l.b16 %v936
    %v5006 = vunpack.c.h.b16 %v936
    %v5007 = vunpack.c.l.b16 %v937
    %v5008 = vunpack.c.h.b16 %v937
    %v5009 = vunpack.c.l.b16 %v938
    %v5010 = vunpack.c.h.b16 %v938
    %v5011 = vunpack.c.l.b16 %v939
    %v5012 = vunpack.c.h.b16 %v939
    %v5013 = vunpack.c.l.b16 %v940
    %v5014 = vunpack.c.h.b16 %v940
    %v5015 = vunpack.c.l.b16 %v941
    %v5016 = vunpack.c.h.b16 %v941
    %v5017 = vunpack.c.l.b16 %v942
    %v5018 = vunpack.c.h.b16 %v942
    %v5019 = vunpack.c.l.b16 %v943
    %v5020 = vunpack.c.h.b16 %v943
    %v5021 = vunpack.c.l.b16 %v944
    %v5022 = vunpack.c.h.b16 %v944
    %v5023 = vunpack.c.l.b16 %v945
    %v5024 = vunpack.c.h.b16 %v945
    %v5025 = vunpack.c.l.b16 %v946
    %v5026 = vunpack.c.h.b16 %v946
    %v5027 = vunpack.c.l.b16 %v947
    %v5028 = vunpack.c.h.b16 %v947
    %v5029 = vunpack.c.l.b16 %v948
    %v5030 = vunpack.c.h.b16 %v948
    %v5031 = vunpack.c.l.b16 %v949
    %v5032 = vunpack.c.h.b16 %v949
    %v5033 = vunpack.c.l.b16 %v950
    %v5034 = vunpack.c.h.b16 %v950
    %v5035 = vunpack.c.l.b16 %v951
    %v5036 = vunpack.c.h.b16 %v951
    %v5037 = vunpack.c.l.b16 %v952
    %v5038 = vunpack.c.h.b16 %v952
    %v5039 = vunpack.c.l.b16 %v953
    %v5040 = vunpack.c.h.b16 %v953
    %v5041 = vunpack.c.l.b16 %v954
    %v5042 = vunpack.c.h.b16 %v954
    %v5043 = vunpack.c.l.b16 %v955
    %v5044 = vunpack.c.h.b16 %v955
    %v5045 = vunpack.c.l.b16 %v956
    %v5046 = vunpack.c.h.b16 %v956
    %v5047 = vunpack.c.l.b16 %v957
    %v5048 = vunpack.c.h.b16 %v957
    %v5049 = vunpack.c.l.b16 %v958
    %v5050 = vunpack.c.h.b16 %v958
    %v5051 = vunpack.c.l.b16 %v959
    %v5052 = vunpack.c.h.b16 %v959
    %v5053 = vunpack.c.l.b16 %v960
    %v5054 = vunpack.c.h.b16 %v960
    %v5055 = vunpack.c.l.b16 %v961
    %v5056 = vunpack.c.h.b16 %v961
    %v5057 = vunpack.c.l.b16 %v962
    %v5058 = vunpack.c.h.b16 %v962
    %v5059 = vunpack.c.l.b16 %v963
    %v5060 = vunpack.c.h.b16 %v963
    %v5061 = vunpack.c.l.b16 %v964
    %v5062 = vunpack.c.h.b16 %v964
    %v5063 = vunpack.c.l.b16 %v965
    %v5064 = vunpack.c.h.b16 %v965
    %v5065 = vunpack.c.l.b16 %v966
    %v5066 = vunpack.c.h.b16 %v966
    %v5067 = vunpack.c.l.b16 %v967
    %v5068 = vunpack.c.h.b16 %v967
    %v5069 = vunpack.c.l.b16 %v968
    %v5070 = vunpack.c.h.b16 %v968
    %v5071 = vunpack.c.l.b16 %v969
    %v5072 = vunpack.c.h.b16 %v969
    %v5073 = vunpack.c.l.b16 %v970
    %v5074 = vunpack.c.h.b16 %v970
    %v5075 = vunpack.c.l.b16 %v971
    %v5076 = vunpack.c.h.b16 %v971
    %v5077 = vunpack.c.l.b16 %v972
    %v5078 = vunpack.c.h.b16 %v972
    %v5079 = vunpack.c.l.b16 %v973
    %v5080 = vunpack.c.h.b16 %v973
    %v5081 = vunpack.c.l.b16 %v974
    %v5082 = vunpack.c.h.b16 %v974
    %v5083 = vunpack.c.l.b16 %v975
    %v5084 = vunpack.c.h.b16 %v975
    %v5085 = vunpack.c.l.b16 %v976
    %v5086 = vunpack.c.h.b16 %v976
    %v5087 = vunpack.c.l.b16 %v977
    %v5088 = vunpack.c.h.b16 %v977
    %v5089 = vunpack.c.l.b16 %v978
    %v5090 = vunpack.c.h.b16 %v978
    %v5091 = vunpack.c.l.b16 %v979
    %v5092 = vunpack.c.h.b16 %v979
    %v5093 = vunpack.c.l.b16 %v980
    %v5094 = vunpack.c.h.b16 %v980
    %v5095 = vunpack.c.l.b16 %v981
    %v5096 = vunpack.c.h.b16 %v981
    %v5097 = vunpack.c.l.b16 %v982
    %v5098 = vunpack.c.h.b16 %v982
    %v5099 = vunpack.c.l.b16 %v983
    %v5100 = vunpack.c.h.b16 %v983
    %v5101 = vunpack.c.l.b16 %v984
    %v5102 = vunpack.c.h.b16 %v984
    %v5103 = vunpack.c.l.b16 %v985
    %v5104 = vunpack.c.h.b16 %v985
    %v5105 = vunpack.c.l.b16 %v986
    %v5106 = vunpack.c.h.b16 %v986
    %v5107 = vunpack.c.l.b16 %v987
    %v5108 = vunpack.c.h.b16 %v987
    %v5109 = vunpack.c.l.b16 %v988
    %v5110 = vunpack.c.h.b16 %v988
    %v5111 = vunpack.c.l.b16 %v989
    %v5112 = vunpack.c.h.b16 %v989
    %v5113 = vunpack.c.l.b16 %v990
    %v5114 = vunpack.c.h.b16 %v990
    %v5115 = vunpack.c.l.b16 %v991
    %v5116 = vunpack.c.h.b16 %v991
    %v5117 = vunpack.c.l.b16 %v992
    %v5118 = vunpack.c.h.b16 %v992
    %v5119 = vunpack.c.l.b16 %v993
    %v5120 = vunpack.c.h.b16 %v993
    %v5121 = vunpack.c.l.b16 %v994
    %v5122 = vunpack.c.h.b16 %v994
    %v5123 = vunpack.c.l.b16 %v995
    %v5124 = vunpack.c.h.b16 %v995
    %v5125 = vunpack.c.l.b16 %v996
    %v5126 = vunpack.c.h.b16 %v996
    %v5127 = vunpack.c.l.b16 %v997
    %v5128 = vunpack.c.h.b16 %v997
    %v5129 = vunpack.c.l.b16 %v998
    %v5130 = vunpack.c.h.b16 %v998
    %v5131 = vunpack.c.l.b16 %v999
    %v5132 = vunpack.c.h.b16 %v999
    %v5133 = vunpack.c.l.b16 %v1000
    %v5134 = vunpack.c.h.b16 %v1000
    %v5135 = vunpack.c.l.b16 %v1001
    %v5136 = vunpack.c.h.b16 %v1001
    %v5137 = vunpack.c.l.b16 %v1002
    %v5138 = vunpack.c.h.b16 %v1002
    %v5139 = vunpack.c.l.b16 %v1003
    %v5140 = vunpack.c.h.b16 %v1003
    %v5141 = vunpack.c.l.b16 %v1004
    %v5142 = vunpack.c.h.b16 %v1004
    %v5143 = vunpack.c.l.b16 %v1005
    %v5144 = vunpack.c.h.b16 %v1005
    %v5145 = vunpack.c.l.b16 %v1006
    %v5146 = vunpack.c.h.b16 %v1006
    %v5147 = vunpack.c.l.b16 %v1007
    %v5148 = vunpack.c.h.b16 %v1007
    %v5149 = vunpack.c.l.b16 %v1008
    %v5150 = vunpack.c.h.b16 %v1008
    %v5151 = vunpack.c.l.b16 %v1009
    %v5152 = vunpack.c.h.b16 %v1009
    %v5153 = vunpack.c.l.b16 %v1010
    %v5154 = vunpack.c.h.b16 %v1010
    %v5155 = vunpack.c.l.b16 %v1011
    %v5156 = vunpack.c.h.b16 %v1011
    %v5157 = vunpack.c.l.b16 %v1012
    %v5158 = vunpack.c.h.b16 %v1012
    %v5159 = vunpack.c.l.b16 %v1013
    %v5160 = vunpack.c.h.b16 %v1013
    %v5161 = vunpack.c.l.b16 %v1014
    %v5162 = vunpack.c.h.b16 %v1014
    %v5163 = vunpack.c.l.b16 %v1015
    %v5164 = vunpack.c.h.b16 %v1015
    %v5165 = vunpack.c.l.b16 %v1016
    %v5166 = vunpack.c.h.b16 %v1016
    %v5167 = vunpack.c.l.b16 %v1017
    %v5168 = vunpack.c.h.b16 %v1017
    %v5169 = vunpack.c.l.b16 %v1018
    %v5170 = vunpack.c.h.b16 %v1018
    %v5171 = vunpack.c.l.b16 %v1019
    %v5172 = vunpack.c.h.b16 %v1019
    %v5173 = vunpack.c.l.b16 %v1020
    %v5174 = vunpack.c.h.b16 %v1020
    %v5175 = vunpack.c.l.b16 %v1021
    %v5176 = vunpack.c.h.b16 %v1021
    %v5177 = vunpack.c.l.b16 %v1022
    %v5178 = vunpack.c.h.b16 %v1022
    %v5179 = vunpack.c.l.b16 %v1023
    %v5180 = vunpack.c.h.b16 %v1023
    %v5181 = vunpack.c.l.b16 %v1024
    %v5182 = vunpack.c.h.b16 %v1024
    %v5183 = vunpack.c.l.b16 %v1025
    %v5184 = vunpack.c.h.b16 %v1025
    %v5185 = vunpack.c.l.b16 %v1026
    %v5186 = vunpack.c.h.b16 %v1026
    %v5187 = vunpack.c.l.b16 %v1027
    %v5188 = vunpack.c.h.b16 %v1027
    %v5189 = vunpack.c.l.b16 %v1028
    %v5190 = vunpack.c.h.b16 %v1028
    %v5191 = vunpack.c.l.b16 %v1029
    %v5192 = vunpack.c.h.b16 %v1029
    %v5193 = vunpack.c.l.b16 %v1030
    %v5194 = vunpack.c.h.b16 %v1030
    %v5195 = vunpack.c.l.b16 %v1031
    %v5196 = vunpack.c.h.b16 %v1031
    %v5197 = vunpack.c.l.b16 %v1032
    %v5198 = vunpack.c.h.b16 %v1032
    %v5199 = vunpack.c.l.b16 %v1033
    %v5200 = vunpack.c.h.b16 %v1033
    %v5201 = vunpack.c.l.b16 %v1034
    %v5202 = vunpack.c.h.b16 %v1034
    %v5203 = vunpack.c.l.b16 %v1035
    %v5204 = vunpack.c.h.b16 %v1035
    %v5205 = vunpack.c.l.b16 %v1036
    %v5206 = vunpack.c.h.b16 %v1036
    %v5207 = vunpack.c.l.b16 %v1037
    %v5208 = vunpack.c.h.b16 %v1037
    %v5209 = vunpack.c.l.b16 %v1038
    %v5210 = vunpack.c.h.b16 %v1038
    %v5211 = vunpack.c.l.b16 %v1039
    %v5212 = vunpack.c.h.b16 %v1039
    %v5213 = vunpack.c.l.b16 %v1040
    %v5214 = vunpack.c.h.b16 %v1040
    %v5215 = vunpack.c.l.b16 %v1041
    %v5216 = vunpack.c.h.b16 %v1041
    %v5217 = vunpack.c.l.b16 %v1042
    %v5218 = vunpack.c.h.b16 %v1042
    %v5219 = vunpack.c.l.b16 %v1043
    %v5220 = vunpack.c.h.b16 %v1043
    %v5221 = vunpack.c.l.b16 %v1044
    %v5222 = vunpack.c.h.b16 %v1044
    %v5223 = vunpack.c.l.b16 %v1045
    %v5224 = vunpack.c.h.b16 %v1045
    %v5225 = vunpack.c.l.b16 %v1046
    %v5226 = vunpack.c.h.b16 %v1046
    %v5227 = vunpack.c.l.b16 %v1047
    %v5228 = vunpack.c.h.b16 %v1047
    %v5229 = vunpack.c.l.b16 %v1048
    %v5230 = vunpack.c.h.b16 %v1048
    %v5231 = vunpack.c.l.b16 %v1049
    %v5232 = vunpack.c.h.b16 %v1049
    %v5233 = vunpack.c.l.b16 %v1050
    %v5234 = vunpack.c.h.b16 %v1050
    %v5235 = vunpack.c.l.b16 %v1051
    %v5236 = vunpack.c.h.b16 %v1051
    %v5237 = vunpack.c.l.b16 %v1052
    %v5238 = vunpack.c.h.b16 %v1052
    %v5239 = vunpack.c.l.b16 %v1053
    %v5240 = vunpack.c.h.b16 %v1053
    %v5241 = vunpack.c.l.b16 %v1054
    %v5242 = vunpack.c.h.b16 %v1054
    %v5243 = vunpack.c.l.b16 %v1055
    %v5244 = vunpack.c.h.b16 %v1055
    %v5245 = vunpack.c.l.b16 %v1056
    %v5246 = vunpack.c.h.b16 %v1056
    %v5247 = vunpack.c.l.b16 %v1057
    %v5248 = vunpack.c.h.b16 %v1057
    %v5249 = vunpack.c.l.b16 %v1058
    %v5250 = vunpack.c.h.b16 %v1058
    %v5251 = vunpack.c.l.b16 %v1059
    %v5252 = vunpack.c.h.b16 %v1059
    %v5253 = vunpack.c.l.b16 %v1060
    %v5254 = vunpack.c.h.b16 %v1060
    %v5255 = vunpack.c.l.b16 %v1061
    %v5256 = vunpack.c.h.b16 %v1061
    %v5257 = vunpack.c.l.b16 %v1062
    %v5258 = vunpack.c.h.b16 %v1062
    %v5259 = vunpack.c.l.b16 %v1063
    %v5260 = vunpack.c.h.b16 %v1063
    %v5261 = vunpack.c.l.b16 %v1064
    %v5262 = vunpack.c.h.b16 %v1064
    %v5263 = vunpack.c.l.b16 %v1065
    %v5264 = vunpack.c.h.b16 %v1065
    %v5265 = vunpack.c.l.b16 %v1066
    %v5266 = vunpack.c.h.b16 %v1066
    %v5267 = vunpack.c.l.b16 %v1067
    %v5268 = vunpack.c.h.b16 %v1067
    %v5269 = vunpack.c.l.b16 %v1068
    %v5270 = vunpack.c.h.b16 %v1068
    %v5271 = vunpack.c.l.b16 %v1069
    %v5272 = vunpack.c.h.b16 %v1069
    %v5273 = vunpack.c.l.b16 %v1070
    %v5274 = vunpack.c.h.b16 %v1070
    %v5275 = vunpack.c.l.b16 %v1071
    %v5276 = vunpack.c.h.b16 %v1071
    %v5277 = vunpack.c.l.b16 %v1072
    %v5278 = vunpack.c.h.b16 %v1072
    %v5279 = vunpack.c.l.b16 %v1073
    %v5280 = vunpack.c.h.b16 %v1073
    %v5281 = vunpack.c.l.b16 %v1074
    %v5282 = vunpack.c.h.b16 %v1074
    %v5283 = vunpack.c.l.b16 %v1075
    %v5284 = vunpack.c.h.b16 %v1075
    %v5285 = vunpack.c.l.b16 %v1076
    %v5286 = vunpack.c.h.b16 %v1076
    %v5287 = vunpack.c.l.b16 %v1077
    %v5288 = vunpack.c.h.b16 %v1077
    %v5289 = vunpack.c.l.b16 %v1078
    %v5290 = vunpack.c.h.b16 %v1078
    %v5291 = vunpack.c.l.b16 %v1079
    %v5292 = vunpack.c.h.b16 %v1079
    %v5293 = vunpack.c.l.b16 %v1080
    %v5294 = vunpack.c.h.b16 %v1080
    %v5295 = vunpack.c.l.b16 %v1081
    %v5296 = vunpack.c.h.b16 %v1081
    %v5297 = vunpack.c.l.b16 %v1082
    %v5298 = vunpack.c.h.b16 %v1082
    %v5299 = vunpack.c.l.b16 %v1083
    %v5300 = vunpack.c.h.b16 %v1083
    %v5301 = vunpack.c.l.b16 %v1084
    %v5302 = vunpack.c.h.b16 %v1084
    %v5303 = vunpack.c.l.b16 %v1085
    %v5304 = vunpack.c.h.b16 %v1085
    %v5305 = vunpack.c.l.b16 %v1086
    %v5306 = vunpack.c.h.b16 %v1086
    %v5307 = vunpack.c.l.b16 %v1087
    %v5308 = vunpack.c.h.b16 %v1087
    %v5309 = vunpack.c.l.b16 %v1088
    %v5310 = vunpack.c.h.b16 %v1088
    %v5311 = vunpack.c.l.b16 %v1089
    %v5312 = vunpack.c.h.b16 %v1089
    %v5313 = vunpack.c.l.b16 %v1090
    %v5314 = vunpack.c.h.b16 %v1090
    %v5315 = vunpack.c.l.b16 %v1091
    %v5316 = vunpack.c.h.b16 %v1091
    %v5317 = vunpack.c.l.b16 %v1092
    %v5318 = vunpack.c.h.b16 %v1092
    %v5319 = vunpack.c.l.b16 %v1093
    %v5320 = vunpack.c.h.b16 %v1093
    %v5321 = vunpack.c.l.b16 %v1094
    %v5322 = vunpack.c.h.b16 %v1094
    %v5323 = vunpack.c.l.b16 %v1095
    %v5324 = vunpack.c.h.b16 %v1095
    %v5325 = vunpack.c.l.b16 %v1096
    %v5326 = vunpack.c.h.b16 %v1096
    %v5327 = vunpack.c.l.b16 %v1097
    %v5328 = vunpack.c.h.b16 %v1097
    %v5329 = vunpack.c.l.b16 %v1098
    %v5330 = vunpack.c.h.b16 %v1098
    %v5331 = vunpack.c.l.b16 %v1099
    %v5332 = vunpack.c.h.b16 %v1099
    %v5333 = vunpack.c.l.b16 %v1100
    %v5334 = vunpack.c.h.b16 %v1100
    %v5335 = vunpack.c.l.b16 %v1101
    %v5336 = vunpack.c.h.b16 %v1101
    %v5337 = vunpack.c.l.b16 %v1102
    %v5338 = vunpack.c.h.b16 %v1102
    %v5339 = vunpack.c.l.b16 %v1103
    %v5340 = vunpack.c.h.b16 %v1103
    %v5341 = vunpack.c.l.b16 %v1104
    %v5342 = vunpack.c.h.b16 %v1104
    %v5343 = vunpack.c.l.b16 %v1105
    %v5344 = vunpack.c.h.b16 %v1105
    %v5345 = vunpack.c.l.b16 %v1106
    %v5346 = vunpack.c.h.b16 %v1106
    %v5347 = vunpack.c.l.b16 %v1107
    %v5348 = vunpack.c.h.b16 %v1107
    %v5349 = vunpack.c.l.b16 %v1108
    %v5350 = vunpack.c.h.b16 %v1108
    %v5351 = vunpack.c.l.b16 %v1109
    %v5352 = vunpack.c.h.b16 %v1109
    %v5353 = vunpack.c.l.b16 %v1110
    %v5354 = vunpack.c.h.b16 %v1110
    %v5355 = vunpack.c.l.b16 %v1111
    %v5356 = vunpack.c.h.b16 %v1111
    %v5357 = vunpack.c.l.b16 %v1112
    %v5358 = vunpack.c.h.b16 %v1112
    %v5359 = vunpack.c.l.b16 %v1113
    %v5360 = vunpack.c.h.b16 %v1113
    %v5361 = vunpack.c.l.b16 %v1114
    %v5362 = vunpack.c.h.b16 %v1114
    %v5363 = vunpack.c.l.b16 %v1115
    %v5364 = vunpack.c.h.b16 %v1115
    %v5365 = vunpack.c.l.b16 %v1116
    %v5366 = vunpack.c.h.b16 %v1116
    %v5367 = vunpack.c.l.b16 %v1117
    %v5368 = vunpack.c.h.b16 %v1117
    %v5369 = vunpack.c.l.b16 %v1118
    %v5370 = vunpack.c.h.b16 %v1118
    %v5371 = vunpack.c.l.b16 %v1119
    %v5372 = vunpack.c.h.b16 %v1119
    %v5373 = vunpack.c.l.b16 %v1120
    %v5374 = vunpack.c.h.b16 %v1120
    %v5375 = vunpack.c.l.b16 %v1121
    %v5376 = vunpack.c.h.b16 %v1121
    %v5377 = vunpack.c.l.b16 %v1122
    %v5378 = vunpack.c.h.b16 %v1122
    %v5379 = vunpack.c.l.b16 %v1123
    %v5380 = vunpack.c.h.b16 %v1123
    %v5381 = vunpack.c.l.b16 %v1124
    %v5382 = vunpack.c.h.b16 %v1124
    %v5383 = vunpack.c.l.b16 %v1125
    %v5384 = vunpack.c.h.b16 %v1125
    %v5385 = vunpack.c.l.b16 %v1126
    %v5386 = vunpack.c.h.b16 %v1126
    %v5387 = vunpack.c.l.b16 %v1127
    %v5388 = vunpack.c.h.b16 %v1127
    %v5389 = vunpack.c.l.b16 %v1128
    %v5390 = vunpack.c.h.b16 %v1128
    %v5391 = vunpack.c.l.b16 %v1129
    %v5392 = vunpack.c.h.b16 %v1129
    %v5393 = vunpack.c.l.b16 %v1130
    %v5394 = vunpack.c.h.b16 %v1130
    %v5395 = vunpack.c.l.b16 %v1131
    %v5396 = vunpack.c.h.b16 %v1131
    %v5397 = vunpack.c.l.b16 %v1132
    %v5398 = vunpack.c.h.b16 %v1132
    %v5399 = vunpack.c.l.b16 %v1133
    %v5400 = vunpack.c.h.b16 %v1133
    %v5401 = vunpack.c.l.b16 %v1134
    %v5402 = vunpack.c.h.b16 %v1134
    %v5403 = vunpack.c.l.b16 %v1135
    %v5404 = vunpack.c.h.b16 %v1135
    %v5405 = vunpack.c.l.b16 %v1136
    %v5406 = vunpack.c.h.b16 %v1136
    %v5407 = vunpack.c.l.b16 %v1137
    %v5408 = vunpack.c.h.b16 %v1137
    %v5409 = vunpack.c.l.b16 %v1138
    %v5410 = vunpack.c.h.b16 %v1138
    %v5411 = vunpack.c.l.b16 %v1139
    %v5412 = vunpack.c.h.b16 %v1139
    %v5413 = vunpack.c.l.b16 %v1140
    %v5414 = vunpack.c.h.b16 %v1140
    %v5415 = vunpack.c.l.b16 %v1141
    %v5416 = vunpack.c.h.b16 %v1141
    %v5417 = vunpack.c.l.b16 %v1142
    %v5418 = vunpack.c.h.b16 %v1142
    %v5419 = vunpack.c.l.b16 %v1143
    %v5420 = vunpack.c.h.b16 %v1143
    %v5421 = vunpack.c.l.b16 %v1144
    %v5422 = vunpack.c.h.b16 %v1144
    %v5423 = vunpack.c.l.b16 %v1145
    %v5424 = vunpack.c.h.b16 %v1145
    %v5425 = vunpack.c.l.b16 %v1146
    %v5426 = vunpack.c.h.b16 %v1146
    %v5427 = vunpack.c.l.b16 %v1147
    %v5428 = vunpack.c.h.b16 %v1147
    %v5429 = vunpack.c.l.b16 %v1148
    %v5430 = vunpack.c.h.b16 %v1148
    %v5431 = vunpack.c.l.b16 %v1149
    %v5432 = vunpack.c.h.b16 %v1149
    %v5433 = vunpack.c.l.b16 %v1150
    %v5434 = vunpack.c.h.b16 %v1150
    %v5435 = vunpack.c.l.b16 %v1151
    %v5436 = vunpack.c.h.b16 %v1151
    %v5437 = vunpack.c.l.b16 %v1152
    %v5438 = vunpack.c.h.b16 %v1152
    %v5439 = vunpack.c.l.b16 %v1153
    %v5440 = vunpack.c.h.b16 %v1153
    %v5441 = vunpack.c.l.b16 %v1154
    %v5442 = vunpack.c.h.b16 %v1154
    %v5443 = vunpack.c.l.b16 %v1155
    %v5444 = vunpack.c.h.b16 %v1155
    %v5445 = vunpack.c.l.b16 %v1156
    %v5446 = vunpack.c.h.b16 %v1156
    %v5447 = vunpack.c.l.b16 %v1157
    %v5448 = vunpack.c.h.b16 %v1157
    %v5449 = vunpack.c.l.b16 %v1158
    %v5450 = vunpack.c.h.b16 %v1158
    %v5451 = vunpack.c.l.b16 %v1159
    %v5452 = vunpack.c.h.b16 %v1159
    %v5453 = vunpack.c.l.b16 %v1160
    %v5454 = vunpack.c.h.b16 %v1160
    %v5455 = vunpack.c.l.b16 %v1161
    %v5456 = vunpack.c.h.b16 %v1161
    %v5457 = vunpack.c.l.b16 %v1162
    %v5458 = vunpack.c.h.b16 %v1162
    %v5459 = vunpack.c.l.b16 %v1163
    %v5460 = vunpack.c.h.b16 %v1163
    %v5461 = vunpack.c.l.b16 %v1164
    %v5462 = vunpack.c.h.b16 %v1164
    %v5463 = vunpack.c.l.b16 %v1165
    %v5464 = vunpack.c.h.b16 %v1165
    %v5465 = vunpack.c.l.b16 %v1166
    %v5466 = vunpack.c.h.b16 %v1166
    %v5467 = vunpack.c.l.b16 %v1167
    %v5468 = vunpack.c.h.b16 %v1167
    %v5469 = vunpack.c.l.b16 %v1168
    %v5470 = vunpack.c.h.b16 %v1168
    %v5471 = vunpack.c.l.b16 %v1169
    %v5472 = vunpack.c.h.b16 %v1169
    %v5473 = vunpack.c.l.b16 %v1170
    %v5474 = vunpack.c.h.b16 %v1170
    %v5475 = vunpack.c.l.b16 %v1171
    %v5476 = vunpack.c.h.b16 %v1171
    %v5477 = vunpack.c.l.b16 %v1172
    %v5478 = vunpack.c.h.b16 %v1172
    %v5479 = vunpack.c.l.b16 %v1173
    %v5480 = vunpack.c.h.b16 %v1173
    %v5481 = vunpack.c.l.b16 %v1174
    %v5482 = vunpack.c.h.b16 %v1174
    %v5483 = vunpack.c.l.b16 %v1175
    %v5484 = vunpack.c.h.b16 %v1175
    %v5485 = vunpack.c.l.b16 %v1176
    %v5486 = vunpack.c.h.b16 %v1176
    %v5487 = vunpack.c.l.b16 %v1177
    %v5488 = vunpack.c.h.b16 %v1177
    %v5489 = vunpack.c.l.b16 %v1178
    %v5490 = vunpack.c.h.b16 %v1178
    %v5491 = vunpack.c.l.b16 %v1179
    %v5492 = vunpack.c.h.b16 %v1179
    %v5493 = vunpack.c.l.b16 %v1180
    %v5494 = vunpack.c.h.b16 %v1180
    %v5495 = vunpack.c.l.b16 %v1181
    %v5496 = vunpack.c.h.b16 %v1181
    %v5497 = vunpack.c.l.b16 %v1182
    %v5498 = vunpack.c.h.b16 %v1182
    %v5499 = vunpack.c.l.b16 %v1183
    %v5500 = vunpack.c.h.b16 %v1183
    %v5501 = vunpack.c.l.b16 %v1184
    %v5502 = vunpack.c.h.b16 %v1184
    %v5503 = vunpack.c.l.b16 %v1185
    %v5504 = vunpack.c.h.b16 %v1185
    %v5505 = vunpack.c.l.b16 %v1186
    %v5506 = vunpack.c.h.b16 %v1186
    %v5507 = vunpack.c.l.b16 %v1187
    %v5508 = vunpack.c.h.b16 %v1187
    %v5509 = vunpack.c.l.b16 %v1188
    %v5510 = vunpack.c.h.b16 %v1188
    %v5511 = vunpack.c.l.b16 %v1189
    %v5512 = vunpack.c.h.b16 %v1189
    %v5513 = vunpack.c.l.b16 %v1190
    %v5514 = vunpack.c.h.b16 %v1190
    %v5515 = vunpack.c.l.b16 %v1191
    %v5516 = vunpack.c.h.b16 %v1191
    %v5517 = vunpack.c.l.b16 %v1192
    %v5518 = vunpack.c.h.b16 %v1192
    %v5519 = vunpack.c.l.b16 %v1193
    %v5520 = vunpack.c.h.b16 %v1193
    %v5521 = vunpack.c.l.b16 %v1194
    %v5522 = vunpack.c.h.b16 %v1194
    %v5523 = vunpack.c.l.b16 %v1195
    %v5524 = vunpack.c.h.b16 %v1195
    %v5525 = vunpack.c.l.b16 %v1196
    %v5526 = vunpack.c.h.b16 %v1196
    %v5527 = vunpack.c.l.b16 %v1197
    %v5528 = vunpack.c.h.b16 %v1197
    %v5529 = vunpack.c.l.b16 %v1198
    %v5530 = vunpack.c.h.b16 %v1198
    %v5531 = vunpack.c.l.b16 %v1199
    %v5532 = vunpack.c.h.b16 %v1199
    %v5533 = vunpack.c.l.b16 %v1200
    %v5534 = vunpack.c.h.b16 %v1200
    %v5535 = vunpack.c.l.b16 %v1201
    %v5536 = vunpack.c.h.b16 %v1201
    %v5537 = vunpack.c.l.b16 %v1202
    %v5538 = vunpack.c.h.b16 %v1202
    %v5539 = vunpack.c.l.b16 %v1203
    %v5540 = vunpack.c.h.b16 %v1203
    %v5541 = vunpack.c.l.b16 %v1204
    %v5542 = vunpack.c.h.b16 %v1204
    %v5543 = vunpack.c.l.b16 %v1205
    %v5544 = vunpack.c.h.b16 %v1205
    %v5545 = vunpack.c.l.b16 %v1206
    %v5546 = vunpack.c.h.b16 %v1206
    %v5547 = vunpack.c.l.b16 %v1207
    %v5548 = vunpack.c.h.b16 %v1207
    %v5549 = vunpack.c.l.b16 %v1208
    %v5550 = vunpack.c.h.b16 %v1208
    %v5551 = vunpack.c.l.b16 %v1209
    %v5552 = vunpack.c.h.b16 %v1209
    %v5553 = vunpack.c.l.b16 %v1210
    %v5554 = vunpack.c.h.b16 %v1210
    %v5555 = vunpack.c.l.b16 %v1211
    %v5556 = vunpack.c.h.b16 %v1211
    %v5557 = vunpack.c.l.b16 %v1212
    %v5558 = vunpack.c.h.b16 %v1212
    %v5559 = vunpack.c.l.b16 %v1213
    %v5560 = vunpack.c.h.b16 %v1213
    %v5561 = vunpack.c.l.b16 %v1214
    %v5562 = vunpack.c.h.b16 %v1214
    %v5563 = vunpack.c.l.b16 %v1215
    %v5564 = vunpack.c.h.b16 %v1215
    %v5565 = vunpack.c.l.b16 %v1216
    %v5566 = vunpack.c.h.b16 %v1216
    %v5567 = vunpack.c.l.b16 %v1217
    %v5568 = vunpack.c.h.b16 %v1217
    %v5569 = vunpack.c.l.b16 %v1218
    %v5570 = vunpack.c.h.b16 %v1218
    %v5571 = vunpack.c.l.b16 %v1219
    %v5572 = vunpack.c.h.b16 %v1219
    %v5573 = vunpack.c.l.b16 %v1220
    %v5574 = vunpack.c.h.b16 %v1220
    %v5575 = vunpack.c.l.b16 %v1221
    %v5576 = vunpack.c.h.b16 %v1221
    %v5577 = vunpack.c.l.b16 %v1222
    %v5578 = vunpack.c.h.b16 %v1222
    %v5579 = vunpack.c.l.b16 %v1223
    %v5580 = vunpack.c.h.b16 %v1223
    %v5581 = vunpack.c.l.b16 %v1224
    %v5582 = vunpack.c.h.b16 %v1224
    %v5583 = vunpack.c.l.b16 %v1225
    %v5584 = vunpack.c.h.b16 %v1225
    %v5585 = vunpack.c.l.b16 %v1226
    %v5586 = vunpack.c.h.b16 %v1226
    %v5587 = vunpack.c.l.b16 %v1227
    %v5588 = vunpack.c.h.b16 %v1227
    %v5589 = vunpack.c.l.b16 %v1228
    %v5590 = vunpack.c.h.b16 %v1228
    %v5591 = vunpack.c.l.b16 %v1229
    %v5592 = vunpack.c.h.b16 %v1229
    %v5593 = vunpack.c.l.b16 %v1230
    %v5594 = vunpack.c.h.b16 %v1230
    %v5595 = vunpack.c.l.b16 %v1231
    %v5596 = vunpack.c.h.b16 %v1231
    %v5597 = vunpack.c.l.b16 %v1232
    %v5598 = vunpack.c.h.b16 %v1232
    %v5599 = vunpack.c.l.b16 %v1233
    %v5600 = vunpack.c.h.b16 %v1233
    %v5601 = vunpack.c.l.b16 %v1234
    %v5602 = vunpack.c.h.b16 %v1234
    %v5603 = vunpack.c.l.b16 %v1235
    %v5604 = vunpack.c.h.b16 %v1235
    %v5605 = vunpack.c.l.b16 %v1236
    %v5606 = vunpack.c.h.b16 %v1236
    %v5607 = vunpack.c.l.b16 %v1237
    %v5608 = vunpack.c.h.b16 %v1237
    %v5609 = vunpack.c.l.b16 %v1238
    %v5610 = vunpack.c.h.b16 %v1238
    %v5611 = vunpack.c.l.b16 %v1239
    %v5612 = vunpack.c.h.b16 %v1239
    %v5613 = vunpack.c.l.b16 %v1240
    %v5614 = vunpack.c.h.b16 %v1240
    %v5615 = vunpack.c.l.b16 %v1241
    %v5616 = vunpack.c.h.b16 %v1241
    %v5617 = vunpack.c.l.b16 %v1242
    %v5618 = vunpack.c.h.b16 %v1242
    %v5619 = vunpack.c.l.b16 %v1243
    %v5620 = vunpack.c.h.b16 %v1243
    %v5621 = vunpack.c.l.b16 %v1244
    %v5622 = vunpack.c.h.b16 %v1244
    %v5623 = vunpack.c.l.b16 %v1245
    %v5624 = vunpack.c.h.b16 %v1245
    %v5625 = vunpack.c.l.b16 %v1246
    %v5626 = vunpack.c.h.b16 %v1246
    %v5627 = vunpack.c.l.b16 %v1247
    %v5628 = vunpack.c.h.b16 %v1247
    %v5629 = vunpack.c.l.b16 %v1248
    %v5630 = vunpack.c.h.b16 %v1248
    %v5631 = vunpack.c.l.b16 %v1249
    %v5632 = vunpack.c.h.b16 %v1249
    %v5633 = vunpack.c.l.b16 %v1250
    %v5634 = vunpack.c.h.b16 %v1250
    %v5635 = vunpack.c.l.b16 %v1251
    %v5636 = vunpack.c.h.b16 %v1251
    %v5637 = vunpack.c.l.b16 %v1252
    %v5638 = vunpack.c.h.b16 %v1252
    %v5639 = vunpack.c.l.b16 %v1253
    %v5640 = vunpack.c.h.b16 %v1253
    %v5641 = vunpack.c.l.b16 %v1254
    %v5642 = vunpack.c.h.b16 %v1254
    %v5643 = vunpack.c.l.b16 %v1255
    %v5644 = vunpack.c.h.b16 %v1255
    %v5645 = vunpack.c.l.b16 %v1256
    %v5646 = vunpack.c.h.b16 %v1256
    %v5647 = vunpack.c.l.b16 %v1257
    %v5648 = vunpack.c.h.b16 %v1257
    %v5649 = vunpack.c.l.b16 %v1258
    %v5650 = vunpack.c.h.b16 %v1258
    %v5651 = vunpack.c.l.b16 %v1259
    %v5652 = vunpack.c.h.b16 %v1259
    %v5653 = vunpack.c.l.b16 %v1260
    %v5654 = vunpack.c.h.b16 %v1260
    %v5655 = vunpack.c.l.b16 %v1261
    %v5656 = vunpack.c.h.b16 %v1261
    %v5657 = vunpack.c.l.b16 %v1262
    %v5658 = vunpack.c.h.b16 %v1262
    %v5659 = vunpack.c.l.b16 %v1263
    %v5660 = vunpack.c.h.b16 %v1263
    %v5661 = vunpack.c.l.b16 %v1264
    %v5662 = vunpack.c.h.b16 %v1264
    %v5663 = vunpack.c.l.b16 %v1265
    %v5664 = vunpack.c.h.b16 %v1265
    %v5665 = vunpack.c.l.b16 %v1266
    %v5666 = vunpack.c.h.b16 %v1266
    %v5667 = vunpack.c.l.b16 %v1267
    %v5668 = vunpack.c.h.b16 %v1267
    %v5669 = vunpack.c.l.b16 %v1268
    %v5670 = vunpack.c.h.b16 %v1268
    %v5671 = vunpack.c.l.b16 %v1269
    %v5672 = vunpack.c.h.b16 %v1269
    %v5673 = vunpack.c.l.b16 %v1270
    %v5674 = vunpack.c.h.b16 %v1270
    %v5675 = vunpack.c.l.b16 %v1271
    %v5676 = vunpack.c.h.b16 %v1271
    %v5677 = vunpack.c.l.b16 %v1272
    %v5678 = vunpack.c.h.b16 %v1272
    %v5679 = vunpack.c.l.b16 %v1273
    %v5680 = vunpack.c.h.b16 %v1273
    %v5681 = vunpack.c.l.b16 %v1274
    %v5682 = vunpack.c.h.b16 %v1274
    %v5683 = vunpack.c.l.b16 %v1275
    %v5684 = vunpack.c.h.b16 %v1275
    %v5685 = vunpack.c.l.b16 %v1276
    %v5686 = vunpack.c.h.b16 %v1276
    %v5687 = vunpack.c.l.b16 %v1277
    %v5688 = vunpack.c.h.b16 %v1277
    %v5689 = vunpack.c.l.b16 %v1278
    %v5690 = vunpack.c.h.b16 %v1278
    %v5691 = vunpack.c.l.b16 %v1279
    %v5692 = vunpack.c.h.b16 %v1279
    %v5693 = vunpack.c.l.b16 %v1280
    %v5694 = vunpack.c.h.b16 %v1280
    %v5695 = vunpack.c.l.b16 %v1281
    %v5696 = vunpack.c.h.b16 %v1281
    %v5697 = vunpack.c.l.b16 %v1282
    %v5698 = vunpack.c.h.b16 %v1282
    %v5699 = vunpack.c.l.b16 %v1283
    %v5700 = vunpack.c.h.b16 %v1283
    %v5701 = vunpack.c.l.b16 %v1284
    %v5702 = vunpack.c.h.b16 %v1284
    %v5703 = vunpack.c.l.b16 %v1285
    %v5704 = vunpack.c.h.b16 %v1285
    %v5705 = vunpack.c.l.b16 %v1286
    %v5706 = vunpack.c.h.b16 %v1286
    %v5707 = vunpack.c.l.b16 %v1287
    %v5708 = vunpack.c.h.b16 %v1287
    %v5709 = vunpack.c.l.b16 %v1288
    %v5710 = vunpack.c.h.b16 %v1288
    %v5711 = vunpack.c.l.b16 %v1289
    %v5712 = vunpack.c.h.b16 %v1289
    %v5713 = vunpack.c.l.b16 %v1290
    %v5714 = vunpack.c.h.b16 %v1290
    %v5715 = vunpack.c.l.b16 %v1291
    %v5716 = vunpack.c.h.b16 %v1291
    %v5717 = vunpack.c.l.b16 %v1292
    %v5718 = vunpack.c.h.b16 %v1292
    %v5719 = vunpack.c.l.b16 %v1293
    %v5720 = vunpack.c.h.b16 %v1293
    %v5721 = vunpack.c.l.b16 %v1294
    %v5722 = vunpack.c.h.b16 %v1294
    %v5723 = vunpack.c.l.b16 %v1295
    %v5724 = vunpack.c.h.b16 %v1295
    %v5725 = vunpack.c.l.b16 %v1296
    %v5726 = vunpack.c.h.b16 %v1296
    %v5727 = vunpack.c.l.b16 %v1297
    %v5728 = vunpack.c.h.b16 %v1297
    %v5729 = vunpack.c.l.b16 %v1298
    %v5730 = vunpack.c.h.b16 %v1298
    %v5731 = vunpack.c.l.b16 %v1299
    %v5732 = vunpack.c.h.b16 %v1299
    %v5733 = vunpack.c.l.b16 %v1300
    %v5734 = vunpack.c.h.b16 %v1300
    %v5735 = vunpack.c.l.b16 %v1301
    %v5736 = vunpack.c.h.b16 %v1301
    %v5737 = vunpack.c.l.b16 %v1302
    %v5738 = vunpack.c.h.b16 %v1302
    %v5739 = vunpack.c.l.b16 %v1303
    %v5740 = vunpack.c.h.b16 %v1303
    %v5741 = vunpack.c.l.b16 %v1304
    %v5742 = vunpack.c.h.b16 %v1304
    %v5743 = vunpack.c.l.b16 %v1305
    %v5744 = vunpack.c.h.b16 %v1305
    %v5745 = vunpack.c.l.b16 %v1306
    %v5746 = vunpack.c.h.b16 %v1306
    %v5747 = vunpack.c.l.b16 %v1307
    %v5748 = vunpack.c.h.b16 %v1307
    %v5749 = vunpack.c.l.b16 %v1308
    %v5750 = vunpack.c.h.b16 %v1308
    %v5751 = vunpack.c.l.b16 %v1309
    %v5752 = vunpack.c.h.b16 %v1309
    %v5753 = vunpack.c.l.b16 %v1310
    %v5754 = vunpack.c.h.b16 %v1310
    %v5755 = vunpack.c.l.b16 %v1311
    %v5756 = vunpack.c.h.b16 %v1311
    %v5757 = vunpack.c.l.b16 %v1312
    %v5758 = vunpack.c.h.b16 %v1312
    %v5759 = vunpack.c.l.b16 %v1313
    %v5760 = vunpack.c.h.b16 %v1313
    %v5761 = vunpack.c.l.b16 %v1314
    %v5762 = vunpack.c.h.b16 %v1314
    %v5763 = vunpack.c.l.b16 %v1315
    %v5764 = vunpack.c.h.b16 %v1315
    %v5765 = vunpack.c.l.b16 %v1316
    %v5766 = vunpack.c.h.b16 %v1316
    %v5767 = vunpack.c.l.b16 %v1317
    %v5768 = vunpack.c.h.b16 %v1317
    %v5769 = vunpack.c.l.b16 %v1318
    %v5770 = vunpack.c.h.b16 %v1318
    %v5771 = vunpack.c.l.b16 %v1319
    %v5772 = vunpack.c.h.b16 %v1319
    %v5773 = vunpack.c.l.b16 %v1320
    %v5774 = vunpack.c.h.b16 %v1320
    %v5775 = vunpack.c.l.b16 %v1321
    %v5776 = vunpack.c.h.b16 %v1321
    %v5777 = vunpack.c.l.b16 %v1322
    %v5778 = vunpack.c.h.b16 %v1322
    %v5779 = vunpack.c.l.b16 %v1323
    %v5780 = vunpack.c.h.b16 %v1323
    %v5781 = vunpack.c.l.b16 %v1324
    %v5782 = vunpack.c.h.b16 %v1324
    %v5783 = vunpack.c.l.b16 %v1325
    %v5784 = vunpack.c.h.b16 %v1325
    %v5785 = vunpack.c.l.b16 %v1326
    %v5786 = vunpack.c.h.b16 %v1326
    %v5787 = vunpack.c.l.b16 %v1327
    %v5788 = vunpack.c.h.b16 %v1327
    %v5789 = vunpack.c.l.b16 %v1328
    %v5790 = vunpack.c.h.b16 %v1328
    %v5791 = vunpack.c.l.b16 %v1329
    %v5792 = vunpack.c.h.b16 %v1329
    %v5793 = vunpack.c.l.b16 %v1330
    %v5794 = vunpack.c.h.b16 %v1330
    %v5795 = vunpack.c.l.b16 %v1331
    %v5796 = vunpack.c.h.b16 %v1331
    %v5797 = vunpack.c.l.b16 %v1332
    %v5798 = vunpack.c.h.b16 %v1332
    %v5799 = vunpack.c.l.b16 %v1333
    %v5800 = vunpack.c.h.b16 %v1333
    %v5801 = vunpack.c.l.b16 %v1334
    %v5802 = vunpack.c.h.b16 %v1334
    %v5803 = vunpack.c.l.b16 %v1335
    %v5804 = vunpack.c.h.b16 %v1335
    %v5805 = vunpack.c.l.b16 %v1336
    %v5806 = vunpack.c.h.b16 %v1336
    %v5807 = vunpack.c.l.b16 %v1337
    %v5808 = vunpack.c.h.b16 %v1337
    %v5809 = vunpack.c.l.b16 %v1338
    %v5810 = vunpack.c.h.b16 %v1338
    %v5811 = vunpack.c.l.b16 %v1339
    %v5812 = vunpack.c.h.b16 %v1339
    %v5813 = vunpack.c.l.b16 %v1340
    %v5814 = vunpack.c.h.b16 %v1340
    %v5815 = vunpack.c.l.b16 %v1341
    %v5816 = vunpack.c.h.b16 %v1341
    %v5817 = vunpack.c.l.b16 %v1342
    %v5818 = vunpack.c.h.b16 %v1342
    %v5819 = vunpack.c.l.b16 %v1343
    %v5820 = vunpack.c.h.b16 %v1343
    %v5821 = vunpack.c.l.b16 %v1344
    %v5822 = vunpack.c.h.b16 %v1344
    %v5823 = vunpack.c.l.b16 %v1345
    %v5824 = vunpack.c.h.b16 %v1345
    %v5825 = vunpack.c.l.b16 %v1346
    %v5826 = vunpack.c.h.b16 %v1346
    %v5827 = vunpack.c.l.b16 %v1347
    %v5828 = vunpack.c.h.b16 %v1347
    %v5829 = vunpack.c.l.b16 %v1348
    %v5830 = vunpack.c.h.b16 %v1348
    %v5831 = vunpack.c.l.b16 %v1349
    %v5832 = vunpack.c.h.b16 %v1349
    %v5833 = vunpack.c.l.b16 %v1350
    %v5834 = vunpack.c.h.b16 %v1350
    %v5835 = vunpack.c.l.b16 %v1351
    %v5836 = vunpack.c.h.b16 %v1351
    %v5837 = vunpack.c.l.b16 %v1352
    %v5838 = vunpack.c.h.b16 %v1352
    %v5839 = vunpack.c.l.b16 %v1353
    %v5840 = vunpack.c.h.b16 %v1353
    %v5841 = vunpack.c.l.b16 %v1354
    %v5842 = vunpack.c.h.b16 %v1354
    %v5843 = vunpack.c.l.b16 %v1355
    %v5844 = vunpack.c.h.b16 %v1355
    %v5845 = vunpack.c.l.b16 %v1356
    %v5846 = vunpack.c.h.b16 %v1356
    %v5847 = vunpack.c.l.b16 %v1357
    %v5848 = vunpack.c.h.b16 %v1357
    %v5849 = vunpack.c.l.b16 %v1358
    %v5850 = vunpack.c.h.b16 %v1358
    %v5851 = vunpack.c.l.b16 %v1359
    %v5852 = vunpack.c.h.b16 %v1359
    %v5853 = vunpack.c.l.b16 %v1360
    %v5854 = vunpack.c.h.b16 %v1360
    %v5855 = vunpack.c.l.b16 %v1361
    %v5856 = vunpack.c.h.b16 %v1361
    %v5857 = vunpack.c.l.b16 %v1362
    %v5858 = vunpack.c.h.b16 %v1362
    %v5859 = vunpack.c.l.b16 %v1363
    %v5860 = vunpack.c.h.b16 %v1363
    %v5861 = vunpack.c.l.b16 %v1364
    %v5862 = vunpack.c.h.b16 %v1364
    %v5863 = vunpack.c.l.b16 %v1365
    %v5864 = vunpack.c.h.b16 %v1365
    %v5865 = vunpack.c.l.b16 %v1366
    %v5866 = vunpack.c.h.b16 %v1366
    %v5867 = vunpack.c.l.b16 %v1367
    %v5868 = vunpack.c.h.b16 %v1367
    %v5869 = vunpack.c.l.b16 %v1368
    %v5870 = vunpack.c.h.b16 %v1368
    %v5871 = vunpack.c.l.b16 %v1369
    %v5872 = vunpack.c.h.b16 %v1369
    %v5873 = vunpack.c.l.b16 %v1370
    %v5874 = vunpack.c.h.b16 %v1370
    %v5875 = vunpack.c.l.b16 %v1371
    %v5876 = vunpack.c.h.b16 %v1371
    %v5877 = vunpack.c.l.b16 %v1372
    %v5878 = vunpack.c.h.b16 %v1372
    %v5879 = vunpack.c.l.b16 %v1373
    %v5880 = vunpack.c.h.b16 %v1373
    %v5881 = vunpack.c.l.b16 %v1374
    %v5882 = vunpack.c.h.b16 %v1374
    %v5883 = vunpack.c.l.b16 %v1375
    %v5884 = vunpack.c.h.b16 %v1375
    %v5885 = vunpack.c.l.b16 %v1376
    %v5886 = vunpack.c.h.b16 %v1376
    %v5887 = vunpack.c.l.b16 %v1377
    %v5888 = vunpack.c.h.b16 %v1377
    %v5889 = vunpack.c.l.b16 %v1378
    %v5890 = vunpack.c.h.b16 %v1378
    %v5891 = vunpack.c.l.b16 %v1379
    %v5892 = vunpack.c.h.b16 %v1379
    %v5893 = vunpack.c.l.b16 %v1380
    %v5894 = vunpack.c.h.b16 %v1380
    %v5895 = vunpack.c.l.b16 %v1381
    %v5896 = vunpack.c.h.b16 %v1381
    %v5897 = vunpack.c.l.b16 %v1382
    %v5898 = vunpack.c.h.b16 %v1382
    %v5899 = vunpack.c.l.b16 %v1383
    %v5900 = vunpack.c.h.b16 %v1383
    %v5901 = vunpack.c.l.b16 %v1384
    %v5902 = vunpack.c.h.b16 %v1384
    %v5903 = vunpack.c.l.b16 %v1385
    %v5904 = vunpack.c.h.b16 %v1385
    %v5905 = vunpack.c.l.b16 %v1386
    %v5906 = vunpack.c.h.b16 %v1386
    %v5907 = vunpack.c.l.b16 %v1387
    %v5908 = vunpack.c.h.b16 %v1387
    %v5909 = vunpack.c.l.b16 %v1388
    %v5910 = vunpack.c.h.b16 %v1388
    %v5911 = vunpack.c.l.b16 %v1389
    %v5912 = vunpack.c.h.b16 %v1389
    %v5913 = vunpack.c.l.b16 %v1390
    %v5914 = vunpack.c.h.b16 %v1390
    %v5915 = vunpack.c.l.b16 %v1391
    %v5916 = vunpack.c.h.b16 %v1391
    %v5917 = vunpack.c.l.b16 %v1392
    %v5918 = vunpack.c.h.b16 %v1392
    %v5919 = vunpack.c.l.b16 %v1393
    %v5920 = vunpack.c.h.b16 %v1393
    %v5921 = vunpack.c.l.b16 %v1394
    %v5922 = vunpack.c.h.b16 %v1394
    %v5923 = vunpack.c.l.b16 %v1395
    %v5924 = vunpack.c.h.b16 %v1395
    %v5925 = vunpack.c.l.b16 %v1396
    %v5926 = vunpack.c.h.b16 %v1396
    %v5927 = vunpack.c.l.b16 %v1397
    %v5928 = vunpack.c.h.b16 %v1397
    %v5929 = vunpack.c.l.b16 %v1398
    %v5930 = vunpack.c.h.b16 %v1398
    %v5931 = vunpack.c.l.b16 %v1399
    %v5932 = vunpack.c.h.b16 %v1399
    %v5933 = vunpack.c.l.b16 %v1400
    %v5934 = vunpack.c.h.b16 %v1400
    %v5935 = vunpack.c.l.b16 %v1401
    %v5936 = vunpack.c.h.b16 %v1401
    %v5937 = vunpack.c.l.b16 %v1402
    %v5938 = vunpack.c.h.b16 %v1402
    %v5939 = vunpack.c.l.b16 %v1403
    %v5940 = vunpack.c.h.b16 %v1403
    %v5941 = vunpack.c.l.b16 %v1404
    %v5942 = vunpack.c.h.b16 %v1404
    %v5943 = vunpack.c.l.b16 %v1405
    %v5944 = vunpack.c.h.b16 %v1405
    %v5945 = vunpack.c.l.b16 %v1406
    %v5946 = vunpack.c.h.b16 %v1406
    %v5947 = vunpack.c.l.b16 %v1407
    %v5948 = vunpack.c.h.b16 %v1407
    %v5949 = vunpack.c.l.b16 %v1408
    %v5950 = vunpack.c.h.b16 %v1408
    %v5951 = vunpack.c.l.b16 %v1409
    %v5952 = vunpack.c.h.b16 %v1409
    %v5953 = vunpack.c.l.b16 %v1410
    %v5954 = vunpack.c.h.b16 %v1410
    %v5955 = vunpack.c.l.b16 %v1411
    %v5956 = vunpack.c.h.b16 %v1411
    %v5957 = vunpack.c.l.b16 %v1412
    %v5958 = vunpack.c.h.b16 %v1412
    %v5959 = vunpack.c.l.b16 %v1413
    %v5960 = vunpack.c.h.b16 %v1413
    %v5961 = vunpack.c.l.b16 %v1414
    %v5962 = vunpack.c.h.b16 %v1414
    %v5963 = vunpack.c.l.b16 %v1415
    %v5964 = vunpack.c.h.b16 %v1415
    %v5965 = vunpack.c.l.b16 %v1416
    %v5966 = vunpack.c.h.b16 %v1416
    %v5967 = vunpack.c.l.b16 %v1417
    %v5968 = vunpack.c.h.b16 %v1417
    %v5969 = vunpack.c.l.b16 %v1418
    %v5970 = vunpack.c.h.b16 %v1418
    %v5971 = vunpack.c.l.b16 %v1419
    %v5972 = vunpack.c.h.b16 %v1419
    %v5973 = vunpack.c.l.b16 %v1420
    %v5974 = vunpack.c.h.b16 %v1420
    %v5975 = vunpack.c.l.b16 %v1421
    %v5976 = vunpack.c.h.b16 %v1421
    %v5977 = vunpack.c.l.b16 %v1422
    %v5978 = vunpack.c.h.b16 %v1422
    %v5979 = vunpack.c.l.b16 %v1423
    %v5980 = vunpack.c.h.b16 %v1423
    %v5981 = vunpack.c.l.b16 %v1424
    %v5982 = vunpack.c.h.b16 %v1424
    %v5983 = vunpack.c.l.b16 %v1425
    %v5984 = vunpack.c.h.b16 %v1425
    %v5985 = vunpack.c.l.b16 %v1426
    %v5986 = vunpack.c.h.b16 %v1426
    %v5987 = vunpack.c.l.b16 %v1427
    %v5988 = vunpack.c.h.b16 %v1427
    %v5989 = vunpack.c.l.b16 %v1428
    %v5990 = vunpack.c.h.b16 %v1428
    %v5991 = vunpack.c.l.b16 %v1429
    %v5992 = vunpack.c.h.b16 %v1429
    %v5993 = vunpack.c.l.b16 %v1430
    %v5994 = vunpack.c.h.b16 %v1430
    %v5995 = vunpack.c.l.b16 %v1431
    %v5996 = vunpack.c.h.b16 %v1431
    %v5997 = vunpack.c.l.b16 %v1432
    %v5998 = vunpack.c.h.b16 %v1432
    %v5999 = vunpack.c.l.b16 %v1433
    %v6000 = vunpack.c.h.b16 %v1433
    %v6001 = vunpack.c.l.b16 %v1434
    %v6002 = vunpack.c.h.b16 %v1434
    %v6003 = vunpack.c.l.b16 %v1435
    %v6004 = vunpack.c.h.b16 %v1435
    %v6005 = vunpack.c.l.b16 %v1436
    %v6006 = vunpack.c.h.b16 %v1436
    %v6007 = vunpack.c.l.b16 %v1437
    %v6008 = vunpack.c.h.b16 %v1437
    %v6009 = vunpack.c.l.b16 %v1438
    %v6010 = vunpack.c.h.b16 %v1438
    %v6011 = vunpack.c.l.b16 %v1439
    %v6012 = vunpack.c.h.b16 %v1439
    %v6013 = vunpack.c.l.b16 %v1440
    %v6014 = vunpack.c.h.b16 %v1440
    %v6015 = vunpack.c.l.b16 %v1441
    %v6016 = vunpack.c.h.b16 %v1441
    %v6017 = vunpack.c.l.b16 %v1442
    %v6018 = vunpack.c.h.b16 %v1442
    %v6019 = vunpack.c.l.b16 %v1443
    %v6020 = vunpack.c.h.b16 %v1443
    %v6021 = vunpack.c.l.b16 %v1444
    %v6022 = vunpack.c.h.b16 %v1444
    %v6023 = vunpack.c.l.b16 %v1445
    %v6024 = vunpack.c.h.b16 %v1445
    %v6025 = vunpack.c.l.b16 %v1446
    %v6026 = vunpack.c.h.b16 %v1446
    %v6027 = vunpack.c.l.b16 %v1447
    %v6028 = vunpack.c.h.b16 %v1447
    %v6029 = vunpack.c.l.b16 %v1448
    %v6030 = vunpack.c.h.b16 %v1448
    %v6031 = vunpack.c.l.b16 %v1449
    %v6032 = vunpack.c.h.b16 %v1449
    %v6033 = vunpack.c.l.b16 %v1450
    %v6034 = vunpack.c.h.b16 %v1450
    %v6035 = vunpack.c.l.b16 %v1451
    %v6036 = vunpack.c.h.b16 %v1451
    %v6037 = vunpack.c.l.b16 %v1452
    %v6038 = vunpack.c.h.b16 %v1452
    %v6039 = vunpack.c.l.b16 %v1453
    %v6040 = vunpack.c.h.b16 %v1453
    %v6041 = vunpack.c.l.b16 %v1454
    %v6042 = vunpack.c.h.b16 %v1454
    %v6043 = vunpack.c.l.b16 %v1455
    %v6044 = vunpack.c.h.b16 %v1455
    %v6045 = vunpack.c.l.b16 %v1456
    %v6046 = vunpack.c.h.b16 %v1456
    %v6047 = vunpack.c.l.b16 %v1457
    %v6048 = vunpack.c.h.b16 %v1457
    %v6049 = vunpack.c.l.b16 %v1458
    %v6050 = vunpack.c.h.b16 %v1458
    %v6051 = vunpack.c.l.b16 %v1459
    %v6052 = vunpack.c.h.b16 %v1459
    %v6053 = vunpack.c.l.b16 %v1460
    %v6054 = vunpack.c.h.b16 %v1460
    %v6055 = vunpack.c.l.b16 %v1461
    %v6056 = vunpack.c.h.b16 %v1461
    %v6057 = vunpack.c.l.b16 %v1462
    %v6058 = vunpack.c.h.b16 %v1462
    %v6059 = vunpack.c.l.b16 %v1463
    %v6060 = vunpack.c.h.b16 %v1463
    %v6061 = vunpack.c.l.b16 %v1464
    %v6062 = vunpack.c.h.b16 %v1464
    %v6063 = vunpack.c.l.b16 %v1465
    %v6064 = vunpack.c.h.b16 %v1465
    %v6065 = vunpack.c.l.b16 %v1466
    %v6066 = vunpack.c.h.b16 %v1466
    %v6067 = vunpack.c.l.b16 %v1467
    %v6068 = vunpack.c.h.b16 %v1467
    %v6069 = vunpack.c.l.b16 %v1468
    %v6070 = vunpack.c.h.b16 %v1468
    %v6071 = vunpack.c.l.b16 %v1469
    %v6072 = vunpack.c.h.b16 %v1469
    %v6073 = vunpack.c.l.b16 %v1470
    %v6074 = vunpack.c.h.b16 %v1470
    %v6075 = vunpack.c.l.b16 %v1471
    %v6076 = vunpack.c.h.b16 %v1471
    %v6077 = vunpack.c.l.b16 %v1472
    %v6078 = vunpack.c.h.b16 %v1472
    %v6079 = vunpack.c.l.b16 %v1473
    %v6080 = vunpack.c.h.b16 %v1473
    %v6081 = vunpack.c.l.b16 %v1474
    %v6082 = vunpack.c.h.b16 %v1474
    %v6083 = vunpack.c.l.b16 %v1475
    %v6084 = vunpack.c.h.b16 %v1475
    %v6085 = vunpack.c.l.b16 %v1476
    %v6086 = vunpack.c.h.b16 %v1476
    %v6087 = vunpack.c.l.b16 %v1477
    %v6088 = vunpack.c.h.b16 %v1477
    %v6089 = vunpack.c.l.b16 %v1478
    %v6090 = vunpack.c.h.b16 %v1478
    %v6091 = vunpack.c.l.b16 %v1479
    %v6092 = vunpack.c.h.b16 %v1479
    %v6093 = vunpack.c.l.b16 %v1480
    %v6094 = vunpack.c.h.b16 %v1480
    %v6095 = vunpack.c.l.b16 %v1481
    %v6096 = vunpack.c.h.b16 %v1481
    %v6097 = vunpack.c.l.b16 %v1482
    %v6098 = vunpack.c.h.b16 %v1482
    %v6099 = vunpack.c.l.b16 %v1483
    %v6100 = vunpack.c.h.b16 %v1483
    %v6101 = vunpack.c.l.b16 %v1484
    %v6102 = vunpack.c.h.b16 %v1484
    %v6103 = vunpack.c.l.b16 %v1485
    %v6104 = vunpack.c.h.b16 %v1485
    %v6105 = vunpack.c.l.b16 %v1486
    %v6106 = vunpack.c.h.b16 %v1486
    %v6107 = vunpack.c.l.b16 %v1487
    %v6108 = vunpack.c.h.b16 %v1487
    %v6109 = vunpack.c.l.b16 %v1488
    %v6110 = vunpack.c.h.b16 %v1488
    %v6111 = vunpack.c.l.b16 %v1489
    %v6112 = vunpack.c.h.b16 %v1489
    %v6113 = vunpack.c.l.b16 %v1490
    %v6114 = vunpack.c.h.b16 %v1490
    %v6115 = vunpack.c.l.b16 %v1491
    %v6116 = vunpack.c.h.b16 %v1491
    %v6117 = vunpack.c.l.b16 %v1492
    %v6118 = vunpack.c.h.b16 %v1492
    %v6119 = vunpack.c.l.b16 %v1493
    %v6120 = vunpack.c.h.b16 %v1493
    %v6121 = vunpack.c.l.b16 %v1494
    %v6122 = vunpack.c.h.b16 %v1494
    %v6123 = vunpack.c.l.b16 %v1495
    %v6124 = vunpack.c.h.b16 %v1495
    %v6125 = vunpack.c.l.b16 %v1496
    %v6126 = vunpack.c.h.b16 %v1496
    %v6127 = vunpack.c.l.b16 %v1497
    %v6128 = vunpack.c.h.b16 %v1497
    %v6129 = vunpack.c.l.b16 %v1498
    %v6130 = vunpack.c.h.b16 %v1498
    %v6131 = vunpack.c.l.b16 %v1499
    %v6132 = vunpack.c.h.b16 %v1499
    %v6133 = vunpack.c.l.b16 %v1500
    %v6134 = vunpack.c.h.b16 %v1500
    %v6135 = vunpack.c.l.b16 %v1501
    %v6136 = vunpack.c.h.b16 %v1501
    %v6137 = vunpack.c.l.b16 %v1502
    %v6138 = vunpack.c.h.b16 %v1502
    %v6139 = vunpack.c.l.b16 %v1503
    %v6140 = vunpack.c.h.b16 %v1503
    %v6141 = vunpack.c.l.b16 %v1504
    %v6142 = vunpack.c.h.b16 %v1504
    %v6143 = vunpack.c.l.b16 %v1505
    %v6144 = vunpack.c.h.b16 %v1505
    %v6145 = vunpack.c.l.b16 %v1506
    %v6146 = vunpack.c.h.b16 %v1506
    %v6147 = vunpack.c.l.b16 %v1507
    %v6148 = vunpack.c.h.b16 %v1507
    %v6149 = vunpack.c.l.b16 %v1508
    %v6150 = vunpack.c.h.b16 %v1508
    %v6151 = vunpack.c.l.b16 %v1509
    %v6152 = vunpack.c.h.b16 %v1509
    %v6153 = vunpack.c.l.b16 %v1510
    %v6154 = vunpack.c.h.b16 %v1510
    %v6155 = vunpack.c.l.b16 %v1511
    %v6156 = vunpack.c.h.b16 %v1511
    %v6157 = vunpack.c.l.b16 %v1512
    %v6158 = vunpack.c.h.b16 %v1512
    %v6159 = vunpack.c.l.b16 %v1513
    %v6160 = vunpack.c.h.b16 %v1513
    %v6161 = vunpack.c.l.b16 %v1514
    %v6162 = vunpack.c.h.b16 %v1514
    %v6163 = vunpack.c.l.b16 %v1515
    %v6164 = vunpack.c.h.b16 %v1515
    %v6165 = vunpack.c.l.b16 %v1516
    %v6166 = vunpack.c.h.b16 %v1516
    %v6167 = vunpack.c.l.b16 %v1517
    %v6168 = vunpack.c.h.b16 %v1517
    %v6169 = vunpack.c.l.b16 %v1518
    %v6170 = vunpack.c.h.b16 %v1518
    %v6171 = vunpack.c.l.b16 %v1519
    %v6172 = vunpack.c.h.b16 %v1519
    %v6173 = vunpack.c.l.b16 %v1520
    %v6174 = vunpack.c.h.b16 %v1520
    %v6175 = vunpack.c.l.b16 %v1521
    %v6176 = vunpack.c.h.b16 %v1521
    %v6177 = vunpack.c.l.b16 %v1522
    %v6178 = vunpack.c.h.b16 %v1522
    %v6179 = vunpack.c.l.b16 %v1523
    %v6180 = vunpack.c.h.b16 %v1523
    %v6181 = vunpack.c.l.b16 %v1524
    %v6182 = vunpack.c.h.b16 %v1524
    %v6183 = vunpack.c.l.b16 %v1525
    %v6184 = vunpack.c.h.b16 %v1525
    %v6185 = vunpack.c.l.b16 %v1526
    %v6186 = vunpack.c.h.b16 %v1526
    %v6187 = vunpack.c.l.b16 %v1527
    %v6188 = vunpack.c.h.b16 %v1527
    %v6189 = vunpack.c.l.b16 %v1528
    %v6190 = vunpack.c.h.b16 %v1528
    %v6191 = vunpack.c.l.b16 %v1529
    %v6192 = vunpack.c.h.b16 %v1529
    %v6193 = vunpack.c.l.b16 %v1530
    %v6194 = vunpack.c.h.b16 %v1530
    %v6195 = vunpack.c.l.b16 %v1531
    %v6196 = vunpack.c.h.b16 %v1531
    %v6197 = vunpack.c.l.b16 %v1532
    %v6198 = vunpack.c.h.b16 %v1532
    %v6199 = vunpack.c.l.b16 %v1533
    %v6200 = vunpack.c.h.b16 %v1533
    %v6201 = vunpack.c.l.b16 %v1534
    %v6202 = vunpack.c.h.b16 %v1534
    %v6203 = vunpack.c.l.b16 %v1535
    %v6204 = vunpack.c.h.b16 %v1535
    %v6205 = vunpack.c.l.b16 %v1536
    %v6206 = vunpack.c.h.b16 %v1536
    %v6207 = vunpack.c.l.b16 %v1537
    %v6208 = vunpack.c.h.b16 %v1537
    %v6209 = vunpack.c.l.b16 %v1538
    %v6210 = vunpack.c.h.b16 %v1538
    %v6211 = vunpack.c.l.b16 %v1539
    %v6212 = vunpack.c.h.b16 %v1539
    %v6213 = vunpack.c.l.b16 %v1540
    %v6214 = vunpack.c.h.b16 %v1540
    %v6215 = vunpack.c.l.b16 %v1541
    %v6216 = vunpack.c.h.b16 %v1541
    %v6217 = vunpack.c.l.b16 %v1542
    %v6218 = vunpack.c.h.b16 %v1542
    %v6219 = vunpack.c.l.b16 %v1543
    %v6220 = vunpack.c.h.b16 %v1543
    %v6221 = vunpack.c.l.b16 %v1544
    %v6222 = vunpack.c.h.b16 %v1544
    %v6223 = vunpack.c.l.b16 %v1545
    %v6224 = vunpack.c.h.b16 %v1545
    %v6225 = vunpack.c.l.b16 %v1546
    %v6226 = vunpack.c.h.b16 %v1546
    %v6227 = vunpack.c.l.b16 %v1547
    %v6228 = vunpack.c.h.b16 %v1547
    %v6229 = vunpack.c.l.b16 %v1548
    %v6230 = vunpack.c.h.b16 %v1548
    %v6231 = vunpack.c.l.b16 %v1549
    %v6232 = vunpack.c.h.b16 %v1549
    %v6233 = vunpack.c.l.b16 %v1550
    %v6234 = vunpack.c.h.b16 %v1550
    %v6235 = vunpack.c.l.b16 %v1551
    %v6236 = vunpack.c.h.b16 %v1551
    %v6237 = vunpack.c.l.b16 %v1552
    %v6238 = vunpack.c.h.b16 %v1552
    %v6239 = vunpack.c.l.b16 %v1553
    %v6240 = vunpack.c.h.b16 %v1553
    %v6241 = vunpack.c.l.b16 %v1554
    %v6242 = vunpack.c.h.b16 %v1554
    %v6243 = vunpack.c.l.b16 %v1555
    %v6244 = vunpack.c.h.b16 %v1555
    %v6245 = vunpack.c.l.b16 %v1556
    %v6246 = vunpack.c.h.b16 %v1556
    %v6247 = vunpack.c.l.b16 %v1557
    %v6248 = vunpack.c.h.b16 %v1557
    %v6249 = vunpack.c.l.b16 %v1558
    %v6250 = vunpack.c.h.b16 %v1558
    %v6251 = vunpack.c.l.b16 %v1559
    %v6252 = vunpack.c.h.b16 %v1559
    %v6253 = vunpack.c.l.b16 %v1560
    %v6254 = vunpack.c.h.b16 %v1560
    %v6255 = vunpack.c.l.b16 %v1561
    %v6256 = vunpack.c.h.b16 %v1561
    %v6257 = vunpack.c.l.b16 %v1562
    %v6258 = vunpack.c.h.b16 %v1562
    %v6259 = vunpack.c.l.b16 %v1563
    %v6260 = vunpack.c.h.b16 %v1563
    %v6261 = vunpack.c.l.b16 %v1564
    %v6262 = vunpack.c.h.b16 %v1564
    %v6263 = vunpack.c.l.b16 %v1565
    %v6264 = vunpack.c.h.b16 %v1565
    %v6265 = vunpack.c.l.b16 %v1566
    %v6266 = vunpack.c.h.b16 %v1566
    %v6267 = vunpack.c.l.b16 %v1567
    %v6268 = vunpack.c.h.b16 %v1567
    %v6269 = vunpack.c.l.b16 %v1568
    %v6270 = vunpack.c.h.b16 %v1568
    %v6271 = vunpack.c.l.b16 %v1569
    %v6272 = vunpack.c.h.b16 %v1569
    %v6273 = vunpack.c.l.b16 %v1570
    %v6274 = vunpack.c.h.b16 %v1570
    %v6275 = vunpack.c.l.b16 %v1571
    %v6276 = vunpack.c.h.b16 %v1571
    %v6277 = vunpack.c.l.b16 %v1572
    %v6278 = vunpack.c.h.b16 %v1572
    %v6279 = vunpack.c.l.b16 %v1573
    %v6280 = vunpack.c.h.b16 %v1573
    %v6281 = vunpack.c.l.b16 %v1574
    %v6282 = vunpack.c.h.b16 %v1574
    %v6283 = vunpack.c.l.b16 %v1575
    %v6284 = vunpack.c.h.b16 %v1575
    %v6285 = vunpack.c.l.b16 %v1576
    %v6286 = vunpack.c.h.b16 %v1576
    %v6287 = vunpack.c.l.b16 %v1577
    %v6288 = vunpack.c.h.b16 %v1577
    %v6289 = vunpack.c.l.b16 %v1578
    %v6290 = vunpack.c.h.b16 %v1578
    %v6291 = vunpack.c.l.b16 %v1579
    %v6292 = vunpack.c.h.b16 %v1579
    %v6293 = vunpack.c.l.b16 %v1580
    %v6294 = vunpack.c.h.b16 %v1580
    %v6295 = vunpack.c.l.b16 %v1581
    %v6296 = vunpack.c.h.b16 %v1581
    %v6297 = vunpack.c.l.b16 %v1582
    %v6298 = vunpack.c.h.b16 %v1582
    %v6299 = vunpack.c.l.b16 %v1583
    %v6300 = vunpack.c.h.b16 %v1583
    %v6301 = vunpack.c.l.b16 %v1584
    %v6302 = vunpack.c.h.b16 %v1584
    %v6303 = vunpack.c.l.b16 %v1585
    %v6304 = vunpack.c.h.b16 %v1585
    %v6305 = vunpack.c.l.b16 %v1586
    %v6306 = vunpack.c.h.b16 %v1586
    %v6307 = vunpack.c.l.b16 %v1587
    %v6308 = vunpack.c.h.b16 %v1587
    %v6309 = vunpack.c.l.b16 %v1588
    %v6310 = vunpack.c.h.b16 %v1588
    %v6311 = vunpack.c.l.b16 %v1589
    %v6312 = vunpack.c.h.b16 %v1589
    %v6313 = vunpack.c.l.b16 %v1590
    %v6314 = vunpack.c.h.b16 %v1590
    %v6315 = vunpack.c.l.b16 %v1591
    %v6316 = vunpack.c.h.b16 %v1591
    %v6317 = vunpack.c.l.b16 %v1592
    %v6318 = vunpack.c.h.b16 %v1592
    %v6319 = vunpack.c.l.b16 %v1593
    %v6320 = vunpack.c.h.b16 %v1593
    %v6321 = vunpack.c.l.b16 %v1594
    %v6322 = vunpack.c.h.b16 %v1594
    %v6323 = vunpack.c.l.b16 %v1595
    %v6324 = vunpack.c.h.b16 %v1595
    %v6325 = vunpack.c.l.b16 %v1596
    %v6326 = vunpack.c.h.b16 %v1596
    %v6327 = vunpack.c.l.b16 %v1597
    %v6328 = vunpack.c.h.b16 %v1597
    %v6329 = vunpack.c.l.b16 %v1598
    %v6330 = vunpack.c.h.b16 %v1598
    %v6331 = vunpack.c.l.b16 %v1599
    %v6332 = vunpack.c.h.b16 %v1599
    %v6333 = vunpack.c.l.b16 %v1600
    %v6334 = vunpack.c.h.b16 %v1600
    %v6335 = vunpack.c.l.b16 %v1601
    %v6336 = vunpack.c.h.b16 %v1601
    %v6337 = vunpack.c.l.b16 %v1602
    %v6338 = vunpack.c.h.b16 %v1602
    %v6339 = vunpack.c.l.b16 %v1603
    %v6340 = vunpack.c.h.b16 %v1603
    %v6341 = vunpack.c.l.b16 %v1604
    %v6342 = vunpack.c.h.b16 %v1604
    %v6343 = vunpack.c.l.b16 %v1605
    %v6344 = vunpack.c.h.b16 %v1605
    %v6345 = vunpack.c.l.b16 %v1606
    %v6346 = vunpack.c.h.b16 %v1606
    %v6347 = vunpack.c.l.b16 %v1607
    %v6348 = vunpack.c.h.b16 %v1607
    %v6349 = vunpack.c.l.b16 %v1608
    %v6350 = vunpack.c.h.b16 %v1608
    %v6351 = vunpack.c.l.b16 %v1609
    %v6352 = vunpack.c.h.b16 %v1609
    %v6353 = vunpack.c.l.b16 %v1610
    %v6354 = vunpack.c.h.b16 %v1610
    %v6355 = vunpack.c.l.b16 %v1611
    %v6356 = vunpack.c.h.b16 %v1611
    %v6357 = vunpack.c.l.b16 %v1612
    %v6358 = vunpack.c.h.b16 %v1612
    %v6359 = vunpack.c.l.b16 %v1613
    %v6360 = vunpack.c.h.b16 %v1613
    %v6361 = vunpack.c.l.b16 %v1614
    %v6362 = vunpack.c.h.b16 %v1614
    %v6363 = vunpack.c.l.b16 %v1615
    %v6364 = vunpack.c.h.b16 %v1615
    %v6365 = vunpack.c.l.b16 %v1616
    %v6366 = vunpack.c.h.b16 %v1616
    %v6367 = vunpack.c.l.b16 %v1617
    %v6368 = vunpack.c.h.b16 %v1617
    %v6369 = vunpack.c.l.b16 %v1618
    %v6370 = vunpack.c.h.b16 %v1618
    %v6371 = vunpack.c.l.b16 %v1619
    %v6372 = vunpack.c.h.b16 %v1619
    %v6373 = vunpack.c.l.b16 %v1620
    %v6374 = vunpack.c.h.b16 %v1620
    %v6375 = vunpack.c.l.b16 %v1621
    %v6376 = vunpack.c.h.b16 %v1621
    %v6377 = vunpack.c.l.b16 %v1622
    %v6378 = vunpack.c.h.b16 %v1622
    %v6379 = vunpack.c.l.b16 %v1623
    %v6380 = vunpack.c.h.b16 %v1623
    %v6381 = vunpack.c.l.b16 %v1624
    %v6382 = vunpack.c.h.b16 %v1624
    %v6383 = vunpack.c.l.b16 %v1625
    %v6384 = vunpack.c.h.b16 %v1625
    %v6385 = vunpack.c.l.b16 %v1626
    %v6386 = vunpack.c.h.b16 %v1626
    %v6387 = vunpack.c.l.b16 %v1627
    %v6388 = vunpack.c.h.b16 %v1627
    %v6389 = vunpack.c.l.b16 %v1628
    %v6390 = vunpack.c.h.b16 %v1628
    %v6391 = vunpack.c.l.b16 %v1629
    %v6392 = vunpack.c.h.b16 %v1629
    %v6393 = vunpack.c.l.b16 %v1630
    %v6394 = vunpack.c.h.b16 %v1630
    %v6395 = vunpack.c.l.b16 %v1631
    %v6396 = vunpack.c.h.b16 %v1631
    %v6397 = vunpack.c.l.b16 %v1632
    %v6398 = vunpack.c.h.b16 %v1632
    %v6399 = vunpack.c.l.b16 %v1633
    %v6400 = vunpack.c.h.b16 %v1633
    %v6401 = vunpack.c.l.b16 %v1634
    %v6402 = vunpack.c.h.b16 %v1634
    %v6403 = vunpack.c.l.b16 %v1635
    %v6404 = vunpack.c.h.b16 %v1635
    %v6405 = vunpack.c.l.b16 %v1636
    %v6406 = vunpack.c.h.b16 %v1636
    %v6407 = vunpack.c.l.b16 %v1637
    %v6408 = vunpack.c.h.b16 %v1637
    %v6409 = vunpack.c.l.b16 %v1638
    %v6410 = vunpack.c.h.b16 %v1638
    %v6411 = vunpack.c.l.b16 %v1639
    %v6412 = vunpack.c.h.b16 %v1639
    %v6413 = vunpack.c.l.b16 %v1640
    %v6414 = vunpack.c.h.b16 %v1640
    %v6415 = vunpack.c.l.b16 %v1641
    %v6416 = vunpack.c.h.b16 %v1641
    %v6417 = vunpack.c.l.b16 %v1642
    %v6418 = vunpack.c.h.b16 %v1642
    %v6419 = vunpack.c.l.b16 %v1643
    %v6420 = vunpack.c.h.b16 %v1643
    %v6421 = vunpack.c.l.b16 %v1644
    %v6422 = vunpack.c.h.b16 %v1644
    %v6423 = vunpack.c.l.b16 %v1645
    %v6424 = vunpack.c.h.b16 %v1645
    %v6425 = vunpack.c.l.b16 %v1646
    %v6426 = vunpack.c.h.b16 %v1646
    %v6427 = vunpack.c.l.b16 %v1647
    %v6428 = vunpack.c.h.b16 %v1647
    %v6429 = vunpack.c.l.b16 %v1648
    %v6430 = vunpack.c.h.b16 %v1648
    %v6431 = vunpack.c.l.b16 %v1649
    %v6432 = vunpack.c.h.b16 %v1649
    %v6433 = vunpack.c.l.b16 %v1650
    %v6434 = vunpack.c.h.b16 %v1650
    %v6435 = vunpack.c.l.b16 %v1651
    %v6436 = vunpack.c.h.b16 %v1651
    %v6437 = vunpack.c.l.b16 %v1652
    %v6438 = vunpack.c.h.b16 %v1652
    %v6439 = vunpack.c.l.b16 %v1653
    %v6440 = vunpack.c.h.b16 %v1653
    %v6441 = vunpack.c.l.b16 %v1654
    %v6442 = vunpack.c.h.b16 %v1654
    %v6443 = vunpack.c.l.b16 %v1655
    %v6444 = vunpack.c.h.b16 %v1655
    %v6445 = vunpack.c.l.b16 %v1656
    %v6446 = vunpack.c.h.b16 %v1656
    %v6447 = vunpack.c.l.b16 %v1657
    %v6448 = vunpack.c.h.b16 %v1657
    %v6449 = vunpack.c.l.b16 %v1658
    %v6450 = vunpack.c.h.b16 %v1658
    %v6451 = vunpack.c.l.b16 %v1659
    %v6452 = vunpack.c.h.b16 %v1659
    %v6453 = vunpack.c.l.b16 %v1660
    %v6454 = vunpack.c.h.b16 %v1660
    %v6455 = vunpack.c.l.b16 %v1661
    %v6456 = vunpack.c.h.b16 %v1661
    %v6457 = vunpack.c.l.b16 %v1662
    %v6458 = vunpack.c.h.b16 %v1662
    %v6459 = vunpack.c.l.b16 %v1663
    %v6460 = vunpack.c.h.b16 %v1663
    %v6461 = vunpack.c.l.b16 %v1664
    %v6462 = vunpack.c.h.b16 %v1664
    %v6463 = vunpack.c.l.b16 %v1665
    %v6464 = vunpack.c.h.b16 %v1665
    %v6465 = vunpack.c.l.b16 %v1666
    %v6466 = vunpack.c.h.b16 %v1666
    %v6467 = vunpack.c.l.b16 %v1667
    %v6468 = vunpack.c.h.b16 %v1667
    %v6469 = vunpack.c.l.b16 %v1668
    %v6470 = vunpack.c.h.b16 %v1668
    %v6471 = vunpack.c.l.b16 %v1669
    %v6472 = vunpack.c.h.b16 %v1669
    %v6473 = vunpack.c.l.b16 %v1670
    %v6474 = vunpack.c.h.b16 %v1670
    %v6475 = vunpack.c.l.b16 %v1671
    %v6476 = vunpack.c.h.b16 %v1671
    %v6477 = vunpack.c.l.b16 %v1672
    %v6478 = vunpack.c.h.b16 %v1672
    %v6479 = vunpack.c.l.b16 %v1673
    %v6480 = vunpack.c.h.b16 %v1673
    %v6481 = vunpack.c.l.b16 %v1674
    %v6482 = vunpack.c.h.b16 %v1674
    %v6483 = vunpack.c.l.b16 %v1675
    %v6484 = vunpack.c.h.b16 %v1675
    %v6485 = vunpack.c.l.b16 %v1676
    %v6486 = vunpack.c.h.b16 %v1676
    %v6487 = vunpack.c.l.b16 %v1677
    %v6488 = vunpack.c.h.b16 %v1677
    %v6489 = vunpack.c.l.b16 %v1678
    %v6490 = vunpack.c.h.b16 %v1678
    %v6491 = vunpack.c.l.b16 %v1679
    %v6492 = vunpack.c.h.b16 %v1679
    %v6493 = vunpack.c.l.b16 %v1680
    %v6494 = vunpack.c.h.b16 %v1680
    %v6495 = vunpack.c.l.b16 %v1681
    %v6496 = vunpack.c.h.b16 %v1681
    %v6497 = vunpack.c.l.b16 %v1682
    %v6498 = vunpack.c.h.b16 %v1682
    %v6499 = vunpack.c.l.b16 %v1683
    %v6500 = vunpack.c.h.b16 %v1683
    %v6501 = vunpack.c.l.b16 %v1684
    %v6502 = vunpack.c.h.b16 %v1684
    %v6503 = vunpack.c.l.b16 %v1685
    %v6504 = vunpack.c.h.b16 %v1685
    %v6505 = vunpack.c.l.b16 %v1686
    %v6506 = vunpack.c.h.b16 %v1686
    %v6507 = vunpack.c.l.b16 %v1687
    %v6508 = vunpack.c.h.b16 %v1687
    %v6509 = vunpack.c.l.b16 %v1688
    %v6510 = vunpack.c.h.b16 %v1688
    %v6511 = vunpack.c.l.b16 %v1689
    %v6512 = vunpack.c.h.b16 %v1689
    %v6513 = vunpack.c.l.b16 %v1690
    %v6514 = vunpack.c.h.b16 %v1690
    %v6515 = vunpack.c.l.b16 %v1691
    %v6516 = vunpack.c.h.b16 %v1691
    %v6517 = vunpack.c.l.b16 %v1692
    %v6518 = vunpack.c.h.b16 %v1692
    %v6519 = vunpack.c.l.b16 %v1693
    %v6520 = vunpack.c.h.b16 %v1693
    %v6521 = vunpack.c.l.b16 %v1694
    %v6522 = vunpack.c.h.b16 %v1694
    %v6523 = vunpack.c.l.b16 %v1695
    %v6524 = vunpack.c.h.b16 %v1695
    %v6525 = vunpack.c.l.b16 %v1696
    %v6526 = vunpack.c.h.b16 %v1696
    %v6527 = vunpack.c.l.b16 %v1697
    %v6528 = vunpack.c.h.b16 %v1697
    %v6529 = vunpack.c.l.b16 %v1698
    %v6530 = vunpack.c.h.b16 %v1698
    %v6531 = vunpack.c.l.b16 %v1699
    %v6532 = vunpack.c.h.b16 %v1699
    %v6533 = vunpack.c.l.b16 %v1700
    %v6534 = vunpack.c.h.b16 %v1700
    %v6535 = vunpack.c.l.b16 %v1701
    %v6536 = vunpack.c.h.b16 %v1701
    %v6537 = vunpack.c.l.b16 %v1702
    %v6538 = vunpack.c.h.b16 %v1702
    %v6539 = vunpack.c.l.b16 %v1703
    %v6540 = vunpack.c.h.b16 %v1703
    %v6541 = vunpack.c.l.b16 %v1704
    %v6542 = vunpack.c.h.b16 %v1704
    %v6543 = vunpack.c.l.b16 %v1705
    %v6544 = vunpack.c.h.b16 %v1705
    %v6545 = vunpack.c.l.b16 %v1706
    %v6546 = vunpack.c.h.b16 %v1706
    %v6547 = vunpack.c.l.b16 %v1707
    %v6548 = vunpack.c.h.b16 %v1707
    %v6549 = vunpack.c.l.b16 %v1708
    %v6550 = vunpack.c.h.b16 %v1708
    %v6551 = vunpack.c.l.b16 %v1709
    %v6552 = vunpack.c.h.b16 %v1709
    %v6553 = vunpack.c.l.b16 %v1710
    %v6554 = vunpack.c.h.b16 %v1710
    %v6555 = vunpack.c.l.b16 %v1711
    %v6556 = vunpack.c.h.b16 %v1711
    %v6557 = vunpack.c.l.b16 %v1712
    %v6558 = vunpack.c.h.b16 %v1712
    %v6559 = vunpack.c.l.b16 %v1713
    %v6560 = vunpack.c.h.b16 %v1713
    %v6561 = vunpack.c.l.b16 %v1714
    %v6562 = vunpack.c.h.b16 %v1714
    %v6563 = vunpack.c.l.b16 %v1715
    %v6564 = vunpack.c.h.b16 %v1715
    %v6565 = vunpack.c.l.b16 %v1716
    %v6566 = vunpack.c.h.b16 %v1716
    %v6567 = vunpack.c.l.b16 %v1717
    %v6568 = vunpack.c.h.b16 %v1717
    %v6569 = vunpack.c.l.b16 %v1718
    %v6570 = vunpack.c.h.b16 %v1718
    %v6571 = vunpack.c.l.b16 %v1719
    %v6572 = vunpack.c.h.b16 %v1719
    %v6573 = vunpack.c.l.b16 %v1720
    %v6574 = vunpack.c.h.b16 %v1720
    %v6575 = vunpack.c.l.b16 %v1721
    %v6576 = vunpack.c.h.b16 %v1721
    %v6577 = vunpack.c.l.b16 %v1722
    %v6578 = vunpack.c.h.b16 %v1722
    %v6579 = vunpack.c.l.b16 %v1723
    %v6580 = vunpack.c.h.b16 %v1723
    %v6581 = vunpack.c.l.b16 %v1724
    %v6582 = vunpack.c.h.b16 %v1724
    %v6583 = vunpack.c.l.b16 %v1725
    %v6584 = vunpack.c.h.b16 %v1725
    %v6585 = vunpack.c.l.b16 %v1726
    %v6586 = vunpack.c.h.b16 %v1726
    %v6587 = vunpack.c.l.b16 %v1727
    %v6588 = vunpack.c.h.b16 %v1727
    %v6589 = vunpack.c.l.b16 %v1728
    %v6590 = vunpack.c.h.b16 %v1728
    %v6591 = vunpack.c.l.b16 %v1729
    %v6592 = vunpack.c.h.b16 %v1729
    %v6593 = vunpack.c.l.b16 %v1730
    %v6594 = vunpack.c.h.b16 %v1730
    %v6595 = vunpack.c.l.b16 %v1731
    %v6596 = vunpack.c.h.b16 %v1731
    %v6597 = vunpack.c.l.b16 %v1732
    %v6598 = vunpack.c.h.b16 %v1732
    %v6599 = vunpack.c.l.b16 %v1733
    %v6600 = vunpack.c.h.b16 %v1733
    %v6601 = vunpack.c.l.b16 %v1734
    %v6602 = vunpack.c.h.b16 %v1734
    %v6603 = vunpack.c.l.b16 %v1735
    %v6604 = vunpack.c.h.b16 %v1735
    %v6605 = vunpack.c.l.b16 %v1736
    %v6606 = vunpack.c.h.b16 %v1736
    %v6607 = vunpack.c.l.b16 %v1737
    %v6608 = vunpack.c.h.b16 %v1737
    %v6609 = vunpack.c.l.b16 %v1738
    %v6610 = vunpack.c.h.b16 %v1738
    %v6611 = vunpack.c.l.b16 %v1739
    %v6612 = vunpack.c.h.b16 %v1739
    %v6613 = vunpack.c.l.b16 %v1740
    %v6614 = vunpack.c.h.b16 %v1740
    %v6615 = vunpack.c.l.b16 %v1741
    %v6616 = vunpack.c.h.b16 %v1741
    %v6617 = vunpack.c.l.b16 %v1742
    %v6618 = vunpack.c.h.b16 %v1742
    %v6619 = vunpack.c.l.b16 %v1743
    %v6620 = vunpack.c.h.b16 %v1743
    %v6621 = vunpack.c.l.b16 %v1744
    %v6622 = vunpack.c.h.b16 %v1744
    %v6623 = vunpack.c.l.b16 %v1745
    %v6624 = vunpack.c.h.b16 %v1745
    %v6625 = vunpack.c.l.b16 %v1746
    %v6626 = vunpack.c.h.b16 %v1746
    %v6627 = vunpack.c.l.b16 %v1747
    %v6628 = vunpack.c.h.b16 %v1747
    %v6629 = vunpack.c.l.b16 %v1748
    %v6630 = vunpack.c.h.b16 %v1748
    %v6631 = vunpack.c.l.b16 %v1749
    %v6632 = vunpack.c.h.b16 %v1749
    %v6633 = vunpack.c.l.b16 %v1750
    %v6634 = vunpack.c.h.b16 %v1750
    %v6635 = vunpack.c.l.b16 %v1751
    %v6636 = vunpack.c.h.b16 %v1751
    %v6637 = vunpack.c.l.b16 %v1752
    %v6638 = vunpack.c.h.b16 %v1752
    %v6639 = vunpack.c.l.b16 %v1753
    %v6640 = vunpack.c.h.b16 %v1753
    %v6641 = vunpack.c.l.b16 %v1754
    %v6642 = vunpack.c.h.b16 %v1754
    %v6643 = vunpack.c.l.b16 %v1755
    %v6644 = vunpack.c.h.b16 %v1755
    %v6645 = vunpack.c.l.b16 %v1756
    %v6646 = vunpack.c.h.b16 %v1756
    %v6647 = vunpack.c.l.b16 %v1757
    %v6648 = vunpack.c.h.b16 %v1757
    %v6649 = vunpack.c.l.b16 %v1758
    %v6650 = vunpack.c.h.b16 %v1758
    %v6651 = vunpack.c.l.b16 %v1759
    %v6652 = vunpack.c.h.b16 %v1759
    %v6653 = vunpack.c.l.b16 %v1760
    %v6654 = vunpack.c.h.b16 %v1760
    %v6655 = vunpack.c.l.b16 %v1761
    %v6656 = vunpack.c.h.b16 %v1761
    %v6657 = vunpack.c.l.b16 %v1762
    %v6658 = vunpack.c.h.b16 %v1762
    %v6659 = vunpack.c.l.b16 %v1763
    %v6660 = vunpack.c.h.b16 %v1763
    %v6661 = vunpack.c.l.b16 %v1764
    %v6662 = vunpack.c.h.b16 %v1764
    %v6663 = vunpack.c.l.b16 %v1765
    %v6664 = vunpack.c.h.b16 %v1765
    %v6665 = vunpack.c.l.b16 %v1766
    %v6666 = vunpack.c.h.b16 %v1766
    %v6667 = vunpack.c.l.b16 %v1767
    %v6668 = vunpack.c.h.b16 %v1767
    %v6669 = vunpack.c.l.b16 %v1768
    %v6670 = vunpack.c.h.b16 %v1768
    %v6671 = vunpack.c.l.b16 %v1769
    %v6672 = vunpack.c.h.b16 %v1769
    %v6673 = vunpack.c.l.b16 %v1770
    %v6674 = vunpack.c.h.b16 %v1770
    %v6675 = vunpack.c.l.b16 %v1771
    %v6676 = vunpack.c.h.b16 %v1771
    %v6677 = vunpack.c.l.b16 %v1772
    %v6678 = vunpack.c.h.b16 %v1772
    %v6679 = vunpack.c.l.b16 %v1773
    %v6680 = vunpack.c.h.b16 %v1773
    %v6681 = vunpack.c.l.b16 %v1774
    %v6682 = vunpack.c.h.b16 %v1774
    %v6683 = vunpack.c.l.b16 %v1775
    %v6684 = vunpack.c.h.b16 %v1775
    %v6685 = vunpack.c.l.b16 %v1776
    %v6686 = vunpack.c.h.b16 %v1776
    %v6687 = vunpack.c.l.b16 %v1777
    %v6688 = vunpack.c.h.b16 %v1777
    %v6689 = vunpack.c.l.b16 %v1778
    %v6690 = vunpack.c.h.b16 %v1778
    %v6691 = vunpack.c.l.b16 %v1779
    %v6692 = vunpack.c.h.b16 %v1779
    %v6693 = vunpack.c.l.b16 %v1780
    %v6694 = vunpack.c.h.b16 %v1780
    %v6695 = vunpack.c.l.b16 %v1781
    %v6696 = vunpack.c.h.b16 %v1781
    %v6697 = vunpack.c.l.b16 %v1782
    %v6698 = vunpack.c.h.b16 %v1782
    %v6699 = vunpack.c.l.b16 %v1783
    %v6700 = vunpack.c.h.b16 %v1783
    %v6701 = vunpack.c.l.b16 %v1784
    %v6702 = vunpack.c.h.b16 %v1784
    %v6703 = vunpack.c.l.b16 %v1785
    %v6704 = vunpack.c.h.b16 %v1785
    %v6705 = vunpack.c.l.b16 %v1786
    %v6706 = vunpack.c.h.b16 %v1786
    %v6707 = vunpack.c.l.b16 %v1787
    %v6708 = vunpack.c.h.b16 %v1787
    %v6709 = vunpack.c.l.b16 %v1788
    %v6710 = vunpack.c.h.b16 %v1788
    %v6711 = vunpack.c.l.b16 %v1789
    %v6712 = vunpack.c.h.b16 %v1789
    %v6713 = vunpack.c.l.b16 %v1790
    %v6714 = vunpack.c.h.b16 %v1790
    %v6715 = vunpack.c.l.b16 %v1791
    %v6716 = vunpack.c.h.b16 %v1791
    %v6717 = vunpack.c.l.b16 %v1792
    %v6718 = vunpack.c.h.b16 %v1792
    %v6719 = vunpack.c.l.b16 %v1793
    %v6720 = vunpack.c.h.b16 %v1793
    %v6721 = vunpack.c.l.b16 %v1794
    %v6722 = vunpack.c.h.b16 %v1794
    %v6723 = vunpack.c.l.b16 %v1795
    %v6724 = vunpack.c.h.b16 %v1795
    %v6725 = vunpack.c.l.b16 %v1796
    %v6726 = vunpack.c.h.b16 %v1796
    %v6727 = vunpack.c.l.b16 %v1797
    %v6728 = vunpack.c.h.b16 %v1797
    %v6729 = vunpack.c.l.b16 %v1798
    %v6730 = vunpack.c.h.b16 %v1798
    %v6731 = vunpack.c.l.b16 %v1799
    %v6732 = vunpack.c.h.b16 %v1799
    %v6733 = vunpack.c.l.b16 %v1800
    %v6734 = vunpack.c.h.b16 %v1800
    %v6735 = vunpack.c.l.b16 %v1801
    %v6736 = vunpack.c.h.b16 %v1801
    %v6737 = vunpack.c.l.b16 %v1802
    %v6738 = vunpack.c.h.b16 %v1802
    %v6739 = vunpack.c.l.b16 %v1803
    %v6740 = vunpack.c.h.b16 %v1803
    %v6741 = vunpack.c.l.b16 %v1804
    %v6742 = vunpack.c.h.b16 %v1804
    %v6743 = vunpack.c.l.b16 %v1805
    %v6744 = vunpack.c.h.b16 %v1805
    %v6745 = vunpack.c.l.b16 %v1806
    %v6746 = vunpack.c.h.b16 %v1806
    %v6747 = vunpack.c.l.b16 %v1807
    %v6748 = vunpack.c.h.b16 %v1807
    %v6749 = vunpack.c.l.b16 %v1808
    %v6750 = vunpack.c.h.b16 %v1808
    %v6751 = vunpack.c.l.b16 %v1809
    %v6752 = vunpack.c.h.b16 %v1809
    %v6753 = vunpack.c.l.b16 %v1810
    %v6754 = vunpack.c.h.b16 %v1810
    %v6755 = vunpack.c.l.b16 %v1811
    %v6756 = vunpack.c.h.b16 %v1811
    %v6757 = vunpack.c.l.b16 %v1812
    %v6758 = vunpack.c.h.b16 %v1812
    %v6759 = vunpack.c.l.b16 %v1813
    %v6760 = vunpack.c.h.b16 %v1813
    %v6761 = vunpack.c.l.b16 %v1814
    %v6762 = vunpack.c.h.b16 %v1814
    %v6763 = vunpack.c.l.b16 %v1815
    %v6764 = vunpack.c.h.b16 %v1815
    %v6765 = vunpack.c.l.b16 %v1816
    %v6766 = vunpack.c.h.b16 %v1816
    %v6767 = vunpack.c.l.b16 %v1817
    %v6768 = vunpack.c.h.b16 %v1817
    %v6769 = vunpack.c.l.b16 %v1818
    %v6770 = vunpack.c.h.b16 %v1818
    %v6771 = vunpack.c.l.b16 %v1819
    %v6772 = vunpack.c.h.b16 %v1819
    %v6773 = vunpack.c.l.b16 %v1820
    %v6774 = vunpack.c.h.b16 %v1820
    %v6775 = vunpack.c.l.b16 %v1821
    %v6776 = vunpack.c.h.b16 %v1821
    %v6777 = vunpack.c.l.b16 %v1822
    %v6778 = vunpack.c.h.b16 %v1822
    %v6779 = vunpack.c.l.b16 %v1823
    %v6780 = vunpack.c.h.b16 %v1823
    %v6781 = vunpack.c.l.b16 %v1824
    %v6782 = vunpack.c.h.b16 %v1824
    %v6783 = vunpack.c.l.b16 %v1825
    %v6784 = vunpack.c.h.b16 %v1825
    %v6785 = vunpack.c.l.b16 %v1826
    %v6786 = vunpack.c.h.b16 %v1826
    %v6787 = vunpack.c.l.b16 %v1827
    %v6788 = vunpack.c.h.b16 %v1827
    %v6789 = vunpack.c.l.b16 %v1828
    %v6790 = vunpack.c.h.b16 %v1828
    %v6791 = vunpack.c.l.b16 %v1829
    %v6792 = vunpack.c.h.b16 %v1829
    %v6793 = vunpack.c.l.b16 %v1830
    %v6794 = vunpack.c.h.b16 %v1830
    %v6795 = vunpack.c.l.b16 %v1831
    %v6796 = vunpack.c.h.b16 %v1831
    %v6797 = vunpack.c.l.b16 %v1832
    %v6798 = vunpack.c.h.b16 %v1832
    %v6799 = vunpack.c.l.b16 %v1833
    %v6800 = vunpack.c.h.b16 %v1833
    %v6801 = vunpack.c.l.b16 %v1834
    %v6802 = vunpack.c.h.b16 %v1834
    %v6803 = vunpack.c.l.b16 %v1835
    %v6804 = vunpack.c.h.b16 %v1835
    %v6805 = vunpack.c.l.b16 %v1836
    %v6806 = vunpack.c.h.b16 %v1836
    %v6807 = vunpack.c.l.b16 %v1837
    %v6808 = vunpack.c.h.b16 %v1837
    %v6809 = vunpack.c.l.b16 %v1838
    %v6810 = vunpack.c.h.b16 %v1838
    %v6811 = vunpack.c.l.b16 %v1839
    %v6812 = vunpack.c.h.b16 %v1839
    %v6813 = vunpack.c.l.b16 %v1840
    %v6814 = vunpack.c.h.b16 %v1840
    %v6815 = vunpack.c.l.b16 %v1841
    %v6816 = vunpack.c.h.b16 %v1841
    %v6817 = vunpack.c.l.b16 %v1842
    %v6818 = vunpack.c.h.b16 %v1842
    %v6819 = vunpack.c.l.b16 %v1843
    %v6820 = vunpack.c.h.b16 %v1843
    %v6821 = vunpack.c.l.b16 %v1844
    %v6822 = vunpack.c.h.b16 %v1844
    %v6823 = vunpack.c.l.b16 %v1845
    %v6824 = vunpack.c.h.b16 %v1845
    %v6825 = vunpack.c.l.b16 %v1846
    %v6826 = vunpack.c.h.b16 %v1846
    %v6827 = vunpack.c.l.b16 %v1847
    %v6828 = vunpack.c.h.b16 %v1847
    %v6829 = vunpack.c.l.b16 %v1848
    %v6830 = vunpack.c.h.b16 %v1848
    %v6831 = vunpack.c.l.b16 %v1849
    %v6832 = vunpack.c.h.b16 %v1849
    %v6833 = vunpack.c.l.b16 %v1850
    %v6834 = vunpack.c.h.b16 %v1850
    %v6835 = vunpack.c.l.b16 %v1851
    %v6836 = vunpack.c.h.b16 %v1851
    %v6837 = vunpack.c.l.b16 %v1852
    %v6838 = vunpack.c.h.b16 %v1852
    %v6839 = vunpack.c.l.b16 %v1853
    %v6840 = vunpack.c.h.b16 %v1853
    %v6841 = vunpack.c.l.b16 %v1854
    %v6842 = vunpack.c.h.b16 %v1854
    %v6843 = vunpack.c.l.b16 %v1855
    %v6844 = vunpack.c.h.b16 %v1855
    %v6845 = vunpack.c.l.b16 %v1856
    %v6846 = vunpack.c.h.b16 %v1856
    %v6847 = vunpack.c.l.b16 %v1857
    %v6848 = vunpack.c.h.b16 %v1857
    %v6849 = vunpack.c.l.b16 %v1858
    %v6850 = vunpack.c.h.b16 %v1858
    %v6851 = vunpack.c.l.b16 %v1859
    %v6852 = vunpack.c.h.b16 %v1859
    %v6853 = vunpack.c.l.b16 %v1860
    %v6854 = vunpack.c.h.b16 %v1860
    %v6855 = vunpack.c.l.b16 %v1861
    %v6856 = vunpack.c.h.b16 %v1861
    %v6857 = vunpack.c.l.b16 %v1862
    %v6858 = vunpack.c.h.b16 %v1862
    %v6859 = vunpack.c.l.b16 %v1863
    %v6860 = vunpack.c.h.b16 %v1863
    %v6861 = vunpack.c.l.b16 %v1864
    %v6862 = vunpack.c.h.b16 %v1864
    %v6863 = vunpack.c.l.b16 %v1865
    %v6864 = vunpack.c.h.b16 %v1865
    %v6865 = vunpack.c.l.b16 %v1866
    %v6866 = vunpack.c.h.b16 %v1866
    %v6867 = vunpack.c.l.b16 %v1867
    %v6868 = vunpack.c.h.b16 %v1867
    %v6869 = vunpack.c.l.b16 %v1868
    %v6870 = vunpack.c.h.b16 %v1868
    %v6871 = vunpack.c.l.b16 %v1869
    %v6872 = vunpack.c.h.b16 %v1869
    %v6873 = vunpack.c.l.b16 %v1870
    %v6874 = vunpack.c.h.b16 %v1870
    %v6875 = vunpack.c.l.b16 %v1871
    %v6876 = vunpack.c.h.b16 %v1871
    %v6877 = vunpack.c.l.b16 %v1872
    %v6878 = vunpack.c.h.b16 %v1872
    %v6879 = vunpack.c.l.b16 %v1873
    %v6880 = vunpack.c.h.b16 %v1873
    %v6881 = vunpack.c.l.b16 %v1874
    %v6882 = vunpack.c.h.b16 %v1874
    %v6883 = vunpack.c.l.b16 %v1875
    %v6884 = vunpack.c.h.b16 %v1875
    %v6885 = vunpack.c.l.b16 %v1876
    %v6886 = vunpack.c.h.b16 %v1876
    %v6887 = vunpack.c.l.b16 %v1877
    %v6888 = vunpack.c.h.b16 %v1877
    %v6889 = vunpack.c.l.b16 %v1878
    %v6890 = vunpack.c.h.b16 %v1878
    %v6891 = vunpack.c.l.b16 %v1879
    %v6892 = vunpack.c.h.b16 %v1879
    %v6893 = vunpack.c.l.b16 %v1880
    %v6894 = vunpack.c.h.b16 %v1880
    %v6895 = vunpack.c.l.b16 %v1881
    %v6896 = vunpack.c.h.b16 %v1881
    %v6897 = vunpack.c.l.b16 %v1882
    %v6898 = vunpack.c.h.b16 %v1882
    %v6899 = vunpack.c.l.b16 %v1883
    %v6900 = vunpack.c.h.b16 %v1883
    %v6901 = vunpack.c.l.b16 %v1884
    %v6902 = vunpack.c.h.b16 %v1884
    %v6903 = vunpack.c.l.b16 %v1885
    %v6904 = vunpack.c.h.b16 %v1885
    %v6905 = vunpack.c.l.b16 %v1886
    %v6906 = vunpack.c.h.b16 %v1886
    %v6907 = vunpack.c.l.b16 %v1887
    %v6908 = vunpack.c.h.b16 %v1887
    %v6909 = vunpack.c.l.b16 %v1888
    %v6910 = vunpack.c.h.b16 %v1888
    %v6911 = vunpack.c.l.b16 %v1889
    %v6912 = vunpack.c.h.b16 %v1889
    %v6913 = vunpack.c.l.b16 %v1890
    %v6914 = vunpack.c.h.b16 %v1890
    %v6915 = vunpack.c.l.b16 %v1891
    %v6916 = vunpack.c.h.b16 %v1891
    %v6917 = vunpack.c.l.b16 %v1892
    %v6918 = vunpack.c.h.b16 %v1892
    %v6919 = vunpack.c.l.b16 %v1893
    %v6920 = vunpack.c.h.b16 %v1893
    %v6921 = vunpack.c.l.b16 %v1894
    %v6922 = vunpack.c.h.b16 %v1894
    %v6923 = vunpack.c.l.b16 %v1895
    %v6924 = vunpack.c.h.b16 %v1895
    %v6925 = vunpack.c.l.b16 %v1896
    %v6926 = vunpack.c.h.b16 %v1896
    %v6927 = vunpack.c.l.b16 %v1897
    %v6928 = vunpack.c.h.b16 %v1897
    %v6929 = vunpack.c.l.b16 %v1898
    %v6930 = vunpack.c.h.b16 %v1898
    %v6931 = vunpack.c.l.b16 %v1899
    %v6932 = vunpack.c.h.b16 %v1899
    %v6933 = vunpack.c.l.b16 %v1900
    %v6934 = vunpack.c.h.b16 %v1900
    %v6935 = vunpack.c.l.b16 %v1901
    %v6936 = vunpack.c.h.b16 %v1901
    %v6937 = vunpack.c.l.b16 %v1902
    %v6938 = vunpack.c.h.b16 %v1902
    %v6939 = vunpack.c.l.b16 %v1903
    %v6940 = vunpack.c.h.b16 %v1903
    %v6941 = vunpack.c.l.b16 %v1904
    %v6942 = vunpack.c.h.b16 %v1904
    %v6943 = vunpack.c.l.b16 %v1905
    %v6944 = vunpack.c.h.b16 %v1905
    %v6945 = vunpack.c.l.b16 %v1906
    %v6946 = vunpack.c.h.b16 %v1906
    %v6947 = vunpack.c.l.b16 %v1907
    %v6948 = vunpack.c.h.b16 %v1907
    %v6949 = vunpack.c.l.b16 %v1908
    %v6950 = vunpack.c.h.b16 %v1908
    %v6951 = vunpack.c.l.b16 %v1909
    %v6952 = vunpack.c.h.b16 %v1909
    %v6953 = vunpack.c.l.b16 %v1910
    %v6954 = vunpack.c.h.b16 %v1910
    %v6955 = vunpack.c.l.b16 %v1911
    %v6956 = vunpack.c.h.b16 %v1911
    %v6957 = vunpack.c.l.b16 %v1912
    %v6958 = vunpack.c.h.b16 %v1912
    %v6959 = vunpack.c.l.b16 %v1913
    %v6960 = vunpack.c.h.b16 %v1913
    %v6961 = vunpack.c.l.b16 %v1914
    %v6962 = vunpack.c.h.b16 %v1914
    %v6963 = vunpack.c.l.b16 %v1915
    %v6964 = vunpack.c.h.b16 %v1915
    %v6965 = vunpack.c.l.b16 %v1916
    %v6966 = vunpack.c.h.b16 %v1916
    %v6967 = vunpack.c.l.b16 %v1917
    %v6968 = vunpack.c.h.b16 %v1917
    %v6969 = vunpack.c.l.b16 %v1918
    %v6970 = vunpack.c.h.b16 %v1918
    %v6971 = vunpack.c.l.b16 %v1919
    %v6972 = vunpack.c.h.b16 %v1919
    %v6973 = vunpack.c.l.b16 %v1920
    %v6974 = vunpack.c.h.b16 %v1920
    %v6975 = vunpack.c.l.b16 %v1921
    %v6976 = vunpack.c.h.b16 %v1921
    %v6977 = vunpack.c.l.b16 %v1922
    %v6978 = vunpack.c.h.b16 %v1922
    %v6979 = vunpack.c.l.b16 %v1923
    %v6980 = vunpack.c.h.b16 %v1923
    %v6981 = vunpack.c.l.b16 %v1924
    %v6982 = vunpack.c.h.b16 %v1924
    %v6983 = vunpack.c.l.b16 %v1925
    %v6984 = vunpack.c.h.b16 %v1925
    %v6985 = vunpack.c.l.b16 %v1926
    %v6986 = vunpack.c.h.b16 %v1926
    %v6987 = vunpack.c.l.b16 %v1927
    %v6988 = vunpack.c.h.b16 %v1927
    %v6989 = vunpack.c.l.b16 %v1928
    %v6990 = vunpack.c.h.b16 %v1928
    %v6991 = vunpack.c.l.b16 %v1929
    %v6992 = vunpack.c.h.b16 %v1929
    %v6993 = vunpack.c.l.b16 %v1930
    %v6994 = vunpack.c.h.b16 %v1930
    %v6995 = vunpack.c.l.b16 %v1931
    %v6996 = vunpack.c.h.b16 %v1931
    %v6997 = vunpack.c.l.b16 %v1932
    %v6998 = vunpack.c.h.b16 %v1932
    %v6999 = vunpack.c.l.b16 %v1933
    %v7000 = vunpack.c.h.b16 %v1933
    %v7001 = vunpack.c.l.b16 %v1934
    %v7002 = vunpack.c.h.b16 %v1934
    %v7003 = vunpack.c.l.b16 %v1935
    %v7004 = vunpack.c.h.b16 %v1935
    %v7005 = vunpack.c.l.b16 %v1936
    %v7006 = vunpack.c.h.b16 %v1936
    %v7007 = vunpack.c.l.b16 %v1937
    %v7008 = vunpack.c.h.b16 %v1937
    %v7009 = vunpack.c.l.b16 %v1938
    %v7010 = vunpack.c.h.b16 %v1938
    %v7011 = vunpack.c.l.b16 %v1939
    %v7012 = vunpack.c.h.b16 %v1939
    %v7013 = vunpack.c.l.b16 %v1940
    %v7014 = vunpack.c.h.b16 %v1940
    %v7015 = vunpack.c.l.b16 %v1941
    %v7016 = vunpack.c.h.b16 %v1941
    %v7017 = vunpack.c.l.b16 %v1942
    %v7018 = vunpack.c.h.b16 %v1942
    %v7019 = vunpack.c.l.b16 %v1943
    %v7020 = vunpack.c.h.b16 %v1943
    %v7021 = vunpack.c.l.b16 %v1944
    %v7022 = vunpack.c.h.b16 %v1944
    %v7023 = vunpack.c.l.b16 %v1945
    %v7024 = vunpack.c.h.b16 %v1945
    %v7025 = vunpack.c.l.b16 %v1946
    %v7026 = vunpack.c.h.b16 %v1946
    %v7027 = vunpack.c.l.b16 %v1947
    %v7028 = vunpack.c.h.b16 %v1947
    %v7029 = vunpack.c.l.b16 %v1948
    %v7030 = vunpack.c.h.b16 %v1948
    %v7031 = vunpack.c.l.b16 %v1949
    %v7032 = vunpack.c.h.b16 %v1949
    %v7033 = vunpack.c.l.b16 %v1950
    %v7034 = vunpack.c.h.b16 %v1950
    %v7035 = vunpack.c.l.b16 %v1951
    %v7036 = vunpack.c.h.b16 %v1951
    %v7037 = vunpack.c.l.b16 %v1952
    %v7038 = vunpack.c.h.b16 %v1952
    %v7039 = vunpack.c.l.b16 %v1953
    %v7040 = vunpack.c.h.b16 %v1953
    %v7041 = vunpack.c.l.b16 %v1954
    %v7042 = vunpack.c.h.b16 %v1954
    %v7043 = vunpack.c.l.b16 %v1955
    %v7044 = vunpack.c.h.b16 %v1955
    %v7045 = vunpack.c.l.b16 %v1956
    %v7046 = vunpack.c.h.b16 %v1956
    %v7047 = vunpack.c.l.b16 %v1957
    %v7048 = vunpack.c.h.b16 %v1957
    %v7049 = vunpack.c.l.b16 %v1958
    %v7050 = vunpack.c.h.b16 %v1958
    %v7051 = vunpack.c.l.b16 %v1959
    %v7052 = vunpack.c.h.b16 %v1959
    %v7053 = vunpack.c.l.b16 %v1960
    %v7054 = vunpack.c.h.b16 %v1960
    %v7055 = vunpack.c.l.b16 %v1961
    %v7056 = vunpack.c.h.b16 %v1961
    %v7057 = vunpack.c.l.b16 %v1962
    %v7058 = vunpack.c.h.b16 %v1962
    %v7059 = vunpack.c.l.b16 %v1963
    %v7060 = vunpack.c.h.b16 %v1963
    %v7061 = vunpack.c.l.b16 %v1964
    %v7062 = vunpack.c.h.b16 %v1964
    %v7063 = vunpack.c.l.b16 %v1965
    %v7064 = vunpack.c.h.b16 %v1965
    %v7065 = vunpack.c.l.b16 %v1966
    %v7066 = vunpack.c.h.b16 %v1966
    %v7067 = vunpack.c.l.b16 %v1967
    %v7068 = vunpack.c.h.b16 %v1967
    %v7069 = vunpack.c.l.b16 %v1968
    %v7070 = vunpack.c.h.b16 %v1968
    %v7071 = vunpack.c.l.b16 %v1969
    %v7072 = vunpack.c.h.b16 %v1969
    %v7073 = vunpack.c.l.b16 %v1970
    %v7074 = vunpack.c.h.b16 %v1970
    %v7075 = vunpack.c.l.b16 %v1971
    %v7076 = vunpack.c.h.b16 %v1971
    %v7077 = vunpack.c.l.b16 %v1972
    %v7078 = vunpack.c.h.b16 %v1972
    %v7079 = vunpack.c.l.b16 %v1973
    %v7080 = vunpack.c.h.b16 %v1973
    %v7081 = vunpack.c.l.b16 %v1974
    %v7082 = vunpack.c.h.b16 %v1974
    %v7083 = vunpack.c.l.b16 %v1975
    %v7084 = vunpack.c.h.b16 %v1975
    %v7085 = vunpack.c.l.b16 %v1976
    %v7086 = vunpack.c.h.b16 %v1976
    %v7087 = vunpack.c.l.b16 %v1977
    %v7088 = vunpack.c.h.b16 %v1977
    %v7089 = vunpack.c.l.b16 %v1978
    %v7090 = vunpack.c.h.b16 %v1978
    %v7091 = vunpack.c.l.b16 %v1979
    %v7092 = vunpack.c.h.b16 %v1979
    %v7093 = vunpack.c.l.b16 %v1980
    %v7094 = vunpack.c.h.b16 %v1980
    %v7095 = vunpack.c.l.b16 %v1981
    %v7096 = vunpack.c.h.b16 %v1981
    %v7097 = vunpack.c.l.b16 %v1982
    %v7098 = vunpack.c.h.b16 %v1982
    %v7099 = vunpack.c.l.b16 %v1983
    %v7100 = vunpack.c.h.b16 %v1983
    %v7101 = vunpack.c.l.b16 %v1984
    %v7102 = vunpack.c.h.b16 %v1984
    %v7103 = vunpack.c.l.b16 %v1985
    %v7104 = vunpack.c.h.b16 %v1985
    %v7105 = vunpack.c.l.b16 %v1986
    %v7106 = vunpack.c.h.b16 %v1986
    %v7107 = vunpack.c.l.b16 %v1987
    %v7108 = vunpack.c.h.b16 %v1987
    %v7109 = vunpack.c.l.b16 %v1988
    %v7110 = vunpack.c.h.b16 %v1988
    %v7111 = vunpack.c.l.b16 %v1989
    %v7112 = vunpack.c.h.b16 %v1989
    %v7113 = vunpack.c.l.b16 %v1990
    %v7114 = vunpack.c.h.b16 %v1990
    %v7115 = vunpack.c.l.b16 %v1991
    %v7116 = vunpack.c.h.b16 %v1991
    %v7117 = vunpack.c.l.b16 %v1992
    %v7118 = vunpack.c.h.b16 %v1992
    %v7119 = vunpack.c.l.b16 %v1993
    %v7120 = vunpack.c.h.b16 %v1993
    %v7121 = vunpack.c.l.b16 %v1994
    %v7122 = vunpack.c.h.b16 %v1994
    %v7123 = vunpack.c.l.b16 %v1995
    %v7124 = vunpack.c.h.b16 %v1995
    %v7125 = vunpack.c.l.b16 %v1996
    %v7126 = vunpack.c.h.b16 %v1996
    %v7127 = vunpack.c.l.b16 %v1997
    %v7128 = vunpack.c.h.b16 %v1997
    %v7129 = vunpack.c.l.b16 %v1998
    %v7130 = vunpack.c.h.b16 %v1998
    %v7131 = vunpack.c.l.b16 %v1999
    %v7132 = vunpack.c.h.b16 %v1999
    %v7133 = vunpack.c.l.b16 %v2000
    %v7134 = vunpack.c.h.b16 %v2000
    %v7135 = vunpack.c.l.b16 %v2001
    %v7136 = vunpack.c.h.b16 %v2001
    %v7137 = vunpack.c.l.b16 %v2002
    %v7138 = vunpack.c.h.b16 %v2002
    %v7139 = vunpack.c.l.b16 %v2003
    %v7140 = vunpack.c.h.b16 %v2003
    %v7141 = vunpack.c.l.b16 %v2004
    %v7142 = vunpack.c.h.b16 %v2004
    %v7143 = vunpack.c.l.b16 %v2005
    %v7144 = vunpack.c.h.b16 %v2005
    %v7145 = vunpack.c.l.b16 %v2006
    %v7146 = vunpack.c.h.b16 %v2006
    %v7147 = vunpack.c.l.b16 %v2007
    %v7148 = vunpack.c.h.b16 %v2007
    %v7149 = vunpack.c.l.b16 %v2008
    %v7150 = vunpack.c.h.b16 %v2008
    %v7151 = vunpack.c.l.b16 %v2009
    %v7152 = vunpack.c.h.b16 %v2009
    %v7153 = vunpack.c.l.b16 %v2010
    %v7154 = vunpack.c.h.b16 %v2010
    %v7155 = vunpack.c.l.b16 %v2011
    %v7156 = vunpack.c.h.b16 %v2011
    %v7157 = vunpack.c.l.b16 %v2012
    %v7158 = vunpack.c.h.b16 %v2012
    %v7159 = vunpack.c.l.b16 %v2013
    %v7160 = vunpack.c.h.b16 %v2013
    %v7161 = vunpack.c.l.b16 %v2014
    %v7162 = vunpack.c.h.b16 %v2014
    %v7163 = vunpack.c.l.b16 %v2015
    %v7164 = vunpack.c.h.b16 %v2015
    %v7165 = vunpack.c.l.b16 %v2016
    %v7166 = vunpack.c.h.b16 %v2016
    %v7167 = vunpack.c.l.b16 %v2017
    %v7168 = vunpack.c.h.b16 %v2017
    %v7169 = vunpack.c.l.b16 %v2018
    %v7170 = vunpack.c.h.b16 %v2018
    %v7171 = vunpack.c.l.b16 %v2019
    %v7172 = vunpack.c.h.b16 %v2019
    %v7173 = vunpack.c.l.b16 %v2020
    %v7174 = vunpack.c.h.b16 %v2020
    %v7175 = vunpack.c.l.b16 %v2021
    %v7176 = vunpack.c.h.b16 %v2021
    %v7177 = vunpack.c.l.b16 %v2022
    %v7178 = vunpack.c.h.b16 %v2022
    %v7179 = vunpack.c.l.b16 %v2023
    %v7180 = vunpack.c.h.b16 %v2023
    %v7181 = vunpack.c.l.b16 %v2024
    %v7182 = vunpack.c.h.b16 %v2024
    %v7183 = vunpack.c.l.b16 %v2025
    %v7184 = vunpack.c.h.b16 %v2025
    %v7185 = vunpack.c.l.b16 %v2026
    %v7186 = vunpack.c.h.b16 %v2026
    %v7187 = vunpack.c.l.b16 %v2027
    %v7188 = vunpack.c.h.b16 %v2027
    %v7189 = vunpack.c.l.b16 %v2028
    %v7190 = vunpack.c.h.b16 %v2028
    %v7191 = vunpack.c.l.b16 %v2029
    %v7192 = vunpack.c.h.b16 %v2029
    %v7193 = vunpack.c.l.b16 %v2030
    %v7194 = vunpack.c.h.b16 %v2030
    %v7195 = vunpack.c.l.b16 %v2031
    %v7196 = vunpack.c.h.b16 %v2031
    %v7197 = vunpack.c.l.b16 %v2032
    %v7198 = vunpack.c.h.b16 %v2032
    %v7199 = vunpack.c.l.b16 %v2033
    %v7200 = vunpack.c.h.b16 %v2033
    %v7201 = vunpack.c.l.b16 %v2034
    %v7202 = vunpack.c.h.b16 %v2034
    %v7203 = vunpack.c.l.b16 %v2035
    %v7204 = vunpack.c.h.b16 %v2035
    %v7205 = vunpack.c.l.b16 %v2036
    %v7206 = vunpack.c.h.b16 %v2036
    %v7207 = vunpack.c.l.b16 %v2037
    %v7208 = vunpack.c.h.b16 %v2037
    %v7209 = vunpack.c.l.b16 %v2038
    %v7210 = vunpack.c.h.b16 %v2038
    %v7211 = vunpack.c.l.b16 %v2039
    %v7212 = vunpack.c.h.b16 %v2039
    %v7213 = vunpack.c.l.b16 %v2040
    %v7214 = vunpack.c.h.b16 %v2040
    %v7215 = vunpack.c.l.b16 %v2041
    %v7216 = vunpack.c.h.b16 %v2041
    %v7217 = vunpack.c.l.b16 %v2042
    %v7218 = vunpack.c.h.b16 %v2042
    %v7219 = vunpack.c.l.b16 %v2043
    %v7220 = vunpack.c.h.b16 %v2043
    %v7221 = vunpack.c.l.b16 %v2044
    %v7222 = vunpack.c.h.b16 %v2044
    %v7223 = vunpack.c.l.b16 %v2045
    %v7224 = vunpack.c.h.b16 %v2045
    %v7225 = vunpack.c.l.b16 %v2046
    %v7226 = vunpack.c.h.b16 %v2046
    %v7227 = vunpack.c.l.b16 %v2047
    %v7228 = vunpack.c.h.b16 %v2047
    %v7229 = vunpack.c.l.b16 %v2048
    %v7230 = vunpack.c.h.b16 %v2048
    %v7231 = vunpack.c.l.b16 %v2049
    %v7232 = vunpack.c.h.b16 %v2049
    %v7233 = vunpack.c.l.b16 %v2050
    %v7234 = vunpack.c.h.b16 %v2050
    %v7235 = vunpack.c.l.b16 %v2051
    %v7236 = vunpack.c.h.b16 %v2051
    %v7237 = vunpack.c.l.b16 %v2052
    %v7238 = vunpack.c.h.b16 %v2052
    %v7239 = vunpack.c.l.b16 %v2053
    %v7240 = vunpack.c.h.b16 %v2053
    %v7241 = vunpack.c.l.b16 %v2054
    %v7242 = vunpack.c.h.b16 %v2054
    %v7243 = vunpack.c.l.b16 %v2055
    %v7244 = vunpack.c.h.b16 %v2055
    %v7245 = vunpack.c.l.b16 %v2056
    %v7246 = vunpack.c.h.b16 %v2056
    %v7247 = vunpack.c.l.b16 %v2057
    %v7248 = vunpack.c.h.b16 %v2057
    %v7249 = vunpack.c.l.b16 %v2058
    %v7250 = vunpack.c.h.b16 %v2058
    %v7251 = vunpack.c.l.b16 %v2059
    %v7252 = vunpack.c.h.b16 %v2059
    %v7253 = vunpack.c.l.b16 %v2060
    %v7254 = vunpack.c.h.b16 %v2060
    %v7255 = vunpack.c.l.b16 %v2061
    %v7256 = vunpack.c.h.b16 %v2061
    %v7257 = vunpack.c.l.b16 %v2062
    %v7258 = vunpack.c.h.b16 %v2062
    %v7259 = vpack.c.b16 %v3805, %v3803
    %v7260 = vpack.c.b16 %v3806, %v3804
    %v7261 = vpack.c.b16 %v3809, %v3807
    %v7262 = vpack.c.b16 %v3810, %v3808
    %v7263 = vpack.c.b16 %v3813, %v3811
    %v7264 = vpack.c.b16 %v3814, %v3812
    %v7265 = vpack.c.b16 %v3817, %v3815
    %v7266 = vpack.c.b16 %v3818, %v3816
    %v7267 = vpack.c.b16 %v3821, %v3819
    %v7268 = vpack.c.b16 %v3822, %v3820
    %v7269 = vpack.c.b16 %v3825, %v3823
    %v7270 = vpack.c.b16 %v3826, %v3824
    %v7271 = vpack.c.b16 %v3829, %v3827
    %v7272 = vpack.c.b16 %v3830, %v3828
    %v7273 = vpack.c.b16 %v3833, %v3831
    %v7274 = vpack.c.b16 %v3834, %v3832
    %v7275 = vpack.c.b16 %v3837, %v3835
    %v7276 = vpack.c.b16 %v3838, %v3836
    %v7277 = vpack.c.b16 %v3841, %v3839
    %v7278 = vpack.c.b16 %v3842, %v3840
    %v7279 = vpack.c.b16 %v3845, %v3843
    %v7280 = vpack.c.b16 %v3846, %v3844
    %v7281 = vpack.c.b16 %v3849, %v3847
    %v7282 = vpack.c.b16 %v3850, %v3848
    %v7283 = vpack.c.b16 %v3853, %v3851
    %v7284 = vpack.c.b16 %v3854, %v3852
    %v7285 = vpack.c.b16 %v3857, %v3855
    %v7286 = vpack.c.b16 %v3858, %v3856
    %v7287 = vpack.c.b16 %v3861, %v3859
    %v7288 = vpack.c.b16 %v3862, %v3860
    %v7289 = vpack.c.b16 %v3865, %v3863
    %v7290 = vpack.c.b16 %v3866, %v3864
    %v7291 = vpack.c.b16 %v3869, %v3867
    %v7292 = vpack.c.b16 %v3870, %v3868
    %v7293 = vpack.c.b16 %v3873, %v3871
    %v7294 = vpack.c.b16 %v3874, %v3872
    %v7295 = vpack.c.b16 %v3877, %v3875
    %v7296 = vpack.c.b16 %v3878, %v3876
    %v7297 = vpack.c.b16 %v3881, %v3879
    %v7298 = vpack.c.b16 %v3882, %v3880
    %v7299 = vpack.c.b16 %v3885, %v3883
    %v7300 = vpack.c.b16 %v3886, %v3884
    %v7301 = vpack.c.b16 %v3889, %v3887
    %v7302 = vpack.c.b16 %v3890, %v3888
    %v7303 = vpack.c.b16 %v3893, %v3891
    %v7304 = vpack.c.b16 %v3894, %v3892
    %v7305 = vpack.c.b16 %v3897, %v3895
    %v7306 = vpack.c.b16 %v3898, %v3896
    %v7307 = vpack.c.b16 %v3901, %v3899
    %v7308 = vpack.c.b16 %v3902, %v3900
    %v7309 = vpack.c.b16 %v3905, %v3903
    %v7310 = vpack.c.b16 %v3906, %v3904
    %v7311 = vpack.c.b16 %v3909, %v3907
    %v7312 = vpack.c.b16 %v3910, %v3908
    %v7313 = vpack.c.b16 %v3913, %v3911
    %v7314 = vpack.c.b16 %v3914, %v3912
    %v7315 = vpack.c.b16 %v3917, %v3915
    %v7316 = vpack.c.b16 %v3918, %v3916
    %v7317 = vpack.c.b16 %v3921, %v3919
    %v7318 = vpack.c.b16 %v3922, %v3920
    %v7319 = vpack.c.b16 %v3925, %v3923
    %v7320 = vpack.c.b16 %v3926, %v3924
    %v7321 = vpack.c.b16 %v3929, %v3927
    %v7322 = vpack.c.b16 %v3930, %v3928
    %v7323 = vpack.c.b16 %v3933, %v3931
    %v7324 = vpack.c.b16 %v3934, %v3932
    %v7325 = vpack.c.b16 %v3937, %v3935
    %v7326 = vpack.c.b16 %v3938, %v3936
    %v7327 = vpack.c.b16 %v3941, %v3939
    %v7328 = vpack.c.b16 %v3942, %v3940
    %v7329 = vpack.c.b16 %v3945, %v3943
    %v7330 = vpack.c.b16 %v3946, %v3944
    %v7331 = vpack.c.b16 %v3949, %v3947
    %v7332 = vpack.c.b16 %v3950, %v3948
    %v7333 = vpack.c.b16 %v3953, %v3951
    %v7334 = vpack.c.b16 %v3954, %v3952
    %v7335 = vpack.c.b16 %v3957, %v3955
    %v7336 = vpack.c.b16 %v3958, %v3956
    %v7337 = vpack.c.b16 %v3961, %v3959
    %v7338 = vpack.c.b16 %v3962, %v3960
    %v7339 = vpack.c.b16 %v3965, %v3963
    %v7340 = vpack.c.b16 %v3966, %v3964
    %v7341 = vpack.c.b16 %v3969, %v3967
    %v7342 = vpack.c.b16 %v3970, %v3968
    %v7343 = vpack.c.b16 %v3973, %v3971
    %v7344 = vpack.c.b16 %v3974, %v3972
    %v7345 = vpack.c.b16 %v3977, %v3975
    %v7346 = vpack.c.b16 %v3978, %v3976
    %v7347 = vpack.c.b16 %v3981, %v3979
    %v7348 = vpack.c.b16 %v3982, %v3980
    %v7349 = vpack.c.b16 %v3985, %v3983
    %v7350 = vpack.c.b16 %v3986, %v3984
    %v7351 = vpack.c.b16 %v3989, %v3987
    %v7352 = vpack.c.b16 %v3990, %v3988
    %v7353 = vpack.c.b16 %v3993, %v3991
    %v7354 = vpack.c.b16 %v3994, %v3992
    %v7355 = vpack.c.b16 %v3997, %v3995
    %v7356 = vpack.c.b16 %v3998, %v3996
    %v7357 = vpack.c.b16 %v4001, %v3999
    %v7358 = vpack.c.b16 %v4002, %v4000
    %v7359 = vpack.c.b16 %v4005, %v4003
    %v7360 = vpack.c.b16 %v4006, %v4004
    %v7361 = vpack.c.b16 %v4009, %v4007
    %v7362 = vpack.c.b16 %v4010, %v4008
    %v7363 = vpack.c.b16 %v4013, %v4011
    %v7364 = vpack.c.b16 %v4014, %v4012
    %v7365 = vpack.c.b16 %v4017, %v4015
    %v7366 = vpack.c.b16 %v4018, %v4016
    %v7367 = vpack.c.b16 %v4021, %v4019
    %v7368 = vpack.c.b16 %v4022, %v4020
    %v7369 = vpack.c.b16 %v4025, %v4023
    %v7370 = vpack.c.b16 %v4026, %v4024
    %v7371 = vpack.c.b16 %v4029, %v4027
    %v7372 = vpack.c.b16 %v4030, %v4028
    %v7373 = vpack.c.b16 %v4033, %v4031
    %v7374 = vpack.c.b16 %v4034, %v4032
    %v7375 = vpack.c.b16 %v4037, %v4035
    %v7376 = vpack.c.b16 %v4038, %v4036
    %v7377 = vpack.c.b16 %v4041, %v4039
    %v7378 = vpack.c.b16 %v4042, %v4040
    %v7379 = vpack.c.b16 %v4045, %v4043
    %v7380 = vpack.c.b16 %v4046, %v4044
    %v7381 = vpack.c.b16 %v4049, %v4047
    %v7382 = vpack.c.b16 %v4050, %v4048
    %v7383 = vpack.c.b16 %v4053, %v4051
    %v7384 = vpack.c.b16 %v4054, %v4052
    %v7385 = vpack.c.b16 %v4057, %v4055
    %v7386 = vpack.c.b16 %v4058, %v4056
    %v7387 = vpack.c.b16 %v4061, %v4059
    %v7388 = vpack.c.b16 %v4062, %v4060
    %v7389 = vpack.c.b16 %v4065, %v4063
    %v7390 = vpack.c.b16 %v4066, %v4064
    %v7391 = vpack.c.b16 %v4069, %v4067
    %v7392 = vpack.c.b16 %v4070, %v4068
    %v7393 = vpack.c.b16 %v4073, %v4071
    %v7394 = vpack.c.b16 %v4074, %v4072
    %v7395 = vpack.c.b16 %v4077, %v4075
    %v7396 = vpack.c.b16 %v4078, %v4076
    %v7397 = vpack.c.b16 %v4081, %v4079
    %v7398 = vpack.c.b16 %v4082, %v4080
    %v7399 = vpack.c.b16 %v4085, %v4083
    %v7400 = vpack.c.b16 %v4086, %v4084
    %v7401 = vpack.c.b16 %v4089, %v4087
    %v7402 = vpack.c.b16 %v4090, %v4088
    %v7403 = vpack.c.b16 %v4093, %v4091
    %v7404 = vpack.c.b16 %v4094, %v4092
    %v7405 = vpack.c.b16 %v4097, %v4095
    %v7406 = vpack.c.b16 %v4098, %v4096
    %v7407 = vpack.c.b16 %v4101, %v4099
    %v7408 = vpack.c.b16 %v4102, %v4100
    %v7409 = vpack.c.b16 %v4105, %v4103
    %v7410 = vpack.c.b16 %v4106, %v4104
    %v7411 = vpack.c.b16 %v4109, %v4107
    %v7412 = vpack.c.b16 %v4110, %v4108
    %v7413 = vpack.c.b16 %v4113, %v4111
    %v7414 = vpack.c.b16 %v4114, %v4112
    %v7415 = vpack.c.b16 %v4117, %v4115
    %v7416 = vpack.c.b16 %v4118, %v4116
    %v7417 = vpack.c.b16 %v4121, %v4119
    %v7418 = vpack.c.b16 %v4122, %v4120
    %v7419 = vpack.c.b16 %v4125, %v4123
    %v7420 = vpack.c.b16 %v4126, %v4124
    %v7421 = vpack.c.b16 %v4129, %v4127
    %v7422 = vpack.c.b16 %v4130, %v4128
    %v7423 = vpack.c.b16 %v4133, %v4131
    %v7424 = vpack.c.b16 %v4134, %v4132
    %v7425 = vpack.c.b16 %v4137, %v4135
    %v7426 = vpack.c.b16 %v4138, %v4136
    %v7427 = vpack.c.b16 %v4141, %v4139
    %v7428 = vpack.c.b16 %v4142, %v4140
    %v7429 = vpack.c.b16 %v4145, %v4143
    %v7430 = vpack.c.b16 %v4146, %v4144
    %v7431 = vpack.c.b16 %v4149, %v4147
    %v7432 = vpack.c.b16 %v4150, %v4148
    %v7433 = vpack.c.b16 %v4153, %v4151
    %v7434 = vpack.c.b16 %v4154, %v4152
    %v7435 = vpack.c.b16 %v4157, %v4155
    %v7436 = vpack.c.b16 %v4158, %v4156
    %v7437 = vpack.c.b16 %v4161, %v4159
    %v7438 = vpack.c.b16 %v4162, %v4160
    %v7439 = vpack.c.b16 %v4165, %v4163
    %v7440 = vpack.c.b16 %v4166, %v4164
    %v7441 = vpack.c.b16 %v4169, %v4167
    %v7442 = vpack.c.b16 %v4170, %v4168
    %v7443 = vpack.c.b16 %v4173, %v4171
    %v7444 = vpack.c.b16 %v4174, %v4172
    %v7445 = vpack.c.b16 %v4177, %v4175
    %v7446 = vpack.c.b16 %v4178, %v4176
    %v7447 = vpack.c.b16 %v4181, %v4179
    %v7448 = vpack.c.b16 %v4182, %v4180
    %v7449 = vpack.c.b16 %v4185, %v4183
    %v7450 = vpack.c.b16 %v4186, %v4184
    %v7451 = vpack.c.b16 %v4189, %v4187
    %v7452 = vpack.c.b16 %v4190, %v4188
    %v7453 = vpack.c.b16 %v4193, %v4191
    %v7454 = vpack.c.b16 %v4194, %v4192
    %v7455 = vpack.c.b16 %v4197, %v4195
    %v7456 = vpack.c.b16 %v4198, %v4196
    %v7457 = vpack.c.b16 %v4201, %v4199
    %v7458 = vpack.c.b16 %v4202, %v4200
    %v7459 = vpack.c.b16 %v4205, %v4203
    %v7460 = vpack.c.b16 %v4206, %v4204
    %v7461 = vpack.c.b16 %v4209, %v4207
    %v7462 = vpack.c.b16 %v4210, %v4208
    %v7463 = vpack.c.b16 %v4213, %v4211
    %v7464 = vpack.c.b16 %v4214, %v4212
    %v7465 = vpack.c.b16 %v4217, %v4215
    %v7466 = vpack.c.b16 %v4218, %v4216
    %v7467 = vpack.c.b16 %v4221, %v4219
    %v7468 = vpack.c.b16 %v4222, %v4220
    %v7469 = vpack.c.b16 %v4225, %v4223
    %v7470 = vpack.c.b16 %v4226, %v4224
    %v7471 = vpack.c.b16 %v4229, %v4227
    %v7472 = vpack.c.b16 %v4230, %v4228
    %v7473 = vpack.c.b16 %v4233, %v4231
    %v7474 = vpack.c.b16 %v4234, %v4232
    %v7475 = vpack.c.b16 %v4237, %v4235
    %v7476 = vpack.c.b16 %v4238, %v4236
    %v7477 = vpack.c.b16 %v4241, %v4239
    %v7478 = vpack.c.b16 %v4242, %v4240
    %v7479 = vpack.c.b16 %v4245, %v4243
    %v7480 = vpack.c.b16 %v4246, %v4244
    %v7481 = vpack.c.b16 %v4249, %v4247
    %v7482 = vpack.c.b16 %v4250, %v4248
    %v7483 = vpack.c.b16 %v4253, %v4251
    %v7484 = vpack.c.b16 %v4254, %v4252
    %v7485 = vpack.c.b16 %v4257, %v4255
    %v7486 = vpack.c.b16 %v4258, %v4256
    %v7487 = vpack.c.b16 %v4261, %v4259
    %v7488 = vpack.c.b16 %v4262, %v4260
    %v7489 = vpack.c.b16 %v4265, %v4263
    %v7490 = vpack.c.b16 %v4266, %v4264
    %v7491 = vpack.c.b16 %v4269, %v4267
    %v7492 = vpack.c.b16 %v4270, %v4268
    %v7493 = vpack.c.b16 %v4273, %v4271
    %v7494 = vpack.c.b16 %v4274, %v4272
    %v7495 = vpack.c.b16 %v4277, %v4275
    %v7496 = vpack.c.b16 %v4278, %v4276
    %v7497 = vpack.c.b16 %v4281, %v4279
    %v7498 = vpack.c.b16 %v4282, %v4280
    %v7499 = vpack.c.b16 %v4285, %v4283
    %v7500 = vpack.c.b16 %v4286, %v4284
    %v7501 = vpack.c.b16 %v4289, %v4287
    %v7502 = vpack.c.b16 %v4290, %v4288
    %v7503 = vpack.c.b16 %v4293, %v4291
    %v7504 = vpack.c.b16 %v4294, %v4292
    %v7505 = vpack.c.b16 %v4297, %v4295
    %v7506 = vpack.c.b16 %v4298, %v4296
    %v7507 = vpack.c.b16 %v4301, %v4299
    %v7508 = vpack.c.b16 %v4302, %v4300
    %v7509 = vpack.c.b16 %v4305, %v4303
    %v7510 = vpack.c.b16 %v4306, %v4304
    %v7511 = vpack.c.b16 %v4309, %v4307
    %v7512 = vpack.c.b16 %v4310, %v4308
    %v7513 = vpack.c.b16 %v4313, %v4311
    %v7514 = vpack.c.b16 %v4314, %v4312
    %v7515 = vpack.c.b16 %v4317, %v4315
    %v7516 = vpack.c.b16 %v4318, %v4316
    %v7517 = vpack.c.b16 %v4321, %v4319
    %v7518 = vpack.c.b16 %v4322, %v4320
    %v7519 = vpack.c.b16 %v4325, %v4323
    %v7520 = vpack.c.b16 %v4326, %v4324
    %v7521 = vpack.c.b16 %v4329, %v4327
    %v7522 = vpack.c.b16 %v4330, %v4328
    %v7523 = vpack.c.b16 %v4333, %v4331
    %v7524 = vpack.c.b16 %v4334, %v4332
    %v7525 = vpack.c.b16 %v4337, %v4335
    %v7526 = vpack.c.b16 %v4338, %v4336
    %v7527 = vpack.c.b16 %v4341, %v4339
    %v7528 = vpack.c.b16 %v4342, %v4340
    %v7529 = vpack.c.b16 %v4345, %v4343
    %v7530 = vpack.c.b16 %v4346, %v4344
    %v7531 = vpack.c.b16 %v4349, %v4347
    %v7532 = vpack.c.b16 %v4350, %v4348
    %v7533 = vpack.c.b16 %v4353, %v4351
    %v7534 = vpack.c.b16 %v4354, %v4352
    %v7535 = vpack.c.b16 %v4357, %v4355
    %v7536 = vpack.c.b16 %v4358, %v4356
    %v7537 = vpack.c.b16 %v4361, %v4359
    %v7538 = vpack.c.b16 %v4362, %v4360
    %v7539 = vpack.c.b16 %v4365, %v4363
    %v7540 = vpack.c.b16 %v4366, %v4364
    %v7541 = vpack.c.b16 %v4369, %v4367
    %v7542 = vpack.c.b16 %v4370, %v4368
    %v7543 = vpack.c.b16 %v4373, %v4371
    %v7544 = vpack.c.b16 %v4374, %v4372
    %v7545 = vpack.c.b16 %v4377, %v4375
    %v7546 = vpack.c.b16 %v4378, %v4376
    %v7547 = vpack.c.b16 %v4381, %v4379
    %v7548 = vpack.c.b16 %v4382, %v4380
    %v7549 = vpack.c.b16 %v4385, %v4383
    %v7550 = vpack.c.b16 %v4386, %v4384
    %v7551 = vpack.c.b16 %v4389, %v4387
    %v7552 = vpack.c.b16 %v4390, %v4388
    %v7553 = vpack.c.b16 %v4393, %v4391
    %v7554 = vpack.c.b16 %v4394, %v4392
    %v7555 = vpack.c.b16 %v4397, %v4395
    %v7556 = vpack.c.b16 %v4398, %v4396
    %v7557 = vpack.c.b16 %v4401, %v4399
    %v7558 = vpack.c.b16 %v4402, %v4400
    %v7559 = vpack.c.b16 %v4405, %v4403
    %v7560 = vpack.c.b16 %v4406, %v4404
    %v7561 = vpack.c.b16 %v4409, %v4407
    %v7562 = vpack.c.b16 %v4410, %v4408
    %v7563 = vpack.c.b16 %v4413, %v4411
    %v7564 = vpack.c.b16 %v4414, %v4412
    %v7565 = vpack.c.b16 %v4417, %v4415
    %v7566 = vpack.c.b16 %v4418, %v4416
    %v7567 = vpack.c.b16 %v4421, %v4419
    %v7568 = vpack.c.b16 %v4422, %v4420
    %v7569 = vpack.c.b16 %v4425, %v4423
    %v7570 = vpack.c.b16 %v4426, %v4424
    %v7571 = vpack.c.b16 %v4429, %v4427
    %v7572 = vpack.c.b16 %v4430, %v4428
    %v7573 = vpack.c.b16 %v4433, %v4431
    %v7574 = vpack.c.b16 %v4434, %v4432
    %v7575 = vpack.c.b16 %v4437, %v4435
    %v7576 = vpack.c.b16 %v4438, %v4436
    %v7577 = vpack.c.b16 %v4441, %v4439
    %v7578 = vpack.c.b16 %v4442, %v4440
    %v7579 = vpack.c.b16 %v4445, %v4443
    %v7580 = vpack.c.b16 %v4446, %v4444
    %v7581 = vpack.c.b16 %v4449, %v4447
    %v7582 = vpack.c.b16 %v4450, %v4448
    %v7583 = vpack.c.b16 %v4453, %v4451
    %v7584 = vpack.c.b16 %v4454, %v4452
    %v7585 = vpack.c.b16 %v4457, %v4455
    %v7586 = vpack.c.b16 %v4458, %v4456
    %v7587 = vpack.c.b16 %v4461, %v4459
    %v7588 = vpack.c.b16 %v4462, %v4460
    %v7589 = vpack.c.b16 %v4465, %v4463
    %v7590 = vpack.c.b16 %v4466, %v4464
    %v7591 = vpack.c.b16 %v4469, %v4467
    %v7592 = vpack.c.b16 %v4470, %v4468
    %v7593 = vpack.c.b16 %v4473, %v4471
    %v7594 = vpack.c.b16 %v4474, %v4472
    %v7595 = vpack.c.b16 %v4477, %v4475
    %v7596 = vpack.c.b16 %v4478, %v4476
    %v7597 = vpack.c.b16 %v4481, %v4479
    %v7598 = vpack.c.b16 %v4482, %v4480
    %v7599 = vpack.c.b16 %v4485, %v4483
    %v7600 = vpack.c.b16 %v4486, %v4484
    %v7601 = vpack.c.b16 %v4489, %v4487
    %v7602 = vpack.c.b16 %v4490, %v4488
    %v7603 = vpack.c.b16 %v4493, %v4491
    %v7604 = vpack.c.b16 %v4494, %v4492
    %v7605 = vpack.c.b16 %v4497, %v4495
    %v7606 = vpack.c.b16 %v4498, %v4496
    %v7607 = vpack.c.b16 %v4501, %v4499
    %v7608 = vpack.c.b16 %v4502, %v4500
    %v7609 = vpack.c.b16 %v4505, %v4503
    %v7610 = vpack.c.b16 %v4506, %v4504
    %v7611 = vpack.c.b16 %v4509, %v4507
    %v7612 = vpack.c.b16 %v4510, %v4508
    %v7613 = vpack.c.b16 %v4513, %v4511
    %v7614 = vpack.c.b16 %v4514, %v4512
    %v7615 = vpack.c.b16 %v4517, %v4515
    %v7616 = vpack.c.b16 %v4518, %v4516
    %v7617 = vpack.c.b16 %v4521, %v4519
    %v7618 = vpack.c.b16 %v4522, %v4520
    %v7619 = vpack.c.b16 %v4525, %v4523
    %v7620 = vpack.c.b16 %v4526, %v4524
    %v7621 = vpack.c.b16 %v4529, %v4527
    %v7622 = vpack.c.b16 %v4530, %v4528
    %v7623 = vpack.c.b16 %v4533, %v4531
    %v7624 = vpack.c.b16 %v4534, %v4532
    %v7625 = vpack.c.b16 %v4537, %v4535
    %v7626 = vpack.c.b16 %v4538, %v4536
    %v7627 = vpack.c.b16 %v4541, %v4539
    %v7628 = vpack.c.b16 %v4542, %v4540
    %v7629 = vpack.c.b16 %v4545, %v4543
    %v7630 = vpack.c.b16 %v4546, %v4544
    %v7631 = vpack.c.b16 %v4549, %v4547
    %v7632 = vpack.c.b16 %v4550, %v4548
    %v7633 = vpack.c.b16 %v4553, %v4551
    %v7634 = vpack.c.b16 %v4554, %v4552
    %v7635 = vpack.c.b16 %v4557, %v4555
    %v7636 = vpack.c.b16 %v4558, %v4556
    %v7637 = vpack.c.b16 %v4561, %v4559
    %v7638 = vpack.c.b16 %v4562, %v4560
    %v7639 = vpack.c.b16 %v4565, %v4563
    %v7640 = vpack.c.b16 %v4566, %v4564
    %v7641 = vpack.c.b16 %v4569, %v4567
    %v7642 = vpack.c.b16 %v4570, %v4568
    %v7643 = vpack.c.b16 %v4573, %v4571
    %v7644 = vpack.c.b16 %v4574, %v4572
    %v7645 = vpack.c.b16 %v4577, %v4575
    %v7646 = vpack.c.b16 %v4578, %v4576
    %v7647 = vpack.c.b16 %v4581, %v4579
    %v7648 = vpack.c.b16 %v4582, %v4580
    %v7649 = vpack.c.b16 %v4585, %v4583
    %v7650 = vpack.c.b16 %v4586, %v4584
    %v7651 = vpack.c.b16 %v4589, %v4587
    %v7652 = vpack.c.b16 %v4590, %v4588
    %v7653 = vpack.c.b16 %v4593, %v4591
    %v7654 = vpack.c.b16 %v4594, %v4592
    %v7655 = vpack.c.b16 %v4597, %v4595
    %v7656 = vpack.c.b16 %v4598, %v4596
    %v7657 = vpack.c.b16 %v4601, %v4599
    %v7658 = vpack.c.b16 %v4602, %v4600
    %v7659 = vpack.c.b16 %v4605, %v4603
    %v7660 = vpack.c.b16 %v4606, %v4604
    %v7661 = vpack.c.b16 %v4609, %v4607
    %v7662 = vpack.c.b16 %v4610, %v4608
    %v7663 = vpack.c.b16 %v4613, %v4611
    %v7664 = vpack.c.b16 %v4614, %v4612
    %v7665 = vpack.c.b16 %v4617, %v4615
    %v7666 = vpack.c.b16 %v4618, %v4616
    %v7667 = vpack.c.b16 %v4621, %v4619
    %v7668 = vpack.c.b16 %v4622, %v4620
    %v7669 = vpack.c.b16 %v4625, %v4623
    %v7670 = vpack.c.b16 %v4626, %v4624
    %v7671 = vpack.c.b16 %v4629, %v4627
    %v7672 = vpack.c.b16 %v4630, %v4628
    %v7673 = vpack.c.b16 %v4633, %v4631
    %v7674 = vpack.c.b16 %v4634, %v4632
    %v7675 = vpack.c.b16 %v4637, %v4635
    %v7676 = vpack.c.b16 %v4638, %v4636
    %v7677 = vpack.c.b16 %v4641, %v4639
    %v7678 = vpack.c.b16 %v4642, %v4640
    %v7679 = vpack.c.b16 %v4645, %v4643
    %v7680 = vpack.c.b16 %v4646, %v4644
    %v7681 = vpack.c.b16 %v4649, %v4647
    %v7682 = vpack.c.b16 %v4650, %v4648
    %v7683 = vpack.c.b16 %v4653, %v4651
    %v7684 = vpack.c.b16 %v4654, %v4652
    %v7685 = vpack.c.b16 %v4657, %v4655
    %v7686 = vpack.c.b16 %v4658, %v4656
    %v7687 = vpack.c.b16 %v4661, %v4659
    %v7688 = vpack.c.b16 %v4662, %v4660
    %v7689 = vpack.c.b16 %v4665, %v4663
    %v7690 = vpack.c.b16 %v4666, %v4664
    %v7691 = vpack.c.b16 %v4669, %v4667
    %v7692 = vpack.c.b16 %v4670, %v4668
    %v7693 = vpack.c.b16 %v4673, %v4671
    %v7694 = vpack.c.b16 %v4674, %v4672
    %v7695 = vpack.c.b16 %v4677, %v4675
    %v7696 = vpack.c.b16 %v4678, %v4676
    %v7697 = vpack.c.b16 %v4681, %v4679
    %v7698 = vpack.c.b16 %v4682, %v4680
    %v7699 = vpack.c.b16 %v4685, %v4683
    %v7700 = vpack.c.b16 %v4686, %v4684
    %v7701 = vpack.c.b16 %v4689, %v4687
    %v7702 = vpack.c.b16 %v4690, %v4688
    %v7703 = vpack.c.b16 %v4693, %v4691
    %v7704 = vpack.c.b16 %v4694, %v4692
    %v7705 = vpack.c.b16 %v4697, %v4695
    %v7706 = vpack.c.b16 %v4698, %v4696
    %v7707 = vpack.c.b16 %v4701, %v4699
    %v7708 = vpack.c.b16 %v4702, %v4700
    %v7709 = vpack.c.b16 %v4705, %v4703
    %v7710 = vpack.c.b16 %v4706, %v4704
    %v7711 = vpack.c.b16 %v4709, %v4707
    %v7712 = vpack.c.b16 %v4710, %v4708
    %v7713 = vpack.c.b16 %v4713, %v4711
    %v7714 = vpack.c.b16 %v4714, %v4712
    %v7715 = vpack.c.b16 %v4717, %v4715
    %v7716 = vpack.c.b16 %v4718, %v4716
    %v7717 = vpack.c.b16 %v4721, %v4719
    %v7718 = vpack.c.b16 %v4722, %v4720
    %v7719 = vpack.c.b16 %v4725, %v4723
    %v7720 = vpack.c.b16 %v4726, %v4724
    %v7721 = vpack.c.b16 %v4729, %v4727
    %v7722 = vpack.c.b16 %v4730, %v4728
    %v7723 = vpack.c.b16 %v4733, %v4731
    %v7724 = vpack.c.b16 %v4734, %v4732
    %v7725 = vpack.c.b16 %v4737, %v4735
    %v7726 = vpack.c.b16 %v4738, %v4736
    %v7727 = vpack.c.b16 %v4741, %v4739
    %v7728 = vpack.c.b16 %v4742, %v4740
    %v7729 = vpack.c.b16 %v4745, %v4743
    %v7730 = vpack.c.b16 %v4746, %v4744
    %v7731 = vpack.c.b16 %v4749, %v4747
    %v7732 = vpack.c.b16 %v4750, %v4748
    %v7733 = vpack.c.b16 %v4753, %v4751
    %v7734 = vpack.c.b16 %v4754, %v4752
    %v7735 = vpack.c.b16 %v4757, %v4755
    %v7736 = vpack.c.b16 %v4758, %v4756
    %v7737 = vpack.c.b16 %v4761, %v4759
    %v7738 = vpack.c.b16 %v4762, %v4760
    %v7739 = vpack.c.b16 %v4765, %v4763
    %v7740 = vpack.c.b16 %v4766, %v4764
    %v7741 = vpack.c.b16 %v4769, %v4767
    %v7742 = vpack.c.b16 %v4770, %v4768
    %v7743 = vpack.c.b16 %v4773, %v4771
    %v7744 = vpack.c.b16 %v4774, %v4772
    %v7745 = vpack.c.b16 %v4777, %v4775
    %v7746 = vpack.c.b16 %v4778, %v4776
    %v7747 = vpack.c.b16 %v4781, %v4779
    %v7748 = vpack.c.b16 %v4782, %v4780
    %v7749 = vpack.c.b16 %v4785, %v4783
    %v7750 = vpack.c.b16 %v4786, %v4784
    %v7751 = vpack.c.b16 %v4789, %v4787
    %v7752 = vpack.c.b16 %v4790, %v4788
    %v7753 = vpack.c.b16 %v4793, %v4791
    %v7754 = vpack.c.b16 %v4794, %v4792
    %v7755 = vpack.c.b16 %v4797, %v4795
    %v7756 = vpack.c.b16 %v4798, %v4796
    %v7757 = vpack.c.b16 %v4801, %v4799
    %v7758 = vpack.c.b16 %v4802, %v4800
    %v7759 = vpack.c.b16 %v4805, %v4803
    %v7760 = vpack.c.b16 %v4806, %v4804
    %v7761 = vpack.c.b16 %v4809, %v4807
    %v7762 = vpack.c.b16 %v4810, %v4808
    %v7763 = vpack.c.b16 %v4813, %v4811
    %v7764 = vpack.c.b16 %v4814, %v4812
    %v7765 = vpack.c.b16 %v4817, %v4815
    %v7766 = vpack.c.b16 %v4818, %v4816
    %v7767 = vpack.c.b16 %v4821, %v4819
    %v7768 = vpack.c.b16 %v4822, %v4820
    %v7769 = vpack.c.b16 %v4825, %v4823
    %v7770 = vpack.c.b16 %v4826, %v4824
    %v7771 = vpack.c.b16 %v4829, %v4827
    %v7772 = vpack.c.b16 %v4830, %v4828
    %v7773 = vpack.c.b16 %v4833, %v4831
    %v7774 = vpack.c.b16 %v4834, %v4832
    %v7775 = vpack.c.b16 %v4837, %v4835
    %v7776 = vpack.c.b16 %v4838, %v4836
    %v7777 = vpack.c.b16 %v4841, %v4839
    %v7778 = vpack.c.b16 %v4842, %v4840
    %v7779 = vpack.c.b16 %v4845, %v4843
    %v7780 = vpack.c.b16 %v4846, %v4844
    %v7781 = vpack.c.b16 %v4849, %v4847
    %v7782 = vpack.c.b16 %v4850, %v4848
    %v7783 = vpack.c.b16 %v4853, %v4851
    %v7784 = vpack.c.b16 %v4854, %v4852
    %v7785 = vpack.c.b16 %v4857, %v4855
    %v7786 = vpack.c.b16 %v4858, %v4856
    %v7787 = vpack.c.b16 %v4861, %v4859
    %v7788 = vpack.c.b16 %v4862, %v4860
    %v7789 = vpack.c.b16 %v4865, %v4863
    %v7790 = vpack.c.b16 %v4866, %v4864
    %v7791 = vpack.c.b16 %v4869, %v4867
    %v7792 = vpack.c.b16 %v4870, %v4868
    %v7793 = vpack.c.b16 %v4873, %v4871
    %v7794 = vpack.c.b16 %v4874, %v4872
    %v7795 = vpack.c.b16 %v4877, %v4875
    %v7796 = vpack.c.b16 %v4878, %v4876
    %v7797 = vpack.c.b16 %v4881, %v4879
    %v7798 = vpack.c.b16 %v4882, %v4880
    %v7799 = vpack.c.b16 %v4885, %v4883
    %v7800 = vpack.c.b16 %v4886, %v4884
    %v7801 = vpack.c.b16 %v4889, %v4887
    %v7802 = vpack.c.b16 %v4890, %v4888
    %v7803 = vpack.c.b16 %v4893, %v4891
    %v7804 = vpack.c.b16 %v4894, %v4892
    %v7805 = vpack.c.b16 %v4897, %v4895
    %v7806 = vpack.c.b16 %v4898, %v4896
    %v7807 = vpack.c.b16 %v4901, %v4899
    %v7808 = vpack.c.b16 %v4902, %v4900
    %v7809 = vpack.c.b16 %v4905, %v4903
    %v7810 = vpack.c.b16 %v4906, %v4904
    %v7811 = vpack.c.b16 %v4909, %v4907
    %v7812 = vpack.c.b16 %v4910, %v4908
    %v7813 = vpack.c.b16 %v4913, %v4911
    %v7814 = vpack.c.b16 %v4914, %v4912
    %v7815 = vpack.c.b16 %v4917, %v4915
    %v7816 = vpack.c.b16 %v4918, %v4916
    %v7817 = vpack.c.b16 %v4921, %v4919
    %v7818 = vpack.c.b16 %v4922, %v4920
    %v7819 = vpack.c.b16 %v4925, %v4923
    %v7820 = vpack.c.b16 %v4926, %v4924
    %v7821 = vpack.c.b16 %v4929, %v4927
    %v7822 = vpack.c.b16 %v4930, %v4928
    %v7823 = vpack.c.b16 %v4933, %v4931
    %v7824 = vpack.c.b16 %v4934, %v4932
    %v7825 = vpack.c.b16 %v4937, %v4935
    %v7826 = vpack.c.b16 %v4938, %v4936
    %v7827 = vpack.c.b16 %v4941, %v4939
    %v7828 = vpack.c.b16 %v4942, %v4940
    %v7829 = vpack.c.b16 %v4945, %v4943
    %v7830 = vpack.c.b16 %v4946, %v4944
    %v7831 = vpack.c.b16 %v4949, %v4947
    %v7832 = vpack.c.b16 %v4950, %v4948
    %v7833 = vpack.c.b16 %v4953, %v4951
    %v7834 = vpack.c.b16 %v4954, %v4952
    %v7835 = vpack.c.b16 %v4957, %v4955
    %v7836 = vpack.c.b16 %v4958, %v4956
    %v7837 = vpack.c.b16 %v4961, %v4959
    %v7838 = vpack.c.b16 %v4962, %v4960
    %v7839 = vpack.c.b16 %v4965, %v4963
    %v7840 = vpack.c.b16 %v4966, %v4964
    %v7841 = vpack.c.b16 %v4969, %v4967
    %v7842 = vpack.c.b16 %v4970, %v4968
    %v7843 = vpack.c.b16 %v4973, %v4971
    %v7844 = vpack.c.b16 %v4974, %v4972
    %v7845 = vpack.c.b16 %v4977, %v4975
    %v7846 = vpack.c.b16 %v4978, %v4976
    %v7847 = vpack.c.b16 %v4981, %v4979
    %v7848 = vpack.c.b16 %v4982, %v4980
    %v7849 = vpack.c.b16 %v4985, %v4983
    %v7850 = vpack.c.b16 %v4986, %v4984
    %v7851 = vpack.c.b16 %v4989, %v4987
    %v7852 = vpack.c.b16 %v4990, %v4988
    %v7853 = vpack.c.b16 %v4993, %v4991
    %v7854 = vpack.c.b16 %v4994, %v4992
    %v7855 = vpack.c.b16 %v4997, %v4995
    %v7856 = vpack.c.b16 %v4998, %v4996
    %v7857 = vpack.c.b16 %v5001, %v4999
    %v7858 = vpack.c.b16 %v5002, %v5000
    %v7859 = vpack.c.b16 %v5005, %v5003
    %v7860 = vpack.c.b16 %v5006, %v5004
    %v7861 = vpack.c.b16 %v5009, %v5007
    %v7862 = vpack.c.b16 %v5010, %v5008
    %v7863 = vpack.c.b16 %v5013, %v5011
    %v7864 = vpack.c.b16 %v5014, %v5012
    %v7865 = vpack.c.b16 %v5017, %v5015
    %v7866 = vpack.c.b16 %v5018, %v5016
    %v7867 = vpack.c.b16 %v5021, %v5019
    %v7868 = vpack.c.b16 %v5022, %v5020
    %v7869 = vpack.c.b16 %v5025, %v5023
    %v7870 = vpack.c.b16 %v5026, %v5024
    %v7871 = vpack.c.b16 %v5029, %v5027
    %v7872 = vpack.c.b16 %v5030, %v5028
    %v7873 = vpack.c.b16 %v5033, %v5031
    %v7874 = vpack.c.b16 %v5034, %v5032
    %v7875 = vpack.c.b16 %v5037, %v5035
    %v7876 = vpack.c.b16 %v5038, %v5036
    %v7877 = vpack.c.b16 %v5041, %v5039
    %v7878 = vpack.c.b16 %v5042, %v5040
    %v7879 = vpack.c.b16 %v5045, %v5043
    %v7880 = vpack.c.b16 %v5046, %v5044
    %v7881 = vpack.c.b16 %v5049, %v5047
    %v7882 = vpack.c.b16 %v5050, %v5048
    %v7883 = vpack.c.b16 %v5053, %v5051
    %v7884 = vpack.c.b16 %v5054, %v5052
    %v7885 = vpack.c.b16 %v5057, %v5055
    %v7886 = vpack.c.b16 %v5058, %v5056
    %v7887 = vpack.c.b16 %v5061, %v5059
    %v7888 = vpack.c.b16 %v5062, %v5060
    %v7889 = vpack.c.b16 %v5065, %v5063
    %v7890 = vpack.c.b16 %v5066, %v5064
    %v7891 = vpack.c.b16 %v5069, %v5067
    %v7892 = vpack.c.b16 %v5070, %v5068
    %v7893 = vpack.c.b16 %v5073, %v5071
    %v7894 = vpack.c.b16 %v5074, %v5072
    %v7895 = vpack.c.b16 %v5077, %v5075
    %v7896 = vpack.c.b16 %v5078, %v5076
    %v7897 = vpack.c.b16 %v5081, %v5079
    %v7898 = vpack.c.b16 %v5082, %v5080
    %v7899 = vpack.c.b16 %v5085, %v5083
    %v7900 = vpack.c.b16 %v5086, %v5084
    %v7901 = vpack.c.b16 %v5089, %v5087
    %v7902 = vpack.c.b16 %v5090, %v5088
    %v7903 = vpack.c.b16 %v5093, %v5091
    %v7904 = vpack.c.b16 %v5094, %v5092
    %v7905 = vpack.c.b16 %v5097, %v5095
    %v7906 = vpack.c.b16 %v5098, %v5096
    %v7907 = vpack.c.b16 %v5101, %v5099
    %v7908 = vpack.c.b16 %v5102, %v5100
    %v7909 = vpack.c.b16 %v5105, %v5103
    %v7910 = vpack.c.b16 %v5106, %v5104
    %v7911 = vpack.c.b16 %v5109, %v5107
    %v7912 = vpack.c.b16 %v5110, %v5108
    %v7913 = vpack.c.b16 %v5113, %v5111
    %v7914 = vpack.c.b16 %v5114, %v5112
    %v7915 = vpack.c.b16 %v5117, %v5115
    %v7916 = vpack.c.b16 %v5118, %v5116
    %v7917 = vpack.c.b16 %v5121, %v5119
    %v7918 = vpack.c.b16 %v5122, %v5120
    %v7919 = vpack.c.b16 %v5125, %v5123
    %v7920 = vpack.c.b16 %v5126, %v5124
    %v7921 = vpack.c.b16 %v5129, %v5127
    %v7922 = vpack.c.b16 %v5130, %v5128
    %v7923 = vpack.c.b16 %v5133, %v5131
    %v7924 = vpack.c.b16 %v5134, %v5132
    %v7925 = vpack.c.b16 %v5137, %v5135
    %v7926 = vpack.c.b16 %v5138, %v5136
    %v7927 = vpack.c.b16 %v5141, %v5139
    %v7928 = vpack.c.b16 %v5142, %v5140
    %v7929 = vpack.c.b16 %v5145, %v5143
    %v7930 = vpack.c.b16 %v5146, %v5144
    %v7931 = vpack.c.b16 %v5149, %v5147
    %v7932 = vpack.c.b16 %v5150, %v5148
    %v7933 = vpack.c.b16 %v5153, %v5151
    %v7934 = vpack.c.b16 %v5154, %v5152
    %v7935 = vpack.c.b16 %v5157, %v5155
    %v7936 = vpack.c.b16 %v5158, %v5156
    %v7937 = vpack.c.b16 %v5161, %v5159
    %v7938 = vpack.c.b16 %v5162, %v5160
    %v7939 = vpack.c.b16 %v5165, %v5163
    %v7940 = vpack.c.b16 %v5166, %v5164
    %v7941 = vpack.c.b16 %v5169, %v5167
    %v7942 = vpack.c.b16 %v5170, %v5168
    %v7943 = vpack.c.b16 %v5173, %v5171
    %v7944 = vpack.c.b16 %v5174, %v5172
    %v7945 = vpack.c.b16 %v5177, %v5175
    %v7946 = vpack.c.b16 %v5178, %v5176
    %v7947 = vpack.c.b16 %v5181, %v5179
    %v7948 = vpack.c.b16 %v5182, %v5180
    %v7949 = vpack.c.b16 %v5185, %v5183
    %v7950 = vpack.c.b16 %v5186, %v5184
    %v7951 = vpack.c.b16 %v5189, %v5187
    %v7952 = vpack.c.b16 %v5190, %v5188
    %v7953 = vpack.c.b16 %v5193, %v5191
    %v7954 = vpack.c.b16 %v5194, %v5192
    %v7955 = vpack.c.b16 %v5197, %v5195
    %v7956 = vpack.c.b16 %v5198, %v5196
    %v7957 = vpack.c.b16 %v5201, %v5199
    %v7958 = vpack.c.b16 %v5202, %v5200
    %v7959 = vpack.c.b16 %v5205, %v5203
    %v7960 = vpack.c.b16 %v5206, %v5204
    %v7961 = vpack.c.b16 %v5209, %v5207
    %v7962 = vpack.c.b16 %v5210, %v5208
    %v7963 = vpack.c.b16 %v5213, %v5211
    %v7964 = vpack.c.b16 %v5214, %v5212
    %v7965 = vpack.c.b16 %v5217, %v5215
    %v7966 = vpack.c.b16 %v5218, %v5216
    %v7967 = vpack.c.b16 %v5221, %v5219
    %v7968 = vpack.c.b16 %v5222, %v5220
    %v7969 = vpack.c.b16 %v5225, %v5223
    %v7970 = vpack.c.b16 %v5226, %v5224
    %v7971 = vpack.c.b16 %v5229, %v5227
    %v7972 = vpack.c.b16 %v5230, %v5228
    %v7973 = vpack.c.b16 %v5233, %v5231
    %v7974 = vpack.c.b16 %v5234, %v5232
    %v7975 = vpack.c.b16 %v5237, %v5235
    %v7976 = vpack.c.b16 %v5238, %v5236
    %v7977 = vpack.c.b16 %v5241, %v5239
    %v7978 = vpack.c.b16 %v5242, %v5240
    %v7979 = vpack.c.b16 %v5245, %v5243
    %v7980 = vpack.c.b16 %v5246, %v5244
    %v7981 = vpack.c.b16 %v5249, %v5247
    %v7982 = vpack.c.b16 %v5250, %v5248
    %v7983 = vpack.c.b16 %v5253, %v5251
    %v7984 = vpack.c.b16 %v5254, %v5252
    %v7985 = vpack.c.b16 %v5257, %v5255
    %v7986 = vpack.c.b16 %v5258, %v5256
    %v7987 = vpack.c.b16 %v5261, %v5259
    %v7988 = vpack.c.b16 %v5262, %v5260
    %v7989 = vpack.c.b16 %v5265, %v5263
    %v7990 = vpack.c.b16 %v5266, %v5264
    %v7991 = vpack.c.b16 %v5269, %v5267
    %v7992 = vpack.c.b16 %v5270, %v5268
    %v7993 = vpack.c.b16 %v5273, %v5271
    %v7994 = vpack.c.b16 %v5274, %v5272
    %v7995 = vpack.c.b16 %v5277, %v5275
    %v7996 = vpack.c.b16 %v5278, %v5276
    %v7997 = vpack.c.b16 %v5281, %v5279
    %v7998 = vpack.c.b16 %v5282, %v5280
    %v7999 = vpack.c.b16 %v5285, %v5283
    %v8000 = vpack.c.b16 %v5286, %v5284
    %v8001 = vpack.c.b16 %v5289, %v5287
    %v8002 = vpack.c.b16 %v5290, %v5288
    %v8003 = vpack.c.b16 %v5293, %v5291
    %v8004 = vpack.c.b16 %v5294, %v5292
    %v8005 = vpack.c.b16 %v5297, %v5295
    %v8006 = vpack.c.b16 %v5298, %v5296
    %v8007 = vpack.c.b16 %v5301, %v5299
    %v8008 = vpack.c.b16 %v5302, %v5300
    %v8009 = vpack.c.b16 %v5305, %v5303
    %v8010 = vpack.c.b16 %v5306, %v5304
    %v8011 = vpack.c.b16 %v5309, %v5307
    %v8012 = vpack.c.b16 %v5310, %v5308
    %v8013 = vpack.c.b16 %v5313, %v5311
    %v8014 = vpack.c.b16 %v5314, %v5312
    %v8015 = vpack.c.b16 %v5317, %v5315
    %v8016 = vpack.c.b16 %v5318, %v5316
    %v8017 = vpack.c.b16 %v5321, %v5319
    %v8018 = vpack.c.b16 %v5322, %v5320
    %v8019 = vpack.c.b16 %v5325, %v5323
    %v8020 = vpack.c.b16 %v5326, %v5324
    %v8021 = vpack.c.b16 %v5329, %v5327
    %v8022 = vpack.c.b16 %v5330, %v5328
    %v8023 = vpack.c.b16 %v5333, %v5331
    %v8024 = vpack.c.b16 %v5334, %v5332
    %v8025 = vpack.c.b16 %v5337, %v5335
    %v8026 = vpack.c.b16 %v5338, %v5336
    %v8027 = vpack.c.b16 %v5341, %v5339
    %v8028 = vpack.c.b16 %v5342, %v5340
    %v8029 = vpack.c.b16 %v5345, %v5343
    %v8030 = vpack.c.b16 %v5346, %v5344
    %v8031 = vpack.c.b16 %v5349, %v5347
    %v8032 = vpack.c.b16 %v5350, %v5348
    %v8033 = vpack.c.b16 %v5353, %v5351
    %v8034 = vpack.c.b16 %v5354, %v5352
    %v8035 = vpack.c.b16 %v5357, %v5355
    %v8036 = vpack.c.b16 %v5358, %v5356
    %v8037 = vpack.c.b16 %v5361, %v5359
    %v8038 = vpack.c.b16 %v5362, %v5360
    %v8039 = vpack.c.b16 %v5365, %v5363
    %v8040 = vpack.c.b16 %v5366, %v5364
    %v8041 = vpack.c.b16 %v5369, %v5367
    %v8042 = vpack.c.b16 %v5370, %v5368
    %v8043 = vpack.c.b16 %v5373, %v5371
    %v8044 = vpack.c.b16 %v5374, %v5372
    %v8045 = vpack.c.b16 %v5377, %v5375
    %v8046 = vpack.c.b16 %v5378, %v5376
    %v8047 = vpack.c.b16 %v5381, %v5379
    %v8048 = vpack.c.b16 %v5382, %v5380
    %v8049 = vpack.c.b16 %v5385, %v5383
    %v8050 = vpack.c.b16 %v5386, %v5384
    %v8051 = vpack.c.b16 %v5389, %v5387
    %v8052 = vpack.c.b16 %v5390, %v5388
    %v8053 = vpack.c.b16 %v5393, %v5391
    %v8054 = vpack.c.b16 %v5394, %v5392
    %v8055 = vpack.c.b16 %v5397, %v5395
    %v8056 = vpack.c.b16 %v5398, %v5396
    %v8057 = vpack.c.b16 %v5401, %v5399
    %v8058 = vpack.c.b16 %v5402, %v5400
    %v8059 = vpack.c.b16 %v5405, %v5403
    %v8060 = vpack.c.b16 %v5406, %v5404
    %v8061 = vpack.c.b16 %v5409, %v5407
    %v8062 = vpack.c.b16 %v5410, %v5408
    %v8063 = vpack.c.b16 %v5413, %v5411
    %v8064 = vpack.c.b16 %v5414, %v5412
    %v8065 = vpack.c.b16 %v5417, %v5415
    %v8066 = vpack.c.b16 %v5418, %v5416
    %v8067 = vpack.c.b16 %v5421, %v5419
    %v8068 = vpack.c.b16 %v5422, %v5420
    %v8069 = vpack.c.b16 %v5425, %v5423
    %v8070 = vpack.c.b16 %v5426, %v5424
    %v8071 = vpack.c.b16 %v5429, %v5427
    %v8072 = vpack.c.b16 %v5430, %v5428
    %v8073 = vpack.c.b16 %v5433, %v5431
    %v8074 = vpack.c.b16 %v5434, %v5432
    %v8075 = vpack.c.b16 %v5437, %v5435
    %v8076 = vpack.c.b16 %v5438, %v5436
    %v8077 = vpack.c.b16 %v5441, %v5439
    %v8078 = vpack.c.b16 %v5442, %v5440
    %v8079 = vpack.c.b16 %v5445, %v5443
    %v8080 = vpack.c.b16 %v5446, %v5444
    %v8081 = vpack.c.b16 %v5449, %v5447
    %v8082 = vpack.c.b16 %v5450, %v5448
    %v8083 = vpack.c.b16 %v5453, %v5451
    %v8084 = vpack.c.b16 %v5454, %v5452
    %v8085 = vpack.c.b16 %v5457, %v5455
    %v8086 = vpack.c.b16 %v5458, %v5456
    %v8087 = vpack.c.b16 %v5461, %v5459
    %v8088 = vpack.c.b16 %v5462, %v5460
    %v8089 = vpack.c.b16 %v5465, %v5463
    %v8090 = vpack.c.b16 %v5466, %v5464
    %v8091 = vpack.c.b16 %v5469, %v5467
    %v8092 = vpack.c.b16 %v5470, %v5468
    %v8093 = vpack.c.b16 %v5473, %v5471
    %v8094 = vpack.c.b16 %v5474, %v5472
    %v8095 = vpack.c.b16 %v5477, %v5475
    %v8096 = vpack.c.b16 %v5478, %v5476
    %v8097 = vpack.c.b16 %v5481, %v5479
    %v8098 = vpack.c.b16 %v5482, %v5480
    %v8099 = vpack.c.b16 %v5485, %v5483
    %v8100 = vpack.c.b16 %v5486, %v5484
    %v8101 = vpack.c.b16 %v5489, %v5487
    %v8102 = vpack.c.b16 %v5490, %v5488
    %v8103 = vpack.c.b16 %v5493, %v5491
    %v8104 = vpack.c.b16 %v5494, %v5492
    %v8105 = vpack.c.b16 %v5497, %v5495
    %v8106 = vpack.c.b16 %v5498, %v5496
    %v8107 = vpack.c.b16 %v5501, %v5499
    %v8108 = vpack.c.b16 %v5502, %v5500
    %v8109 = vpack.c.b16 %v5505, %v5503
    %v8110 = vpack.c.b16 %v5506, %v5504
    %v8111 = vpack.c.b16 %v5509, %v5507
    %v8112 = vpack.c.b16 %v5510, %v5508
    %v8113 = vpack.c.b16 %v5513, %v5511
    %v8114 = vpack.c.b16 %v5514, %v5512
    %v8115 = vpack.c.b16 %v5517, %v5515
    %v8116 = vpack.c.b16 %v5518, %v5516
    %v8117 = vpack.c.b16 %v5521, %v5519
    %v8118 = vpack.c.b16 %v5522, %v5520
    %v8119 = vpack.c.b16 %v5525, %v5523
    %v8120 = vpack.c.b16 %v5526, %v5524
    %v8121 = vpack.c.b16 %v5529, %v5527
    %v8122 = vpack.c.b16 %v5530, %v5528
    %v8123 = vpack.c.b16 %v5533, %v5531
    %v8124 = vpack.c.b16 %v5534, %v5532
    %v8125 = vpack.c.b16 %v5537, %v5535
    %v8126 = vpack.c.b16 %v5538, %v5536
    %v8127 = vpack.c.b16 %v5541, %v5539
    %v8128 = vpack.c.b16 %v5542, %v5540
    %v8129 = vpack.c.b16 %v5545, %v5543
    %v8130 = vpack.c.b16 %v5546, %v5544
    %v8131 = vpack.c.b16 %v5549, %v5547
    %v8132 = vpack.c.b16 %v5550, %v5548
    %v8133 = vpack.c.b16 %v5553, %v5551
    %v8134 = vpack.c.b16 %v5554, %v5552
    %v8135 = vpack.c.b16 %v5557, %v5555
    %v8136 = vpack.c.b16 %v5558, %v5556
    %v8137 = vpack.c.b16 %v5561, %v5559
    %v8138 = vpack.c.b16 %v5562, %v5560
    %v8139 = vpack.c.b16 %v5565, %v5563
    %v8140 = vpack.c.b16 %v5566, %v5564
    %v8141 = vpack.c.b16 %v5569, %v5567
    %v8142 = vpack.c.b16 %v5570, %v5568
    %v8143 = vpack.c.b16 %v5573, %v5571
    %v8144 = vpack.c.b16 %v5574, %v5572
    %v8145 = vpack.c.b16 %v5577, %v5575
    %v8146 = vpack.c.b16 %v5578, %v5576
    %v8147 = vpack.c.b16 %v5581, %v5579
    %v8148 = vpack.c.b16 %v5582, %v5580
    %v8149 = vpack.c.b16 %v5585, %v5583
    %v8150 = vpack.c.b16 %v5586, %v5584
    %v8151 = vpack.c.b16 %v5589, %v5587
    %v8152 = vpack.c.b16 %v5590, %v5588
    %v8153 = vpack.c.b16 %v5593, %v5591
    %v8154 = vpack.c.b16 %v5594, %v5592
    %v8155 = vpack.c.b16 %v5597, %v5595
    %v8156 = vpack.c.b16 %v5598, %v5596
    %v8157 = vpack.c.b16 %v5601, %v5599
    %v8158 = vpack.c.b16 %v5602, %v5600
    %v8159 = vpack.c.b16 %v5605, %v5603
    %v8160 = vpack.c.b16 %v5606, %v5604
    %v8161 = vpack.c.b16 %v5609, %v5607
    %v8162 = vpack.c.b16 %v5610, %v5608
    %v8163 = vpack.c.b16 %v5613, %v5611
    %v8164 = vpack.c.b16 %v5614, %v5612
    %v8165 = vpack.c.b16 %v5617, %v5615
    %v8166 = vpack.c.b16 %v5618, %v5616
    %v8167 = vpack.c.b16 %v5621, %v5619
    %v8168 = vpack.c.b16 %v5622, %v5620
    %v8169 = vpack.c.b16 %v5625, %v5623
    %v8170 = vpack.c.b16 %v5626, %v5624
    %v8171 = vpack.c.b16 %v5629, %v5627
    %v8172 = vpack.c.b16 %v5630, %v5628
    %v8173 = vpack.c.b16 %v5633, %v5631
    %v8174 = vpack.c.b16 %v5634, %v5632
    %v8175 = vpack.c.b16 %v5637, %v5635
    %v8176 = vpack.c.b16 %v5638, %v5636
    %v8177 = vpack.c.b16 %v5641, %v5639
    %v8178 = vpack.c.b16 %v5642, %v5640
    %v8179 = vpack.c.b16 %v5645, %v5643
    %v8180 = vpack.c.b16 %v5646, %v5644
    %v8181 = vpack.c.b16 %v5649, %v5647
    %v8182 = vpack.c.b16 %v5650, %v5648
    %v8183 = vpack.c.b16 %v5653, %v5651
    %v8184 = vpack.c.b16 %v5654, %v5652
    %v8185 = vpack.c.b16 %v5657, %v5655
    %v8186 = vpack.c.b16 %v5658, %v5656
    %v8187 = vpack.c.b16 %v5661, %v5659
    %v8188 = vpack.c.b16 %v5662, %v5660
    %v8189 = vpack.c.b16 %v5665, %v5663
    %v8190 = vpack.c.b16 %v5666, %v5664
    %v8191 = vpack.c.b16 %v5669, %v5667
    %v8192 = vpack.c.b16 %v5670, %v5668
    %v8193 = vpack.c.b16 %v5673, %v5671
    %v8194 = vpack.c.b16 %v5674, %v5672
    %v8195 = vpack.c.b16 %v5677, %v5675
    %v8196 = vpack.c.b16 %v5678, %v5676
    %v8197 = vpack.c.b16 %v5681, %v5679
    %v8198 = vpack.c.b16 %v5682, %v5680
    %v8199 = vpack.c.b16 %v5685, %v5683
    %v8200 = vpack.c.b16 %v5686, %v5684
    %v8201 = vpack.c.b16 %v5689, %v5687
    %v8202 = vpack.c.b16 %v5690, %v5688
    %v8203 = vpack.c.b16 %v5693, %v5691
    %v8204 = vpack.c.b16 %v5694, %v5692
    %v8205 = vpack.c.b16 %v5697, %v5695
    %v8206 = vpack.c.b16 %v5698, %v5696
    %v8207 = vpack.c.b16 %v5701, %v5699
    %v8208 = vpack.c.b16 %v5702, %v5700
    %v8209 = vpack.c.b16 %v5705, %v5703
    %v8210 = vpack.c.b16 %v5706, %v5704
    %v8211 = vpack.c.b16 %v5709, %v5707
    %v8212 = vpack.c.b16 %v5710, %v5708
    %v8213 = vpack.c.b16 %v5713, %v5711
    %v8214 = vpack.c.b16 %v5714, %v5712
    %v8215 = vpack.c.b16 %v5717, %v5715
    %v8216 = vpack.c.b16 %v5718, %v5716
    %v8217 = vpack.c.b16 %v5721, %v5719
    %v8218 = vpack.c.b16 %v5722, %v5720
    %v8219 = vpack.c.b16 %v5725, %v5723
    %v8220 = vpack.c.b16 %v5726, %v5724
    %v8221 = vpack.c.b16 %v5729, %v5727
    %v8222 = vpack.c.b16 %v5730, %v5728
    %v8223 = vpack.c.b16 %v5733, %v5731
    %v8224 = vpack.c.b16 %v5734, %v5732
    %v8225 = vpack.c.b16 %v5737, %v5735
    %v8226 = vpack.c.b16 %v5738, %v5736
    %v8227 = vpack.c.b16 %v5741, %v5739
    %v8228 = vpack.c.b16 %v5742, %v5740
    %v8229 = vpack.c.b16 %v5745, %v5743
    %v8230 = vpack.c.b16 %v5746, %v5744
    %v8231 = vpack.c.b16 %v5749, %v5747
    %v8232 = vpack.c.b16 %v5750, %v5748
    %v8233 = vpack.c.b16 %v5753, %v5751
    %v8234 = vpack.c.b16 %v5754, %v5752
    %v8235 = vpack.c.b16 %v5757, %v5755
    %v8236 = vpack.c.b16 %v5758, %v5756
    %v8237 = vpack.c.b16 %v5761, %v5759
    %v8238 = vpack.c.b16 %v5762, %v5760
    %v8239 = vpack.c.b16 %v5765, %v5763
    %v8240 = vpack.c.b16 %v5766, %v5764
    %v8241 = vpack.c.b16 %v5769, %v5767
    %v8242 = vpack.c.b16 %v5770, %v5768
    %v8243 = vpack.c.b16 %v5773, %v5771
    %v8244 = vpack.c.b16 %v5774, %v5772
    %v8245 = vpack.c.b16 %v5777, %v5775
    %v8246 = vpack.c.b16 %v5778, %v5776
    %v8247 = vpack.c.b16 %v5781, %v5779
    %v8248 = vpack.c.b16 %v5782, %v5780
    %v8249 = vpack.c.b16 %v5785, %v5783
    %v8250 = vpack.c.b16 %v5786, %v5784
    %v8251 = vpack.c.b16 %v5789, %v5787
    %v8252 = vpack.c.b16 %v5790, %v5788
    %v8253 = vpack.c.b16 %v5793, %v5791
    %v8254 = vpack.c.b16 %v5794, %v5792
    %v8255 = vpack.c.b16 %v5797, %v5795
    %v8256 = vpack.c.b16 %v5798, %v5796
    %v8257 = vpack.c.b16 %v5801, %v5799
    %v8258 = vpack.c.b16 %v5802, %v5800
    %v8259 = vpack.c.b16 %v5805, %v5803
    %v8260 = vpack.c.b16 %v5806, %v5804
    %v8261 = vpack.c.b16 %v5809, %v5807
    %v8262 = vpack.c.b16 %v5810, %v5808
    %v8263 = vpack.c.b16 %v5813, %v5811
    %v8264 = vpack.c.b16 %v5814, %v5812
    %v8265 = vpack.c.b16 %v5817, %v5815
    %v8266 = vpack.c.b16 %v5818, %v5816
    %v8267 = vpack.c.b16 %v5821, %v5819
    %v8268 = vpack.c.b16 %v5822, %v5820
    %v8269 = vpack.c.b16 %v5825, %v5823
    %v8270 = vpack.c.b16 %v5826, %v5824
    %v8271 = vpack.c.b16 %v5829, %v5827
    %v8272 = vpack.c.b16 %v5830, %v5828
    %v8273 = vpack.c.b16 %v5833, %v5831
    %v8274 = vpack.c.b16 %v5834, %v5832
    %v8275 = vpack.c.b16 %v5837, %v5835
    %v8276 = vpack.c.b16 %v5838, %v5836
    %v8277 = vpack.c.b16 %v5841, %v5839
    %v8278 = vpack.c.b16 %v5842, %v5840
    %v8279 = vpack.c.b16 %v5845, %v5843
    %v8280 = vpack.c.b16 %v5846, %v5844
    %v8281 = vpack.c.b16 %v5849, %v5847
    %v8282 = vpack.c.b16 %v5850, %v5848
    %v8283 = vpack.c.b16 %v5853, %v5851
    %v8284 = vpack.c.b16 %v5854, %v5852
    %v8285 = vpack.c.b16 %v5857, %v5855
    %v8286 = vpack.c.b16 %v5858, %v5856
    %v8287 = vpack.c.b16 %v5861, %v5859
    %v8288 = vpack.c.b16 %v5862, %v5860
    %v8289 = vpack.c.b16 %v5865, %v5863
    %v8290 = vpack.c.b16 %v5866, %v5864
    %v8291 = vpack.c.b16 %v5869, %v5867
    %v8292 = vpack.c.b16 %v5870, %v5868
    %v8293 = vpack.c.b16 %v5873, %v5871
    %v8294 = vpack.c.b16 %v5874, %v5872
    %v8295 = vpack.c.b16 %v5877, %v5875
    %v8296 = vpack.c.b16 %v5878, %v5876
    %v8297 = vpack.c.b16 %v5881, %v5879
    %v8298 = vpack.c.b16 %v5882, %v5880
    %v8299 = vpack.c.b16 %v5885, %v5883
    %v8300 = vpack.c.b16 %v5886, %v5884
    %v8301 = vpack.c.b16 %v5889, %v5887
    %v8302 = vpack.c.b16 %v5890, %v5888
    %v8303 = vpack.c.b16 %v5893, %v5891
    %v8304 = vpack.c.b16 %v5894, %v5892
    %v8305 = vpack.c.b16 %v5897, %v5895
    %v8306 = vpack.c.b16 %v5898, %v5896
    %v8307 = vpack.c.b16 %v5901, %v5899
    %v8308 = vpack.c.b16 %v5902, %v5900
    %v8309 = vpack.c.b16 %v5905, %v5903
    %v8310 = vpack.c.b16 %v5906, %v5904
    %v8311 = vpack.c.b16 %v5909, %v5907
    %v8312 = vpack.c.b16 %v5910, %v5908
    %v8313 = vpack.c.b16 %v5913, %v5911
    %v8314 = vpack.c.b16 %v5914, %v5912
    %v8315 = vpack.c.b16 %v5917, %v5915
    %v8316 = vpack.c.b16 %v5918, %v5916
    %v8317 = vpack.c.b16 %v5921, %v5919
    %v8318 = vpack.c.b16 %v5922, %v5920
    %v8319 = vpack.c.b16 %v5925, %v5923
    %v8320 = vpack.c.b16 %v5926, %v5924
    %v8321 = vpack.c.b16 %v5929, %v5927
    %v8322 = vpack.c.b16 %v5930, %v5928
    %v8323 = vpack.c.b16 %v5933, %v5931
    %v8324 = vpack.c.b16 %v5934, %v5932
    %v8325 = vpack.c.b16 %v5937, %v5935
    %v8326 = vpack.c.b16 %v5938, %v5936
    %v8327 = vpack.c.b16 %v5941, %v5939
    %v8328 = vpack.c.b16 %v5942, %v5940
    %v8329 = vpack.c.b16 %v5945, %v5943
    %v8330 = vpack.c.b16 %v5946, %v5944
    %v8331 = vpack.c.b16 %v5949, %v5947
    %v8332 = vpack.c.b16 %v5950, %v5948
    %v8333 = vpack.c.b16 %v5953, %v5951
    %v8334 = vpack.c.b16 %v5954, %v5952
    %v8335 = vpack.c.b16 %v5957, %v5955
    %v8336 = vpack.c.b16 %v5958, %v5956
    %v8337 = vpack.c.b16 %v5961, %v5959
    %v8338 = vpack.c.b16 %v5962, %v5960
    %v8339 = vpack.c.b16 %v5965, %v5963
    %v8340 = vpack.c.b16 %v5966, %v5964
    %v8341 = vpack.c.b16 %v5969, %v5967
    %v8342 = vpack.c.b16 %v5970, %v5968
    %v8343 = vpack.c.b16 %v5973, %v5971
    %v8344 = vpack.c.b16 %v5974, %v5972
    %v8345 = vpack.c.b16 %v5977, %v5975
    %v8346 = vpack.c.b16 %v5978, %v5976
    %v8347 = vpack.c.b16 %v5981, %v5979
    %v8348 = vpack.c.b16 %v5982, %v5980
    %v8349 = vpack.c.b16 %v5985, %v5983
    %v8350 = vpack.c.b16 %v5986, %v5984
    %v8351 = vpack.c.b16 %v5989, %v5987
    %v8352 = vpack.c.b16 %v5990, %v5988
    %v8353 = vpack.c.b16 %v5993, %v5991
    %v8354 = vpack.c.b16 %v5994, %v5992
    %v8355 = vpack.c.b16 %v5997, %v5995
    %v8356 = vpack.c.b16 %v5998, %v5996
    %v8357 = vpack.c.b16 %v6001, %v5999
    %v8358 = vpack.c.b16 %v6002, %v6000
    %v8359 = vpack.c.b16 %v6005, %v6003
    %v8360 = vpack.c.b16 %v6006, %v6004
    %v8361 = vpack.c.b16 %v6009, %v6007
    %v8362 = vpack.c.b16 %v6010, %v6008
    %v8363 = vpack.c.b16 %v6013, %v6011
    %v8364 = vpack.c.b16 %v6014, %v6012
    %v8365 = vpack.c.b16 %v6017, %v6015
    %v8366 = vpack.c.b16 %v6018, %v6016
    %v8367 = vpack.c.b16 %v6021, %v6019
    %v8368 = vpack.c.b16 %v6022, %v6020
    %v8369 = vpack.c.b16 %v6025, %v6023
    %v8370 = vpack.c.b16 %v6026, %v6024
    %v8371 = vpack.c.b16 %v6029, %v6027
    %v8372 = vpack.c.b16 %v6030, %v6028
    %v8373 = vpack.c.b16 %v6033, %v6031
    %v8374 = vpack.c.b16 %v6034, %v6032
    %v8375 = vpack.c.b16 %v6037, %v6035
    %v8376 = vpack.c.b16 %v6038, %v6036
    %v8377 = vpack.c.b16 %v6041, %v6039
    %v8378 = vpack.c.b16 %v6042, %v6040
    %v8379 = vpack.c.b16 %v6045, %v6043
    %v8380 = vpack.c.b16 %v6046, %v6044
    %v8381 = vpack.c.b16 %v6049, %v6047
    %v8382 = vpack.c.b16 %v6050, %v6048
    %v8383 = vpack.c.b16 %v6053, %v6051
    %v8384 = vpack.c.b16 %v6054, %v6052
    %v8385 = vpack.c.b16 %v6057, %v6055
    %v8386 = vpack.c.b16 %v6058, %v6056
    %v8387 = vpack.c.b16 %v6061, %v6059
    %v8388 = vpack.c.b16 %v6062, %v6060
    %v8389 = vpack.c.b16 %v6065, %v6063
    %v8390 = vpack.c.b16 %v6066, %v6064
    %v8391 = vpack.c.b16 %v6069, %v6067
    %v8392 = vpack.c.b16 %v6070, %v6068
    %v8393 = vpack.c.b16 %v6073, %v6071
    %v8394 = vpack.c.b16 %v6074, %v6072
    %v8395 = vpack.c.b16 %v6077, %v6075
    %v8396 = vpack.c.b16 %v6078, %v6076
    %v8397 = vpack.c.b16 %v6081, %v6079
    %v8398 = vpack.c.b16 %v6082, %v6080
    %v8399 = vpack.c.b16 %v6085, %v6083
    %v8400 = vpack.c.b16 %v6086, %v6084
    %v8401 = vpack.c.b16 %v6089, %v6087
    %v8402 = vpack.c.b16 %v6090, %v6088
    %v8403 = vpack.c.b16 %v6093, %v6091
    %v8404 = vpack.c.b16 %v6094, %v6092
    %v8405 = vpack.c.b16 %v6097, %v6095
    %v8406 = vpack.c.b16 %v6098, %v6096
    %v8407 = vpack.c.b16 %v6101, %v6099
    %v8408 = vpack.c.b16 %v6102, %v6100
    %v8409 = vpack.c.b16 %v6105, %v6103
    %v8410 = vpack.c.b16 %v6106, %v6104
    %v8411 = vpack.c.b16 %v6109, %v6107
    %v8412 = vpack.c.b16 %v6110, %v6108
    %v8413 = vpack.c.b16 %v6113, %v6111
    %v8414 = vpack.c.b16 %v6114, %v6112
    %v8415 = vpack.c.b16 %v6117, %v6115
    %v8416 = vpack.c.b16 %v6118, %v6116
    %v8417 = vpack.c.b16 %v6121, %v6119
    %v8418 = vpack.c.b16 %v6122, %v6120
    %v8419 = vpack.c.b16 %v6125, %v6123
    %v8420 = vpack.c.b16 %v6126, %v6124
    %v8421 = vpack.c.b16 %v6129, %v6127
    %v8422 = vpack.c.b16 %v6130, %v6128
    %v8423 = vpack.c.b16 %v6133, %v6131
    %v8424 = vpack.c.b16 %v6134, %v6132
    %v8425 = vpack.c.b16 %v6137, %v6135
    %v8426 = vpack.c.b16 %v6138, %v6136
    %v8427 = vpack.c.b16 %v6141, %v6139
    %v8428 = vpack.c.b16 %v6142, %v6140
    %v8429 = vpack.c.b16 %v6145, %v6143
    %v8430 = vpack.c.b16 %v6146, %v6144
    %v8431 = vpack.c.b16 %v6149, %v6147
    %v8432 = vpack.c.b16 %v6150, %v6148
    %v8433 = vpack.c.b16 %v6153, %v6151
    %v8434 = vpack.c.b16 %v6154, %v6152
    %v8435 = vpack.c.b16 %v6157, %v6155
    %v8436 = vpack.c.b16 %v6158, %v6156
    %v8437 = vpack.c.b16 %v6161, %v6159
    %v8438 = vpack.c.b16 %v6162, %v6160
    %v8439 = vpack.c.b16 %v6165, %v6163
    %v8440 = vpack.c.b16 %v6166, %v6164
    %v8441 = vpack.c.b16 %v6169, %v6167
    %v8442 = vpack.c.b16 %v6170, %v6168
    %v8443 = vpack.c.b16 %v6173, %v6171
    %v8444 = vpack.c.b16 %v6174, %v6172
    %v8445 = vpack.c.b16 %v6177, %v6175
    %v8446 = vpack.c.b16 %v6178, %v6176
    %v8447 = vpack.c.b16 %v6181, %v6179
    %v8448 = vpack.c.b16 %v6182, %v6180
    %v8449 = vpack.c.b16 %v6185, %v6183
    %v8450 = vpack.c.b16 %v6186, %v6184
    %v8451 = vpack.c.b16 %v6189, %v6187
    %v8452 = vpack.c.b16 %v6190, %v6188
    %v8453 = vpack.c.b16 %v6193, %v6191
    %v8454 = vpack.c.b16 %v6194, %v6192
    %v8455 = vpack.c.b16 %v6197, %v6195
    %v8456 = vpack.c.b16 %v6198, %v6196
    %v8457 = vpack.c.b16 %v6201, %v6199
    %v8458 = vpack.c.b16 %v6202, %v6200
    %v8459 = vpack.c.b16 %v6205, %v6203
    %v8460 = vpack.c.b16 %v6206, %v6204
    %v8461 = vpack.c.b16 %v6209, %v6207
    %v8462 = vpack.c.b16 %v6210, %v6208
    %v8463 = vpack.c.b16 %v6213, %v6211
    %v8464 = vpack.c.b16 %v6214, %v6212
    %v8465 = vpack.c.b16 %v6217, %v6215
    %v8466 = vpack.c.b16 %v6218, %v6216
    %v8467 = vpack.c.b16 %v6221, %v6219
    %v8468 = vpack.c.b16 %v6222, %v6220
    %v8469 = vpack.c.b16 %v6225, %v6223
    %v8470 = vpack.c.b16 %v6226, %v6224
    %v8471 = vpack.c.b16 %v6229, %v6227
    %v8472 = vpack.c.b16 %v6230, %v6228
    %v8473 = vpack.c.b16 %v6233, %v6231
    %v8474 = vpack.c.b16 %v6234, %v6232
    %v8475 = vpack.c.b16 %v6237, %v6235
    %v8476 = vpack.c.b16 %v6238, %v6236
    %v8477 = vpack.c.b16 %v6241, %v6239
    %v8478 = vpack.c.b16 %v6242, %v6240
    %v8479 = vpack.c.b16 %v6245, %v6243
    %v8480 = vpack.c.b16 %v6246, %v6244
    %v8481 = vpack.c.b16 %v6249, %v6247
    %v8482 = vpack.c.b16 %v6250, %v6248
    %v8483 = vpack.c.b16 %v6253, %v6251
    %v8484 = vpack.c.b16 %v6254, %v6252
    %v8485 = vpack.c.b16 %v6257, %v6255
    %v8486 = vpack.c.b16 %v6258, %v6256
    %v8487 = vpack.c.b16 %v6261, %v6259
    %v8488 = vpack.c.b16 %v6262, %v6260
    %v8489 = vpack.c.b16 %v6265, %v6263
    %v8490 = vpack.c.b16 %v6266, %v6264
    %v8491 = vpack.c.b16 %v6269, %v6267
    %v8492 = vpack.c.b16 %v6270, %v6268
    %v8493 = vpack.c.b16 %v6273, %v6271
    %v8494 = vpack.c.b16 %v6274, %v6272
    %v8495 = vpack.c.b16 %v6277, %v6275
    %v8496 = vpack.c.b16 %v6278, %v6276
    %v8497 = vpack.c.b16 %v6281, %v6279
    %v8498 = vpack.c.b16 %v6282, %v6280
    %v8499 = vpack.c.b16 %v6285, %v6283
    %v8500 = vpack.c.b16 %v6286, %v6284
    %v8501 = vpack.c.b16 %v6289, %v6287
    %v8502 = vpack.c.b16 %v6290, %v6288
    %v8503 = vpack.c.b16 %v6293, %v6291
    %v8504 = vpack.c.b16 %v6294, %v6292
    %v8505 = vpack.c.b16 %v6297, %v6295
    %v8506 = vpack.c.b16 %v6298, %v6296
    %v8507 = vpack.c.b16 %v6301, %v6299
    %v8508 = vpack.c.b16 %v6302, %v6300
    %v8509 = vpack.c.b16 %v6305, %v6303
    %v8510 = vpack.c.b16 %v6306, %v6304
    %v8511 = vpack.c.b16 %v6309, %v6307
    %v8512 = vpack.c.b16 %v6310, %v6308
    %v8513 = vpack.c.b16 %v6313, %v6311
    %v8514 = vpack.c.b16 %v6314, %v6312
    %v8515 = vpack.c.b16 %v6317, %v6315
    %v8516 = vpack.c.b16 %v6318, %v6316
    %v8517 = vpack.c.b16 %v6321, %v6319
    %v8518 = vpack.c.b16 %v6322, %v6320
    %v8519 = vpack.c.b16 %v6325, %v6323
    %v8520 = vpack.c.b16 %v6326, %v6324
    %v8521 = vpack.c.b16 %v6329, %v6327
    %v8522 = vpack.c.b16 %v6330, %v6328
    %v8523 = vpack.c.b16 %v6333, %v6331
    %v8524 = vpack.c.b16 %v6334, %v6332
    %v8525 = vpack.c.b16 %v6337, %v6335
    %v8526 = vpack.c.b16 %v6338, %v6336
    %v8527 = vpack.c.b16 %v6341, %v6339
    %v8528 = vpack.c.b16 %v6342, %v6340
    %v8529 = vpack.c.b16 %v6345, %v6343
    %v8530 = vpack.c.b16 %v6346, %v6344
    %v8531 = vpack.c.b16 %v6349, %v6347
    %v8532 = vpack.c.b16 %v6350, %v6348
    %v8533 = vpack.c.b16 %v6353, %v6351
    %v8534 = vpack.c.b16 %v6354, %v6352
    %v8535 = vpack.c.b16 %v6357, %v6355
    %v8536 = vpack.c.b16 %v6358, %v6356
    %v8537 = vpack.c.b16 %v6361, %v6359
    %v8538 = vpack.c.b16 %v6362, %v6360
    %v8539 = vpack.c.b16 %v6365, %v6363
    %v8540 = vpack.c.b16 %v6366, %v6364
    %v8541 = vpack.c.b16 %v6369, %v6367
    %v8542 = vpack.c.b16 %v6370, %v6368
    %v8543 = vpack.c.b16 %v6373, %v6371
    %v8544 = vpack.c.b16 %v6374, %v6372
    %v8545 = vpack.c.b16 %v6377, %v6375
    %v8546 = vpack.c.b16 %v6378, %v6376
    %v8547 = vpack.c.b16 %v6381, %v6379
    %v8548 = vpack.c.b16 %v6382, %v6380
    %v8549 = vpack.c.b16 %v6385, %v6383
    %v8550 = vpack.c.b16 %v6386, %v6384
    %v8551 = vpack.c.b16 %v6389, %v6387
    %v8552 = vpack.c.b16 %v6390, %v6388
    %v8553 = vpack.c.b16 %v6393, %v6391
    %v8554 = vpack.c.b16 %v6394, %v6392
    %v8555 = vpack.c.b16 %v6397, %v6395
    %v8556 = vpack.c.b16 %v6398, %v6396
    %v8557 = vpack.c.b16 %v6401, %v6399
    %v8558 = vpack.c.b16 %v6402, %v6400
    %v8559 = vpack.c.b16 %v6405, %v6403
    %v8560 = vpack.c.b16 %v6406, %v6404
    %v8561 = vpack.c.b16 %v6409, %v6407
    %v8562 = vpack.c.b16 %v6410, %v6408
    %v8563 = vpack.c.b16 %v6413, %v6411
    %v8564 = vpack.c.b16 %v6414, %v6412
    %v8565 = vpack.c.b16 %v6417, %v6415
    %v8566 = vpack.c.b16 %v6418, %v6416
    %v8567 = vpack.c.b16 %v6421, %v6419
    %v8568 = vpack.c.b16 %v6422, %v6420
    %v8569 = vpack.c.b16 %v6425, %v6423
    %v8570 = vpack.c.b16 %v6426, %v6424
    %v8571 = vpack.c.b16 %v6429, %v6427
    %v8572 = vpack.c.b16 %v6430, %v6428
    %v8573 = vpack.c.b16 %v6433, %v6431
    %v8574 = vpack.c.b16 %v6434, %v6432
    %v8575 = vpack.c.b16 %v6437, %v6435
    %v8576 = vpack.c.b16 %v6438, %v6436
    %v8577 = vpack.c.b16 %v6441, %v6439
    %v8578 = vpack.c.b16 %v6442, %v6440
    %v8579 = vpack.c.b16 %v6445, %v6443
    %v8580 = vpack.c.b16 %v6446, %v6444
    %v8581 = vpack.c.b16 %v6449, %v6447
    %v8582 = vpack.c.b16 %v6450, %v6448
    %v8583 = vpack.c.b16 %v6453, %v6451
    %v8584 = vpack.c.b16 %v6454, %v6452
    %v8585 = vpack.c.b16 %v6457, %v6455
    %v8586 = vpack.c.b16 %v6458, %v6456
    %v8587 = vpack.c.b16 %v6461, %v6459
    %v8588 = vpack.c.b16 %v6462, %v6460
    %v8589 = vpack.c.b16 %v6465, %v6463
    %v8590 = vpack.c.b16 %v6466, %v6464
    %v8591 = vpack.c.b16 %v6469, %v6467
    %v8592 = vpack.c.b16 %v6470, %v6468
    %v8593 = vpack.c.b16 %v6473, %v6471
    %v8594 = vpack.c.b16 %v6474, %v6472
    %v8595 = vpack.c.b16 %v6477, %v6475
    %v8596 = vpack.c.b16 %v6478, %v6476
    %v8597 = vpack.c.b16 %v6481, %v6479
    %v8598 = vpack.c.b16 %v6482, %v6480
    %v8599 = vpack.c.b16 %v6485, %v6483
    %v8600 = vpack.c.b16 %v6486, %v6484
    %v8601 = vpack.c.b16 %v6489, %v6487
    %v8602 = vpack.c.b16 %v6490, %v6488
    %v8603 = vpack.c.b16 %v6493, %v6491
    %v8604 = vpack.c.b16 %v6494, %v6492
    %v8605 = vpack.c.b16 %v6497, %v6495
    %v8606 = vpack.c.b16 %v6498, %v6496
    %v8607 = vpack.c.b16 %v6501, %v6499
    %v8608 = vpack.c.b16 %v6502, %v6500
    %v8609 = vpack.c.b16 %v6505, %v6503
    %v8610 = vpack.c.b16 %v6506, %v6504
    %v8611 = vpack.c.b16 %v6509, %v6507
    %v8612 = vpack.c.b16 %v6510, %v6508
    %v8613 = vpack.c.b16 %v6513, %v6511
    %v8614 = vpack.c.b16 %v6514, %v6512
    %v8615 = vpack.c.b16 %v6517, %v6515
    %v8616 = vpack.c.b16 %v6518, %v6516
    %v8617 = vpack.c.b16 %v6521, %v6519
    %v8618 = vpack.c.b16 %v6522, %v6520
    %v8619 = vpack.c.b16 %v6525, %v6523
    %v8620 = vpack.c.b16 %v6526, %v6524
    %v8621 = vpack.c.b16 %v6529, %v6527
    %v8622 = vpack.c.b16 %v6530, %v6528
    %v8623 = vpack.c.b16 %v6533, %v6531
    %v8624 = vpack.c.b16 %v6534, %v6532
    %v8625 = vpack.c.b16 %v6537, %v6535
    %v8626 = vpack.c.b16 %v6538, %v6536
    %v8627 = vpack.c.b16 %v6541, %v6539
    %v8628 = vpack.c.b16 %v6542, %v6540
    %v8629 = vpack.c.b16 %v6545, %v6543
    %v8630 = vpack.c.b16 %v6546, %v6544
    %v8631 = vpack.c.b16 %v6549, %v6547
    %v8632 = vpack.c.b16 %v6550, %v6548
    %v8633 = vpack.c.b16 %v6553, %v6551
    %v8634 = vpack.c.b16 %v6554, %v6552
    %v8635 = vpack.c.b16 %v6557, %v6555
    %v8636 = vpack.c.b16 %v6558, %v6556
    %v8637 = vpack.c.b16 %v6561, %v6559
    %v8638 = vpack.c.b16 %v6562, %v6560
    %v8639 = vpack.c.b16 %v6565, %v6563
    %v8640 = vpack.c.b16 %v6566, %v6564
    %v8641 = vpack.c.b16 %v6569, %v6567
    %v8642 = vpack.c.b16 %v6570, %v6568
    %v8643 = vpack.c.b16 %v6573, %v6571
    %v8644 = vpack.c.b16 %v6574, %v6572
    %v8645 = vpack.c.b16 %v6577, %v6575
    %v8646 = vpack.c.b16 %v6578, %v6576
    %v8647 = vpack.c.b16 %v6581, %v6579
    %v8648 = vpack.c.b16 %v6582, %v6580
    %v8649 = vpack.c.b16 %v6585, %v6583
    %v8650 = vpack.c.b16 %v6586, %v6584
    %v8651 = vpack.c.b16 %v6589, %v6587
    %v8652 = vpack.c.b16 %v6590, %v6588
    %v8653 = vpack.c.b16 %v6593, %v6591
    %v8654 = vpack.c.b16 %v6594, %v6592
    %v8655 = vpack.c.b16 %v6597, %v6595
    %v8656 = vpack.c.b16 %v6598, %v6596
    %v8657 = vpack.c.b16 %v6601, %v6599
    %v8658 = vpack.c.b16 %v6602, %v6600
    %v8659 = vpack.c.b16 %v6605, %v6603
    %v8660 = vpack.c.b16 %v6606, %v6604
    %v8661 = vpack.c.b16 %v6609, %v6607
    %v8662 = vpack.c.b16 %v6610, %v6608
    %v8663 = vpack.c.b16 %v6613, %v6611
    %v8664 = vpack.c.b16 %v6614, %v6612
    %v8665 = vpack.c.b16 %v6617, %v6615
    %v8666 = vpack.c.b16 %v6618, %v6616
    %v8667 = vpack.c.b16 %v6621, %v6619
    %v8668 = vpack.c.b16 %v6622, %v6620
    %v8669 = vpack.c.b16 %v6625, %v6623
    %v8670 = vpack.c.b16 %v6626, %v6624
    %v8671 = vpack.c.b16 %v6629, %v6627
    %v8672 = vpack.c.b16 %v6630, %v6628
    %v8673 = vpack.c.b16 %v6633, %v6631
    %v8674 = vpack.c.b16 %v6634, %v6632
    %v8675 = vpack.c.b16 %v6637, %v6635
    %v8676 = vpack.c.b16 %v6638, %v6636
    %v8677 = vpack.c.b16 %v6641, %v6639
    %v8678 = vpack.c.b16 %v6642, %v6640
    %v8679 = vpack.c.b16 %v6645, %v6643
    %v8680 = vpack.c.b16 %v6646, %v6644
    %v8681 = vpack.c.b16 %v6649, %v6647
    %v8682 = vpack.c.b16 %v6650, %v6648
    %v8683 = vpack.c.b16 %v6653, %v6651
    %v8684 = vpack.c.b16 %v6654, %v6652
    %v8685 = vpack.c.b16 %v6657, %v6655
    %v8686 = vpack.c.b16 %v6658, %v6656
    %v8687 = vpack.c.b16 %v6661, %v6659
    %v8688 = vpack.c.b16 %v6662, %v6660
    %v8689 = vpack.c.b16 %v6665, %v6663
    %v8690 = vpack.c.b16 %v6666, %v6664
    %v8691 = vpack.c.b16 %v6669, %v6667
    %v8692 = vpack.c.b16 %v6670, %v6668
    %v8693 = vpack.c.b16 %v6673, %v6671
    %v8694 = vpack.c.b16 %v6674, %v6672
    %v8695 = vpack.c.b16 %v6677, %v6675
    %v8696 = vpack.c.b16 %v6678, %v6676
    %v8697 = vpack.c.b16 %v6681, %v6679
    %v8698 = vpack.c.b16 %v6682, %v6680
    %v8699 = vpack.c.b16 %v6685, %v6683
    %v8700 = vpack.c.b16 %v6686, %v6684
    %v8701 = vpack.c.b16 %v6689, %v6687
    %v8702 = vpack.c.b16 %v6690, %v6688
    %v8703 = vpack.c.b16 %v6693, %v6691
    %v8704 = vpack.c.b16 %v6694, %v6692
    %v8705 = vpack.c.b16 %v6697, %v6695
    %v8706 = vpack.c.b16 %v6698, %v6696
    %v8707 = vpack.c.b16 %v6701, %v6699
    %v8708 = vpack.c.b16 %v6702, %v6700
    %v8709 = vpack.c.b16 %v6705, %v6703
    %v8710 = vpack.c.b16 %v6706, %v6704
    %v8711 = vpack.c.b16 %v6709, %v6707
    %v8712 = vpack.c.b16 %v6710, %v6708
    %v8713 = vpack.c.b16 %v6713, %v6711
    %v8714 = vpack.c.b16 %v6714, %v6712
    %v8715 = vpack.c.b16 %v6717, %v6715
    %v8716 = vpack.c.b16 %v6718, %v6716
    %v8717 = vpack.c.b16 %v6721, %v6719
    %v8718 = vpack.c.b16 %v6722, %v6720
    %v8719 = vpack.c.b16 %v6725, %v6723
    %v8720 = vpack.c.b16 %v6726, %v6724
    %v8721 = vpack.c.b16 %v6729, %v6727
    %v8722 = vpack.c.b16 %v6730, %v6728
    %v8723 = vpack.c.b16 %v6733, %v6731
    %v8724 = vpack.c.b16 %v6734, %v6732
    %v8725 = vpack.c.b16 %v6737, %v6735
    %v8726 = vpack.c.b16 %v6738, %v6736
    %v8727 = vpack.c.b16 %v6741, %v6739
    %v8728 = vpack.c.b16 %v6742, %v6740
    %v8729 = vpack.c.b16 %v6745, %v6743
    %v8730 = vpack.c.b16 %v6746, %v6744
    %v8731 = vpack.c.b16 %v6749, %v6747
    %v8732 = vpack.c.b16 %v6750, %v6748
    %v8733 = vpack.c.b16 %v6753, %v6751
    %v8734 = vpack.c.b16 %v6754, %v6752
    %v8735 = vpack.c.b16 %v6757, %v6755
    %v8736 = vpack.c.b16 %v6758, %v6756
    %v8737 = vpack.c.b16 %v6761, %v6759
    %v8738 = vpack.c.b16 %v6762, %v6760
    %v8739 = vpack.c.b16 %v6765, %v6763
    %v8740 = vpack.c.b16 %v6766, %v6764
    %v8741 = vpack.c.b16 %v6769, %v6767
    %v8742 = vpack.c.b16 %v6770, %v6768
    %v8743 = vpack.c.b16 %v6773, %v6771
    %v8744 = vpack.c.b16 %v6774, %v6772
    %v8745 = vpack.c.b16 %v6777, %v6775
    %v8746 = vpack.c.b16 %v6778, %v6776
    %v8747 = vpack.c.b16 %v6781, %v6779
    %v8748 = vpack.c.b16 %v6782, %v6780
    %v8749 = vpack.c.b16 %v6785, %v6783
    %v8750 = vpack.c.b16 %v6786, %v6784
    %v8751 = vpack.c.b16 %v6789, %v6787
    %v8752 = vpack.c.b16 %v6790, %v6788
    %v8753 = vpack.c.b16 %v6793, %v6791
    %v8754 = vpack.c.b16 %v6794, %v6792
    %v8755 = vpack.c.b16 %v6797, %v6795
    %v8756 = vpack.c.b16 %v6798, %v6796
    %v8757 = vpack.c.b16 %v6801, %v6799
    %v8758 = vpack.c.b16 %v6802, %v6800
    %v8759 = vpack.c.b16 %v6805, %v6803
    %v8760 = vpack.c.b16 %v6806, %v6804
    %v8761 = vpack.c.b16 %v6809, %v6807
    %v8762 = vpack.c.b16 %v6810, %v6808
    %v8763 = vpack.c.b16 %v6813, %v6811
    %v8764 = vpack.c.b16 %v6814, %v6812
    %v8765 = vpack.c.b16 %v6817, %v6815
    %v8766 = vpack.c.b16 %v6818, %v6816
    %v8767 = vpack.c.b16 %v6821, %v6819
    %v8768 = vpack.c.b16 %v6822, %v6820
    %v8769 = vpack.c.b16 %v6825, %v6823
    %v8770 = vpack.c.b16 %v6826, %v6824
    %v8771 = vpack.c.b16 %v6829, %v6827
    %v8772 = vpack.c.b16 %v6830, %v6828
    %v8773 = vpack.c.b16 %v6833, %v6831
    %v8774 = vpack.c.b16 %v6834, %v6832
    %v8775 = vpack.c.b16 %v6837, %v6835
    %v8776 = vpack.c.b16 %v6838, %v6836
    %v8777 = vpack.c.b16 %v6841, %v6839
    %v8778 = vpack.c.b16 %v6842, %v6840
    %v8779 = vpack.c.b16 %v6845, %v6843
    %v8780 = vpack.c.b16 %v6846, %v6844
    %v8781 = vpack.c.b16 %v6849, %v6847
    %v8782 = vpack.c.b16 %v6850, %v6848
    %v8783 = vpack.c.b16 %v6853, %v6851
    %v8784 = vpack.c.b16 %v6854, %v6852
    %v8785 = vpack.c.b16 %v6857, %v6855
    %v8786 = vpack.c.b16 %v6858, %v6856
    %v8787 = vpack.c.b16 %v6861, %v6859
    %v8788 = vpack.c.b16 %v6862, %v6860
    %v8789 = vpack.c.b16 %v6865, %v6863
    %v8790 = vpack.c.b16 %v6866, %v6864
    %v8791 = vpack.c.b16 %v6869, %v6867
    %v8792 = vpack.c.b16 %v6870, %v6868
    %v8793 = vpack.c.b16 %v6873, %v6871
    %v8794 = vpack.c.b16 %v6874, %v6872
    %v8795 = vpack.c.b16 %v6877, %v6875
    %v8796 = vpack.c.b16 %v6878, %v6876
    %v8797 = vpack.c.b16 %v6881, %v6879
    %v8798 = vpack.c.b16 %v6882, %v6880
    %v8799 = vpack.c.b16 %v6885, %v6883
    %v8800 = vpack.c.b16 %v6886, %v6884
    %v8801 = vpack.c.b16 %v6889, %v6887
    %v8802 = vpack.c.b16 %v6890, %v6888
    %v8803 = vpack.c.b16 %v6893, %v6891
    %v8804 = vpack.c.b16 %v6894, %v6892
    %v8805 = vpack.c.b16 %v6897, %v6895
    %v8806 = vpack.c.b16 %v6898, %v6896
    %v8807 = vpack.c.b16 %v6901, %v6899
    %v8808 = vpack.c.b16 %v6902, %v6900
    %v8809 = vpack.c.b16 %v6905, %v6903
    %v8810 = vpack.c.b16 %v6906, %v6904
    %v8811 = vpack.c.b16 %v6909, %v6907
    %v8812 = vpack.c.b16 %v6910, %v6908
    %v8813 = vpack.c.b16 %v6913, %v6911
    %v8814 = vpack.c.b16 %v6914, %v6912
    %v8815 = vpack.c.b16 %v6917, %v6915
    %v8816 = vpack.c.b16 %v6918, %v6916
    %v8817 = vpack.c.b16 %v6921, %v6919
    %v8818 = vpack.c.b16 %v6922, %v6920
    %v8819 = vpack.c.b16 %v6925, %v6923
    %v8820 = vpack.c.b16 %v6926, %v6924
    %v8821 = vpack.c.b16 %v6929, %v6927
    %v8822 = vpack.c.b16 %v6930, %v6928
    %v8823 = vpack.c.b16 %v6933, %v6931
    %v8824 = vpack.c.b16 %v6934, %v6932
    %v8825 = vpack.c.b16 %v6937, %v6935
    %v8826 = vpack.c.b16 %v6938, %v6936
    %v8827 = vpack.c.b16 %v6941, %v6939
    %v8828 = vpack.c.b16 %v6942, %v6940
    %v8829 = vpack.c.b16 %v6945, %v6943
    %v8830 = vpack.c.b16 %v6946, %v6944
    %v8831 = vpack.c.b16 %v6949, %v6947
    %v8832 = vpack.c.b16 %v6950, %v6948
    %v8833 = vpack.c.b16 %v6953, %v6951
    %v8834 = vpack.c.b16 %v6954, %v6952
    %v8835 = vpack.c.b16 %v6957, %v6955
    %v8836 = vpack.c.b16 %v6958, %v6956
    %v8837 = vpack.c.b16 %v6961, %v6959
    %v8838 = vpack.c.b16 %v6962, %v6960
    %v8839 = vpack.c.b16 %v6965, %v6963
    %v8840 = vpack.c.b16 %v6966, %v6964
    %v8841 = vpack.c.b16 %v6969, %v6967
    %v8842 = vpack.c.b16 %v6970, %v6968
    %v8843 = vpack.c.b16 %v6973, %v6971
    %v8844 = vpack.c.b16 %v6974, %v6972
    %v8845 = vpack.c.b16 %v6977, %v6975
    %v8846 = vpack.c.b16 %v6978, %v6976
    %v8847 = vpack.c.b16 %v6981, %v6979
    %v8848 = vpack.c.b16 %v6982, %v6980
    %v8849 = vpack.c.b16 %v6985, %v6983
    %v8850 = vpack.c.b16 %v6986, %v6984
    %v8851 = vpack.c.b16 %v6989, %v6987
    %v8852 = vpack.c.b16 %v6990, %v6988
    %v8853 = vpack.c.b16 %v6993, %v6991
    %v8854 = vpack.c.b16 %v6994, %v6992
    %v8855 = vpack.c.b16 %v6997, %v6995
    %v8856 = vpack.c.b16 %v6998, %v6996
    %v8857 = vpack.c.b16 %v7001, %v6999
    %v8858 = vpack.c.b16 %v7002, %v7000
    %v8859 = vpack.c.b16 %v7005, %v7003
    %v8860 = vpack.c.b16 %v7006, %v7004
    %v8861 = vpack.c.b16 %v7009, %v7007
    %v8862 = vpack.c.b16 %v7010, %v7008
    %v8863 = vpack.c.b16 %v7013, %v7011
    %v8864 = vpack.c.b16 %v7014, %v7012
    %v8865 = vpack.c.b16 %v7017, %v7015
    %v8866 = vpack.c.b16 %v7018, %v7016
    %v8867 = vpack.c.b16 %v7021, %v7019
    %v8868 = vpack.c.b16 %v7022, %v7020
    %v8869 = vpack.c.b16 %v7025, %v7023
    %v8870 = vpack.c.b16 %v7026, %v7024
    %v8871 = vpack.c.b16 %v7029, %v7027
    %v8872 = vpack.c.b16 %v7030, %v7028
    %v8873 = vpack.c.b16 %v7033, %v7031
    %v8874 = vpack.c.b16 %v7034, %v7032
    %v8875 = vpack.c.b16 %v7037, %v7035
    %v8876 = vpack.c.b16 %v7038, %v7036
    %v8877 = vpack.c.b16 %v7041, %v7039
    %v8878 = vpack.c.b16 %v7042, %v7040
    %v8879 = vpack.c.b16 %v7045, %v7043
    %v8880 = vpack.c.b16 %v7046, %v7044
    %v8881 = vpack.c.b16 %v7049, %v7047
    %v8882 = vpack.c.b16 %v7050, %v7048
    %v8883 = vpack.c.b16 %v7053, %v7051
    %v8884 = vpack.c.b16 %v7054, %v7052
    %v8885 = vpack.c.b16 %v7057, %v7055
    %v8886 = vpack.c.b16 %v7058, %v7056
    %v8887 = vpack.c.b16 %v7061, %v7059
    %v8888 = vpack.c.b16 %v7062, %v7060
    %v8889 = vpack.c.b16 %v7065, %v7063
    %v8890 = vpack.c.b16 %v7066, %v7064
    %v8891 = vpack.c.b16 %v7069, %v7067
    %v8892 = vpack.c.b16 %v7070, %v7068
    %v8893 = vpack.c.b16 %v7073, %v7071
    %v8894 = vpack.c.b16 %v7074, %v7072
    %v8895 = vpack.c.b16 %v7077, %v7075
    %v8896 = vpack.c.b16 %v7078, %v7076
    %v8897 = vpack.c.b16 %v7081, %v7079
    %v8898 = vpack.c.b16 %v7082, %v7080
    %v8899 = vpack.c.b16 %v7085, %v7083
    %v8900 = vpack.c.b16 %v7086, %v7084
    %v8901 = vpack.c.b16 %v7089, %v7087
    %v8902 = vpack.c.b16 %v7090, %v7088
    %v8903 = vpack.c.b16 %v7093, %v7091
    %v8904 = vpack.c.b16 %v7094, %v7092
    %v8905 = vpack.c.b16 %v7097, %v7095
    %v8906 = vpack.c.b16 %v7098, %v7096
    %v8907 = vpack.c.b16 %v7101, %v7099
    %v8908 = vpack.c.b16 %v7102, %v7100
    %v8909 = vpack.c.b16 %v7105, %v7103
    %v8910 = vpack.c.b16 %v7106, %v7104
    %v8911 = vpack.c.b16 %v7109, %v7107
    %v8912 = vpack.c.b16 %v7110, %v7108
    %v8913 = vpack.c.b16 %v7113, %v7111
    %v8914 = vpack.c.b16 %v7114, %v7112
    %v8915 = vpack.c.b16 %v7117, %v7115
    %v8916 = vpack.c.b16 %v7118, %v7116
    %v8917 = vpack.c.b16 %v7121, %v7119
    %v8918 = vpack.c.b16 %v7122, %v7120
    %v8919 = vpack.c.b16 %v7125, %v7123
    %v8920 = vpack.c.b16 %v7126, %v7124
    %v8921 = vpack.c.b16 %v7129, %v7127
    %v8922 = vpack.c.b16 %v7130, %v7128
    %v8923 = vpack.c.b16 %v7133, %v7131
    %v8924 = vpack.c.b16 %v7134, %v7132
    %v8925 = vpack.c.b16 %v7137, %v7135
    %v8926 = vpack.c.b16 %v7138, %v7136
    %v8927 = vpack.c.b16 %v7141, %v7139
    %v8928 = vpack.c.b16 %v7142, %v7140
    %v8929 = vpack.c.b16 %v7145, %v7143
    %v8930 = vpack.c.b16 %v7146, %v7144
    %v8931 = vpack.c.b16 %v7149, %v7147
    %v8932 = vpack.c.b16 %v7150, %v7148
    %v8933 = vpack.c.b16 %v7153, %v7151
    %v8934 = vpack.c.b16 %v7154, %v7152
    %v8935 = vpack.c.b16 %v7157, %v7155
    %v8936 = vpack.c.b16 %v7158, %v7156
    %v8937 = vpack.c.b16 %v7161, %v7159
    %v8938 = vpack.c.b16 %v7162, %v7160
    %v8939 = vpack.c.b16 %v7165, %v7163
    %v8940 = vpack.c.b16 %v7166, %v7164
    %v8941 = vpack.c.b16 %v7169, %v7167
    %v8942 = vpack.c.b16 %v7170, %v7168
    %v8943 = vpack.c.b16 %v7173, %v7171
    %v8944 = vpack.c.b16 %v7174, %v7172
    %v8945 = vpack.c.b16 %v7177, %v7175
    %v8946 = vpack.c.b16 %v7178, %v7176
    %v8947 = vpack.c.b16 %v7181, %v7179
    %v8948 = vpack.c.b16 %v7182, %v7180
    %v8949 = vpack.c.b16 %v7185, %v7183
    %v8950 = vpack.c.b16 %v7186, %v7184
    %v8951 = vpack.c.b16 %v7189, %v7187
    %v8952 = vpack.c.b16 %v7190, %v7188
    %v8953 = vpack.c.b16 %v7193, %v7191
    %v8954 = vpack.c.b16 %v7194, %v7192
    %v8955 = vpack.c.b16 %v7197, %v7195
    %v8956 = vpack.c.b16 %v7198, %v7196
    %v8957 = vpack.c.b16 %v7201, %v7199
    %v8958 = vpack.c.b16 %v7202, %v7200
    %v8959 = vpack.c.b16 %v7205, %v7203
    %v8960 = vpack.c.b16 %v7206, %v7204
    %v8961 = vpack.c.b16 %v7209, %v7207
    %v8962 = vpack.c.b16 %v7210, %v7208
    %v8963 = vpack.c.b16 %v7213, %v7211
    %v8964 = vpack.c.b16 %v7214, %v7212
    %v8965 = vpack.c.b16 %v7217, %v7215
    %v8966 = vpack.c.b16 %v7218, %v7216
    %v8967 = vpack.c.b16 %v7221, %v7219
    %v8968 = vpack.c.b16 %v7222, %v7220
    %v8969 = vpack.c.b16 %v7225, %v7223
    %v8970 = vpack.c.b16 %v7226, %v7224
    %v8971 = vpack.c.b16 %v7229, %v7227
    %v8972 = vpack.c.b16 %v7230, %v7228
    %v8973 = vpack.c.b16 %v7233, %v7231
    %v8974 = vpack.c.b16 %v7234, %v7232
    %v8975 = vpack.c.b16 %v7237, %v7235
    %v8976 = vpack.c.b16 %v7238, %v7236
    %v8977 = vpack.c.b16 %v7241, %v7239
    %v8978 = vpack.c.b16 %v7242, %v7240
    %v8979 = vpack.c.b16 %v7245, %v7243
    %v8980 = vpack.c.b16 %v7246, %v7244
    %v8981 = vpack.c.b16 %v7249, %v7247
    %v8982 = vpack.c.b16 %v7250, %v7248
    %v8983 = vpack.c.b16 %v7253, %v7251
    %v8984 = vpack.c.b16 %v7254, %v7252
    %v8985 = vpack.c.b16 %v7257, %v7255
    %v8986 = vpack.c.b16 %v7258, %v7256
    %10715 = vmatprep.subr.bf16.mxu0 %v7274
    %10716 = vmatpush1.bf16.msra.mxu0 %v7273
    %10717 = vmatprep.subr.bf16.mxu0 %v7272
    %10718 = vmatpush1.bf16.msra.mxu0 %v7271
    %10719 = vmatprep.subr.bf16.mxu0 %v7270
    %10720 = vmatpush1.bf16.msra.mxu0 %v7269
    %10721 = vmatprep.subr.bf16.mxu0 %v7268
    %10722 = vmatpush1.bf16.msra.mxu0 %v7267
    %10723 = vmatprep.subr.bf16.mxu0 %v7266
    %10724 = vmatpush1.bf16.msra.mxu0 %v7265
    %10725 = vmatprep.subr.bf16.mxu0 %v7264
    %10726 = vmatpush1.bf16.msra.mxu0 %v7263
    %10727 = vmatprep.subr.bf16.mxu0 %v7262
    %10728 = vmatpush1.bf16.msra.mxu0 %v7261
    %10729 = vmatprep.subr.bf16.mxu0 %v7260
    %10730 = vmatpush1.bf16.msra.mxu0 %v7259
    %10731 = vmatprep.subr.bf16.mxu0 %v7290
    %10732 = vmatpush2.bf16.msra.mxu0 %v7289
    %10733 = vmatprep.subr.bf16.mxu0 %v7288
    %10734 = vmatpush2.bf16.msra.mxu0 %v7287
    %10735 = vmatprep.subr.bf16.mxu0 %v7286
    %10736 = vmatpush2.bf16.msra.mxu0 %v7285
    %10737 = vmatprep.subr.bf16.mxu0 %v7284
    %10738 = vmatpush2.bf16.msra.mxu0 %v7283
    %10739 = vmatprep.subr.bf16.mxu0 %v7282
    %10740 = vmatpush2.bf16.msra.mxu0 %v7281
    %10741 = vmatprep.subr.bf16.mxu0 %v7280
    %10742 = vmatpush2.bf16.msra.mxu0 %v7279
    %10743 = vmatprep.subr.bf16.mxu0 %v7278
    %10744 = vmatpush2.bf16.msra.mxu0 %v7277
    %10745 = vmatprep.subr.bf16.mxu0 %v7276
    %10746 = vmatpush2.bf16.msra.mxu0 %v7275
    %10747 = vmatprep.mubr.bf16.mxu0 %v228
    %10748 = vmatmul.mubr.bf16.gmra.mxu0 %v227
    %v10749 = vpop.f32.mrf.mxu0
    %v10750 = vadd.f32 %v2068, %v10749
    %v10751 = vpop.f32.mrf.mxu0
    %v10752 = vadd.f32 %v2072, %v10751
    %v10753 = vpop.f32.mrf.mxu0
    %v10754 = vpop.f32.mrf.mxu0
    %10755 = vdwg.mxu0
    %10756 = vmatprep.subr.bf16.mxu0 %v7306
    %10757 = vmatpush1.bf16.msra.mxu0 %v7305
    %10758 = vmatprep.subr.bf16.mxu0 %v7304
    %10759 = vmatpush1.bf16.msra.mxu0 %v7303
    %10760 = vmatprep.subr.bf16.mxu0 %v7302
    %10761 = vmatpush1.bf16.msra.mxu0 %v7301
    %10762 = vmatprep.subr.bf16.mxu0 %v7300
    %10763 = vmatpush1.bf16.msra.mxu0 %v7299
    %10764 = vmatprep.subr.bf16.mxu0 %v7298
    %10765 = vmatpush1.bf16.msra.mxu0 %v7297
    %10766 = vmatprep.subr.bf16.mxu0 %v7296
    %10767 = vmatpush1.bf16.msra.mxu0 %v7295
    %10768 = vmatprep.subr.bf16.mxu0 %v7294
    %10769 = vmatpush1.bf16.msra.mxu0 %v7293
    %10770 = vmatprep.subr.bf16.mxu0 %v7292
    %10771 = vmatpush1.bf16.msra.mxu0 %v7291
    %10772 = vmatprep.subr.bf16.mxu0 %v7322
    %10773 = vmatpush2.bf16.msra.mxu0 %v7321
    %10774 = vmatprep.subr.bf16.mxu0 %v7320
    %10775 = vmatpush2.bf16.msra.mxu0 %v7319
    %10776 = vmatprep.subr.bf16.mxu0 %v7318
    %10777 = vmatpush2.bf16.msra.mxu0 %v7317
    %10778 = vmatprep.subr.bf16.mxu0 %v7316
    %10779 = vmatpush2.bf16.msra.mxu0 %v7315
    %10780 = vmatprep.subr.bf16.mxu0 %v7314
    %10781 = vmatpush2.bf16.msra.mxu0 %v7313
    %10782 = vmatprep.subr.bf16.mxu0 %v7312
    %10783 = vmatpush2.bf16.msra.mxu0 %v7311
    %10784 = vmatprep.subr.bf16.mxu0 %v7310
    %10785 = vmatpush2.bf16.msra.mxu0 %v7309
    %10786 = vmatprep.subr.bf16.mxu0 %v7308
    %10787 = vmatpush2.bf16.msra.mxu0 %v7307
    %10788 = vmatprep.mubr.bf16.mxu0 %v230
    %10789 = vmatmul.mubr.bf16.gmra.mxu0 %v229
    %v10790 = vpop.f32.mrf.mxu0
    %v10791 = vadd.f32 %v10750, %v10790
    %v10792 = vpop.f32.mrf.mxu0
    %v10793 = vadd.f32 %v10752, %v10792
    %v10794 = vpop.f32.mrf.mxu0
    %v10795 = vpop.f32.mrf.mxu0
    %10796 = vdwg.mxu0
    %10797 = vmatprep.subr.bf16.mxu0 %v7338
    %10798 = vmatpush1.bf16.msra.mxu0 %v7337
    %10799 = vmatprep.subr.bf16.mxu0 %v7336
    %10800 = vmatpush1.bf16.msra.mxu0 %v7335
    %10801 = vmatprep.subr.bf16.mxu0 %v7334
    %10802 = vmatpush1.bf16.msra.mxu0 %v7333
    %10803 = vmatprep.subr.bf16.mxu0 %v7332
    %10804 = vmatpush1.bf16.msra.mxu0 %v7331
    %10805 = vmatprep.subr.bf16.mxu0 %v7330
    %10806 = vmatpush1.bf16.msra.mxu0 %v7329
    %10807 = vmatprep.subr.bf16.mxu0 %v7328
    %10808 = vmatpush1.bf16.msra.mxu0 %v7327
    %10809 = vmatprep.subr.bf16.mxu0 %v7326
    %10810 = vmatpush1.bf16.msra.mxu0 %v7325
    %10811 = vmatprep.subr.bf16.mxu0 %v7324
    %10812 = vmatpush1.bf16.msra.mxu0 %v7323
    %10813 = vmatprep.subr.bf16.mxu0 %v7354
    %10814 = vmatpush2.bf16.msra.mxu0 %v7353
    %10815 = vmatprep.subr.bf16.mxu0 %v7352
    %10816 = vmatpush2.bf16.msra.mxu0 %v7351
    %10817 = vmatprep.subr.bf16.mxu0 %v7350
    %10818 = vmatpush2.bf16.msra.mxu0 %v7349
    %10819 = vmatprep.subr.bf16.mxu0 %v7348
    %10820 = vmatpush2.bf16.msra.mxu0 %v7347
    %10821 = vmatprep.subr.bf16.mxu0 %v7346
    %10822 = vmatpush2.bf16.msra.mxu0 %v7345
    %10823 = vmatprep.subr.bf16.mxu0 %v7344
    %10824 = vmatpush2.bf16.msra.mxu0 %v7343
    %10825 = vmatprep.subr.bf16.mxu0 %v7342
    %10826 = vmatpush2.bf16.msra.mxu0 %v7341
    %10827 = vmatprep.subr.bf16.mxu0 %v7340
    %10828 = vmatpush2.bf16.msra.mxu0 %v7339
    %10829 = vmatprep.mubr.bf16.mxu0 %v232
    %10830 = vmatmul.mubr.bf16.gmra.mxu0 %v231
    %v10831 = vpop.f32.mrf.mxu0
    %v10832 = vadd.f32 %v10791, %v10831
    %v10833 = vpop.f32.mrf.mxu0
    %v10834 = vadd.f32 %v10793, %v10833
    %v10835 = vpop.f32.mrf.mxu0
    %v10836 = vpop.f32.mrf.mxu0
    %10837 = vdwg.mxu0
    %10838 = vmatprep.subr.bf16.mxu0 %v7370
    %10839 = vmatpush1.bf16.msra.mxu0 %v7369
    %10840 = vmatprep.subr.bf16.mxu0 %v7368
    %10841 = vmatpush1.bf16.msra.mxu0 %v7367
    %10842 = vmatprep.subr.bf16.mxu0 %v7366
    %10843 = vmatpush1.bf16.msra.mxu0 %v7365
    %10844 = vmatprep.subr.bf16.mxu0 %v7364
    %10845 = vmatpush1.bf16.msra.mxu0 %v7363
    %10846 = vmatprep.subr.bf16.mxu0 %v7362
    %10847 = vmatpush1.bf16.msra.mxu0 %v7361
    %10848 = vmatprep.subr.bf16.mxu0 %v7360
    %10849 = vmatpush1.bf16.msra.mxu0 %v7359
    %10850 = vmatprep.subr.bf16.mxu0 %v7358
    %10851 = vmatpush1.bf16.msra.mxu0 %v7357
    %10852 = vmatprep.subr.bf16.mxu0 %v7356
    %10853 = vmatpush1.bf16.msra.mxu0 %v7355
    %10854 = vmatprep.subr.bf16.mxu0 %v7386
    %10855 = vmatpush2.bf16.msra.mxu0 %v7385
    %10856 = vmatprep.subr.bf16.mxu0 %v7384
    %10857 = vmatpush2.bf16.msra.mxu0 %v7383
    %10858 = vmatprep.subr.bf16.mxu0 %v7382
    %10859 = vmatpush2.bf16.msra.mxu0 %v7381
    %10860 = vmatprep.subr.bf16.mxu0 %v7380
    %10861 = vmatpush2.bf16.msra.mxu0 %v7379
    %10862 = vmatprep.subr.bf16.mxu0 %v7378
    %10863 = vmatpush2.bf16.msra.mxu0 %v7377
    %10864 = vmatprep.subr.bf16.mxu0 %v7376
    %10865 = vmatpush2.bf16.msra.mxu0 %v7375
    %10866 = vmatprep.subr.bf16.mxu0 %v7374
    %10867 = vmatpush2.bf16.msra.mxu0 %v7373
    %10868 = vmatprep.subr.bf16.mxu0 %v7372
    %10869 = vmatpush2.bf16.msra.mxu0 %v7371
    %10870 = vmatprep.mubr.bf16.mxu0 %v234
    %10871 = vmatmul.mubr.bf16.gmra.mxu0 %v233
    %v10872 = vpop.f32.mrf.mxu0
    %v10873 = vadd.f32 %v10832, %v10872
    %v10874 = vpop.f32.mrf.mxu0
    %v10875 = vadd.f32 %v10834, %v10874
    %v10876 = vpop.f32.mrf.mxu0
    %v10877 = vpop.f32.mrf.mxu0
    %10878 = vdwg.mxu0
    %10879 = vmatprep.subr.bf16.mxu0 %v7402
    %10880 = vmatpush1.bf16.msra.mxu0 %v7401
    %10881 = vmatprep.subr.bf16.mxu0 %v7400
    %10882 = vmatpush1.bf16.msra.mxu0 %v7399
    %10883 = vmatprep.subr.bf16.mxu0 %v7398
    %10884 = vmatpush1.bf16.msra.mxu0 %v7397
    %10885 = vmatprep.subr.bf16.mxu0 %v7396
    %10886 = vmatpush1.bf16.msra.mxu0 %v7395
    %10887 = vmatprep.subr.bf16.mxu0 %v7394
    %10888 = vmatpush1.bf16.msra.mxu0 %v7393
    %10889 = vmatprep.subr.bf16.mxu0 %v7392
    %10890 = vmatpush1.bf16.msra.mxu0 %v7391
    %10891 = vmatprep.subr.bf16.mxu0 %v7390
    %10892 = vmatpush1.bf16.msra.mxu0 %v7389
    %10893 = vmatprep.subr.bf16.mxu0 %v7388
    %10894 = vmatpush1.bf16.msra.mxu0 %v7387
    %10895 = vmatprep.subr.bf16.mxu0 %v7418
    %10896 = vmatpush2.bf16.msra.mxu0 %v7417
    %10897 = vmatprep.subr.bf16.mxu0 %v7416
    %10898 = vmatpush2.bf16.msra.mxu0 %v7415
    %10899 = vmatprep.subr.bf16.mxu0 %v7414
    %10900 = vmatpush2.bf16.msra.mxu0 %v7413
    %10901 = vmatprep.subr.bf16.mxu0 %v7412
    %10902 = vmatpush2.bf16.msra.mxu0 %v7411
    %10903 = vmatprep.subr.bf16.mxu0 %v7410
    %10904 = vmatpush2.bf16.msra.mxu0 %v7409
    %10905 = vmatprep.subr.bf16.mxu0 %v7408
    %10906 = vmatpush2.bf16.msra.mxu0 %v7407
    %10907 = vmatprep.subr.bf16.mxu0 %v7406
    %10908 = vmatpush2.bf16.msra.mxu0 %v7405
    %10909 = vmatprep.subr.bf16.mxu0 %v7404
    %10910 = vmatpush2.bf16.msra.mxu0 %v7403
    %10911 = vmatprep.mubr.bf16.mxu0 %v236
    %10912 = vmatmul.mubr.bf16.gmra.mxu0 %v235
    %v10913 = vpop.f32.mrf.mxu0
    %v10914 = vadd.f32 %v10873, %v10913
    %v10915 = vpop.f32.mrf.mxu0
    %v10916 = vadd.f32 %v10875, %v10915
    %v10917 = vpop.f32.mrf.mxu0
    %v10918 = vpop.f32.mrf.mxu0
    %10919 = vdwg.mxu0
    %10920 = vmatprep.subr.bf16.mxu0 %v7434
    %10921 = vmatpush1.bf16.msra.mxu0 %v7433
    %10922 = vmatprep.subr.bf16.mxu0 %v7432
    %10923 = vmatpush1.bf16.msra.mxu0 %v7431
    %10924 = vmatprep.subr.bf16.mxu0 %v7430
    %10925 = vmatpush1.bf16.msra.mxu0 %v7429
    %10926 = vmatprep.subr.bf16.mxu0 %v7428
    %10927 = vmatpush1.bf16.msra.mxu0 %v7427
    %10928 = vmatprep.subr.bf16.mxu0 %v7426
    %10929 = vmatpush1.bf16.msra.mxu0 %v7425
    %10930 = vmatprep.subr.bf16.mxu0 %v7424
    %10931 = vmatpush1.bf16.msra.mxu0 %v7423
    %10932 = vmatprep.subr.bf16.mxu0 %v7422
    %10933 = vmatpush1.bf16.msra.mxu0 %v7421
    %10934 = vmatprep.subr.bf16.mxu0 %v7420
    %10935 = vmatpush1.bf16.msra.mxu0 %v7419
    %10936 = vmatprep.subr.bf16.mxu0 %v7450
    %10937 = vmatpush2.bf16.msra.mxu0 %v7449
    %10938 = vmatprep.subr.bf16.mxu0 %v7448
    %10939 = vmatpush2.bf16.msra.mxu0 %v7447
    %10940 = vmatprep.subr.bf16.mxu0 %v7446
    %10941 = vmatpush2.bf16.msra.mxu0 %v7445
    %10942 = vmatprep.subr.bf16.mxu0 %v7444
    %10943 = vmatpush2.bf16.msra.mxu0 %v7443
    %10944 = vmatprep.subr.bf16.mxu0 %v7442
    %10945 = vmatpush2.bf16.msra.mxu0 %v7441
    %10946 = vmatprep.subr.bf16.mxu0 %v7440
    %10947 = vmatpush2.bf16.msra.mxu0 %v7439
    %10948 = vmatprep.subr.bf16.mxu0 %v7438
    %10949 = vmatpush2.bf16.msra.mxu0 %v7437
    %10950 = vmatprep.subr.bf16.mxu0 %v7436
    %10951 = vmatpush2.bf16.msra.mxu0 %v7435
    %10952 = vmatprep.mubr.bf16.mxu0 %v238
    %10953 = vmatmul.mubr.bf16.gmra.mxu0 %v237
    %v10954 = vpop.f32.mrf.mxu0
    %v10955 = vadd.f32 %v10914, %v10954
    %v10956 = vpop.f32.mrf.mxu0
    %v10957 = vadd.f32 %v10916, %v10956
    %v10958 = vpop.f32.mrf.mxu0
    %v10959 = vpop.f32.mrf.mxu0
    %10960 = vdwg.mxu0
    %10961 = vmatprep.subr.bf16.mxu0 %v7466
    %10962 = vmatpush1.bf16.msra.mxu0 %v7465
    %10963 = vmatprep.subr.bf16.mxu0 %v7464
    %10964 = vmatpush1.bf16.msra.mxu0 %v7463
    %10965 = vmatprep.subr.bf16.mxu0 %v7462
    %10966 = vmatpush1.bf16.msra.mxu0 %v7461
    %10967 = vmatprep.subr.bf16.mxu0 %v7460
    %10968 = vmatpush1.bf16.msra.mxu0 %v7459
    %10969 = vmatprep.subr.bf16.mxu0 %v7458
    %10970 = vmatpush1.bf16.msra.mxu0 %v7457
    %10971 = vmatprep.subr.bf16.mxu0 %v7456
    %10972 = vmatpush1.bf16.msra.mxu0 %v7455
    %10973 = vmatprep.subr.bf16.mxu0 %v7454
    %10974 = vmatpush1.bf16.msra.mxu0 %v7453
    %10975 = vmatprep.subr.bf16.mxu0 %v7452
    %10976 = vmatpush1.bf16.msra.mxu0 %v7451
    %10977 = vmatprep.subr.bf16.mxu0 %v7482
    %10978 = vmatpush2.bf16.msra.mxu0 %v7481
    %10979 = vmatprep.subr.bf16.mxu0 %v7480
    %10980 = vmatpush2.bf16.msra.mxu0 %v7479
    %10981 = vmatprep.subr.bf16.mxu0 %v7478
    %10982 = vmatpush2.bf16.msra.mxu0 %v7477
    %10983 = vmatprep.subr.bf16.mxu0 %v7476
    %10984 = vmatpush2.bf16.msra.mxu0 %v7475
    %10985 = vmatprep.subr.bf16.mxu0 %v7474
    %10986 = vmatpush2.bf16.msra.mxu0 %v7473
    %10987 = vmatprep.subr.bf16.mxu0 %v7472
    %10988 = vmatpush2.bf16.msra.mxu0 %v7471
    %10989 = vmatprep.subr.bf16.mxu0 %v7470
    %10990 = vmatpush2.bf16.msra.mxu0 %v7469
    %10991 = vmatprep.subr.bf16.mxu0 %v7468
    %10992 = vmatpush2.bf16.msra.mxu0 %v7467
    %10993 = vmatprep.mubr.bf16.mxu0 %v240
    %10994 = vmatmul.mubr.bf16.gmra.mxu0 %v239
    %v10995 = vpop.f32.mrf.mxu0
    %v10996 = vadd.f32 %v10955, %v10995
    %v10997 = vpop.f32.mrf.mxu0
    %v10998 = vadd.f32 %v10957, %v10997
    %v10999 = vpop.f32.mrf.mxu0
    %v11000 = vpop.f32.mrf.mxu0
    %11001 = vdwg.mxu0
    %11002 = vmatprep.subr.bf16.mxu0 %v7498
    %11003 = vmatpush1.bf16.msra.mxu0 %v7497
    %11004 = vmatprep.subr.bf16.mxu0 %v7496
    %11005 = vmatpush1.bf16.msra.mxu0 %v7495
    %11006 = vmatprep.subr.bf16.mxu0 %v7494
    %11007 = vmatpush1.bf16.msra.mxu0 %v7493
    %11008 = vmatprep.subr.bf16.mxu0 %v7492
    %11009 = vmatpush1.bf16.msra.mxu0 %v7491
    %11010 = vmatprep.subr.bf16.mxu0 %v7490
    %11011 = vmatpush1.bf16.msra.mxu0 %v7489
    %11012 = vmatprep.subr.bf16.mxu0 %v7488
    %11013 = vmatpush1.bf16.msra.mxu0 %v7487
    %11014 = vmatprep.subr.bf16.mxu0 %v7486
    %11015 = vmatpush1.bf16.msra.mxu0 %v7485
    %11016 = vmatprep.subr.bf16.mxu0 %v7484
    %11017 = vmatpush1.bf16.msra.mxu0 %v7483
    %11018 = vmatprep.subr.bf16.mxu0 %v7514
    %11019 = vmatpush2.bf16.msra.mxu0 %v7513
    %11020 = vmatprep.subr.bf16.mxu0 %v7512
    %11021 = vmatpush2.bf16.msra.mxu0 %v7511
    %11022 = vmatprep.subr.bf16.mxu0 %v7510
    %11023 = vmatpush2.bf16.msra.mxu0 %v7509
    %11024 = vmatprep.subr.bf16.mxu0 %v7508
    %11025 = vmatpush2.bf16.msra.mxu0 %v7507
    %11026 = vmatprep.subr.bf16.mxu0 %v7506
    %11027 = vmatpush2.bf16.msra.mxu0 %v7505
    %11028 = vmatprep.subr.bf16.mxu0 %v7504
    %11029 = vmatpush2.bf16.msra.mxu0 %v7503
    %11030 = vmatprep.subr.bf16.mxu0 %v7502
    %11031 = vmatpush2.bf16.msra.mxu0 %v7501
    %11032 = vmatprep.subr.bf16.mxu0 %v7500
    %11033 = vmatpush2.bf16.msra.mxu0 %v7499
    %11034 = vmatprep.mubr.bf16.mxu0 %v242
    %11035 = vmatmul.mubr.bf16.gmra.mxu0 %v241
    %v11036 = vpop.f32.mrf.mxu0
    %v11037 = vadd.f32 %v10996, %v11036
    %v11038 = vpop.f32.mrf.mxu0
    %v11039 = vadd.f32 %v10998, %v11038
    %v11040 = vpop.f32.mrf.mxu0
    %v11041 = vpop.f32.mrf.mxu0
    %11042 = vdwg.mxu0
    %11043 = vmatprep.subr.bf16.mxu0 %v7530
    %11044 = vmatpush1.bf16.msra.mxu0 %v7529
    %11045 = vmatprep.subr.bf16.mxu0 %v7528
    %11046 = vmatpush1.bf16.msra.mxu0 %v7527
    %11047 = vmatprep.subr.bf16.mxu0 %v7526
    %11048 = vmatpush1.bf16.msra.mxu0 %v7525
    %11049 = vmatprep.subr.bf16.mxu0 %v7524
    %11050 = vmatpush1.bf16.msra.mxu0 %v7523
    %11051 = vmatprep.subr.bf16.mxu0 %v7522
    %11052 = vmatpush1.bf16.msra.mxu0 %v7521
    %11053 = vmatprep.subr.bf16.mxu0 %v7520
    %11054 = vmatpush1.bf16.msra.mxu0 %v7519
    %11055 = vmatprep.subr.bf16.mxu0 %v7518
    %11056 = vmatpush1.bf16.msra.mxu0 %v7517
    %11057 = vmatprep.subr.bf16.mxu0 %v7516
    %11058 = vmatpush1.bf16.msra.mxu0 %v7515
    %11059 = vmatprep.subr.bf16.mxu0 %v7546
    %11060 = vmatpush2.bf16.msra.mxu0 %v7545
    %11061 = vmatprep.subr.bf16.mxu0 %v7544
    %11062 = vmatpush2.bf16.msra.mxu0 %v7543
    %11063 = vmatprep.subr.bf16.mxu0 %v7542
    %11064 = vmatpush2.bf16.msra.mxu0 %v7541
    %11065 = vmatprep.subr.bf16.mxu0 %v7540
    %11066 = vmatpush2.bf16.msra.mxu0 %v7539
    %11067 = vmatprep.subr.bf16.mxu0 %v7538
    %11068 = vmatpush2.bf16.msra.mxu0 %v7537
    %11069 = vmatprep.subr.bf16.mxu0 %v7536
    %11070 = vmatpush2.bf16.msra.mxu0 %v7535
    %11071 = vmatprep.subr.bf16.mxu0 %v7534
    %11072 = vmatpush2.bf16.msra.mxu0 %v7533
    %11073 = vmatprep.subr.bf16.mxu0 %v7532
    %11074 = vmatpush2.bf16.msra.mxu0 %v7531
    %11075 = vmatprep.mubr.bf16.mxu0 %v244
    %11076 = vmatmul.mubr.bf16.gmra.mxu0 %v243
    %v11077 = vpop.f32.mrf.mxu0
    %v11078 = vadd.f32 %v11037, %v11077
    %v11079 = vpop.f32.mrf.mxu0
    %v11080 = vadd.f32 %v11039, %v11079
    %v11081 = vpop.f32.mrf.mxu0
    %v11082 = vpop.f32.mrf.mxu0
    %11083 = vdwg.mxu0
    %11084 = vmatprep.subr.bf16.mxu0 %v7562
    %11085 = vmatpush1.bf16.msra.mxu0 %v7561
    %11086 = vmatprep.subr.bf16.mxu0 %v7560
    %11087 = vmatpush1.bf16.msra.mxu0 %v7559
    %11088 = vmatprep.subr.bf16.mxu0 %v7558
    %11089 = vmatpush1.bf16.msra.mxu0 %v7557
    %11090 = vmatprep.subr.bf16.mxu0 %v7556
    %11091 = vmatpush1.bf16.msra.mxu0 %v7555
    %11092 = vmatprep.subr.bf16.mxu0 %v7554
    %11093 = vmatpush1.bf16.msra.mxu0 %v7553
    %11094 = vmatprep.subr.bf16.mxu0 %v7552
    %11095 = vmatpush1.bf16.msra.mxu0 %v7551
    %11096 = vmatprep.subr.bf16.mxu0 %v7550
    %11097 = vmatpush1.bf16.msra.mxu0 %v7549
    %11098 = vmatprep.subr.bf16.mxu0 %v7548
    %11099 = vmatpush1.bf16.msra.mxu0 %v7547
    %11100 = vmatprep.subr.bf16.mxu0 %v7578
    %11101 = vmatpush2.bf16.msra.mxu0 %v7577
    %11102 = vmatprep.subr.bf16.mxu0 %v7576
    %11103 = vmatpush2.bf16.msra.mxu0 %v7575
    %11104 = vmatprep.subr.bf16.mxu0 %v7574
    %11105 = vmatpush2.bf16.msra.mxu0 %v7573
    %11106 = vmatprep.subr.bf16.mxu0 %v7572
    %11107 = vmatpush2.bf16.msra.mxu0 %v7571
    %11108 = vmatprep.subr.bf16.mxu0 %v7570
    %11109 = vmatpush2.bf16.msra.mxu0 %v7569
    %11110 = vmatprep.subr.bf16.mxu0 %v7568
    %11111 = vmatpush2.bf16.msra.mxu0 %v7567
    %11112 = vmatprep.subr.bf16.mxu0 %v7566
    %11113 = vmatpush2.bf16.msra.mxu0 %v7565
    %11114 = vmatprep.subr.bf16.mxu0 %v7564
    %11115 = vmatpush2.bf16.msra.mxu0 %v7563
    %11116 = vmatprep.mubr.bf16.mxu0 %v246
    %11117 = vmatmul.mubr.bf16.gmra.mxu0 %v245
    %v11118 = vpop.f32.mrf.mxu0
    %v11119 = vadd.f32 %v11078, %v11118
    %v11120 = vpop.f32.mrf.mxu0
    %v11121 = vadd.f32 %v11080, %v11120
    %v11122 = vpop.f32.mrf.mxu0
    %v11123 = vpop.f32.mrf.mxu0
    %11124 = vdwg.mxu0
    %11125 = vmatprep.subr.bf16.mxu0 %v7594
    %11126 = vmatpush1.bf16.msra.mxu0 %v7593
    %11127 = vmatprep.subr.bf16.mxu0 %v7592
    %11128 = vmatpush1.bf16.msra.mxu0 %v7591
    %11129 = vmatprep.subr.bf16.mxu0 %v7590
    %11130 = vmatpush1.bf16.msra.mxu0 %v7589
    %11131 = vmatprep.subr.bf16.mxu0 %v7588
    %11132 = vmatpush1.bf16.msra.mxu0 %v7587
    %11133 = vmatprep.subr.bf16.mxu0 %v7586
    %11134 = vmatpush1.bf16.msra.mxu0 %v7585
    %11135 = vmatprep.subr.bf16.mxu0 %v7584
    %11136 = vmatpush1.bf16.msra.mxu0 %v7583
    %11137 = vmatprep.subr.bf16.mxu0 %v7582
    %11138 = vmatpush1.bf16.msra.mxu0 %v7581
    %11139 = vmatprep.subr.bf16.mxu0 %v7580
    %11140 = vmatpush1.bf16.msra.mxu0 %v7579
    %11141 = vmatprep.subr.bf16.mxu0 %v7610
    %11142 = vmatpush2.bf16.msra.mxu0 %v7609
    %11143 = vmatprep.subr.bf16.mxu0 %v7608
    %11144 = vmatpush2.bf16.msra.mxu0 %v7607
    %11145 = vmatprep.subr.bf16.mxu0 %v7606
    %11146 = vmatpush2.bf16.msra.mxu0 %v7605
    %11147 = vmatprep.subr.bf16.mxu0 %v7604
    %11148 = vmatpush2.bf16.msra.mxu0 %v7603
    %11149 = vmatprep.subr.bf16.mxu0 %v7602
    %11150 = vmatpush2.bf16.msra.mxu0 %v7601
    %11151 = vmatprep.subr.bf16.mxu0 %v7600
    %11152 = vmatpush2.bf16.msra.mxu0 %v7599
    %11153 = vmatprep.subr.bf16.mxu0 %v7598
    %11154 = vmatpush2.bf16.msra.mxu0 %v7597
    %11155 = vmatprep.subr.bf16.mxu0 %v7596
    %11156 = vmatpush2.bf16.msra.mxu0 %v7595
    %11157 = vmatprep.mubr.bf16.mxu0 %v248
    %11158 = vmatmul.mubr.bf16.gmra.mxu0 %v247
    %v11159 = vpop.f32.mrf.mxu0
    %v11160 = vadd.f32 %v11119, %v11159
    %v11161 = vpop.f32.mrf.mxu0
    %v11162 = vadd.f32 %v11121, %v11161
    %v11163 = vpop.f32.mrf.mxu0
    %v11164 = vpop.f32.mrf.mxu0
    %11165 = vdwg.mxu0
    %11166 = vmatprep.subr.bf16.mxu0 %v7626
    %11167 = vmatpush1.bf16.msra.mxu0 %v7625
    %11168 = vmatprep.subr.bf16.mxu0 %v7624
    %11169 = vmatpush1.bf16.msra.mxu0 %v7623
    %11170 = vmatprep.subr.bf16.mxu0 %v7622
    %11171 = vmatpush1.bf16.msra.mxu0 %v7621
    %11172 = vmatprep.subr.bf16.mxu0 %v7620
    %11173 = vmatpush1.bf16.msra.mxu0 %v7619
    %11174 = vmatprep.subr.bf16.mxu0 %v7618
    %11175 = vmatpush1.bf16.msra.mxu0 %v7617
    %11176 = vmatprep.subr.bf16.mxu0 %v7616
    %11177 = vmatpush1.bf16.msra.mxu0 %v7615
    %11178 = vmatprep.subr.bf16.mxu0 %v7614
    %11179 = vmatpush1.bf16.msra.mxu0 %v7613
    %11180 = vmatprep.subr.bf16.mxu0 %v7612
    %11181 = vmatpush1.bf16.msra.mxu0 %v7611
    %11182 = vmatprep.subr.bf16.mxu0 %v7642
    %11183 = vmatpush2.bf16.msra.mxu0 %v7641
    %11184 = vmatprep.subr.bf16.mxu0 %v7640
    %11185 = vmatpush2.bf16.msra.mxu0 %v7639
    %11186 = vmatprep.subr.bf16.mxu0 %v7638
    %11187 = vmatpush2.bf16.msra.mxu0 %v7637
    %11188 = vmatprep.subr.bf16.mxu0 %v7636
    %11189 = vmatpush2.bf16.msra.mxu0 %v7635
    %11190 = vmatprep.subr.bf16.mxu0 %v7634
    %11191 = vmatpush2.bf16.msra.mxu0 %v7633
    %11192 = vmatprep.subr.bf16.mxu0 %v7632
    %11193 = vmatpush2.bf16.msra.mxu0 %v7631
    %11194 = vmatprep.subr.bf16.mxu0 %v7630
    %11195 = vmatpush2.bf16.msra.mxu0 %v7629
    %11196 = vmatprep.subr.bf16.mxu0 %v7628
    %11197 = vmatpush2.bf16.msra.mxu0 %v7627
    %11198 = vmatprep.mubr.bf16.mxu0 %v250
    %11199 = vmatmul.mubr.bf16.gmra.mxu0 %v249
    %v11200 = vpop.f32.mrf.mxu0
    %v11201 = vadd.f32 %v11160, %v11200
    %v11202 = vpop.f32.mrf.mxu0
    %v11203 = vadd.f32 %v11162, %v11202
    %v11204 = vpop.f32.mrf.mxu0
    %v11205 = vpop.f32.mrf.mxu0
    %11206 = vdwg.mxu0
    %11207 = vmatprep.subr.bf16.mxu0 %v7658
    %11208 = vmatpush1.bf16.msra.mxu0 %v7657
    %11209 = vmatprep.subr.bf16.mxu0 %v7656
    %11210 = vmatpush1.bf16.msra.mxu0 %v7655
    %11211 = vmatprep.subr.bf16.mxu0 %v7654
    %11212 = vmatpush1.bf16.msra.mxu0 %v7653
    %11213 = vmatprep.subr.bf16.mxu0 %v7652
    %11214 = vmatpush1.bf16.msra.mxu0 %v7651
    %11215 = vmatprep.subr.bf16.mxu0 %v7650
    %11216 = vmatpush1.bf16.msra.mxu0 %v7649
    %11217 = vmatprep.subr.bf16.mxu0 %v7648
    %11218 = vmatpush1.bf16.msra.mxu0 %v7647
    %11219 = vmatprep.subr.bf16.mxu0 %v7646
    %11220 = vmatpush1.bf16.msra.mxu0 %v7645
    %11221 = vmatprep.subr.bf16.mxu0 %v7644
    %11222 = vmatpush1.bf16.msra.mxu0 %v7643
    %11223 = vmatprep.subr.bf16.mxu0 %v7674
    %11224 = vmatpush2.bf16.msra.mxu0 %v7673
    %11225 = vmatprep.subr.bf16.mxu0 %v7672
    %11226 = vmatpush2.bf16.msra.mxu0 %v7671
    %11227 = vmatprep.subr.bf16.mxu0 %v7670
    %11228 = vmatpush2.bf16.msra.mxu0 %v7669
    %11229 = vmatprep.subr.bf16.mxu0 %v7668
    %11230 = vmatpush2.bf16.msra.mxu0 %v7667
    %11231 = vmatprep.subr.bf16.mxu0 %v7666
    %11232 = vmatpush2.bf16.msra.mxu0 %v7665
    %11233 = vmatprep.subr.bf16.mxu0 %v7664
    %11234 = vmatpush2.bf16.msra.mxu0 %v7663
    %11235 = vmatprep.subr.bf16.mxu0 %v7662
    %11236 = vmatpush2.bf16.msra.mxu0 %v7661
    %11237 = vmatprep.subr.bf16.mxu0 %v7660
    %11238 = vmatpush2.bf16.msra.mxu0 %v7659
    %11239 = vmatprep.mubr.bf16.mxu0 %v252
    %11240 = vmatmul.mubr.bf16.gmra.mxu0 %v251
    %v11241 = vpop.f32.mrf.mxu0
    %v11242 = vadd.f32 %v11201, %v11241
    %v11243 = vpop.f32.mrf.mxu0
    %v11244 = vadd.f32 %v11203, %v11243
    %v11245 = vpop.f32.mrf.mxu0
    %v11246 = vpop.f32.mrf.mxu0
    %11247 = vdwg.mxu0
    %11248 = vmatprep.subr.bf16.mxu0 %v7690
    %11249 = vmatpush1.bf16.msra.mxu0 %v7689
    %11250 = vmatprep.subr.bf16.mxu0 %v7688
    %11251 = vmatpush1.bf16.msra.mxu0 %v7687
    %11252 = vmatprep.subr.bf16.mxu0 %v7686
    %11253 = vmatpush1.bf16.msra.mxu0 %v7685
    %11254 = vmatprep.subr.bf16.mxu0 %v7684
    %11255 = vmatpush1.bf16.msra.mxu0 %v7683
    %11256 = vmatprep.subr.bf16.mxu0 %v7682
    %11257 = vmatpush1.bf16.msra.mxu0 %v7681
    %11258 = vmatprep.subr.bf16.mxu0 %v7680
    %11259 = vmatpush1.bf16.msra.mxu0 %v7679
    %11260 = vmatprep.subr.bf16.mxu0 %v7678
    %11261 = vmatpush1.bf16.msra.mxu0 %v7677
    %11262 = vmatprep.subr.bf16.mxu0 %v7676
    %11263 = vmatpush1.bf16.msra.mxu0 %v7675
    %11264 = vmatprep.subr.bf16.mxu0 %v7706
    %11265 = vmatpush2.bf16.msra.mxu0 %v7705
    %11266 = vmatprep.subr.bf16.mxu0 %v7704
    %11267 = vmatpush2.bf16.msra.mxu0 %v7703
    %11268 = vmatprep.subr.bf16.mxu0 %v7702
    %11269 = vmatpush2.bf16.msra.mxu0 %v7701
    %11270 = vmatprep.subr.bf16.mxu0 %v7700
    %11271 = vmatpush2.bf16.msra.mxu0 %v7699
    %11272 = vmatprep.subr.bf16.mxu0 %v7698
    %11273 = vmatpush2.bf16.msra.mxu0 %v7697
    %11274 = vmatprep.subr.bf16.mxu0 %v7696
    %11275 = vmatpush2.bf16.msra.mxu0 %v7695
    %11276 = vmatprep.subr.bf16.mxu0 %v7694
    %11277 = vmatpush2.bf16.msra.mxu0 %v7693
    %11278 = vmatprep.subr.bf16.mxu0 %v7692
    %11279 = vmatpush2.bf16.msra.mxu0 %v7691
    %11280 = vmatprep.mubr.bf16.mxu0 %v254
    %11281 = vmatmul.mubr.bf16.gmra.mxu0 %v253
    %v11282 = vpop.f32.mrf.mxu0
    %v11283 = vadd.f32 %v11242, %v11282
    %v11284 = vpop.f32.mrf.mxu0
    %v11285 = vadd.f32 %v11244, %v11284
    %v11286 = vpop.f32.mrf.mxu0
    %v11287 = vpop.f32.mrf.mxu0
    %11288 = vdwg.mxu0
    %11289 = vmatprep.subr.bf16.mxu0 %v7722
    %11290 = vmatpush1.bf16.msra.mxu0 %v7721
    %11291 = vmatprep.subr.bf16.mxu0 %v7720
    %11292 = vmatpush1.bf16.msra.mxu0 %v7719
    %11293 = vmatprep.subr.bf16.mxu0 %v7718
    %11294 = vmatpush1.bf16.msra.mxu0 %v7717
    %11295 = vmatprep.subr.bf16.mxu0 %v7716
    %11296 = vmatpush1.bf16.msra.mxu0 %v7715
    %11297 = vmatprep.subr.bf16.mxu0 %v7714
    %11298 = vmatpush1.bf16.msra.mxu0 %v7713
    %11299 = vmatprep.subr.bf16.mxu0 %v7712
    %11300 = vmatpush1.bf16.msra.mxu0 %v7711
    %11301 = vmatprep.subr.bf16.mxu0 %v7710
    %11302 = vmatpush1.bf16.msra.mxu0 %v7709
    %11303 = vmatprep.subr.bf16.mxu0 %v7708
    %11304 = vmatpush1.bf16.msra.mxu0 %v7707
    %11305 = vmatprep.subr.bf16.mxu0 %v7738
    %11306 = vmatpush2.bf16.msra.mxu0 %v7737
    %11307 = vmatprep.subr.bf16.mxu0 %v7736
    %11308 = vmatpush2.bf16.msra.mxu0 %v7735
    %11309 = vmatprep.subr.bf16.mxu0 %v7734
    %11310 = vmatpush2.bf16.msra.mxu0 %v7733
    %11311 = vmatprep.subr.bf16.mxu0 %v7732
    %11312 = vmatpush2.bf16.msra.mxu0 %v7731
    %11313 = vmatprep.subr.bf16.mxu0 %v7730
    %11314 = vmatpush2.bf16.msra.mxu0 %v7729
    %11315 = vmatprep.subr.bf16.mxu0 %v7728
    %11316 = vmatpush2.bf16.msra.mxu0 %v7727
    %11317 = vmatprep.subr.bf16.mxu0 %v7726
    %11318 = vmatpush2.bf16.msra.mxu0 %v7725
    %11319 = vmatprep.subr.bf16.mxu0 %v7724
    %11320 = vmatpush2.bf16.msra.mxu0 %v7723
    %11321 = vmatprep.mubr.bf16.mxu0 %v256
    %11322 = vmatmul.mubr.bf16.gmra.mxu0 %v255
    %v11323 = vpop.f32.mrf.mxu0
    %v11324 = vadd.f32 %v11283, %v11323
    %v11325 = vpop.f32.mrf.mxu0
    %v11326 = vadd.f32 %v11285, %v11325
    %v11327 = vpop.f32.mrf.mxu0
    %v11328 = vpop.f32.mrf.mxu0
    %11329 = vdwg.mxu0
    %11330 = vmatprep.subr.bf16.mxu0 %v7754
    %11331 = vmatpush1.bf16.msra.mxu0 %v7753
    %11332 = vmatprep.subr.bf16.mxu0 %v7752
    %11333 = vmatpush1.bf16.msra.mxu0 %v7751
    %11334 = vmatprep.subr.bf16.mxu0 %v7750
    %11335 = vmatpush1.bf16.msra.mxu0 %v7749
    %11336 = vmatprep.subr.bf16.mxu0 %v7748
    %11337 = vmatpush1.bf16.msra.mxu0 %v7747
    %11338 = vmatprep.subr.bf16.mxu0 %v7746
    %11339 = vmatpush1.bf16.msra.mxu0 %v7745
    %11340 = vmatprep.subr.bf16.mxu0 %v7744
    %11341 = vmatpush1.bf16.msra.mxu0 %v7743
    %11342 = vmatprep.subr.bf16.mxu0 %v7742
    %11343 = vmatpush1.bf16.msra.mxu0 %v7741
    %11344 = vmatprep.subr.bf16.mxu0 %v7740
    %11345 = vmatpush1.bf16.msra.mxu0 %v7739
    %11346 = vmatprep.subr.bf16.mxu0 %v7770
    %11347 = vmatpush2.bf16.msra.mxu0 %v7769
    %11348 = vmatprep.subr.bf16.mxu0 %v7768
    %11349 = vmatpush2.bf16.msra.mxu0 %v7767
    %11350 = vmatprep.subr.bf16.mxu0 %v7766
    %11351 = vmatpush2.bf16.msra.mxu0 %v7765
    %11352 = vmatprep.subr.bf16.mxu0 %v7764
    %11353 = vmatpush2.bf16.msra.mxu0 %v7763
    %11354 = vmatprep.subr.bf16.mxu0 %v7762
    %11355 = vmatpush2.bf16.msra.mxu0 %v7761
    %11356 = vmatprep.subr.bf16.mxu0 %v7760
    %11357 = vmatpush2.bf16.msra.mxu0 %v7759
    %11358 = vmatprep.subr.bf16.mxu0 %v7758
    %11359 = vmatpush2.bf16.msra.mxu0 %v7757
    %11360 = vmatprep.subr.bf16.mxu0 %v7756
    %11361 = vmatpush2.bf16.msra.mxu0 %v7755
    %11362 = vmatprep.mubr.bf16.mxu0 %v258
    %11363 = vmatmul.mubr.bf16.gmra.mxu0 %v257
    %v11364 = vpop.f32.mrf.mxu0
    %v11365 = vadd.f32 %v11324, %v11364
    %v11366 = vpop.f32.mrf.mxu0
    %v11367 = vadd.f32 %v11326, %v11366
    %v11368 = vpop.f32.mrf.mxu0
    %v11369 = vpop.f32.mrf.mxu0
    %11370 = vdwg.mxu0
    %11371 = vmatprep.subr.bf16.mxu0 %v7786
    %11372 = vmatpush1.bf16.msra.mxu0 %v7785
    %11373 = vmatprep.subr.bf16.mxu0 %v7784
    %11374 = vmatpush1.bf16.msra.mxu0 %v7783
    %11375 = vmatprep.subr.bf16.mxu0 %v7782
    %11376 = vmatpush1.bf16.msra.mxu0 %v7781
    %11377 = vmatprep.subr.bf16.mxu0 %v7780
    %11378 = vmatpush1.bf16.msra.mxu0 %v7779
    %11379 = vmatprep.subr.bf16.mxu0 %v7778
    %11380 = vmatpush1.bf16.msra.mxu0 %v7777
    %11381 = vmatprep.subr.bf16.mxu0 %v7776
    %11382 = vmatpush1.bf16.msra.mxu0 %v7775
    %11383 = vmatprep.subr.bf16.mxu0 %v7774
    %11384 = vmatpush1.bf16.msra.mxu0 %v7773
    %11385 = vmatprep.subr.bf16.mxu0 %v7772
    %11386 = vmatpush1.bf16.msra.mxu0 %v7771
    %11387 = vmatprep.subr.bf16.mxu0 %v7802
    %11388 = vmatpush2.bf16.msra.mxu0 %v7801
    %11389 = vmatprep.subr.bf16.mxu0 %v7800
    %11390 = vmatpush2.bf16.msra.mxu0 %v7799
    %11391 = vmatprep.subr.bf16.mxu0 %v7798
    %11392 = vmatpush2.bf16.msra.mxu0 %v7797
    %11393 = vmatprep.subr.bf16.mxu0 %v7796
    %11394 = vmatpush2.bf16.msra.mxu0 %v7795
    %11395 = vmatprep.subr.bf16.mxu0 %v7794
    %11396 = vmatpush2.bf16.msra.mxu0 %v7793
    %11397 = vmatprep.subr.bf16.mxu0 %v7792
    %11398 = vmatpush2.bf16.msra.mxu0 %v7791
    %11399 = vmatprep.subr.bf16.mxu0 %v7790
    %11400 = vmatpush2.bf16.msra.mxu0 %v7789
    %11401 = vmatprep.subr.bf16.mxu0 %v7788
    %11402 = vmatpush2.bf16.msra.mxu0 %v7787
    %11403 = vmatprep.mubr.bf16.mxu0 %v260
    %11404 = vmatmul.mubr.bf16.gmra.mxu0 %v259
    %v11405 = vpop.f32.mrf.mxu0
    %v11406 = vadd.f32 %v11365, %v11405
    %v11407 = vpop.f32.mrf.mxu0
    %v11408 = vadd.f32 %v11367, %v11407
    %v11409 = vpop.f32.mrf.mxu0
    %v11410 = vpop.f32.mrf.mxu0
    %11411 = vdwg.mxu0
    %11412 = vmatprep.subr.bf16.mxu0 %v7818
    %11413 = vmatpush1.bf16.msra.mxu0 %v7817
    %11414 = vmatprep.subr.bf16.mxu0 %v7816
    %11415 = vmatpush1.bf16.msra.mxu0 %v7815
    %11416 = vmatprep.subr.bf16.mxu0 %v7814
    %11417 = vmatpush1.bf16.msra.mxu0 %v7813
    %11418 = vmatprep.subr.bf16.mxu0 %v7812
    %11419 = vmatpush1.bf16.msra.mxu0 %v7811
    %11420 = vmatprep.subr.bf16.mxu0 %v7810
    %11421 = vmatpush1.bf16.msra.mxu0 %v7809
    %11422 = vmatprep.subr.bf16.mxu0 %v7808
    %11423 = vmatpush1.bf16.msra.mxu0 %v7807
    %11424 = vmatprep.subr.bf16.mxu0 %v7806
    %11425 = vmatpush1.bf16.msra.mxu0 %v7805
    %11426 = vmatprep.subr.bf16.mxu0 %v7804
    %11427 = vmatpush1.bf16.msra.mxu0 %v7803
    %11428 = vmatprep.subr.bf16.mxu0 %v7834
    %11429 = vmatpush2.bf16.msra.mxu0 %v7833
    %11430 = vmatprep.subr.bf16.mxu0 %v7832
    %11431 = vmatpush2.bf16.msra.mxu0 %v7831
    %11432 = vmatprep.subr.bf16.mxu0 %v7830
    %11433 = vmatpush2.bf16.msra.mxu0 %v7829
    %11434 = vmatprep.subr.bf16.mxu0 %v7828
    %11435 = vmatpush2.bf16.msra.mxu0 %v7827
    %11436 = vmatprep.subr.bf16.mxu0 %v7826
    %11437 = vmatpush2.bf16.msra.mxu0 %v7825
    %11438 = vmatprep.subr.bf16.mxu0 %v7824
    %11439 = vmatpush2.bf16.msra.mxu0 %v7823
    %11440 = vmatprep.subr.bf16.mxu0 %v7822
    %11441 = vmatpush2.bf16.msra.mxu0 %v7821
    %11442 = vmatprep.subr.bf16.mxu0 %v7820
    %11443 = vmatpush2.bf16.msra.mxu0 %v7819
    %11444 = vmatprep.mubr.bf16.mxu0 %v262
    %11445 = vmatmul.mubr.bf16.gmra.mxu0 %v261
    %v11446 = vpop.f32.mrf.mxu0
    %v11447 = vadd.f32 %v11406, %v11446
    %v11448 = vpop.f32.mrf.mxu0
    %v11449 = vadd.f32 %v11408, %v11448
    %v11450 = vpop.f32.mrf.mxu0
    %v11451 = vpop.f32.mrf.mxu0
    %11452 = vdwg.mxu0
    %11453 = vmatprep.subr.bf16.mxu0 %v7850
    %11454 = vmatpush1.bf16.msra.mxu0 %v7849
    %11455 = vmatprep.subr.bf16.mxu0 %v7848
    %11456 = vmatpush1.bf16.msra.mxu0 %v7847
    %11457 = vmatprep.subr.bf16.mxu0 %v7846
    %11458 = vmatpush1.bf16.msra.mxu0 %v7845
    %11459 = vmatprep.subr.bf16.mxu0 %v7844
    %11460 = vmatpush1.bf16.msra.mxu0 %v7843
    %11461 = vmatprep.subr.bf16.mxu0 %v7842
    %11462 = vmatpush1.bf16.msra.mxu0 %v7841
    %11463 = vmatprep.subr.bf16.mxu0 %v7840
    %11464 = vmatpush1.bf16.msra.mxu0 %v7839
    %11465 = vmatprep.subr.bf16.mxu0 %v7838
    %11466 = vmatpush1.bf16.msra.mxu0 %v7837
    %11467 = vmatprep.subr.bf16.mxu0 %v7836
    %11468 = vmatpush1.bf16.msra.mxu0 %v7835
    %11469 = vmatprep.subr.bf16.mxu0 %v7866
    %11470 = vmatpush2.bf16.msra.mxu0 %v7865
    %11471 = vmatprep.subr.bf16.mxu0 %v7864
    %11472 = vmatpush2.bf16.msra.mxu0 %v7863
    %11473 = vmatprep.subr.bf16.mxu0 %v7862
    %11474 = vmatpush2.bf16.msra.mxu0 %v7861
    %11475 = vmatprep.subr.bf16.mxu0 %v7860
    %11476 = vmatpush2.bf16.msra.mxu0 %v7859
    %11477 = vmatprep.subr.bf16.mxu0 %v7858
    %11478 = vmatpush2.bf16.msra.mxu0 %v7857
    %11479 = vmatprep.subr.bf16.mxu0 %v7856
    %11480 = vmatpush2.bf16.msra.mxu0 %v7855
    %11481 = vmatprep.subr.bf16.mxu0 %v7854
    %11482 = vmatpush2.bf16.msra.mxu0 %v7853
    %11483 = vmatprep.subr.bf16.mxu0 %v7852
    %11484 = vmatpush2.bf16.msra.mxu0 %v7851
    %11485 = vmatprep.mubr.bf16.mxu0 %v264
    %11486 = vmatmul.mubr.bf16.gmra.mxu0 %v263
    %v11487 = vpop.f32.mrf.mxu0
    %v11488 = vadd.f32 %v11447, %v11487
    %v11489 = vpop.f32.mrf.mxu0
    %v11490 = vadd.f32 %v11449, %v11489
    %v11491 = vpop.f32.mrf.mxu0
    %v11492 = vpop.f32.mrf.mxu0
    %11493 = vdwg.mxu0
    %11494 = vmatprep.subr.bf16.mxu0 %v7882
    %11495 = vmatpush1.bf16.msra.mxu0 %v7881
    %11496 = vmatprep.subr.bf16.mxu0 %v7880
    %11497 = vmatpush1.bf16.msra.mxu0 %v7879
    %11498 = vmatprep.subr.bf16.mxu0 %v7878
    %11499 = vmatpush1.bf16.msra.mxu0 %v7877
    %11500 = vmatprep.subr.bf16.mxu0 %v7876
    %11501 = vmatpush1.bf16.msra.mxu0 %v7875
    %11502 = vmatprep.subr.bf16.mxu0 %v7874
    %11503 = vmatpush1.bf16.msra.mxu0 %v7873
    %11504 = vmatprep.subr.bf16.mxu0 %v7872
    %11505 = vmatpush1.bf16.msra.mxu0 %v7871
    %11506 = vmatprep.subr.bf16.mxu0 %v7870
    %11507 = vmatpush1.bf16.msra.mxu0 %v7869
    %11508 = vmatprep.subr.bf16.mxu0 %v7868
    %11509 = vmatpush1.bf16.msra.mxu0 %v7867
    %11510 = vmatprep.subr.bf16.mxu0 %v7898
    %11511 = vmatpush2.bf16.msra.mxu0 %v7897
    %11512 = vmatprep.subr.bf16.mxu0 %v7896
    %11513 = vmatpush2.bf16.msra.mxu0 %v7895
    %11514 = vmatprep.subr.bf16.mxu0 %v7894
    %11515 = vmatpush2.bf16.msra.mxu0 %v7893
    %11516 = vmatprep.subr.bf16.mxu0 %v7892
    %11517 = vmatpush2.bf16.msra.mxu0 %v7891
    %11518 = vmatprep.subr.bf16.mxu0 %v7890
    %11519 = vmatpush2.bf16.msra.mxu0 %v7889
    %11520 = vmatprep.subr.bf16.mxu0 %v7888
    %11521 = vmatpush2.bf16.msra.mxu0 %v7887
    %11522 = vmatprep.subr.bf16.mxu0 %v7886
    %11523 = vmatpush2.bf16.msra.mxu0 %v7885
    %11524 = vmatprep.subr.bf16.mxu0 %v7884
    %11525 = vmatpush2.bf16.msra.mxu0 %v7883
    %11526 = vmatprep.mubr.bf16.mxu0 %v266
    %11527 = vmatmul.mubr.bf16.gmra.mxu0 %v265
    %v11528 = vpop.f32.mrf.mxu0
    %v11529 = vadd.f32 %v11488, %v11528
    %v11530 = vpop.f32.mrf.mxu0
    %v11531 = vadd.f32 %v11490, %v11530
    %v11532 = vpop.f32.mrf.mxu0
    %v11533 = vpop.f32.mrf.mxu0
    %11534 = vdwg.mxu0
    %11535 = vmatprep.subr.bf16.mxu0 %v7914
    %11536 = vmatpush1.bf16.msra.mxu0 %v7913
    %11537 = vmatprep.subr.bf16.mxu0 %v7912
    %11538 = vmatpush1.bf16.msra.mxu0 %v7911
    %11539 = vmatprep.subr.bf16.mxu0 %v7910
    %11540 = vmatpush1.bf16.msra.mxu0 %v7909
    %11541 = vmatprep.subr.bf16.mxu0 %v7908
    %11542 = vmatpush1.bf16.msra.mxu0 %v7907
    %11543 = vmatprep.subr.bf16.mxu0 %v7906
    %11544 = vmatpush1.bf16.msra.mxu0 %v7905
    %11545 = vmatprep.subr.bf16.mxu0 %v7904
    %11546 = vmatpush1.bf16.msra.mxu0 %v7903
    %11547 = vmatprep.subr.bf16.mxu0 %v7902
    %11548 = vmatpush1.bf16.msra.mxu0 %v7901
    %11549 = vmatprep.subr.bf16.mxu0 %v7900
    %11550 = vmatpush1.bf16.msra.mxu0 %v7899
    %11551 = vmatprep.subr.bf16.mxu0 %v7930
    %11552 = vmatpush2.bf16.msra.mxu0 %v7929
    %11553 = vmatprep.subr.bf16.mxu0 %v7928
    %11554 = vmatpush2.bf16.msra.mxu0 %v7927
    %11555 = vmatprep.subr.bf16.mxu0 %v7926
    %11556 = vmatpush2.bf16.msra.mxu0 %v7925
    %11557 = vmatprep.subr.bf16.mxu0 %v7924
    %11558 = vmatpush2.bf16.msra.mxu0 %v7923
    %11559 = vmatprep.subr.bf16.mxu0 %v7922
    %11560 = vmatpush2.bf16.msra.mxu0 %v7921
    %11561 = vmatprep.subr.bf16.mxu0 %v7920
    %11562 = vmatpush2.bf16.msra.mxu0 %v7919
    %11563 = vmatprep.subr.bf16.mxu0 %v7918
    %11564 = vmatpush2.bf16.msra.mxu0 %v7917
    %11565 = vmatprep.subr.bf16.mxu0 %v7916
    %11566 = vmatpush2.bf16.msra.mxu0 %v7915
    %11567 = vmatprep.mubr.bf16.mxu0 %v268
    %11568 = vmatmul.mubr.bf16.gmra.mxu0 %v267
    %v11569 = vpop.f32.mrf.mxu0
    %v11570 = vadd.f32 %v11529, %v11569
    %v11571 = vpop.f32.mrf.mxu0
    %v11572 = vadd.f32 %v11531, %v11571
    %v11573 = vpop.f32.mrf.mxu0
    %v11574 = vpop.f32.mrf.mxu0
    %11575 = vdwg.mxu0
    %11576 = vmatprep.subr.bf16.mxu0 %v7946
    %11577 = vmatpush1.bf16.msra.mxu0 %v7945
    %11578 = vmatprep.subr.bf16.mxu0 %v7944
    %11579 = vmatpush1.bf16.msra.mxu0 %v7943
    %11580 = vmatprep.subr.bf16.mxu0 %v7942
    %11581 = vmatpush1.bf16.msra.mxu0 %v7941
    %11582 = vmatprep.subr.bf16.mxu0 %v7940
    %11583 = vmatpush1.bf16.msra.mxu0 %v7939
    %11584 = vmatprep.subr.bf16.mxu0 %v7938
    %11585 = vmatpush1.bf16.msra.mxu0 %v7937
    %11586 = vmatprep.subr.bf16.mxu0 %v7936
    %11587 = vmatpush1.bf16.msra.mxu0 %v7935
    %11588 = vmatprep.subr.bf16.mxu0 %v7934
    %11589 = vmatpush1.bf16.msra.mxu0 %v7933
    %11590 = vmatprep.subr.bf16.mxu0 %v7932
    %11591 = vmatpush1.bf16.msra.mxu0 %v7931
    %11592 = vmatprep.subr.bf16.mxu0 %v7962
    %11593 = vmatpush2.bf16.msra.mxu0 %v7961
    %11594 = vmatprep.subr.bf16.mxu0 %v7960
    %11595 = vmatpush2.bf16.msra.mxu0 %v7959
    %11596 = vmatprep.subr.bf16.mxu0 %v7958
    %11597 = vmatpush2.bf16.msra.mxu0 %v7957
    %11598 = vmatprep.subr.bf16.mxu0 %v7956
    %11599 = vmatpush2.bf16.msra.mxu0 %v7955
    %11600 = vmatprep.subr.bf16.mxu0 %v7954
    %11601 = vmatpush2.bf16.msra.mxu0 %v7953
    %11602 = vmatprep.subr.bf16.mxu0 %v7952
    %11603 = vmatpush2.bf16.msra.mxu0 %v7951
    %11604 = vmatprep.subr.bf16.mxu0 %v7950
    %11605 = vmatpush2.bf16.msra.mxu0 %v7949
    %11606 = vmatprep.subr.bf16.mxu0 %v7948
    %11607 = vmatpush2.bf16.msra.mxu0 %v7947
    %11608 = vmatprep.mubr.bf16.mxu0 %v270
    %11609 = vmatmul.mubr.bf16.gmra.mxu0 %v269
    %v11610 = vpop.f32.mrf.mxu0
    %v11611 = vadd.f32 %v11570, %v11610
    %v11612 = vpop.f32.mrf.mxu0
    %v11613 = vadd.f32 %v11572, %v11612
    %v11614 = vpop.f32.mrf.mxu0
    %v11615 = vpop.f32.mrf.mxu0
    %11616 = vdwg.mxu0
    %11617 = vmatprep.subr.bf16.mxu0 %v7978
    %11618 = vmatpush1.bf16.msra.mxu0 %v7977
    %11619 = vmatprep.subr.bf16.mxu0 %v7976
    %11620 = vmatpush1.bf16.msra.mxu0 %v7975
    %11621 = vmatprep.subr.bf16.mxu0 %v7974
    %11622 = vmatpush1.bf16.msra.mxu0 %v7973
    %11623 = vmatprep.subr.bf16.mxu0 %v7972
    %11624 = vmatpush1.bf16.msra.mxu0 %v7971
    %11625 = vmatprep.subr.bf16.mxu0 %v7970
    %11626 = vmatpush1.bf16.msra.mxu0 %v7969
    %11627 = vmatprep.subr.bf16.mxu0 %v7968
    %11628 = vmatpush1.bf16.msra.mxu0 %v7967
    %11629 = vmatprep.subr.bf16.mxu0 %v7966
    %11630 = vmatpush1.bf16.msra.mxu0 %v7965
    %11631 = vmatprep.subr.bf16.mxu0 %v7964
    %11632 = vmatpush1.bf16.msra.mxu0 %v7963
    %11633 = vmatprep.subr.bf16.mxu0 %v7994
    %11634 = vmatpush2.bf16.msra.mxu0 %v7993
    %11635 = vmatprep.subr.bf16.mxu0 %v7992
    %11636 = vmatpush2.bf16.msra.mxu0 %v7991
    %11637 = vmatprep.subr.bf16.mxu0 %v7990
    %11638 = vmatpush2.bf16.msra.mxu0 %v7989
    %11639 = vmatprep.subr.bf16.mxu0 %v7988
    %11640 = vmatpush2.bf16.msra.mxu0 %v7987
    %11641 = vmatprep.subr.bf16.mxu0 %v7986
    %11642 = vmatpush2.bf16.msra.mxu0 %v7985
    %11643 = vmatprep.subr.bf16.mxu0 %v7984
    %11644 = vmatpush2.bf16.msra.mxu0 %v7983
    %11645 = vmatprep.subr.bf16.mxu0 %v7982
    %11646 = vmatpush2.bf16.msra.mxu0 %v7981
    %11647 = vmatprep.subr.bf16.mxu0 %v7980
    %11648 = vmatpush2.bf16.msra.mxu0 %v7979
    %11649 = vmatprep.mubr.bf16.mxu0 %v272
    %11650 = vmatmul.mubr.bf16.gmra.mxu0 %v271
    %v11651 = vpop.f32.mrf.mxu0
    %v11652 = vadd.f32 %v11611, %v11651
    %v11653 = vpop.f32.mrf.mxu0
    %v11654 = vadd.f32 %v11613, %v11653
    %v11655 = vpop.f32.mrf.mxu0
    %v11656 = vpop.f32.mrf.mxu0
    %11657 = vdwg.mxu0
    %11658 = vmatprep.subr.bf16.mxu0 %v8010
    %11659 = vmatpush1.bf16.msra.mxu0 %v8009
    %11660 = vmatprep.subr.bf16.mxu0 %v8008
    %11661 = vmatpush1.bf16.msra.mxu0 %v8007
    %11662 = vmatprep.subr.bf16.mxu0 %v8006
    %11663 = vmatpush1.bf16.msra.mxu0 %v8005
    %11664 = vmatprep.subr.bf16.mxu0 %v8004
    %11665 = vmatpush1.bf16.msra.mxu0 %v8003
    %11666 = vmatprep.subr.bf16.mxu0 %v8002
    %11667 = vmatpush1.bf16.msra.mxu0 %v8001
    %11668 = vmatprep.subr.bf16.mxu0 %v8000
    %11669 = vmatpush1.bf16.msra.mxu0 %v7999
    %11670 = vmatprep.subr.bf16.mxu0 %v7998
    %11671 = vmatpush1.bf16.msra.mxu0 %v7997
    %11672 = vmatprep.subr.bf16.mxu0 %v7996
    %11673 = vmatpush1.bf16.msra.mxu0 %v7995
    %11674 = vmatprep.subr.bf16.mxu0 %v8026
    %11675 = vmatpush2.bf16.msra.mxu0 %v8025
    %11676 = vmatprep.subr.bf16.mxu0 %v8024
    %11677 = vmatpush2.bf16.msra.mxu0 %v8023
    %11678 = vmatprep.subr.bf16.mxu0 %v8022
    %11679 = vmatpush2.bf16.msra.mxu0 %v8021
    %11680 = vmatprep.subr.bf16.mxu0 %v8020
    %11681 = vmatpush2.bf16.msra.mxu0 %v8019
    %11682 = vmatprep.subr.bf16.mxu0 %v8018
    %11683 = vmatpush2.bf16.msra.mxu0 %v8017
    %11684 = vmatprep.subr.bf16.mxu0 %v8016
    %11685 = vmatpush2.bf16.msra.mxu0 %v8015
    %11686 = vmatprep.subr.bf16.mxu0 %v8014
    %11687 = vmatpush2.bf16.msra.mxu0 %v8013
    %11688 = vmatprep.subr.bf16.mxu0 %v8012
    %11689 = vmatpush2.bf16.msra.mxu0 %v8011
    %11690 = vmatprep.mubr.bf16.mxu0 %v274
    %11691 = vmatmul.mubr.bf16.gmra.mxu0 %v273
    %v11692 = vpop.f32.mrf.mxu0
    %v11693 = vadd.f32 %v11652, %v11692
    %v11694 = vpop.f32.mrf.mxu0
    %v11695 = vadd.f32 %v11654, %v11694
    %v11696 = vpop.f32.mrf.mxu0
    %v11697 = vpop.f32.mrf.mxu0
    %11698 = vdwg.mxu0
    %11699 = vmatprep.subr.bf16.mxu0 %v8042
    %11700 = vmatpush1.bf16.msra.mxu0 %v8041
    %11701 = vmatprep.subr.bf16.mxu0 %v8040
    %11702 = vmatpush1.bf16.msra.mxu0 %v8039
    %11703 = vmatprep.subr.bf16.mxu0 %v8038
    %11704 = vmatpush1.bf16.msra.mxu0 %v8037
    %11705 = vmatprep.subr.bf16.mxu0 %v8036
    %11706 = vmatpush1.bf16.msra.mxu0 %v8035
    %11707 = vmatprep.subr.bf16.mxu0 %v8034
    %11708 = vmatpush1.bf16.msra.mxu0 %v8033
    %11709 = vmatprep.subr.bf16.mxu0 %v8032
    %11710 = vmatpush1.bf16.msra.mxu0 %v8031
    %11711 = vmatprep.subr.bf16.mxu0 %v8030
    %11712 = vmatpush1.bf16.msra.mxu0 %v8029
    %11713 = vmatprep.subr.bf16.mxu0 %v8028
    %11714 = vmatpush1.bf16.msra.mxu0 %v8027
    %11715 = vmatprep.subr.bf16.mxu0 %v8058
    %11716 = vmatpush2.bf16.msra.mxu0 %v8057
    %11717 = vmatprep.subr.bf16.mxu0 %v8056
    %11718 = vmatpush2.bf16.msra.mxu0 %v8055
    %11719 = vmatprep.subr.bf16.mxu0 %v8054
    %11720 = vmatpush2.bf16.msra.mxu0 %v8053
    %11721 = vmatprep.subr.bf16.mxu0 %v8052
    %11722 = vmatpush2.bf16.msra.mxu0 %v8051
    %11723 = vmatprep.subr.bf16.mxu0 %v8050
    %11724 = vmatpush2.bf16.msra.mxu0 %v8049
    %11725 = vmatprep.subr.bf16.mxu0 %v8048
    %11726 = vmatpush2.bf16.msra.mxu0 %v8047
    %11727 = vmatprep.subr.bf16.mxu0 %v8046
    %11728 = vmatpush2.bf16.msra.mxu0 %v8045
    %11729 = vmatprep.subr.bf16.mxu0 %v8044
    %11730 = vmatpush2.bf16.msra.mxu0 %v8043
    %11731 = vmatprep.mubr.bf16.mxu0 %v276
    %11732 = vmatmul.mubr.bf16.gmra.mxu0 %v275
    %v11733 = vpop.f32.mrf.mxu0
    %v11734 = vadd.f32 %v11693, %v11733
    %v11735 = vpop.f32.mrf.mxu0
    %v11736 = vadd.f32 %v11695, %v11735
    %v11737 = vpop.f32.mrf.mxu0
    %v11738 = vpop.f32.mrf.mxu0
    %11739 = vdwg.mxu0
    %11740 = vmatprep.subr.bf16.mxu0 %v8074
    %11741 = vmatpush1.bf16.msra.mxu0 %v8073
    %11742 = vmatprep.subr.bf16.mxu0 %v8072
    %11743 = vmatpush1.bf16.msra.mxu0 %v8071
    %11744 = vmatprep.subr.bf16.mxu0 %v8070
    %11745 = vmatpush1.bf16.msra.mxu0 %v8069
    %11746 = vmatprep.subr.bf16.mxu0 %v8068
    %11747 = vmatpush1.bf16.msra.mxu0 %v8067
    %11748 = vmatprep.subr.bf16.mxu0 %v8066
    %11749 = vmatpush1.bf16.msra.mxu0 %v8065
    %11750 = vmatprep.subr.bf16.mxu0 %v8064
    %11751 = vmatpush1.bf16.msra.mxu0 %v8063
    %11752 = vmatprep.subr.bf16.mxu0 %v8062
    %11753 = vmatpush1.bf16.msra.mxu0 %v8061
    %11754 = vmatprep.subr.bf16.mxu0 %v8060
    %11755 = vmatpush1.bf16.msra.mxu0 %v8059
    %11756 = vmatprep.subr.bf16.mxu0 %v8090
    %11757 = vmatpush2.bf16.msra.mxu0 %v8089
    %11758 = vmatprep.subr.bf16.mxu0 %v8088
    %11759 = vmatpush2.bf16.msra.mxu0 %v8087
    %11760 = vmatprep.subr.bf16.mxu0 %v8086
    %11761 = vmatpush2.bf16.msra.mxu0 %v8085
    %11762 = vmatprep.subr.bf16.mxu0 %v8084
    %11763 = vmatpush2.bf16.msra.mxu0 %v8083
    %11764 = vmatprep.subr.bf16.mxu0 %v8082
    %11765 = vmatpush2.bf16.msra.mxu0 %v8081
    %11766 = vmatprep.subr.bf16.mxu0 %v8080
    %11767 = vmatpush2.bf16.msra.mxu0 %v8079
    %11768 = vmatprep.subr.bf16.mxu0 %v8078
    %11769 = vmatpush2.bf16.msra.mxu0 %v8077
    %11770 = vmatprep.subr.bf16.mxu0 %v8076
    %11771 = vmatpush2.bf16.msra.mxu0 %v8075
    %11772 = vmatprep.mubr.bf16.mxu0 %v278
    %11773 = vmatmul.mubr.bf16.gmra.mxu0 %v277
    %v11774 = vpop.f32.mrf.mxu0
    %v11775 = vadd.f32 %v11734, %v11774
    %v11776 = vpop.f32.mrf.mxu0
    %v11777 = vadd.f32 %v11736, %v11776
    %v11778 = vpop.f32.mrf.mxu0
    %v11779 = vpop.f32.mrf.mxu0
    %11780 = vdwg.mxu0
    %11781 = vmatprep.subr.bf16.mxu0 %v8106
    %11782 = vmatpush1.bf16.msra.mxu0 %v8105
    %11783 = vmatprep.subr.bf16.mxu0 %v8104
    %11784 = vmatpush1.bf16.msra.mxu0 %v8103
    %11785 = vmatprep.subr.bf16.mxu0 %v8102
    %11786 = vmatpush1.bf16.msra.mxu0 %v8101
    %11787 = vmatprep.subr.bf16.mxu0 %v8100
    %11788 = vmatpush1.bf16.msra.mxu0 %v8099
    %11789 = vmatprep.subr.bf16.mxu0 %v8098
    %11790 = vmatpush1.bf16.msra.mxu0 %v8097
    %11791 = vmatprep.subr.bf16.mxu0 %v8096
    %11792 = vmatpush1.bf16.msra.mxu0 %v8095
    %11793 = vmatprep.subr.bf16.mxu0 %v8094
    %11794 = vmatpush1.bf16.msra.mxu0 %v8093
    %11795 = vmatprep.subr.bf16.mxu0 %v8092
    %11796 = vmatpush1.bf16.msra.mxu0 %v8091
    %11797 = vmatprep.subr.bf16.mxu0 %v8122
    %11798 = vmatpush2.bf16.msra.mxu0 %v8121
    %11799 = vmatprep.subr.bf16.mxu0 %v8120
    %11800 = vmatpush2.bf16.msra.mxu0 %v8119
    %11801 = vmatprep.subr.bf16.mxu0 %v8118
    %11802 = vmatpush2.bf16.msra.mxu0 %v8117
    %11803 = vmatprep.subr.bf16.mxu0 %v8116
    %11804 = vmatpush2.bf16.msra.mxu0 %v8115
    %11805 = vmatprep.subr.bf16.mxu0 %v8114
    %11806 = vmatpush2.bf16.msra.mxu0 %v8113
    %11807 = vmatprep.subr.bf16.mxu0 %v8112
    %11808 = vmatpush2.bf16.msra.mxu0 %v8111
    %11809 = vmatprep.subr.bf16.mxu0 %v8110
    %11810 = vmatpush2.bf16.msra.mxu0 %v8109
    %11811 = vmatprep.subr.bf16.mxu0 %v8108
    %11812 = vmatpush2.bf16.msra.mxu0 %v8107
    %11813 = vmatprep.mubr.bf16.mxu0 %v280
    %11814 = vmatmul.mubr.bf16.gmra.mxu0 %v279
    %v11815 = vpop.f32.mrf.mxu0
    %v11816 = vadd.f32 %v11775, %v11815
    %v11817 = vpop.f32.mrf.mxu0
    %v11818 = vadd.f32 %v11777, %v11817
    %v11819 = vpop.f32.mrf.mxu0
    %v11820 = vpop.f32.mrf.mxu0
    %11821 = vdwg.mxu0
    %11822 = vmatprep.subr.bf16.mxu0 %v8138
    %11823 = vmatpush1.bf16.msra.mxu0 %v8137
    %11824 = vmatprep.subr.bf16.mxu0 %v8136
    %11825 = vmatpush1.bf16.msra.mxu0 %v8135
    %11826 = vmatprep.subr.bf16.mxu0 %v8134
    %11827 = vmatpush1.bf16.msra.mxu0 %v8133
    %11828 = vmatprep.subr.bf16.mxu0 %v8132
    %11829 = vmatpush1.bf16.msra.mxu0 %v8131
    %11830 = vmatprep.subr.bf16.mxu0 %v8130
    %11831 = vmatpush1.bf16.msra.mxu0 %v8129
    %11832 = vmatprep.subr.bf16.mxu0 %v8128
    %11833 = vmatpush1.bf16.msra.mxu0 %v8127
    %11834 = vmatprep.subr.bf16.mxu0 %v8126
    %11835 = vmatpush1.bf16.msra.mxu0 %v8125
    %11836 = vmatprep.subr.bf16.mxu0 %v8124
    %11837 = vmatpush1.bf16.msra.mxu0 %v8123
    %11838 = vmatprep.subr.bf16.mxu0 %v8154
    %11839 = vmatpush2.bf16.msra.mxu0 %v8153
    %11840 = vmatprep.subr.bf16.mxu0 %v8152
    %11841 = vmatpush2.bf16.msra.mxu0 %v8151
    %11842 = vmatprep.subr.bf16.mxu0 %v8150
    %11843 = vmatpush2.bf16.msra.mxu0 %v8149
    %11844 = vmatprep.subr.bf16.mxu0 %v8148
    %11845 = vmatpush2.bf16.msra.mxu0 %v8147
    %11846 = vmatprep.subr.bf16.mxu0 %v8146
    %11847 = vmatpush2.bf16.msra.mxu0 %v8145
    %11848 = vmatprep.subr.bf16.mxu0 %v8144
    %11849 = vmatpush2.bf16.msra.mxu0 %v8143
    %11850 = vmatprep.subr.bf16.mxu0 %v8142
    %11851 = vmatpush2.bf16.msra.mxu0 %v8141
    %11852 = vmatprep.subr.bf16.mxu0 %v8140
    %11853 = vmatpush2.bf16.msra.mxu0 %v8139
    %11854 = vmatprep.mubr.bf16.mxu0 %v282
    %11855 = vmatmul.mubr.bf16.gmra.mxu0 %v281
    %v11856 = vpop.f32.mrf.mxu0
    %v11857 = vadd.f32 %v11816, %v11856
    %v11858 = vpop.f32.mrf.mxu0
    %v11859 = vadd.f32 %v11818, %v11858
    %v11860 = vpop.f32.mrf.mxu0
    %v11861 = vpop.f32.mrf.mxu0
    %11862 = vdwg.mxu0
    %11863 = vmatprep.subr.bf16.mxu0 %v8170
    %11864 = vmatpush1.bf16.msra.mxu0 %v8169
    %11865 = vmatprep.subr.bf16.mxu0 %v8168
    %11866 = vmatpush1.bf16.msra.mxu0 %v8167
    %11867 = vmatprep.subr.bf16.mxu0 %v8166
    %11868 = vmatpush1.bf16.msra.mxu0 %v8165
    %11869 = vmatprep.subr.bf16.mxu0 %v8164
    %11870 = vmatpush1.bf16.msra.mxu0 %v8163
    %11871 = vmatprep.subr.bf16.mxu0 %v8162
    %11872 = vmatpush1.bf16.msra.mxu0 %v8161
    %11873 = vmatprep.subr.bf16.mxu0 %v8160
    %11874 = vmatpush1.bf16.msra.mxu0 %v8159
    %11875 = vmatprep.subr.bf16.mxu0 %v8158
    %11876 = vmatpush1.bf16.msra.mxu0 %v8157
    %11877 = vmatprep.subr.bf16.mxu0 %v8156
    %11878 = vmatpush1.bf16.msra.mxu0 %v8155
    %11879 = vmatprep.subr.bf16.mxu0 %v8186
    %11880 = vmatpush2.bf16.msra.mxu0 %v8185
    %11881 = vmatprep.subr.bf16.mxu0 %v8184
    %11882 = vmatpush2.bf16.msra.mxu0 %v8183
    %11883 = vmatprep.subr.bf16.mxu0 %v8182
    %11884 = vmatpush2.bf16.msra.mxu0 %v8181
    %11885 = vmatprep.subr.bf16.mxu0 %v8180
    %11886 = vmatpush2.bf16.msra.mxu0 %v8179
    %11887 = vmatprep.subr.bf16.mxu0 %v8178
    %11888 = vmatpush2.bf16.msra.mxu0 %v8177
    %11889 = vmatprep.subr.bf16.mxu0 %v8176
    %11890 = vmatpush2.bf16.msra.mxu0 %v8175
    %11891 = vmatprep.subr.bf16.mxu0 %v8174
    %11892 = vmatpush2.bf16.msra.mxu0 %v8173
    %11893 = vmatprep.subr.bf16.mxu0 %v8172
    %11894 = vmatpush2.bf16.msra.mxu0 %v8171
    %11895 = vmatprep.mubr.bf16.mxu0 %v284
    %11896 = vmatmul.mubr.bf16.gmra.mxu0 %v283
    %v11897 = vpop.f32.mrf.mxu0
    %v11898 = vadd.f32 %v11857, %v11897
    %v11899 = vpop.f32.mrf.mxu0
    %v11900 = vadd.f32 %v11859, %v11899
    %v11901 = vpop.f32.mrf.mxu0
    %v11902 = vpop.f32.mrf.mxu0
    %11903 = vdwg.mxu0
    %11904 = vmatprep.subr.bf16.mxu0 %v8202
    %11905 = vmatpush1.bf16.msra.mxu0 %v8201
    %11906 = vmatprep.subr.bf16.mxu0 %v8200
    %11907 = vmatpush1.bf16.msra.mxu0 %v8199
    %11908 = vmatprep.subr.bf16.mxu0 %v8198
    %11909 = vmatpush1.bf16.msra.mxu0 %v8197
    %11910 = vmatprep.subr.bf16.mxu0 %v8196
    %11911 = vmatpush1.bf16.msra.mxu0 %v8195
    %11912 = vmatprep.subr.bf16.mxu0 %v8194
    %11913 = vmatpush1.bf16.msra.mxu0 %v8193
    %11914 = vmatprep.subr.bf16.mxu0 %v8192
    %11915 = vmatpush1.bf16.msra.mxu0 %v8191
    %11916 = vmatprep.subr.bf16.mxu0 %v8190
    %11917 = vmatpush1.bf16.msra.mxu0 %v8189
    %11918 = vmatprep.subr.bf16.mxu0 %v8188
    %11919 = vmatpush1.bf16.msra.mxu0 %v8187
    %11920 = vmatprep.subr.bf16.mxu0 %v8218
    %11921 = vmatpush2.bf16.msra.mxu0 %v8217
    %11922 = vmatprep.subr.bf16.mxu0 %v8216
    %11923 = vmatpush2.bf16.msra.mxu0 %v8215
    %11924 = vmatprep.subr.bf16.mxu0 %v8214
    %11925 = vmatpush2.bf16.msra.mxu0 %v8213
    %11926 = vmatprep.subr.bf16.mxu0 %v8212
    %11927 = vmatpush2.bf16.msra.mxu0 %v8211
    %11928 = vmatprep.subr.bf16.mxu0 %v8210
    %11929 = vmatpush2.bf16.msra.mxu0 %v8209
    %11930 = vmatprep.subr.bf16.mxu0 %v8208
    %11931 = vmatpush2.bf16.msra.mxu0 %v8207
    %11932 = vmatprep.subr.bf16.mxu0 %v8206
    %11933 = vmatpush2.bf16.msra.mxu0 %v8205
    %11934 = vmatprep.subr.bf16.mxu0 %v8204
    %11935 = vmatpush2.bf16.msra.mxu0 %v8203
    %11936 = vmatprep.mubr.bf16.mxu0 %v286
    %11937 = vmatmul.mubr.bf16.gmra.mxu0 %v285
    %v11938 = vpop.f32.mrf.mxu0
    %v11939 = vadd.f32 %v11898, %v11938
    %v11940 = vpop.f32.mrf.mxu0
    %v11941 = vadd.f32 %v11900, %v11940
    %v11942 = vpop.f32.mrf.mxu0
    %v11943 = vpop.f32.mrf.mxu0
    %11944 = vdwg.mxu0
    %11945 = vmatprep.subr.bf16.mxu0 %v8234
    %11946 = vmatpush1.bf16.msra.mxu0 %v8233
    %11947 = vmatprep.subr.bf16.mxu0 %v8232
    %11948 = vmatpush1.bf16.msra.mxu0 %v8231
    %11949 = vmatprep.subr.bf16.mxu0 %v8230
    %11950 = vmatpush1.bf16.msra.mxu0 %v8229
    %11951 = vmatprep.subr.bf16.mxu0 %v8228
    %11952 = vmatpush1.bf16.msra.mxu0 %v8227
    %11953 = vmatprep.subr.bf16.mxu0 %v8226
    %11954 = vmatpush1.bf16.msra.mxu0 %v8225
    %11955 = vmatprep.subr.bf16.mxu0 %v8224
    %11956 = vmatpush1.bf16.msra.mxu0 %v8223
    %11957 = vmatprep.subr.bf16.mxu0 %v8222
    %11958 = vmatpush1.bf16.msra.mxu0 %v8221
    %11959 = vmatprep.subr.bf16.mxu0 %v8220
    %11960 = vmatpush1.bf16.msra.mxu0 %v8219
    %11961 = vmatprep.subr.bf16.mxu0 %v8250
    %11962 = vmatpush2.bf16.msra.mxu0 %v8249
    %11963 = vmatprep.subr.bf16.mxu0 %v8248
    %11964 = vmatpush2.bf16.msra.mxu0 %v8247
    %11965 = vmatprep.subr.bf16.mxu0 %v8246
    %11966 = vmatpush2.bf16.msra.mxu0 %v8245
    %11967 = vmatprep.subr.bf16.mxu0 %v8244
    %11968 = vmatpush2.bf16.msra.mxu0 %v8243
    %11969 = vmatprep.subr.bf16.mxu0 %v8242
    %11970 = vmatpush2.bf16.msra.mxu0 %v8241
    %11971 = vmatprep.subr.bf16.mxu0 %v8240
    %11972 = vmatpush2.bf16.msra.mxu0 %v8239
    %11973 = vmatprep.subr.bf16.mxu0 %v8238
    %11974 = vmatpush2.bf16.msra.mxu0 %v8237
    %11975 = vmatprep.subr.bf16.mxu0 %v8236
    %11976 = vmatpush2.bf16.msra.mxu0 %v8235
    %11977 = vmatprep.mubr.bf16.mxu0 %v288
    %11978 = vmatmul.mubr.bf16.gmra.mxu0 %v287
    %v11979 = vpop.f32.mrf.mxu0
    %v11980 = vadd.f32 %v11939, %v11979
    %v11981 = vpop.f32.mrf.mxu0
    %v11982 = vadd.f32 %v11941, %v11981
    %v11983 = vpop.f32.mrf.mxu0
    %v11984 = vpop.f32.mrf.mxu0
    %11985 = vdwg.mxu0
    %11986 = vmatprep.subr.bf16.mxu0 %v8266
    %11987 = vmatpush1.bf16.msra.mxu0 %v8265
    %11988 = vmatprep.subr.bf16.mxu0 %v8264
    %11989 = vmatpush1.bf16.msra.mxu0 %v8263
    %11990 = vmatprep.subr.bf16.mxu0 %v8262
    %11991 = vmatpush1.bf16.msra.mxu0 %v8261
    %11992 = vmatprep.subr.bf16.mxu0 %v8260
    %11993 = vmatpush1.bf16.msra.mxu0 %v8259
    %11994 = vmatprep.subr.bf16.mxu0 %v8258
    %11995 = vmatpush1.bf16.msra.mxu0 %v8257
    %11996 = vmatprep.subr.bf16.mxu0 %v8256
    %11997 = vmatpush1.bf16.msra.mxu0 %v8255
    %11998 = vmatprep.subr.bf16.mxu0 %v8254
    %11999 = vmatpush1.bf16.msra.mxu0 %v8253
    %12000 = vmatprep.subr.bf16.mxu0 %v8252
    %12001 = vmatpush1.bf16.msra.mxu0 %v8251
    %12002 = vmatprep.subr.bf16.mxu0 %v8282
    %12003 = vmatpush2.bf16.msra.mxu0 %v8281
    %12004 = vmatprep.subr.bf16.mxu0 %v8280
    %12005 = vmatpush2.bf16.msra.mxu0 %v8279
    %12006 = vmatprep.subr.bf16.mxu0 %v8278
    %12007 = vmatpush2.bf16.msra.mxu0 %v8277
    %12008 = vmatprep.subr.bf16.mxu0 %v8276
    %12009 = vmatpush2.bf16.msra.mxu0 %v8275
    %12010 = vmatprep.subr.bf16.mxu0 %v8274
    %12011 = vmatpush2.bf16.msra.mxu0 %v8273
    %12012 = vmatprep.subr.bf16.mxu0 %v8272
    %12013 = vmatpush2.bf16.msra.mxu0 %v8271
    %12014 = vmatprep.subr.bf16.mxu0 %v8270
    %12015 = vmatpush2.bf16.msra.mxu0 %v8269
    %12016 = vmatprep.subr.bf16.mxu0 %v8268
    %12017 = vmatpush2.bf16.msra.mxu0 %v8267
    %12018 = vmatprep.mubr.bf16.mxu0 %v290
    %12019 = vmatmul.mubr.bf16.gmra.mxu0 %v289
    %v12020 = vpop.f32.mrf.mxu0
    %v12021 = vadd.f32 %v11980, %v12020
    %v12022 = vpop.f32.mrf.mxu0
    %v12023 = vadd.f32 %v11982, %v12022
    %v12024 = vpop.f32.mrf.mxu0
    %v12025 = vpop.f32.mrf.mxu0
    %12026 = vdwg.mxu0
    %12027 = vmatprep.subr.bf16.mxu0 %v8298
    %12028 = vmatpush1.bf16.msra.mxu0 %v8297
    %12029 = vmatprep.subr.bf16.mxu0 %v8296
    %12030 = vmatpush1.bf16.msra.mxu0 %v8295
    %12031 = vmatprep.subr.bf16.mxu0 %v8294
    %12032 = vmatpush1.bf16.msra.mxu0 %v8293
    %12033 = vmatprep.subr.bf16.mxu0 %v8292
    %12034 = vmatpush1.bf16.msra.mxu0 %v8291
    %12035 = vmatprep.subr.bf16.mxu0 %v8290
    %12036 = vmatpush1.bf16.msra.mxu0 %v8289
    %12037 = vmatprep.subr.bf16.mxu0 %v8288
    %12038 = vmatpush1.bf16.msra.mxu0 %v8287
    %12039 = vmatprep.subr.bf16.mxu0 %v8286
    %12040 = vmatpush1.bf16.msra.mxu0 %v8285
    %12041 = vmatprep.subr.bf16.mxu0 %v8284
    %12042 = vmatpush1.bf16.msra.mxu0 %v8283
    %12043 = vmatprep.subr.bf16.mxu0 %v8314
    %12044 = vmatpush2.bf16.msra.mxu0 %v8313
    %12045 = vmatprep.subr.bf16.mxu0 %v8312
    %12046 = vmatpush2.bf16.msra.mxu0 %v8311
    %12047 = vmatprep.subr.bf16.mxu0 %v8310
    %12048 = vmatpush2.bf16.msra.mxu0 %v8309
    %12049 = vmatprep.subr.bf16.mxu0 %v8308
    %12050 = vmatpush2.bf16.msra.mxu0 %v8307
    %12051 = vmatprep.subr.bf16.mxu0 %v8306
    %12052 = vmatpush2.bf16.msra.mxu0 %v8305
    %12053 = vmatprep.subr.bf16.mxu0 %v8304
    %12054 = vmatpush2.bf16.msra.mxu0 %v8303
    %12055 = vmatprep.subr.bf16.mxu0 %v8302
    %12056 = vmatpush2.bf16.msra.mxu0 %v8301
    %12057 = vmatprep.subr.bf16.mxu0 %v8300
    %12058 = vmatpush2.bf16.msra.mxu0 %v8299
    %12059 = vmatprep.mubr.bf16.mxu0 %v292
    %12060 = vmatmul.mubr.bf16.gmra.mxu0 %v291
    %v12061 = vpop.f32.mrf.mxu0
    %v12062 = vadd.f32 %v12021, %v12061
    %v12063 = vpop.f32.mrf.mxu0
    %v12064 = vadd.f32 %v12023, %v12063
    %v12065 = vpop.f32.mrf.mxu0
    %v12066 = vpop.f32.mrf.mxu0
    %12067 = vdwg.mxu0
    %12068 = vmatprep.subr.bf16.mxu0 %v8330
    %12069 = vmatpush1.bf16.msra.mxu0 %v8329
    %12070 = vmatprep.subr.bf16.mxu0 %v8328
    %12071 = vmatpush1.bf16.msra.mxu0 %v8327
    %12072 = vmatprep.subr.bf16.mxu0 %v8326
    %12073 = vmatpush1.bf16.msra.mxu0 %v8325
    %12074 = vmatprep.subr.bf16.mxu0 %v8324
    %12075 = vmatpush1.bf16.msra.mxu0 %v8323
    %12076 = vmatprep.subr.bf16.mxu0 %v8322
    %12077 = vmatpush1.bf16.msra.mxu0 %v8321
    %12078 = vmatprep.subr.bf16.mxu0 %v8320
    %12079 = vmatpush1.bf16.msra.mxu0 %v8319
    %12080 = vmatprep.subr.bf16.mxu0 %v8318
    %12081 = vmatpush1.bf16.msra.mxu0 %v8317
    %12082 = vmatprep.subr.bf16.mxu0 %v8316
    %12083 = vmatpush1.bf16.msra.mxu0 %v8315
    %12084 = vmatprep.subr.bf16.mxu0 %v8346
    %12085 = vmatpush2.bf16.msra.mxu0 %v8345
    %12086 = vmatprep.subr.bf16.mxu0 %v8344
    %12087 = vmatpush2.bf16.msra.mxu0 %v8343
    %12088 = vmatprep.subr.bf16.mxu0 %v8342
    %12089 = vmatpush2.bf16.msra.mxu0 %v8341
    %12090 = vmatprep.subr.bf16.mxu0 %v8340
    %12091 = vmatpush2.bf16.msra.mxu0 %v8339
    %12092 = vmatprep.subr.bf16.mxu0 %v8338
    %12093 = vmatpush2.bf16.msra.mxu0 %v8337
    %12094 = vmatprep.subr.bf16.mxu0 %v8336
    %12095 = vmatpush2.bf16.msra.mxu0 %v8335
    %12096 = vmatprep.subr.bf16.mxu0 %v8334
    %12097 = vmatpush2.bf16.msra.mxu0 %v8333
    %12098 = vmatprep.subr.bf16.mxu0 %v8332
    %12099 = vmatpush2.bf16.msra.mxu0 %v8331
    %12100 = vmatprep.mubr.bf16.mxu0 %v294
    %12101 = vmatmul.mubr.bf16.gmra.mxu0 %v293
    %v12102 = vpop.f32.mrf.mxu0
    %v12103 = vadd.f32 %v12062, %v12102
    %v12104 = vpop.f32.mrf.mxu0
    %v12105 = vadd.f32 %v12064, %v12104
    %v12106 = vpop.f32.mrf.mxu0
    %v12107 = vpop.f32.mrf.mxu0
    %12108 = vdwg.mxu0
    %12109 = vmatprep.subr.bf16.mxu0 %v8362
    %12110 = vmatpush1.bf16.msra.mxu0 %v8361
    %12111 = vmatprep.subr.bf16.mxu0 %v8360
    %12112 = vmatpush1.bf16.msra.mxu0 %v8359
    %12113 = vmatprep.subr.bf16.mxu0 %v8358
    %12114 = vmatpush1.bf16.msra.mxu0 %v8357
    %12115 = vmatprep.subr.bf16.mxu0 %v8356
    %12116 = vmatpush1.bf16.msra.mxu0 %v8355
    %12117 = vmatprep.subr.bf16.mxu0 %v8354
    %12118 = vmatpush1.bf16.msra.mxu0 %v8353
    %12119 = vmatprep.subr.bf16.mxu0 %v8352
    %12120 = vmatpush1.bf16.msra.mxu0 %v8351
    %12121 = vmatprep.subr.bf16.mxu0 %v8350
    %12122 = vmatpush1.bf16.msra.mxu0 %v8349
    %12123 = vmatprep.subr.bf16.mxu0 %v8348
    %12124 = vmatpush1.bf16.msra.mxu0 %v8347
    %12125 = vmatprep.subr.bf16.mxu0 %v8378
    %12126 = vmatpush2.bf16.msra.mxu0 %v8377
    %12127 = vmatprep.subr.bf16.mxu0 %v8376
    %12128 = vmatpush2.bf16.msra.mxu0 %v8375
    %12129 = vmatprep.subr.bf16.mxu0 %v8374
    %12130 = vmatpush2.bf16.msra.mxu0 %v8373
    %12131 = vmatprep.subr.bf16.mxu0 %v8372
    %12132 = vmatpush2.bf16.msra.mxu0 %v8371
    %12133 = vmatprep.subr.bf16.mxu0 %v8370
    %12134 = vmatpush2.bf16.msra.mxu0 %v8369
    %12135 = vmatprep.subr.bf16.mxu0 %v8368
    %12136 = vmatpush2.bf16.msra.mxu0 %v8367
    %12137 = vmatprep.subr.bf16.mxu0 %v8366
    %12138 = vmatpush2.bf16.msra.mxu0 %v8365
    %12139 = vmatprep.subr.bf16.mxu0 %v8364
    %12140 = vmatpush2.bf16.msra.mxu0 %v8363
    %12141 = vmatprep.mubr.bf16.mxu0 %v296
    %12142 = vmatmul.mubr.bf16.gmra.mxu0 %v295
    %v12143 = vpop.f32.mrf.mxu0
    %v12144 = vadd.f32 %v12103, %v12143
    %v12145 = vpop.f32.mrf.mxu0
    %v12146 = vadd.f32 %v12105, %v12145
    %v12147 = vpop.f32.mrf.mxu0
    %v12148 = vpop.f32.mrf.mxu0
    %12149 = vdwg.mxu0
    %12150 = vmatprep.subr.bf16.mxu0 %v8394
    %12151 = vmatpush1.bf16.msra.mxu0 %v8393
    %12152 = vmatprep.subr.bf16.mxu0 %v8392
    %12153 = vmatpush1.bf16.msra.mxu0 %v8391
    %12154 = vmatprep.subr.bf16.mxu0 %v8390
    %12155 = vmatpush1.bf16.msra.mxu0 %v8389
    %12156 = vmatprep.subr.bf16.mxu0 %v8388
    %12157 = vmatpush1.bf16.msra.mxu0 %v8387
    %12158 = vmatprep.subr.bf16.mxu0 %v8386
    %12159 = vmatpush1.bf16.msra.mxu0 %v8385
    %12160 = vmatprep.subr.bf16.mxu0 %v8384
    %12161 = vmatpush1.bf16.msra.mxu0 %v8383
    %12162 = vmatprep.subr.bf16.mxu0 %v8382
    %12163 = vmatpush1.bf16.msra.mxu0 %v8381
    %12164 = vmatprep.subr.bf16.mxu0 %v8380
    %12165 = vmatpush1.bf16.msra.mxu0 %v8379
    %12166 = vmatprep.subr.bf16.mxu0 %v8410
    %12167 = vmatpush2.bf16.msra.mxu0 %v8409
    %12168 = vmatprep.subr.bf16.mxu0 %v8408
    %12169 = vmatpush2.bf16.msra.mxu0 %v8407
    %12170 = vmatprep.subr.bf16.mxu0 %v8406
    %12171 = vmatpush2.bf16.msra.mxu0 %v8405
    %12172 = vmatprep.subr.bf16.mxu0 %v8404
    %12173 = vmatpush2.bf16.msra.mxu0 %v8403
    %12174 = vmatprep.subr.bf16.mxu0 %v8402
    %12175 = vmatpush2.bf16.msra.mxu0 %v8401
    %12176 = vmatprep.subr.bf16.mxu0 %v8400
    %12177 = vmatpush2.bf16.msra.mxu0 %v8399
    %12178 = vmatprep.subr.bf16.mxu0 %v8398
    %12179 = vmatpush2.bf16.msra.mxu0 %v8397
    %12180 = vmatprep.subr.bf16.mxu0 %v8396
    %12181 = vmatpush2.bf16.msra.mxu0 %v8395
    %12182 = vmatprep.mubr.bf16.mxu0 %v298
    %12183 = vmatmul.mubr.bf16.gmra.mxu0 %v297
    %v12184 = vpop.f32.mrf.mxu0
    %v12185 = vadd.f32 %v12144, %v12184
    %v12186 = vpop.f32.mrf.mxu0
    %v12187 = vadd.f32 %v12146, %v12186
    %v12188 = vpop.f32.mrf.mxu0
    %v12189 = vpop.f32.mrf.mxu0
    %12190 = vdwg.mxu0
    %12191 = vmatprep.subr.bf16.mxu0 %v8426
    %12192 = vmatpush1.bf16.msra.mxu0 %v8425
    %12193 = vmatprep.subr.bf16.mxu0 %v8424
    %12194 = vmatpush1.bf16.msra.mxu0 %v8423
    %12195 = vmatprep.subr.bf16.mxu0 %v8422
    %12196 = vmatpush1.bf16.msra.mxu0 %v8421
    %12197 = vmatprep.subr.bf16.mxu0 %v8420
    %12198 = vmatpush1.bf16.msra.mxu0 %v8419
    %12199 = vmatprep.subr.bf16.mxu0 %v8418
    %12200 = vmatpush1.bf16.msra.mxu0 %v8417
    %12201 = vmatprep.subr.bf16.mxu0 %v8416
    %12202 = vmatpush1.bf16.msra.mxu0 %v8415
    %12203 = vmatprep.subr.bf16.mxu0 %v8414
    %12204 = vmatpush1.bf16.msra.mxu0 %v8413
    %12205 = vmatprep.subr.bf16.mxu0 %v8412
    %12206 = vmatpush1.bf16.msra.mxu0 %v8411
    %12207 = vmatprep.subr.bf16.mxu0 %v8442
    %12208 = vmatpush2.bf16.msra.mxu0 %v8441
    %12209 = vmatprep.subr.bf16.mxu0 %v8440
    %12210 = vmatpush2.bf16.msra.mxu0 %v8439
    %12211 = vmatprep.subr.bf16.mxu0 %v8438
    %12212 = vmatpush2.bf16.msra.mxu0 %v8437
    %12213 = vmatprep.subr.bf16.mxu0 %v8436
    %12214 = vmatpush2.bf16.msra.mxu0 %v8435
    %12215 = vmatprep.subr.bf16.mxu0 %v8434
    %12216 = vmatpush2.bf16.msra.mxu0 %v8433
    %12217 = vmatprep.subr.bf16.mxu0 %v8432
    %12218 = vmatpush2.bf16.msra.mxu0 %v8431
    %12219 = vmatprep.subr.bf16.mxu0 %v8430
    %12220 = vmatpush2.bf16.msra.mxu0 %v8429
    %12221 = vmatprep.subr.bf16.mxu0 %v8428
    %12222 = vmatpush2.bf16.msra.mxu0 %v8427
    %12223 = vmatprep.mubr.bf16.mxu0 %v300
    %12224 = vmatmul.mubr.bf16.gmra.mxu0 %v299
    %v12225 = vpop.f32.mrf.mxu0
    %v12226 = vadd.f32 %v12185, %v12225
    %v12227 = vpop.f32.mrf.mxu0
    %v12228 = vadd.f32 %v12187, %v12227
    %v12229 = vpop.f32.mrf.mxu0
    %v12230 = vpop.f32.mrf.mxu0
    %12231 = vdwg.mxu0
    %12232 = vmatprep.subr.bf16.mxu0 %v8458
    %12233 = vmatpush1.bf16.msra.mxu0 %v8457
    %12234 = vmatprep.subr.bf16.mxu0 %v8456
    %12235 = vmatpush1.bf16.msra.mxu0 %v8455
    %12236 = vmatprep.subr.bf16.mxu0 %v8454
    %12237 = vmatpush1.bf16.msra.mxu0 %v8453
    %12238 = vmatprep.subr.bf16.mxu0 %v8452
    %12239 = vmatpush1.bf16.msra.mxu0 %v8451
    %12240 = vmatprep.subr.bf16.mxu0 %v8450
    %12241 = vmatpush1.bf16.msra.mxu0 %v8449
    %12242 = vmatprep.subr.bf16.mxu0 %v8448
    %12243 = vmatpush1.bf16.msra.mxu0 %v8447
    %12244 = vmatprep.subr.bf16.mxu0 %v8446
    %12245 = vmatpush1.bf16.msra.mxu0 %v8445
    %12246 = vmatprep.subr.bf16.mxu0 %v8444
    %12247 = vmatpush1.bf16.msra.mxu0 %v8443
    %12248 = vmatprep.subr.bf16.mxu0 %v8474
    %12249 = vmatpush2.bf16.msra.mxu0 %v8473
    %12250 = vmatprep.subr.bf16.mxu0 %v8472
    %12251 = vmatpush2.bf16.msra.mxu0 %v8471
    %12252 = vmatprep.subr.bf16.mxu0 %v8470
    %12253 = vmatpush2.bf16.msra.mxu0 %v8469
    %12254 = vmatprep.subr.bf16.mxu0 %v8468
    %12255 = vmatpush2.bf16.msra.mxu0 %v8467
    %12256 = vmatprep.subr.bf16.mxu0 %v8466
    %12257 = vmatpush2.bf16.msra.mxu0 %v8465
    %12258 = vmatprep.subr.bf16.mxu0 %v8464
    %12259 = vmatpush2.bf16.msra.mxu0 %v8463
    %12260 = vmatprep.subr.bf16.mxu0 %v8462
    %12261 = vmatpush2.bf16.msra.mxu0 %v8461
    %12262 = vmatprep.subr.bf16.mxu0 %v8460
    %12263 = vmatpush2.bf16.msra.mxu0 %v8459
    %12264 = vmatprep.mubr.bf16.mxu0 %v302
    %12265 = vmatmul.mubr.bf16.gmra.mxu0 %v301
    %v12266 = vpop.f32.mrf.mxu0
    %v12267 = vadd.f32 %v12226, %v12266
    %v12268 = vpop.f32.mrf.mxu0
    %v12269 = vadd.f32 %v12228, %v12268
    %v12270 = vpop.f32.mrf.mxu0
    %v12271 = vpop.f32.mrf.mxu0
    %12272 = vdwg.mxu0
    %12273 = vmatprep.subr.bf16.mxu0 %v8490
    %12274 = vmatpush1.bf16.msra.mxu0 %v8489
    %12275 = vmatprep.subr.bf16.mxu0 %v8488
    %12276 = vmatpush1.bf16.msra.mxu0 %v8487
    %12277 = vmatprep.subr.bf16.mxu0 %v8486
    %12278 = vmatpush1.bf16.msra.mxu0 %v8485
    %12279 = vmatprep.subr.bf16.mxu0 %v8484
    %12280 = vmatpush1.bf16.msra.mxu0 %v8483
    %12281 = vmatprep.subr.bf16.mxu0 %v8482
    %12282 = vmatpush1.bf16.msra.mxu0 %v8481
    %12283 = vmatprep.subr.bf16.mxu0 %v8480
    %12284 = vmatpush1.bf16.msra.mxu0 %v8479
    %12285 = vmatprep.subr.bf16.mxu0 %v8478
    %12286 = vmatpush1.bf16.msra.mxu0 %v8477
    %12287 = vmatprep.subr.bf16.mxu0 %v8476
    %12288 = vmatpush1.bf16.msra.mxu0 %v8475
    %12289 = vmatprep.subr.bf16.mxu0 %v8506
    %12290 = vmatpush2.bf16.msra.mxu0 %v8505
    %12291 = vmatprep.subr.bf16.mxu0 %v8504
    %12292 = vmatpush2.bf16.msra.mxu0 %v8503
    %12293 = vmatprep.subr.bf16.mxu0 %v8502
    %12294 = vmatpush2.bf16.msra.mxu0 %v8501
    %12295 = vmatprep.subr.bf16.mxu0 %v8500
    %12296 = vmatpush2.bf16.msra.mxu0 %v8499
    %12297 = vmatprep.subr.bf16.mxu0 %v8498
    %12298 = vmatpush2.bf16.msra.mxu0 %v8497
    %12299 = vmatprep.subr.bf16.mxu0 %v8496
    %12300 = vmatpush2.bf16.msra.mxu0 %v8495
    %12301 = vmatprep.subr.bf16.mxu0 %v8494
    %12302 = vmatpush2.bf16.msra.mxu0 %v8493
    %12303 = vmatprep.subr.bf16.mxu0 %v8492
    %12304 = vmatpush2.bf16.msra.mxu0 %v8491
    %12305 = vmatprep.mubr.bf16.mxu0 %v304
    %12306 = vmatmul.mubr.bf16.gmra.mxu0 %v303
    %v12307 = vpop.f32.mrf.mxu0
    %v12308 = vadd.f32 %v12267, %v12307
    %v12309 = vpop.f32.mrf.mxu0
    %v12310 = vadd.f32 %v12269, %v12309
    %v12311 = vpop.f32.mrf.mxu0
    %v12312 = vpop.f32.mrf.mxu0
    %12313 = vdwg.mxu0
    %12314 = vmatprep.subr.bf16.mxu0 %v8522
    %12315 = vmatpush1.bf16.msra.mxu0 %v8521
    %12316 = vmatprep.subr.bf16.mxu0 %v8520
    %12317 = vmatpush1.bf16.msra.mxu0 %v8519
    %12318 = vmatprep.subr.bf16.mxu0 %v8518
    %12319 = vmatpush1.bf16.msra.mxu0 %v8517
    %12320 = vmatprep.subr.bf16.mxu0 %v8516
    %12321 = vmatpush1.bf16.msra.mxu0 %v8515
    %12322 = vmatprep.subr.bf16.mxu0 %v8514
    %12323 = vmatpush1.bf16.msra.mxu0 %v8513
    %12324 = vmatprep.subr.bf16.mxu0 %v8512
    %12325 = vmatpush1.bf16.msra.mxu0 %v8511
    %12326 = vmatprep.subr.bf16.mxu0 %v8510
    %12327 = vmatpush1.bf16.msra.mxu0 %v8509
    %12328 = vmatprep.subr.bf16.mxu0 %v8508
    %12329 = vmatpush1.bf16.msra.mxu0 %v8507
    %12330 = vmatprep.subr.bf16.mxu0 %v8538
    %12331 = vmatpush2.bf16.msra.mxu0 %v8537
    %12332 = vmatprep.subr.bf16.mxu0 %v8536
    %12333 = vmatpush2.bf16.msra.mxu0 %v8535
    %12334 = vmatprep.subr.bf16.mxu0 %v8534
    %12335 = vmatpush2.bf16.msra.mxu0 %v8533
    %12336 = vmatprep.subr.bf16.mxu0 %v8532
    %12337 = vmatpush2.bf16.msra.mxu0 %v8531
    %12338 = vmatprep.subr.bf16.mxu0 %v8530
    %12339 = vmatpush2.bf16.msra.mxu0 %v8529
    %12340 = vmatprep.subr.bf16.mxu0 %v8528
    %12341 = vmatpush2.bf16.msra.mxu0 %v8527
    %12342 = vmatprep.subr.bf16.mxu0 %v8526
    %12343 = vmatpush2.bf16.msra.mxu0 %v8525
    %12344 = vmatprep.subr.bf16.mxu0 %v8524
    %12345 = vmatpush2.bf16.msra.mxu0 %v8523
    %12346 = vmatprep.mubr.bf16.mxu0 %v306
    %12347 = vmatmul.mubr.bf16.gmra.mxu0 %v305
    %v12348 = vpop.f32.mrf.mxu0
    %v12349 = vadd.f32 %v12308, %v12348
    %v12350 = vpop.f32.mrf.mxu0
    %v12351 = vadd.f32 %v12310, %v12350
    %v12352 = vpop.f32.mrf.mxu0
    %v12353 = vpop.f32.mrf.mxu0
    %12354 = vdwg.mxu0
    %12355 = vmatprep.subr.bf16.mxu0 %v8554
    %12356 = vmatpush1.bf16.msra.mxu0 %v8553
    %12357 = vmatprep.subr.bf16.mxu0 %v8552
    %12358 = vmatpush1.bf16.msra.mxu0 %v8551
    %12359 = vmatprep.subr.bf16.mxu0 %v8550
    %12360 = vmatpush1.bf16.msra.mxu0 %v8549
    %12361 = vmatprep.subr.bf16.mxu0 %v8548
    %12362 = vmatpush1.bf16.msra.mxu0 %v8547
    %12363 = vmatprep.subr.bf16.mxu0 %v8546
    %12364 = vmatpush1.bf16.msra.mxu0 %v8545
    %12365 = vmatprep.subr.bf16.mxu0 %v8544
    %12366 = vmatpush1.bf16.msra.mxu0 %v8543
    %12367 = vmatprep.subr.bf16.mxu0 %v8542
    %12368 = vmatpush1.bf16.msra.mxu0 %v8541
    %12369 = vmatprep.subr.bf16.mxu0 %v8540
    %12370 = vmatpush1.bf16.msra.mxu0 %v8539
    %12371 = vmatprep.subr.bf16.mxu0 %v8570
    %12372 = vmatpush2.bf16.msra.mxu0 %v8569
    %12373 = vmatprep.subr.bf16.mxu0 %v8568
    %12374 = vmatpush2.bf16.msra.mxu0 %v8567
    %12375 = vmatprep.subr.bf16.mxu0 %v8566
    %12376 = vmatpush2.bf16.msra.mxu0 %v8565
    %12377 = vmatprep.subr.bf16.mxu0 %v8564
    %12378 = vmatpush2.bf16.msra.mxu0 %v8563
    %12379 = vmatprep.subr.bf16.mxu0 %v8562
    %12380 = vmatpush2.bf16.msra.mxu0 %v8561
    %12381 = vmatprep.subr.bf16.mxu0 %v8560
    %12382 = vmatpush2.bf16.msra.mxu0 %v8559
    %12383 = vmatprep.subr.bf16.mxu0 %v8558
    %12384 = vmatpush2.bf16.msra.mxu0 %v8557
    %12385 = vmatprep.subr.bf16.mxu0 %v8556
    %12386 = vmatpush2.bf16.msra.mxu0 %v8555
    %12387 = vmatprep.mubr.bf16.mxu0 %v308
    %12388 = vmatmul.mubr.bf16.gmra.mxu0 %v307
    %v12389 = vpop.f32.mrf.mxu0
    %v12390 = vadd.f32 %v12349, %v12389
    %v12391 = vpop.f32.mrf.mxu0
    %v12392 = vadd.f32 %v12351, %v12391
    %v12393 = vpop.f32.mrf.mxu0
    %v12394 = vpop.f32.mrf.mxu0
    %12395 = vdwg.mxu0
    %12396 = vmatprep.subr.bf16.mxu0 %v8586
    %12397 = vmatpush1.bf16.msra.mxu0 %v8585
    %12398 = vmatprep.subr.bf16.mxu0 %v8584
    %12399 = vmatpush1.bf16.msra.mxu0 %v8583
    %12400 = vmatprep.subr.bf16.mxu0 %v8582
    %12401 = vmatpush1.bf16.msra.mxu0 %v8581
    %12402 = vmatprep.subr.bf16.mxu0 %v8580
    %12403 = vmatpush1.bf16.msra.mxu0 %v8579
    %12404 = vmatprep.subr.bf16.mxu0 %v8578
    %12405 = vmatpush1.bf16.msra.mxu0 %v8577
    %12406 = vmatprep.subr.bf16.mxu0 %v8576
    %12407 = vmatpush1.bf16.msra.mxu0 %v8575
    %12408 = vmatprep.subr.bf16.mxu0 %v8574
    %12409 = vmatpush1.bf16.msra.mxu0 %v8573
    %12410 = vmatprep.subr.bf16.mxu0 %v8572
    %12411 = vmatpush1.bf16.msra.mxu0 %v8571
    %12412 = vmatprep.subr.bf16.mxu0 %v8602
    %12413 = vmatpush2.bf16.msra.mxu0 %v8601
    %12414 = vmatprep.subr.bf16.mxu0 %v8600
    %12415 = vmatpush2.bf16.msra.mxu0 %v8599
    %12416 = vmatprep.subr.bf16.mxu0 %v8598
    %12417 = vmatpush2.bf16.msra.mxu0 %v8597
    %12418 = vmatprep.subr.bf16.mxu0 %v8596
    %12419 = vmatpush2.bf16.msra.mxu0 %v8595
    %12420 = vmatprep.subr.bf16.mxu0 %v8594
    %12421 = vmatpush2.bf16.msra.mxu0 %v8593
    %12422 = vmatprep.subr.bf16.mxu0 %v8592
    %12423 = vmatpush2.bf16.msra.mxu0 %v8591
    %12424 = vmatprep.subr.bf16.mxu0 %v8590
    %12425 = vmatpush2.bf16.msra.mxu0 %v8589
    %12426 = vmatprep.subr.bf16.mxu0 %v8588
    %12427 = vmatpush2.bf16.msra.mxu0 %v8587
    %12428 = vmatprep.mubr.bf16.mxu0 %v310
    %12429 = vmatmul.mubr.bf16.gmra.mxu0 %v309
    %v12430 = vpop.f32.mrf.mxu0
    %v12431 = vadd.f32 %v12390, %v12430
    %v12432 = vpop.f32.mrf.mxu0
    %v12433 = vadd.f32 %v12392, %v12432
    %v12434 = vpop.f32.mrf.mxu0
    %v12435 = vpop.f32.mrf.mxu0
    %12436 = vdwg.mxu0
    %12437 = vmatprep.subr.bf16.mxu0 %v8618
    %12438 = vmatpush1.bf16.msra.mxu0 %v8617
    %12439 = vmatprep.subr.bf16.mxu0 %v8616
    %12440 = vmatpush1.bf16.msra.mxu0 %v8615
    %12441 = vmatprep.subr.bf16.mxu0 %v8614
    %12442 = vmatpush1.bf16.msra.mxu0 %v8613
    %12443 = vmatprep.subr.bf16.mxu0 %v8612
    %12444 = vmatpush1.bf16.msra.mxu0 %v8611
    %12445 = vmatprep.subr.bf16.mxu0 %v8610
    %12446 = vmatpush1.bf16.msra.mxu0 %v8609
    %12447 = vmatprep.subr.bf16.mxu0 %v8608
    %12448 = vmatpush1.bf16.msra.mxu0 %v8607
    %12449 = vmatprep.subr.bf16.mxu0 %v8606
    %12450 = vmatpush1.bf16.msra.mxu0 %v8605
    %12451 = vmatprep.subr.bf16.mxu0 %v8604
    %12452 = vmatpush1.bf16.msra.mxu0 %v8603
    %12453 = vmatprep.subr.bf16.mxu0 %v8634
    %12454 = vmatpush2.bf16.msra.mxu0 %v8633
    %12455 = vmatprep.subr.bf16.mxu0 %v8632
    %12456 = vmatpush2.bf16.msra.mxu0 %v8631
    %12457 = vmatprep.subr.bf16.mxu0 %v8630
    %12458 = vmatpush2.bf16.msra.mxu0 %v8629
    %12459 = vmatprep.subr.bf16.mxu0 %v8628
    %12460 = vmatpush2.bf16.msra.mxu0 %v8627
    %12461 = vmatprep.subr.bf16.mxu0 %v8626
    %12462 = vmatpush2.bf16.msra.mxu0 %v8625
    %12463 = vmatprep.subr.bf16.mxu0 %v8624
    %12464 = vmatpush2.bf16.msra.mxu0 %v8623
    %12465 = vmatprep.subr.bf16.mxu0 %v8622
    %12466 = vmatpush2.bf16.msra.mxu0 %v8621
    %12467 = vmatprep.subr.bf16.mxu0 %v8620
    %12468 = vmatpush2.bf16.msra.mxu0 %v8619
    %12469 = vmatprep.mubr.bf16.mxu0 %v312
    %12470 = vmatmul.mubr.bf16.gmra.mxu0 %v311
    %v12471 = vpop.f32.mrf.mxu0
    %v12472 = vadd.f32 %v12431, %v12471
    %v12473 = vpop.f32.mrf.mxu0
    %v12474 = vadd.f32 %v12433, %v12473
    %v12475 = vpop.f32.mrf.mxu0
    %v12476 = vpop.f32.mrf.mxu0
    %12477 = vdwg.mxu0
    %12478 = vmatprep.subr.bf16.mxu0 %v8650
    %12479 = vmatpush1.bf16.msra.mxu0 %v8649
    %12480 = vmatprep.subr.bf16.mxu0 %v8648
    %12481 = vmatpush1.bf16.msra.mxu0 %v8647
    %12482 = vmatprep.subr.bf16.mxu0 %v8646
    %12483 = vmatpush1.bf16.msra.mxu0 %v8645
    %12484 = vmatprep.subr.bf16.mxu0 %v8644
    %12485 = vmatpush1.bf16.msra.mxu0 %v8643
    %12486 = vmatprep.subr.bf16.mxu0 %v8642
    %12487 = vmatpush1.bf16.msra.mxu0 %v8641
    %12488 = vmatprep.subr.bf16.mxu0 %v8640
    %12489 = vmatpush1.bf16.msra.mxu0 %v8639
    %12490 = vmatprep.subr.bf16.mxu0 %v8638
    %12491 = vmatpush1.bf16.msra.mxu0 %v8637
    %12492 = vmatprep.subr.bf16.mxu0 %v8636
    %12493 = vmatpush1.bf16.msra.mxu0 %v8635
    %12494 = vmatprep.subr.bf16.mxu0 %v8666
    %12495 = vmatpush2.bf16.msra.mxu0 %v8665
    %12496 = vmatprep.subr.bf16.mxu0 %v8664
    %12497 = vmatpush2.bf16.msra.mxu0 %v8663
    %12498 = vmatprep.subr.bf16.mxu0 %v8662
    %12499 = vmatpush2.bf16.msra.mxu0 %v8661
    %12500 = vmatprep.subr.bf16.mxu0 %v8660
    %12501 = vmatpush2.bf16.msra.mxu0 %v8659
    %12502 = vmatprep.subr.bf16.mxu0 %v8658
    %12503 = vmatpush2.bf16.msra.mxu0 %v8657
    %12504 = vmatprep.subr.bf16.mxu0 %v8656
    %12505 = vmatpush2.bf16.msra.mxu0 %v8655
    %12506 = vmatprep.subr.bf16.mxu0 %v8654
    %12507 = vmatpush2.bf16.msra.mxu0 %v8653
    %12508 = vmatprep.subr.bf16.mxu0 %v8652
    %12509 = vmatpush2.bf16.msra.mxu0 %v8651
    %12510 = vmatprep.mubr.bf16.mxu0 %v314
    %12511 = vmatmul.mubr.bf16.gmra.mxu0 %v313
    %v12512 = vpop.f32.mrf.mxu0
    %v12513 = vadd.f32 %v12472, %v12512
    %v12514 = vpop.f32.mrf.mxu0
    %v12515 = vadd.f32 %v12474, %v12514
    %v12516 = vpop.f32.mrf.mxu0
    %v12517 = vpop.f32.mrf.mxu0
    %12518 = vdwg.mxu0
    %12519 = vmatprep.subr.bf16.mxu0 %v8682
    %12520 = vmatpush1.bf16.msra.mxu0 %v8681
    %12521 = vmatprep.subr.bf16.mxu0 %v8680
    %12522 = vmatpush1.bf16.msra.mxu0 %v8679
    %12523 = vmatprep.subr.bf16.mxu0 %v8678
    %12524 = vmatpush1.bf16.msra.mxu0 %v8677
    %12525 = vmatprep.subr.bf16.mxu0 %v8676
    %12526 = vmatpush1.bf16.msra.mxu0 %v8675
    %12527 = vmatprep.subr.bf16.mxu0 %v8674
    %12528 = vmatpush1.bf16.msra.mxu0 %v8673
    %12529 = vmatprep.subr.bf16.mxu0 %v8672
    %12530 = vmatpush1.bf16.msra.mxu0 %v8671
    %12531 = vmatprep.subr.bf16.mxu0 %v8670
    %12532 = vmatpush1.bf16.msra.mxu0 %v8669
    %12533 = vmatprep.subr.bf16.mxu0 %v8668
    %12534 = vmatpush1.bf16.msra.mxu0 %v8667
    %12535 = vmatprep.subr.bf16.mxu0 %v8698
    %12536 = vmatpush2.bf16.msra.mxu0 %v8697
    %12537 = vmatprep.subr.bf16.mxu0 %v8696
    %12538 = vmatpush2.bf16.msra.mxu0 %v8695
    %12539 = vmatprep.subr.bf16.mxu0 %v8694
    %12540 = vmatpush2.bf16.msra.mxu0 %v8693
    %12541 = vmatprep.subr.bf16.mxu0 %v8692
    %12542 = vmatpush2.bf16.msra.mxu0 %v8691
    %12543 = vmatprep.subr.bf16.mxu0 %v8690
    %12544 = vmatpush2.bf16.msra.mxu0 %v8689
    %12545 = vmatprep.subr.bf16.mxu0 %v8688
    %12546 = vmatpush2.bf16.msra.mxu0 %v8687
    %12547 = vmatprep.subr.bf16.mxu0 %v8686
    %12548 = vmatpush2.bf16.msra.mxu0 %v8685
    %12549 = vmatprep.subr.bf16.mxu0 %v8684
    %12550 = vmatpush2.bf16.msra.mxu0 %v8683
    %12551 = vmatprep.mubr.bf16.mxu0 %v316
    %12552 = vmatmul.mubr.bf16.gmra.mxu0 %v315
    %v12553 = vpop.f32.mrf.mxu0
    %v12554 = vadd.f32 %v12513, %v12553
    %v12555 = vpop.f32.mrf.mxu0
    %v12556 = vadd.f32 %v12515, %v12555
    %v12557 = vpop.f32.mrf.mxu0
    %v12558 = vpop.f32.mrf.mxu0
    %12559 = vdwg.mxu0
    %12560 = vmatprep.subr.bf16.mxu0 %v8714
    %12561 = vmatpush1.bf16.msra.mxu0 %v8713
    %12562 = vmatprep.subr.bf16.mxu0 %v8712
    %12563 = vmatpush1.bf16.msra.mxu0 %v8711
    %12564 = vmatprep.subr.bf16.mxu0 %v8710
    %12565 = vmatpush1.bf16.msra.mxu0 %v8709
    %12566 = vmatprep.subr.bf16.mxu0 %v8708
    %12567 = vmatpush1.bf16.msra.mxu0 %v8707
    %12568 = vmatprep.subr.bf16.mxu0 %v8706
    %12569 = vmatpush1.bf16.msra.mxu0 %v8705
    %12570 = vmatprep.subr.bf16.mxu0 %v8704
    %12571 = vmatpush1.bf16.msra.mxu0 %v8703
    %12572 = vmatprep.subr.bf16.mxu0 %v8702
    %12573 = vmatpush1.bf16.msra.mxu0 %v8701
    %12574 = vmatprep.subr.bf16.mxu0 %v8700
    %12575 = vmatpush1.bf16.msra.mxu0 %v8699
    %12576 = vmatprep.subr.bf16.mxu0 %v8730
    %12577 = vmatpush2.bf16.msra.mxu0 %v8729
    %12578 = vmatprep.subr.bf16.mxu0 %v8728
    %12579 = vmatpush2.bf16.msra.mxu0 %v8727
    %12580 = vmatprep.subr.bf16.mxu0 %v8726
    %12581 = vmatpush2.bf16.msra.mxu0 %v8725
    %12582 = vmatprep.subr.bf16.mxu0 %v8724
    %12583 = vmatpush2.bf16.msra.mxu0 %v8723
    %12584 = vmatprep.subr.bf16.mxu0 %v8722
    %12585 = vmatpush2.bf16.msra.mxu0 %v8721
    %12586 = vmatprep.subr.bf16.mxu0 %v8720
    %12587 = vmatpush2.bf16.msra.mxu0 %v8719
    %12588 = vmatprep.subr.bf16.mxu0 %v8718
    %12589 = vmatpush2.bf16.msra.mxu0 %v8717
    %12590 = vmatprep.subr.bf16.mxu0 %v8716
    %12591 = vmatpush2.bf16.msra.mxu0 %v8715
    %12592 = vmatprep.mubr.bf16.mxu0 %v318
    %12593 = vmatmul.mubr.bf16.gmra.mxu0 %v317
    %v12594 = vpop.f32.mrf.mxu0
    %v12595 = vadd.f32 %v12554, %v12594
    %v12596 = vpop.f32.mrf.mxu0
    %v12597 = vadd.f32 %v12556, %v12596
    %v12598 = vpop.f32.mrf.mxu0
    %v12599 = vpop.f32.mrf.mxu0
    %12600 = vdwg.mxu0
    %12601 = vmatprep.subr.bf16.mxu0 %v8746
    %12602 = vmatpush1.bf16.msra.mxu0 %v8745
    %12603 = vmatprep.subr.bf16.mxu0 %v8744
    %12604 = vmatpush1.bf16.msra.mxu0 %v8743
    %12605 = vmatprep.subr.bf16.mxu0 %v8742
    %12606 = vmatpush1.bf16.msra.mxu0 %v8741
    %12607 = vmatprep.subr.bf16.mxu0 %v8740
    %12608 = vmatpush1.bf16.msra.mxu0 %v8739
    %12609 = vmatprep.subr.bf16.mxu0 %v8738
    %12610 = vmatpush1.bf16.msra.mxu0 %v8737
    %12611 = vmatprep.subr.bf16.mxu0 %v8736
    %12612 = vmatpush1.bf16.msra.mxu0 %v8735
    %12613 = vmatprep.subr.bf16.mxu0 %v8734
    %12614 = vmatpush1.bf16.msra.mxu0 %v8733
    %12615 = vmatprep.subr.bf16.mxu0 %v8732
    %12616 = vmatpush1.bf16.msra.mxu0 %v8731
    %12617 = vmatprep.subr.bf16.mxu0 %v8762
    %12618 = vmatpush2.bf16.msra.mxu0 %v8761
    %12619 = vmatprep.subr.bf16.mxu0 %v8760
    %12620 = vmatpush2.bf16.msra.mxu0 %v8759
    %12621 = vmatprep.subr.bf16.mxu0 %v8758
    %12622 = vmatpush2.bf16.msra.mxu0 %v8757
    %12623 = vmatprep.subr.bf16.mxu0 %v8756
    %12624 = vmatpush2.bf16.msra.mxu0 %v8755
    %12625 = vmatprep.subr.bf16.mxu0 %v8754
    %12626 = vmatpush2.bf16.msra.mxu0 %v8753
    %12627 = vmatprep.subr.bf16.mxu0 %v8752
    %12628 = vmatpush2.bf16.msra.mxu0 %v8751
    %12629 = vmatprep.subr.bf16.mxu0 %v8750
    %12630 = vmatpush2.bf16.msra.mxu0 %v8749
    %12631 = vmatprep.subr.bf16.mxu0 %v8748
    %12632 = vmatpush2.bf16.msra.mxu0 %v8747
    %12633 = vmatprep.mubr.bf16.mxu0 %v320
    %12634 = vmatmul.mubr.bf16.gmra.mxu0 %v319
    %v12635 = vpop.f32.mrf.mxu0
    %v12636 = vadd.f32 %v12595, %v12635
    %v12637 = vpop.f32.mrf.mxu0
    %v12638 = vadd.f32 %v12597, %v12637
    %v12639 = vpop.f32.mrf.mxu0
    %v12640 = vpop.f32.mrf.mxu0
    %12641 = vdwg.mxu0
    %12642 = vmatprep.subr.bf16.mxu0 %v8778
    %12643 = vmatpush1.bf16.msra.mxu0 %v8777
    %12644 = vmatprep.subr.bf16.mxu0 %v8776
    %12645 = vmatpush1.bf16.msra.mxu0 %v8775
    %12646 = vmatprep.subr.bf16.mxu0 %v8774
    %12647 = vmatpush1.bf16.msra.mxu0 %v8773
    %12648 = vmatprep.subr.bf16.mxu0 %v8772
    %12649 = vmatpush1.bf16.msra.mxu0 %v8771
    %12650 = vmatprep.subr.bf16.mxu0 %v8770
    %12651 = vmatpush1.bf16.msra.mxu0 %v8769
    %12652 = vmatprep.subr.bf16.mxu0 %v8768
    %12653 = vmatpush1.bf16.msra.mxu0 %v8767
    %12654 = vmatprep.subr.bf16.mxu0 %v8766
    %12655 = vmatpush1.bf16.msra.mxu0 %v8765
    %12656 = vmatprep.subr.bf16.mxu0 %v8764
    %12657 = vmatpush1.bf16.msra.mxu0 %v8763
    %12658 = vmatprep.subr.bf16.mxu0 %v8794
    %12659 = vmatpush2.bf16.msra.mxu0 %v8793
    %12660 = vmatprep.subr.bf16.mxu0 %v8792
    %12661 = vmatpush2.bf16.msra.mxu0 %v8791
    %12662 = vmatprep.subr.bf16.mxu0 %v8790
    %12663 = vmatpush2.bf16.msra.mxu0 %v8789
    %12664 = vmatprep.subr.bf16.mxu0 %v8788
    %12665 = vmatpush2.bf16.msra.mxu0 %v8787
    %12666 = vmatprep.subr.bf16.mxu0 %v8786
    %12667 = vmatpush2.bf16.msra.mxu0 %v8785
    %12668 = vmatprep.subr.bf16.mxu0 %v8784
    %12669 = vmatpush2.bf16.msra.mxu0 %v8783
    %12670 = vmatprep.subr.bf16.mxu0 %v8782
    %12671 = vmatpush2.bf16.msra.mxu0 %v8781
    %12672 = vmatprep.subr.bf16.mxu0 %v8780
    %12673 = vmatpush2.bf16.msra.mxu0 %v8779
    %12674 = vmatprep.mubr.bf16.mxu0 %v322
    %12675 = vmatmul.mubr.bf16.gmra.mxu0 %v321
    %v12676 = vpop.f32.mrf.mxu0
    %v12677 = vadd.f32 %v12636, %v12676
    %v12678 = vpop.f32.mrf.mxu0
    %v12679 = vadd.f32 %v12638, %v12678
    %v12680 = vpop.f32.mrf.mxu0
    %v12681 = vpop.f32.mrf.mxu0
    %12682 = vdwg.mxu0
    %12683 = vmatprep.subr.bf16.mxu0 %v8810
    %12684 = vmatpush1.bf16.msra.mxu0 %v8809
    %12685 = vmatprep.subr.bf16.mxu0 %v8808
    %12686 = vmatpush1.bf16.msra.mxu0 %v8807
    %12687 = vmatprep.subr.bf16.mxu0 %v8806
    %12688 = vmatpush1.bf16.msra.mxu0 %v8805
    %12689 = vmatprep.subr.bf16.mxu0 %v8804
    %12690 = vmatpush1.bf16.msra.mxu0 %v8803
    %12691 = vmatprep.subr.bf16.mxu0 %v8802
    %12692 = vmatpush1.bf16.msra.mxu0 %v8801
    %12693 = vmatprep.subr.bf16.mxu0 %v8800
    %12694 = vmatpush1.bf16.msra.mxu0 %v8799
    %12695 = vmatprep.subr.bf16.mxu0 %v8798
    %12696 = vmatpush1.bf16.msra.mxu0 %v8797
    %12697 = vmatprep.subr.bf16.mxu0 %v8796
    %12698 = vmatpush1.bf16.msra.mxu0 %v8795
    %12699 = vmatprep.subr.bf16.mxu0 %v8826
    %12700 = vmatpush2.bf16.msra.mxu0 %v8825
    %12701 = vmatprep.subr.bf16.mxu0 %v8824
    %12702 = vmatpush2.bf16.msra.mxu0 %v8823
    %12703 = vmatprep.subr.bf16.mxu0 %v8822
    %12704 = vmatpush2.bf16.msra.mxu0 %v8821
    %12705 = vmatprep.subr.bf16.mxu0 %v8820
    %12706 = vmatpush2.bf16.msra.mxu0 %v8819
    %12707 = vmatprep.subr.bf16.mxu0 %v8818
    %12708 = vmatpush2.bf16.msra.mxu0 %v8817
    %12709 = vmatprep.subr.bf16.mxu0 %v8816
    %12710 = vmatpush2.bf16.msra.mxu0 %v8815
    %12711 = vmatprep.subr.bf16.mxu0 %v8814
    %12712 = vmatpush2.bf16.msra.mxu0 %v8813
    %12713 = vmatprep.subr.bf16.mxu0 %v8812
    %12714 = vmatpush2.bf16.msra.mxu0 %v8811
    %12715 = vmatprep.mubr.bf16.mxu0 %v324
    %12716 = vmatmul.mubr.bf16.gmra.mxu0 %v323
    %v12717 = vpop.f32.mrf.mxu0
    %v12718 = vadd.f32 %v12677, %v12717
    %v12719 = vpop.f32.mrf.mxu0
    %v12720 = vadd.f32 %v12679, %v12719
    %v12721 = vpop.f32.mrf.mxu0
    %v12722 = vpop.f32.mrf.mxu0
    %12723 = vdwg.mxu0
    %12724 = vmatprep.subr.bf16.mxu0 %v8842
    %12725 = vmatpush1.bf16.msra.mxu0 %v8841
    %12726 = vmatprep.subr.bf16.mxu0 %v8840
    %12727 = vmatpush1.bf16.msra.mxu0 %v8839
    %12728 = vmatprep.subr.bf16.mxu0 %v8838
    %12729 = vmatpush1.bf16.msra.mxu0 %v8837
    %12730 = vmatprep.subr.bf16.mxu0 %v8836
    %12731 = vmatpush1.bf16.msra.mxu0 %v8835
    %12732 = vmatprep.subr.bf16.mxu0 %v8834
    %12733 = vmatpush1.bf16.msra.mxu0 %v8833
    %12734 = vmatprep.subr.bf16.mxu0 %v8832
    %12735 = vmatpush1.bf16.msra.mxu0 %v8831
    %12736 = vmatprep.subr.bf16.mxu0 %v8830
    %12737 = vmatpush1.bf16.msra.mxu0 %v8829
    %12738 = vmatprep.subr.bf16.mxu0 %v8828
    %12739 = vmatpush1.bf16.msra.mxu0 %v8827
    %12740 = vmatprep.subr.bf16.mxu0 %v8858
    %12741 = vmatpush2.bf16.msra.mxu0 %v8857
    %12742 = vmatprep.subr.bf16.mxu0 %v8856
    %12743 = vmatpush2.bf16.msra.mxu0 %v8855
    %12744 = vmatprep.subr.bf16.mxu0 %v8854
    %12745 = vmatpush2.bf16.msra.mxu0 %v8853
    %12746 = vmatprep.subr.bf16.mxu0 %v8852
    %12747 = vmatpush2.bf16.msra.mxu0 %v8851
    %12748 = vmatprep.subr.bf16.mxu0 %v8850
    %12749 = vmatpush2.bf16.msra.mxu0 %v8849
    %12750 = vmatprep.subr.bf16.mxu0 %v8848
    %12751 = vmatpush2.bf16.msra.mxu0 %v8847
    %12752 = vmatprep.subr.bf16.mxu0 %v8846
    %12753 = vmatpush2.bf16.msra.mxu0 %v8845
    %12754 = vmatprep.subr.bf16.mxu0 %v8844
    %12755 = vmatpush2.bf16.msra.mxu0 %v8843
    %12756 = vmatprep.mubr.bf16.mxu0 %v326
    %12757 = vmatmul.mubr.bf16.gmra.mxu0 %v325
    %v12758 = vpop.f32.mrf.mxu0
    %v12759 = vadd.f32 %v12718, %v12758
    %v12760 = vpop.f32.mrf.mxu0
    %v12761 = vadd.f32 %v12720, %v12760
    %v12762 = vpop.f32.mrf.mxu0
    %v12763 = vpop.f32.mrf.mxu0
    %12764 = vdwg.mxu0
    %12765 = vmatprep.subr.bf16.mxu0 %v8874
    %12766 = vmatpush1.bf16.msra.mxu0 %v8873
    %12767 = vmatprep.subr.bf16.mxu0 %v8872
    %12768 = vmatpush1.bf16.msra.mxu0 %v8871
    %12769 = vmatprep.subr.bf16.mxu0 %v8870
    %12770 = vmatpush1.bf16.msra.mxu0 %v8869
    %12771 = vmatprep.subr.bf16.mxu0 %v8868
    %12772 = vmatpush1.bf16.msra.mxu0 %v8867
    %12773 = vmatprep.subr.bf16.mxu0 %v8866
    %12774 = vmatpush1.bf16.msra.mxu0 %v8865
    %12775 = vmatprep.subr.bf16.mxu0 %v8864
    %12776 = vmatpush1.bf16.msra.mxu0 %v8863
    %12777 = vmatprep.subr.bf16.mxu0 %v8862
    %12778 = vmatpush1.bf16.msra.mxu0 %v8861
    %12779 = vmatprep.subr.bf16.mxu0 %v8860
    %12780 = vmatpush1.bf16.msra.mxu0 %v8859
    %12781 = vmatprep.subr.bf16.mxu0 %v8890
    %12782 = vmatpush2.bf16.msra.mxu0 %v8889
    %12783 = vmatprep.subr.bf16.mxu0 %v8888
    %12784 = vmatpush2.bf16.msra.mxu0 %v8887
    %12785 = vmatprep.subr.bf16.mxu0 %v8886
    %12786 = vmatpush2.bf16.msra.mxu0 %v8885
    %12787 = vmatprep.subr.bf16.mxu0 %v8884
    %12788 = vmatpush2.bf16.msra.mxu0 %v8883
    %12789 = vmatprep.subr.bf16.mxu0 %v8882
    %12790 = vmatpush2.bf16.msra.mxu0 %v8881
    %12791 = vmatprep.subr.bf16.mxu0 %v8880
    %12792 = vmatpush2.bf16.msra.mxu0 %v8879
    %12793 = vmatprep.subr.bf16.mxu0 %v8878
    %12794 = vmatpush2.bf16.msra.mxu0 %v8877
    %12795 = vmatprep.subr.bf16.mxu0 %v8876
    %12796 = vmatpush2.bf16.msra.mxu0 %v8875
    %12797 = vmatprep.mubr.bf16.mxu0 %v328
    %12798 = vmatmul.mubr.bf16.gmra.mxu0 %v327
    %v12799 = vpop.f32.mrf.mxu0
    %v12800 = vadd.f32 %v12759, %v12799
    %v12801 = vpop.f32.mrf.mxu0
    %v12802 = vadd.f32 %v12761, %v12801
    %v12803 = vpop.f32.mrf.mxu0
    %v12804 = vpop.f32.mrf.mxu0
    %12805 = vdwg.mxu0
    %12806 = vmatprep.subr.bf16.mxu0 %v8906
    %12807 = vmatpush1.bf16.msra.mxu0 %v8905
    %12808 = vmatprep.subr.bf16.mxu0 %v8904
    %12809 = vmatpush1.bf16.msra.mxu0 %v8903
    %12810 = vmatprep.subr.bf16.mxu0 %v8902
    %12811 = vmatpush1.bf16.msra.mxu0 %v8901
    %12812 = vmatprep.subr.bf16.mxu0 %v8900
    %12813 = vmatpush1.bf16.msra.mxu0 %v8899
    %12814 = vmatprep.subr.bf16.mxu0 %v8898
    %12815 = vmatpush1.bf16.msra.mxu0 %v8897
    %12816 = vmatprep.subr.bf16.mxu0 %v8896
    %12817 = vmatpush1.bf16.msra.mxu0 %v8895
    %12818 = vmatprep.subr.bf16.mxu0 %v8894
    %12819 = vmatpush1.bf16.msra.mxu0 %v8893
    %12820 = vmatprep.subr.bf16.mxu0 %v8892
    %12821 = vmatpush1.bf16.msra.mxu0 %v8891
    %12822 = vmatprep.subr.bf16.mxu0 %v8922
    %12823 = vmatpush2.bf16.msra.mxu0 %v8921
    %12824 = vmatprep.subr.bf16.mxu0 %v8920
    %12825 = vmatpush2.bf16.msra.mxu0 %v8919
    %12826 = vmatprep.subr.bf16.mxu0 %v8918
    %12827 = vmatpush2.bf16.msra.mxu0 %v8917
    %12828 = vmatprep.subr.bf16.mxu0 %v8916
    %12829 = vmatpush2.bf16.msra.mxu0 %v8915
    %12830 = vmatprep.subr.bf16.mxu0 %v8914
    %12831 = vmatpush2.bf16.msra.mxu0 %v8913
    %12832 = vmatprep.subr.bf16.mxu0 %v8912
    %12833 = vmatpush2.bf16.msra.mxu0 %v8911
    %12834 = vmatprep.subr.bf16.mxu0 %v8910
    %12835 = vmatpush2.bf16.msra.mxu0 %v8909
    %12836 = vmatprep.subr.bf16.mxu0 %v8908
    %12837 = vmatpush2.bf16.msra.mxu0 %v8907
    %12838 = vmatprep.mubr.bf16.mxu0 %v330
    %12839 = vmatmul.mubr.bf16.gmra.mxu0 %v329
    %v12840 = vpop.f32.mrf.mxu0
    %v12841 = vadd.f32 %v12800, %v12840
    %v12842 = vpop.f32.mrf.mxu0
    %v12843 = vadd.f32 %v12802, %v12842
    %v12844 = vpop.f32.mrf.mxu0
    %v12845 = vpop.f32.mrf.mxu0
    %12846 = vdwg.mxu0
    %12847 = vmatprep.subr.bf16.mxu0 %v8938
    %12848 = vmatpush1.bf16.msra.mxu0 %v8937
    %12849 = vmatprep.subr.bf16.mxu0 %v8936
    %12850 = vmatpush1.bf16.msra.mxu0 %v8935
    %12851 = vmatprep.subr.bf16.mxu0 %v8934
    %12852 = vmatpush1.bf16.msra.mxu0 %v8933
    %12853 = vmatprep.subr.bf16.mxu0 %v8932
    %12854 = vmatpush1.bf16.msra.mxu0 %v8931
    %12855 = vmatprep.subr.bf16.mxu0 %v8930
    %12856 = vmatpush1.bf16.msra.mxu0 %v8929
    %12857 = vmatprep.subr.bf16.mxu0 %v8928
    %12858 = vmatpush1.bf16.msra.mxu0 %v8927
    %12859 = vmatprep.subr.bf16.mxu0 %v8926
    %12860 = vmatpush1.bf16.msra.mxu0 %v8925
    %12861 = vmatprep.subr.bf16.mxu0 %v8924
    %12862 = vmatpush1.bf16.msra.mxu0 %v8923
    %12863 = vmatprep.subr.bf16.mxu0 %v8954
    %12864 = vmatpush2.bf16.msra.mxu0 %v8953
    %12865 = vmatprep.subr.bf16.mxu0 %v8952
    %12866 = vmatpush2.bf16.msra.mxu0 %v8951
    %12867 = vmatprep.subr.bf16.mxu0 %v8950
    %12868 = vmatpush2.bf16.msra.mxu0 %v8949
    %12869 = vmatprep.subr.bf16.mxu0 %v8948
    %12870 = vmatpush2.bf16.msra.mxu0 %v8947
    %12871 = vmatprep.subr.bf16.mxu0 %v8946
    %12872 = vmatpush2.bf16.msra.mxu0 %v8945
    %12873 = vmatprep.subr.bf16.mxu0 %v8944
    %12874 = vmatpush2.bf16.msra.mxu0 %v8943
    %12875 = vmatprep.subr.bf16.mxu0 %v8942
    %12876 = vmatpush2.bf16.msra.mxu0 %v8941
    %12877 = vmatprep.subr.bf16.mxu0 %v8940
    %12878 = vmatpush2.bf16.msra.mxu0 %v8939
    %12879 = vmatprep.mubr.bf16.mxu0 %v332
    %12880 = vmatmul.mubr.bf16.gmra.mxu0 %v331
    %v12881 = vpop.f32.mrf.mxu0
    %v12882 = vadd.f32 %v12841, %v12881
    %v12883 = vpop.f32.mrf.mxu0
    %v12884 = vadd.f32 %v12843, %v12883
    %v12885 = vpop.f32.mrf.mxu0
    %v12886 = vpop.f32.mrf.mxu0
    %12887 = vdwg.mxu0
    %12888 = vmatprep.subr.bf16.mxu0 %v8970
    %12889 = vmatpush1.bf16.msra.mxu0 %v8969
    %12890 = vmatprep.subr.bf16.mxu0 %v8968
    %12891 = vmatpush1.bf16.msra.mxu0 %v8967
    %12892 = vmatprep.subr.bf16.mxu0 %v8966
    %12893 = vmatpush1.bf16.msra.mxu0 %v8965
    %12894 = vmatprep.subr.bf16.mxu0 %v8964
    %12895 = vmatpush1.bf16.msra.mxu0 %v8963
    %12896 = vmatprep.subr.bf16.mxu0 %v8962
    %12897 = vmatpush1.bf16.msra.mxu0 %v8961
    %12898 = vmatprep.subr.bf16.mxu0 %v8960
    %12899 = vmatpush1.bf16.msra.mxu0 %v8959
    %12900 = vmatprep.subr.bf16.mxu0 %v8958
    %12901 = vmatpush1.bf16.msra.mxu0 %v8957
    %12902 = vmatprep.subr.bf16.mxu0 %v8956
    %12903 = vmatpush1.bf16.msra.mxu0 %v8955
    %12904 = vmatprep.subr.bf16.mxu0 %v8986
    %12905 = vmatpush2.bf16.msra.mxu0 %v8985
    %12906 = vmatprep.subr.bf16.mxu0 %v8984
    %12907 = vmatpush2.bf16.msra.mxu0 %v8983
    %12908 = vmatprep.subr.bf16.mxu0 %v8982
    %12909 = vmatpush2.bf16.msra.mxu0 %v8981
    %12910 = vmatprep.subr.bf16.mxu0 %v8980
    %12911 = vmatpush2.bf16.msra.mxu0 %v8979
    %12912 = vmatprep.subr.bf16.mxu0 %v8978
    %12913 = vmatpush2.bf16.msra.mxu0 %v8977
    %12914 = vmatprep.subr.bf16.mxu0 %v8976
    %12915 = vmatpush2.bf16.msra.mxu0 %v8975
    %12916 = vmatprep.subr.bf16.mxu0 %v8974
    %12917 = vmatpush2.bf16.msra.mxu0 %v8973
    %12918 = vmatprep.subr.bf16.mxu0 %v8972
    %12919 = vmatpush2.bf16.msra.mxu0 %v8971
    %12920 = vmatprep.mubr.bf16.mxu0 %v334
    %12921 = vmatmul.mubr.bf16.gmra.mxu0 %v333
    %v12922 = vpop.f32.mrf.mxu0
    %v12923 = vadd.f32 %v12882, %v12922
    %v12924 = vpop.f32.mrf.mxu0
    %v12925 = vadd.f32 %v12884, %v12924
    %v12926 = vpop.f32.mrf.mxu0
    %v12927 = vpop.f32.mrf.mxu0
    %12928 = vdwg.mxu0
    %v12929 = vmax.f32 %v12923, 0.0
    %v12930 = vmax.f32 %v12925, 0.0
    %v12931 = vpack.c.bf16 %v12929, %v12929
    %v12932 = vpack.c.bf16 %v12930, %v12930
    %v12933 = vld [vmem:[#allocation8] sm:$0xf]
    %v12934 = vld [vmem:[#allocation8 + $0x4] sm:$0xf]
    %v12935 = vld [vmem:[#allocation8 + $0x8] sm:$0xf]
    %v12936 = vld [vmem:[#allocation8 + $0xc] sm:$0xf]
    %v12937 = vld [vmem:[#allocation8 + $0x10] sm:$0xf]
    %v12938 = vld [vmem:[#allocation8 + $0x14] sm:$0xf]
    %v12939 = vld [vmem:[#allocation8 + $0x18] sm:$0xf]
    %v12940 = vld [vmem:[#allocation8 + $0x1c] sm:$0xf]
    %v12941 = vld [vmem:[#allocation8 + $0x20] sm:$0xf]
    %v12942 = vld [vmem:[#allocation8 + $0x24] sm:$0xf]
    %v12943 = vld [vmem:[#allocation8 + $0x28] sm:$0xf]
    %v12944 = vld [vmem:[#allocation8 + $0x2c] sm:$0xf]
    %v12945 = vld [vmem:[#allocation8 + $0x30] sm:$0xf]
    %v12946 = vld [vmem:[#allocation8 + $0x34] sm:$0xf]
    %v12947 = vld [vmem:[#allocation8 + $0x38] sm:$0xf]
    %v12948 = vld [vmem:[#allocation8 + $0x3c] sm:$0xf]
    %v12949 = vld [vmem:[#allocation8 + $0x40] sm:$0xf]
    %v12950 = vld [vmem:[#allocation8 + $0x44] sm:$0xf]
    %v12951 = vld [vmem:[#allocation8 + $0x48] sm:$0xf]
    %v12952 = vld [vmem:[#allocation8 + $0x4c] sm:$0xf]
    %v12953 = vld [vmem:[#allocation8 + $0x50] sm:$0xf]
    %v12954 = vld [vmem:[#allocation8 + $0x54] sm:$0xf]
    %v12955 = vld [vmem:[#allocation8 + $0x58] sm:$0xf]
    %v12956 = vld [vmem:[#allocation8 + $0x5c] sm:$0xf]
    %v12957 = vld [vmem:[#allocation8 + $0x60] sm:$0xf]
    %v12958 = vld [vmem:[#allocation8 + $0x64] sm:$0xf]
    %v12959 = vld [vmem:[#allocation8 + $0x68] sm:$0xf]
    %v12960 = vld [vmem:[#allocation8 + $0x6c] sm:$0xf]
    %v12961 = vld [vmem:[#allocation8 + $0x70] sm:$0xf]
    %v12962 = vld [vmem:[#allocation8 + $0x74] sm:$0xf]
    %v12963 = vld [vmem:[#allocation8 + $0x78] sm:$0xf]
    %v12964 = vld [vmem:[#allocation8 + $0x7c] sm:$0xf]
    %v12965 = vld [vmem:[#allocation10] sm:$0x1]
    %v12967 = vlaneseq
    %v12968 = vshrl.u32 %v12967, 7
    %v12969 = vsub.s32 0, %v12968
    %v12970 = vrot.slane %v12965, %v12969
    %v13004 = vunpack.c.l.b16 %v12933
    %v13005 = vunpack.c.l.b16 %v12934
    %v13006 = vunpack.c.l.b16 %v12935
    %v13007 = vunpack.c.l.b16 %v12936
    %v13008 = vunpack.c.l.b16 %v12937
    %v13009 = vunpack.c.l.b16 %v12938
    %v13010 = vunpack.c.l.b16 %v12939
    %v13011 = vunpack.c.l.b16 %v12940
    %v13012 = vunpack.c.l.b16 %v12941
    %v13013 = vunpack.c.l.b16 %v12942
    %v13014 = vunpack.c.l.b16 %v12943
    %v13015 = vunpack.c.l.b16 %v12944
    %v13016 = vunpack.c.l.b16 %v12945
    %v13017 = vunpack.c.l.b16 %v12946
    %v13018 = vunpack.c.l.b16 %v12947
    %v13019 = vunpack.c.l.b16 %v12948
    %v13020 = vunpack.c.l.b16 %v12949
    %v13021 = vunpack.c.l.b16 %v12950
    %v13022 = vunpack.c.l.b16 %v12951
    %v13023 = vunpack.c.l.b16 %v12952
    %v13024 = vunpack.c.l.b16 %v12953
    %v13025 = vunpack.c.l.b16 %v12954
    %v13026 = vunpack.c.l.b16 %v12955
    %v13027 = vunpack.c.l.b16 %v12956
    %v13028 = vunpack.c.l.b16 %v12957
    %v13029 = vunpack.c.l.b16 %v12958
    %v13030 = vunpack.c.l.b16 %v12959
    %v13031 = vunpack.c.l.b16 %v12960
    %v13032 = vunpack.c.l.b16 %v12961
    %v13033 = vunpack.c.l.b16 %v12962
    %v13034 = vunpack.c.l.b16 %v12963
    %v13035 = vunpack.c.l.b16 %v12964
    %v13036 = vpack.c.b16 %v13005, %v13004
    %v13037 = vpack.c.b16 %v13007, %v13006
    %v13038 = vpack.c.b16 %v13009, %v13008
    %v13039 = vpack.c.b16 %v13011, %v13010
    %v13040 = vpack.c.b16 %v13013, %v13012
    %v13041 = vpack.c.b16 %v13015, %v13014
    %v13042 = vpack.c.b16 %v13017, %v13016
    %v13043 = vpack.c.b16 %v13019, %v13018
    %v13044 = vpack.c.b16 %v13021, %v13020
    %v13045 = vpack.c.b16 %v13023, %v13022
    %v13046 = vpack.c.b16 %v13025, %v13024
    %v13047 = vpack.c.b16 %v13027, %v13026
    %v13048 = vpack.c.b16 %v13029, %v13028
    %v13049 = vpack.c.b16 %v13031, %v13030
    %v13050 = vpack.c.b16 %v13033, %v13032
    %v13051 = vpack.c.b16 %v13035, %v13034
    %13068 = vmatprep.subr.bf16.mxu0 0
    %13069 = vmatpush1.bf16.msra.mxu0 %v13043
    %13070 = vmatprep.subr.bf16.mxu0 0
    %13071 = vmatpush1.bf16.msra.mxu0 %v13042
    %13072 = vmatprep.subr.bf16.mxu0 0
    %13073 = vmatpush1.bf16.msra.mxu0 %v13041
    %13074 = vmatprep.subr.bf16.mxu0 0
    %13075 = vmatpush1.bf16.msra.mxu0 %v13040
    %13076 = vmatprep.subr.bf16.mxu0 0
    %13077 = vmatpush1.bf16.msra.mxu0 %v13039
    %13078 = vmatprep.subr.bf16.mxu0 0
    %13079 = vmatpush1.bf16.msra.mxu0 %v13038
    %13080 = vmatprep.subr.bf16.mxu0 0
    %13081 = vmatpush1.bf16.msra.mxu0 %v13037
    %13082 = vmatprep.subr.bf16.mxu0 0
    %13083 = vmatpush1.bf16.msra.mxu0 %v13036
    %13084 = vmatprep.subr.bf16.mxu0 0
    %13085 = vmatpush2.bf16.msra.mxu0 %v13051
    %13086 = vmatprep.subr.bf16.mxu0 0
    %13087 = vmatpush2.bf16.msra.mxu0 %v13050
    %13088 = vmatprep.subr.bf16.mxu0 0
    %13089 = vmatpush2.bf16.msra.mxu0 %v13049
    %13090 = vmatprep.subr.bf16.mxu0 0
    %13091 = vmatpush2.bf16.msra.mxu0 %v13048
    %13092 = vmatprep.subr.bf16.mxu0 0
    %13093 = vmatpush2.bf16.msra.mxu0 %v13047
    %13094 = vmatprep.subr.bf16.mxu0 0
    %13095 = vmatpush2.bf16.msra.mxu0 %v13046
    %13096 = vmatprep.subr.bf16.mxu0 0
    %13097 = vmatpush2.bf16.msra.mxu0 %v13045
    %13098 = vmatprep.subr.bf16.mxu0 0
    %13099 = vmatpush2.bf16.msra.mxu0 %v13044
    %13100 = vmatprep.mubr.bf16.mxu0 %v12932
    %13101 = vmatmul.mubr.bf16.gmra.mxu0 %v12931
    %v13102 = vpop.f32.mrf.mxu0
    %v13103 = vadd.f32 %v12970, %v13102
    %v13104 = vpop.f32.mrf.mxu0
    %v13105 = vpop.f32.mrf.mxu0
    %v13106 = vpop.f32.mrf.mxu0
    %13107 = vdwg.mxu0
    %v13108 = vmax.f32 %v13103, 0.0
    %v13109 = vpack.c.bf16 %v13108, %v13108
    %v13110 = vld [vmem:[%s5] sm:$0xf]
    %v13111 = vld [vmem:[%s5 + $0x4] sm:$0xf]
    %v13112 = vld [vmem:[%s5 + $0x8] sm:$0xf]
    %v13113 = vld [vmem:[%s5 + $0xc] sm:$0xf]
    %v13114 = vld [vmem:[%s5 + $0x10] sm:$0xf]
    %v13115 = vld [vmem:[%s5 + $0x14] sm:$0xf]
    %v13116 = vld [vmem:[%s5 + $0x18] sm:$0xf]
    %v13117 = vld [vmem:[%s5 + $0x1c] sm:$0xf]
    %v13118 = vld [vmem:[%s5 + $0x20] sm:$0xf]
    %v13119 = vld [vmem:[%s5 + $0x24] sm:$0xf]
    %v13120 = vld [vmem:[%s5 + $0x28] sm:$0xf]
    %v13121 = vld [vmem:[%s5 + $0x2c] sm:$0xf]
    %v13122 = vld [vmem:[%s5 + $0x30] sm:$0xf]
    %v13123 = vld [vmem:[%s5 + $0x34] sm:$0xf]
    %v13124 = vld [vmem:[%s5 + $0x38] sm:$0xf]
    %v13125 = vld [vmem:[%s5 + $0x3c] sm:$0xf]
    %v13126 = vld [vmem:[#allocation11] sm:$0x1]
    %v13128 = vlaneseq
    %v13129 = vshrl.u32 %v13128, 7
    %v13130 = vsub.s32 0, %v13129
    %v13131 = vrot.slane %v13126, %v13130
    %v13149 = vunpack.c.l.b16 %v13110
    %v13150 = vunpack.c.l.b16 %v13111
    %v13151 = vunpack.c.l.b16 %v13112
    %v13152 = vunpack.c.l.b16 %v13113
    %v13153 = vunpack.c.l.b16 %v13114
    %v13154 = vunpack.c.l.b16 %v13115
    %v13155 = vunpack.c.l.b16 %v13116
    %v13156 = vunpack.c.l.b16 %v13117
    %v13157 = vunpack.c.l.b16 %v13118
    %v13158 = vunpack.c.l.b16 %v13119
    %v13159 = vunpack.c.l.b16 %v13120
    %v13160 = vunpack.c.l.b16 %v13121
    %v13161 = vunpack.c.l.b16 %v13122
    %v13162 = vunpack.c.l.b16 %v13123
    %v13163 = vunpack.c.l.b16 %v13124
    %v13164 = vunpack.c.l.b16 %v13125
    %v13165 = vpack.c.b16 %v13150, %v13149
    %v13166 = vpack.c.b16 %v13152, %v13151
    %v13167 = vpack.c.b16 %v13154, %v13153
    %v13168 = vpack.c.b16 %v13156, %v13155
    %v13169 = vpack.c.b16 %v13158, %v13157
    %v13170 = vpack.c.b16 %v13160, %v13159
    %v13171 = vpack.c.b16 %v13162, %v13161
    %v13172 = vpack.c.b16 %v13164, %v13163
    %13181 = vmatprep.subr.bf16.mxu0 0
    %13182 = vmatpush1.bf16.msra.mxu0 %v13172
    %13183 = vmatprep.subr.bf16.mxu0 0
    %13184 = vmatpush1.bf16.msra.mxu0 %v13171
    %13185 = vmatprep.subr.bf16.mxu0 0
    %13186 = vmatpush1.bf16.msra.mxu0 %v13170
    %13187 = vmatprep.subr.bf16.mxu0 0
    %13188 = vmatpush1.bf16.msra.mxu0 %v13169
    %13189 = vmatprep.subr.bf16.mxu0 0
    %13190 = vmatpush1.bf16.msra.mxu0 %v13168
    %13191 = vmatprep.subr.bf16.mxu0 0
    %13192 = vmatpush1.bf16.msra.mxu0 %v13167
    %13193 = vmatprep.subr.bf16.mxu0 0
    %13194 = vmatpush1.bf16.msra.mxu0 %v13166
    %13195 = vmatprep.subr.bf16.mxu0 0
    %13196 = vmatpush1.bf16.msra.mxu0 %v13165
    %13197 = vmatprep.subr.bf16.mxu0 0
    %13198 = vmatpush2.bf16.msra.mxu0 0
    %13199 = vmatprep.subr.bf16.mxu0 0
    %13200 = vmatpush2.bf16.msra.mxu0 0
    %13201 = vmatprep.subr.bf16.mxu0 0
    %13202 = vmatpush2.bf16.msra.mxu0 0
    %13203 = vmatprep.subr.bf16.mxu0 0
    %13204 = vmatpush2.bf16.msra.mxu0 0
    %13205 = vmatprep.subr.bf16.mxu0 0
    %13206 = vmatpush2.bf16.msra.mxu0 0
    %13207 = vmatprep.subr.bf16.mxu0 0
    %13208 = vmatpush2.bf16.msra.mxu0 0
    %13209 = vmatprep.subr.bf16.mxu0 0
    %13210 = vmatpush2.bf16.msra.mxu0 0
    %13211 = vmatprep.subr.bf16.mxu0 0
    %13212 = vmatpush2.bf16.msra.mxu0 0
    %13213 = vmatprep.mubr.bf16.mxu0 0
    %13214 = vmatmul.mubr.bf16.gmra.mxu0 %v13109
    %v13215 = vpop.f32.mrf.mxu0
    %v13216 = vadd.f32 %v13131, %v13215
    %v13217 = vpop.f32.mrf.mxu0
    %v13218 = vpop.f32.mrf.mxu0
    %v13219 = vpop.f32.mrf.mxu0
    %13220 = vdwg.mxu0
    %v13221 = vmax.f32 %v13216, 0.0
    %v13222 = vpack.c.bf16 %v13221, %v13221
    %v13223 = vld [vmem:[%s7] sm:$0xf]
    %v13224 = vld [vmem:[%s7 + $0x4] sm:$0xf]
    %v13225 = vld [vmem:[%s7 + $0x8] sm:$0xf]
    %v13226 = vld [vmem:[%s7 + $0xc] sm:$0xf]
    %v13227 = vld [vmem:[%s7 + $0x10] sm:$0xf]
    %v13228 = vld [vmem:[%s7 + $0x14] sm:$0xf]
    %v13229 = vld [vmem:[%s7 + $0x18] sm:$0xf]
    %v13230 = vld [vmem:[%s7 + $0x1c] sm:$0xf]
    %v13231 = vld [vmem:[#allocation13] sm:$0x1]
    %v13233 = vlaneseq
    %v13234 = vshrl.u32 %v13233, 7
    %v13235 = vsub.s32 0, %v13234
    %v13236 = vrot.slane %v13231, %v13235
    %v13246 = vunpack.c.l.b16 %v13223
    %v13247 = vunpack.c.l.b16 %v13224
    %v13248 = vunpack.c.l.b16 %v13225
    %v13249 = vunpack.c.l.b16 %v13226
    %v13250 = vunpack.c.l.b16 %v13227
    %v13251 = vunpack.c.l.b16 %v13228
    %v13252 = vunpack.c.l.b16 %v13229
    %v13253 = vunpack.c.l.b16 %v13230
    %v13254 = vpack.c.b16 %v13247, %v13246
    %v13255 = vpack.c.b16 %v13249, %v13248
    %v13256 = vpack.c.b16 %v13251, %v13250
    %v13257 = vpack.c.b16 %v13253, %v13252
    %vm13262 = vcmask 523264
    %v13264 = vsel %vm13262, %v13222, 0
    %13266 = vmatprep.subr.bf16.mxu0 0
    %13267 = vmatpush1.bf16.msra.mxu0 0
    %13268 = vmatprep.subr.bf16.mxu0 0
    %13269 = vmatpush1.bf16.msra.mxu0 0
    %13270 = vmatprep.subr.bf16.mxu0 0
    %13271 = vmatpush1.bf16.msra.mxu0 0
    %13272 = vmatprep.subr.bf16.mxu0 0
    %13273 = vmatpush1.bf16.msra.mxu0 0
    %13274 = vmatprep.subr.bf16.mxu0 0
    %13275 = vmatpush1.bf16.msra.mxu0 %v13257
    %13276 = vmatprep.subr.bf16.mxu0 0
    %13277 = vmatpush1.bf16.msra.mxu0 %v13256
    %13278 = vmatprep.subr.bf16.mxu0 0
    %13279 = vmatpush1.bf16.msra.mxu0 %v13255
    %13280 = vmatprep.subr.bf16.mxu0 0
    %13281 = vmatpush1.bf16.msra.mxu0 %v13254
    %13282 = vmatprep.subr.bf16.mxu0 0
    %13283 = vmatpush2.bf16.msra.mxu0 0
    %13284 = vmatprep.subr.bf16.mxu0 0
    %13285 = vmatpush2.bf16.msra.mxu0 0
    %13286 = vmatprep.subr.bf16.mxu0 0
    %13287 = vmatpush2.bf16.msra.mxu0 0
    %13288 = vmatprep.subr.bf16.mxu0 0
    %13289 = vmatpush2.bf16.msra.mxu0 0
    %13290 = vmatprep.subr.bf16.mxu0 0
    %13291 = vmatpush2.bf16.msra.mxu0 0
    %13292 = vmatprep.subr.bf16.mxu0 0
    %13293 = vmatpush2.bf16.msra.mxu0 0
    %13294 = vmatprep.subr.bf16.mxu0 0
    %13295 = vmatpush2.bf16.msra.mxu0 0
    %13296 = vmatprep.subr.bf16.mxu0 0
    %13297 = vmatpush2.bf16.msra.mxu0 0
    %13298 = vmatprep.mubr.bf16.mxu0 0
    %13299 = vmatmul.mubr.bf16.gmra.mxu0 %v13264
    %v13300 = vpop.f32.mrf.mxu0
    %v13301 = vadd.f32 %v13236, %v13300
    %v13302 = vpop.f32.mrf.mxu0
    %v13303 = vpop.f32.mrf.mxu0
    %v13304 = vpop.f32.mrf.mxu0
    %13305 = vdwg.mxu0
    %vm13306 = vcmask 334848
    %13307 = vst.msk [vmem:[#allocation14] sm:$0xff] %vm13306, %v13301
    // Predicated region
    $region66: #{tpu_custom_call.1} parent=1 // pred_check
      _
    $region67: #{tpu_custom_call.1} parent=1 // pred_check_branch
      %13309 = sbr.rel (0) target = $region69
    $region68: #{tpu_custom_call.1} parent=1 // pred_region
      %s13311 = ssub.s32 128, 128
      %13312 = vsyncadd [#allocation4], %s13311
      %s13314 = sshll.u32 [#allocation14], 4
      %s13315 = int_to_ptr.vmem [resolvable:$true] %s13314
      %13317 = dma.vmem_to_hbm [thread:$0]  %s13315, 128, %s9, [#allocation4]
    $region69: #{tpu_custom_call.1} parent=1 // pred_fallthru
      _
    // Predicated region
    $region70: #{tpu_custom_call.1} parent=1 // pred_check
      _
    $region71: #{tpu_custom_call.1} parent=1 // pred_check_branch
      %13319 = sbr.rel (0) target = $region73
    $region72: #{tpu_custom_call.1} parent=1 // pred_region
      %13320 = dma.done [#allocation4], 128
    $region73: #{tpu_custom_call.1} parent=1 // pred_fallthru
      _
    %13321 = vsyncpa [#allocation3], 1
    %13322 = vsyncpa [#allocation6], 1
    %13323 = vsyncpa [#allocation9], 1
    %13324 = vsyncpa [#allocation12], 1
    %13325 = vsyncpa [#allocation4], 1

</llo_original>
